<compile_context>
chip_gen: v7x
topology: tpu7x:2x2x1
jax: 0.10.0
libtpu: 0.0.40
codegen_flags: <defaults>
</compile_context>

<pallas_src>
import functools

import numpy as np
import jax
import jax.numpy as jnp
from jax.experimental import pallas as pl
from jax.experimental.pallas import tpu as pltpu

CONV_K = 10      # Conv1d kernel_size
CONV_S = 2       # Conv1d stride
CONV_COUT = 16   # Conv1d out_channels
FC1_IN = 1968    # hard-coded in the PyTorch module -> forces L = 500
FC1_OUT = 600
BN_EPS = 1e-5
LRELU_SLOPE = 0.2


# ---------------------------------------------------------------------------
# Fused Pallas kernel: conv+BN+LeakyReLU+MaxPool+flatten+fc1+LeakyReLU+fc2
# ---------------------------------------------------------------------------
def _discriminator_kernel(pe_ref, po_ref, cw_ref, cb_ref, w1_hbm_ref, b1_ref,
                          w2_ref, b2_ref, o_ref, w1_vmem, xf_scr, w1_sem,
                          *, alpha, batch, lp, cout):
    # pe_ref/po_ref: (K*Cin, B*Lp) im2col patches for the even / odd conv
    #                positions of each MaxPool1d(2) window
    # cw_ref: (Cout, K*Cin) conv weight with eval-mode BN scale folded in
    # cb_ref: (Cout, 1)     conv bias + BN shift folded together
    # w1_hbm_ref: (1968, 600) bf16 fc1 weight, left in HBM (pl.ANY)
    # b1_ref: (1, 600), w2_ref: (1, 600), b2_ref: (1, 1)
    # o_ref: (B, 1)
    # w1_vmem: (1968, 600) bf16 scratch, xf_scr: (B, 1968) f32 scratch

    # 1) Kick off the fc1-weight DMA so it overlaps the conv stage.
    w1_copy = pltpu.make_async_copy(w1_hbm_ref, w1_vmem, w1_sem)
    w1_copy.start()

    # 2) Conv1d + folded BN as one im2col GEMM per pooling phase
    #    (batch folded into the GEMM N dim -> lane dim = B*Lp).
    cw = cw_ref[...]
    he = jnp.dot(cw, pe_ref[...], preferred_element_type=jnp.float32)  # (Cout, B*Lp)
    ho = jnp.dot(cw, po_ref[...], preferred_element_type=jnp.float32)
    # MaxPool1d(2), then bias/BN shift (identical for both phases), then
    # LeakyReLU(0.2).  LeakyReLU is monotonic, so this equals the PyTorch
    # order (LeakyReLU before MaxPool).
    p = jnp.maximum(he, ho) + cb_ref[...]
    p = jnp.maximum(p, alpha * p)

    # 3) Flatten to PyTorch channel-major order, entirely in VMEM:
    #    x_flat[b, co*Lp + t] = p[co, b*Lp + t]
    for b in range(batch):
        row = jnp.concatenate(
            [p[co:co + 1, b * lp:(b + 1) * lp] for co in range(cout)], axis=1)
        xf_scr[b:b + 1, :] = row                                        # (1, 1968)

    # 4) Dense layers. fc1 weights arrive as bf16 (halves the dominant HBM
    #    stream); MXU accumulates in f32, epilogue math stays f32.
    w1_copy.wait()
    h = jnp.dot(xf_scr[...].astype(jnp.bfloat16), w1_vmem[...],
                preferred_element_type=jnp.float32) + b1_ref[...]       # (B, 600)
    h = jnp.maximum(h, alpha * h)                                       # LeakyReLU(0.2)
    # fc2 (600 -> 1) as multiply + lane reduction (avoids a degenerate N=1 matmul).
    o_ref[...] = (jnp.sum(h * w2_ref[...], axis=1, keepdims=True)
                  + b2_ref[...]).astype(o_ref.dtype)


# ---------------------------------------------------------------------------
# Parameters (PyTorch layouts, deterministic synthetic init) + kernel packing
# ---------------------------------------------------------------------------
def init_params(key, chn_num):
    ks = jax.random.split(key, 10)
    p = {}
    # nn.Conv1d(chn_num, 16, 10, stride=2)
    p["conv_w"] = jax.random.normal(ks[0], (CONV_COUT, chn_num, CONV_K),
                                    jnp.float32) / float(np.sqrt(chn_num * CONV_K))
    p["conv_b"] = jax.random.normal(ks[1], (CONV_COUT,), jnp.float32) * 0.01
    # nn.BatchNorm1d(16) -- eval-mode statistics
    p["bn_gamma"] = 1.0 + 0.1 * jax.random.normal(ks[2], (CONV_COUT,), jnp.float32)
    p["bn_beta"] = 0.01 * jax.random.normal(ks[3], (CONV_COUT,), jnp.float32)
    p["bn_mean"] = 0.1 * jax.random.normal(ks[4], (CONV_COUT,), jnp.float32)
    p["bn_var"] = 1.0 + 0.1 * jnp.abs(jax.random.normal(ks[5], (CONV_COUT,), jnp.float32))
    # nn.Linear(1968, 600) / nn.Linear(600, 1)  (PyTorch (out, in) layout)
    p["fc1_w"] = jax.random.normal(ks[6], (FC1_OUT, FC1_IN), jnp.float32) / float(np.sqrt(FC1_IN))
    p["fc1_b"] = jax.random.normal(ks[7], (FC1_OUT,), jnp.float32) * 0.01
    p["fc2_w"] = jax.random.normal(ks[8], (1, FC1_OUT), jnp.float32) / float(np.sqrt(FC1_OUT))
    p["fc2_b"] = jax.random.normal(ks[9], (1,), jnp.float32) * 0.01
    return p


def pack_params(p):
    """One-time conversion of PyTorch-layout params to kernel layouts."""
    Cout, Cin, K = p["conv_w"].shape
    scale = p["bn_gamma"] / jnp.sqrt(p["bn_var"] + BN_EPS)                  # (Cout,)
    # im2col weight: cw[co, k*Cin + c] = conv_w[co, c, k], BN scale folded in.
    cw = jnp.transpose(p["conv_w"], (0, 2, 1)).reshape(Cout, K * Cin) * scale[:, None]
    cb = (scale * (p["conv_b"] - p["bn_mean"]) + p["bn_beta"]).reshape(Cout, 1)
    return {
        "conv_w": cw.astype(jnp.float32),
        "conv_b": cb.astype(jnp.float32),
        # Kernel flatten order == PyTorch channel-major flatten -> plain transpose.
        # Stored bf16: halves the dominant HBM stream (accumulation stays f32).
        "fc1_w": p["fc1_w"].T.astype(jnp.bfloat16),                         # (1968, 600)
        "fc1_b": p["fc1_b"].reshape(1, FC1_OUT).astype(jnp.float32),
        "fc2_w": p["fc2_w"].astype(jnp.float32),                            # (1, 600)
        "fc2_b": p["fc2_b"].reshape(1, 1).astype(jnp.float32),
    }


# ---------------------------------------------------------------------------
# Forward pass: thin im2col glue + one fused pallas_call
# ---------------------------------------------------------------------------
def discriminator_forward(packed, x, *, alpha=LRELU_SLOPE):
    B, Cin, L = x.shape
    K, S = CONV_K, CONV_S
    Lc = (L - K) // S + 1              # conv output length (246 for L=500)
    Lp = Lc // 2                       # after MaxPool1d(2) (123)
    Cout = CONV_COUT
    Q = K * Cin
    assert Lp * Cout == FC1_IN, "input length inconsistent with Linear(1968, 600)"

    # im2col patches, laid out (K*Cin, B*Lp) per pooling phase so the conv GEMM
    # is lane-dense (N = B*Lp) and batch is folded into the GEMM.
    taps = [x[:, :, k: k + S * (Lc - 1) + 1: S] for k in range(K)]          # (B, Cin, Lc)
    tap_all = jnp.stack(taps, axis=1).reshape(B, Q, Lc)[:, :, :2 * Lp]      # q = k*Cin + c
    pe = jnp.transpose(tap_all[:, :, 0::2], (1, 0, 2)).reshape(Q, B * Lp)   # conv pos 2t
    po = jnp.transpose(tap_all[:, :, 1::2], (1, 0, 2)).reshape(Q, B * Lp)   # conv pos 2t+1

    kernel = functools.partial(_discriminator_kernel, alpha=alpha,
                               batch=B, lp=Lp, cout=Cout)
    return pl.pallas_call(
        kernel,
        out_shape=jax.ShapeDtypeStruct((B, 1), jnp.float32),
        grid=(1,),
        in_specs=[
            pl.BlockSpec((Q, B * Lp), lambda i: (0, 0)),        # pe
            pl.BlockSpec((Q, B * Lp), lambda i: (0, 0)),        # po
            pl.BlockSpec((Cout, Q), lambda i: (0, 0)),          # conv_w (BN folded)
            pl.BlockSpec((Cout, 1), lambda i: (0, 0)),          # conv_b (BN folded)
            pl.BlockSpec(memory_space=pl.ANY),                  # fc1_w stays in HBM
            pl.BlockSpec((1, FC1_OUT), lambda i: (0, 0)),       # fc1_b
            pl.BlockSpec((1, FC1_OUT), lambda i: (0, 0)),       # fc2_w
            pl.BlockSpec((1, 1), lambda i: (0, 0)),             # fc2_b
        ],
        out_specs=pl.BlockSpec((B, 1), lambda i: (0, 0)),
        scratch_shapes=[
            pltpu.VMEM((FC1_IN, FC1_OUT), jnp.bfloat16),        # fc1_w landing buffer
            pltpu.VMEM((B, FC1_IN), jnp.float32),               # flattened features
            pltpu.SemaphoreType.DMA(()),                        # fc1_w DMA semaphore
        ],
        compiler_params=pltpu.CompilerParams(
            dimension_semantics=("arbitrary",),
            vmem_limit_bytes=16 * 1024 * 1024,
        ),
    )(pe, po, packed["conv_w"], packed["conv_b"], packed["fc1_w"],
      packed["fc1_b"], packed["fc2_w"], packed["fc2_b"])


# ---------------------------------------------------------------------------
# NumPy reference (float64, PyTorch semantics) for a correctness sanity check
# ---------------------------------------------------------------------------
def forward_ref_np(params, x):
    x = np.asarray(x, np.float64)                       # (B, C, L)
    W = np.asarray(params["conv_w"], np.float64)        # (16, C, 10)
    cb = np.asarray(params["conv_b"], np.float64)
    gamma = np.asarray(params["bn_gamma"], np.float64)
    beta = np.asarray(params["bn_beta"], np.float64)
    mean = np.asarray(params["bn_mean"], np.float64)
    var = np.asarray(params["bn_var"], np.float64)
    w1 = np.asarray(params["fc1_w"], np.float64)
    b1 = np.asarray(params["fc1_b"], np.float64)
    w2 = np.asarray(params["fc2_w"], np.float64)
    b2 = np.asarray(params["fc2_b"], np.float64)

    B, C, L = x.shape
    K, s = CONV_K, CONV_S
    Lc = (L - K) // s + 1
    y = np.zeros((B, CONV_COUT, Lc))
    for k in range(K):
        xs = x[:, :, k: k + s * (Lc - 1) + 1: s]        # (B, C, Lc)
        y += np.einsum("oc,bcl->bol", W[:, :, k], xs)
    y += cb[None, :, None]
    y = ((y - mean[None, :, None]) / np.sqrt(var[None, :, None] + BN_EPS)
         * gamma[None, :, None] + beta[None, :, None])
    y = np.where(y > 0, y, LRELU_SLOPE * y)             # LeakyReLU(0.2)
    Lp = Lc // 2
    y = y[:, :, : 2 * Lp].reshape(B, CONV_COUT, Lp, 2).max(axis=3)   # MaxPool1d(2)
    flat = y.reshape(B, -1)                             # PyTorch channel-major flatten
    h = flat @ w1.T + b1
    h = np.where(h > 0, h, LRELU_SLOPE * h)
    return h @ w2.T + b2


if __name__ == "__main__":
    key = jax.random.PRNGKey(0)
    kp, kx = jax.random.split(key)

    B, CHN, L = 2, 8, 500          # L=500 is forced by the hard-coded Linear(1968, 600)
    params = init_params(kp, CHN)
    packed = pack_params(params)

    x = jax.random.normal(kx, (B, CHN, L), jnp.float32)

    fwd = jax.jit(discriminator_forward)
    out = jax.block_until_ready(fwd(packed, x))

    assert out.shape == (B, 1), out.shape
    assert bool(jnp.all(jnp.isfinite(out)))

    # fc1 weights/activations go through bf16 on the MXU (f32 accumulation), so
    # compare against the f64 reference with a correspondingly loose tolerance.
    ref = forward_ref_np(params, np.asarray(x))
    np.testing.assert_allclose(np.asarray(out), ref, rtol=2e-2, atol=2e-2)

    print("KERNEL_OK")
</pallas_src>

<mosaic_0001>
module attributes {stable_mosaic.version = 11 : i64} {
  func.func @_discriminator_kernel(%arg0: i32, %arg1: memref<80x246xf32, #tpu.memory_space<vmem>>, %arg2: memref<80x246xf32, #tpu.memory_space<vmem>>, %arg3: memref<16x80xf32, #tpu.memory_space<vmem>>, %arg4: memref<16x1xf32, #tpu.memory_space<vmem>>, %arg5: memref<1968x600xbf16, #tpu.memory_space<any>>, %arg6: memref<1x600xf32, #tpu.memory_space<vmem>>, %arg7: memref<1x600xf32, #tpu.memory_space<vmem>>, %arg8: memref<1x1xf32, #tpu.memory_space<vmem>>, %arg9: memref<2x1xf32, #tpu.memory_space<vmem>>, %arg10: memref<1968x600xbf16, #tpu.memory_space<vmem>>, %arg11: memref<2x1968xf32, #tpu.memory_space<vmem>>, %arg12: memref<!tpu.dma_semaphore, #tpu.memory_space<semaphore_mem>>) attributes {dimension_semantics = [#tpu.dimension_semantics<arbitrary>], iteration_bounds = array<i64: 1>, scalar_prefetch = 0 : i64, scratch_operands = 3 : i64, tpu.core_type = #tpu.core_type<tc>, window_params = [{pipeline_mode = #tpu.pipeline_mode<synchronous>, transform_indices = @transform_0, window_bounds = array<i64: 80, 246>}, {pipeline_mode = #tpu.pipeline_mode<synchronous>, transform_indices = @transform_1, window_bounds = array<i64: 80, 246>}, {pipeline_mode = #tpu.pipeline_mode<synchronous>, transform_indices = @transform_2, window_bounds = array<i64: 16, 80>}, {pipeline_mode = #tpu.pipeline_mode<synchronous>, transform_indices = @transform_3, window_bounds = array<i64: 16, 1>}, {}, {pipeline_mode = #tpu.pipeline_mode<synchronous>, transform_indices = @transform_5, window_bounds = array<i64: 1, 600>}, {pipeline_mode = #tpu.pipeline_mode<synchronous>, transform_indices = @transform_6, window_bounds = array<i64: 1, 600>}, {pipeline_mode = #tpu.pipeline_mode<synchronous>, transform_indices = @transform_7, window_bounds = array<i64: 1, 1>}, {pipeline_mode = #tpu.pipeline_mode<synchronous>, transform_indices = @transform_8, window_bounds = array<i64: 2, 1>}]} {
    tpu.enqueue_dma source(%arg5 : memref<1968x600xbf16, #tpu.memory_space<any>>) target(%arg10 : memref<1968x600xbf16, #tpu.memory_space<vmem>>) target_semaphore(%arg12 : memref<!tpu.dma_semaphore, #tpu.memory_space<semaphore_mem>>)
    %c0 = arith.constant 0 : index
    %c0_0 = arith.constant 0 : index
    %0 = vector.load %arg3[%c0, %c0_0] : memref<16x80xf32, #tpu.memory_space<vmem>>, vector<16x80xf32>
    %c0_1 = arith.constant 0 : index
    %c0_2 = arith.constant 0 : index
    %1 = vector.load %arg1[%c0_1, %c0_2] : memref<80x246xf32, #tpu.memory_space<vmem>>, vector<80x246xf32>
    %cst = arith.constant dense<0.000000e+00> : vector<16x246xf32>
    %2 = tpu.matmul %0, %1, %cst {dimension_numbers = #tpu.dot_dimension_numbers<[1], [0], [0], [1], [0, 0, 1, 1], [], []>} : vector<16x80xf32>, vector<80x246xf32>, vector<16x246xf32> -> vector<16x246xf32>
    %c0_3 = arith.constant 0 : index
    %c0_4 = arith.constant 0 : index
    %3 = vector.load %arg2[%c0_3, %c0_4] : memref<80x246xf32, #tpu.memory_space<vmem>>, vector<80x246xf32>
    %cst_5 = arith.constant dense<0.000000e+00> : vector<16x246xf32>
    %4 = tpu.matmul %0, %3, %cst_5 {dimension_numbers = #tpu.dot_dimension_numbers<[1], [0], [0], [1], [0, 0, 1, 1], [], []>} : vector<16x80xf32>, vector<80x246xf32>, vector<16x246xf32> -> vector<16x246xf32>
    %5 = arith.maximumf %2, %4 : vector<16x246xf32>
    %c0_6 = arith.constant 0 : index
    %c0_7 = arith.constant 0 : index
    %6 = vector.load %arg4[%c0_6, %c0_7] : memref<16x1xf32, #tpu.memory_space<vmem>>, vector<16x1xf32>
    %7 = vector.broadcast %6 : vector<16x1xf32> to vector<16x246xf32>
    %8 = arith.addf %5, %7 : vector<16x246xf32>
    %cst_8 = arith.constant 2.000000e-01 : f32
    %9 = vector.broadcast %cst_8 : f32 to vector<16x246xf32>
    %10 = arith.mulf %9, %8 : vector<16x246xf32>
    %11 = arith.maximumf %8, %10 : vector<16x246xf32>
    %12 = vector.extract_strided_slice %11 {offsets = [0, 0], sizes = [1, 123], strides = [1, 1]} : vector<16x246xf32> to vector<1x123xf32>
    %13 = vector.extract_strided_slice %11 {offsets = [1, 0], sizes = [1, 123], strides = [1, 1]} : vector<16x246xf32> to vector<1x123xf32>
    %14 = vector.extract_strided_slice %11 {offsets = [2, 0], sizes = [1, 123], strides = [1, 1]} : vector<16x246xf32> to vector<1x123xf32>
    %15 = vector.extract_strided_slice %11 {offsets = [3, 0], sizes = [1, 123], strides = [1, 1]} : vector<16x246xf32> to vector<1x123xf32>
    %16 = vector.extract_strided_slice %11 {offsets = [4, 0], sizes = [1, 123], strides = [1, 1]} : vector<16x246xf32> to vector<1x123xf32>
    %17 = vector.extract_strided_slice %11 {offsets = [5, 0], sizes = [1, 123], strides = [1, 1]} : vector<16x246xf32> to vector<1x123xf32>
    %18 = vector.extract_strided_slice %11 {offsets = [6, 0], sizes = [1, 123], strides = [1, 1]} : vector<16x246xf32> to vector<1x123xf32>
    %19 = vector.extract_strided_slice %11 {offsets = [7, 0], sizes = [1, 123], strides = [1, 1]} : vector<16x246xf32> to vector<1x123xf32>
    %20 = vector.extract_strided_slice %11 {offsets = [8, 0], sizes = [1, 123], strides = [1, 1]} : vector<16x246xf32> to vector<1x123xf32>
    %21 = vector.extract_strided_slice %11 {offsets = [9, 0], sizes = [1, 123], strides = [1, 1]} : vector<16x246xf32> to vector<1x123xf32>
    %22 = vector.extract_strided_slice %11 {offsets = [10, 0], sizes = [1, 123], strides = [1, 1]} : vector<16x246xf32> to vector<1x123xf32>
    %23 = vector.extract_strided_slice %11 {offsets = [11, 0], sizes = [1, 123], strides = [1, 1]} : vector<16x246xf32> to vector<1x123xf32>
    %24 = vector.extract_strided_slice %11 {offsets = [12, 0], sizes = [1, 123], strides = [1, 1]} : vector<16x246xf32> to vector<1x123xf32>
    %25 = vector.extract_strided_slice %11 {offsets = [13, 0], sizes = [1, 123], strides = [1, 1]} : vector<16x246xf32> to vector<1x123xf32>
    %26 = vector.extract_strided_slice %11 {offsets = [14, 0], sizes = [1, 123], strides = [1, 1]} : vector<16x246xf32> to vector<1x123xf32>
    %27 = vector.extract_strided_slice %11 {offsets = [15, 0], sizes = [1, 123], strides = [1, 1]} : vector<16x246xf32> to vector<1x123xf32>
    %28 = tpu.concatenate %12, %13, %14, %15, %16, %17, %18, %19, %20, %21, %22, %23, %24, %25, %26, %27 in 1 : vector<1x123xf32>, vector<1x123xf32>, vector<1x123xf32>, vector<1x123xf32>, vector<1x123xf32>, vector<1x123xf32>, vector<1x123xf32>, vector<1x123xf32>, vector<1x123xf32>, vector<1x123xf32>, vector<1x123xf32>, vector<1x123xf32>, vector<1x123xf32>, vector<1x123xf32>, vector<1x123xf32>, vector<1x123xf32> -> vector<1x1968xf32>
    %c0_9 = arith.constant 0 : index
    %c0_10 = arith.constant 0 : index
    %29 = vector.load %arg11[%c0_9, %c0_10] : memref<2x1968xf32, #tpu.memory_space<vmem>>, vector<1x1968xf32>
    tpu.vector_store %arg11[%c0_9, %c0_10], %28 {strides = array<i32>} : memref<2x1968xf32, #tpu.memory_space<vmem>>, vector<1x1968xf32>,
    %30 = vector.extract_strided_slice %11 {offsets = [0, 123], sizes = [1, 123], strides = [1, 1]} : vector<16x246xf32> to vector<1x123xf32>
    %31 = vector.extract_strided_slice %11 {offsets = [1, 123], sizes = [1, 123], strides = [1, 1]} : vector<16x246xf32> to vector<1x123xf32>
    %32 = vector.extract_strided_slice %11 {offsets = [2, 123], sizes = [1, 123], strides = [1, 1]} : vector<16x246xf32> to vector<1x123xf32>
    %33 = vector.extract_strided_slice %11 {offsets = [3, 123], sizes = [1, 123], strides = [1, 1]} : vector<16x246xf32> to vector<1x123xf32>
    %34 = vector.extract_strided_slice %11 {offsets = [4, 123], sizes = [1, 123], strides = [1, 1]} : vector<16x246xf32> to vector<1x123xf32>
    %35 = vector.extract_strided_slice %11 {offsets = [5, 123], sizes = [1, 123], strides = [1, 1]} : vector<16x246xf32> to vector<1x123xf32>
    %36 = vector.extract_strided_slice %11 {offsets = [6, 123], sizes = [1, 123], strides = [1, 1]} : vector<16x246xf32> to vector<1x123xf32>
    %37 = vector.extract_strided_slice %11 {offsets = [7, 123], sizes = [1, 123], strides = [1, 1]} : vector<16x246xf32> to vector<1x123xf32>
    %38 = vector.extract_strided_slice %11 {offsets = [8, 123], sizes = [1, 123], strides = [1, 1]} : vector<16x246xf32> to vector<1x123xf32>
    %39 = vector.extract_strided_slice %11 {offsets = [9, 123], sizes = [1, 123], strides = [1, 1]} : vector<16x246xf32> to vector<1x123xf32>
    %40 = vector.extract_strided_slice %11 {offsets = [10, 123], sizes = [1, 123], strides = [1, 1]} : vector<16x246xf32> to vector<1x123xf32>
    %41 = vector.extract_strided_slice %11 {offsets = [11, 123], sizes = [1, 123], strides = [1, 1]} : vector<16x246xf32> to vector<1x123xf32>
    %42 = vector.extract_strided_slice %11 {offsets = [12, 123], sizes = [1, 123], strides = [1, 1]} : vector<16x246xf32> to vector<1x123xf32>
    %43 = vector.extract_strided_slice %11 {offsets = [13, 123], sizes = [1, 123], strides = [1, 1]} : vector<16x246xf32> to vector<1x123xf32>
    %44 = vector.extract_strided_slice %11 {offsets = [14, 123], sizes = [1, 123], strides = [1, 1]} : vector<16x246xf32> to vector<1x123xf32>
    %45 = vector.extract_strided_slice %11 {offsets = [15, 123], sizes = [1, 123], strides = [1, 1]} : vector<16x246xf32> to vector<1x123xf32>
    %46 = tpu.concatenate %30, %31, %32, %33, %34, %35, %36, %37, %38, %39, %40, %41, %42, %43, %44, %45 in 1 : vector<1x123xf32>, vector<1x123xf32>, vector<1x123xf32>, vector<1x123xf32>, vector<1x123xf32>, vector<1x123xf32>, vector<1x123xf32>, vector<1x123xf32>, vector<1x123xf32>, vector<1x123xf32>, vector<1x123xf32>, vector<1x123xf32>, vector<1x123xf32>, vector<1x123xf32>, vector<1x123xf32>, vector<1x123xf32> -> vector<1x1968xf32>
    %c1 = arith.constant 1 : index
    %c0_11 = arith.constant 0 : index
    %47 = vector.load %arg11[%c1, %c0_11] : memref<2x1968xf32, #tpu.memory_space<vmem>>, vector<1x1968xf32>
    tpu.vector_store %arg11[%c1, %c0_11], %46 {strides = array<i32>} : memref<2x1968xf32, #tpu.memory_space<vmem>>, vector<1x1968xf32>,
    tpu.wait_dma2 semaphore(%arg12 : memref<!tpu.dma_semaphore, #tpu.memory_space<semaphore_mem>>) src(%arg5 : memref<1968x600xbf16, #tpu.memory_space<any>>) dst(%arg10 : memref<1968x600xbf16, #tpu.memory_space<vmem>>)
    %c0_12 = arith.constant 0 : index
    %c0_13 = arith.constant 0 : index
    %48 = vector.load %arg11[%c0_12, %c0_13] : memref<2x1968xf32, #tpu.memory_space<vmem>>, vector<2x1968xf32>
    %49 = arith.truncf %48 : vector<2x1968xf32> to vector<2x1968xbf16>
    %c0_14 = arith.constant 0 : index
    %c0_15 = arith.constant 0 : index
    %50 = vector.load %arg10[%c0_14, %c0_15] : memref<1968x600xbf16, #tpu.memory_space<vmem>>, vector<1968x600xbf16>
    %cst_16 = arith.constant dense<0.000000e+00> : vector<2x600xf32>
    %51 = tpu.matmul %49, %50, %cst_16 {dimension_numbers = #tpu.dot_dimension_numbers<[1], [0], [0], [1], [0, 0, 1, 1], [], []>} : vector<2x1968xbf16>, vector<1968x600xbf16>, vector<2x600xf32> -> vector<2x600xf32>
    %c0_17 = arith.constant 0 : index
    %c0_18 = arith.constant 0 : index
    %52 = vector.load %arg6[%c0_17, %c0_18] : memref<1x600xf32, #tpu.memory_space<vmem>>, vector<1x600xf32>
    %53 = vector.broadcast %52 : vector<1x600xf32> to vector<2x600xf32>
    %54 = arith.addf %51, %53 : vector<2x600xf32>
    %cst_19 = arith.constant 2.000000e-01 : f32
    %55 = vector.broadcast %cst_19 : f32 to vector<2x600xf32>
    %56 = arith.mulf %55, %54 : vector<2x600xf32>
    %57 = arith.maximumf %54, %56 : vector<2x600xf32>
    %c0_20 = arith.constant 0 : index
    %c0_21 = arith.constant 0 : index
    %58 = vector.load %arg7[%c0_20, %c0_21] : memref<1x600xf32, #tpu.memory_space<vmem>>, vector<1x600xf32>
    %59 = vector.broadcast %58 : vector<1x600xf32> to vector<2x600xf32>
    %60 = arith.mulf %57, %59 : vector<2x600xf32>
    %cst_22 = arith.constant dense<0.000000e+00> : vector<2xf32>
    %61 = vector.multi_reduction <add>, %60, %cst_22 [1] : vector<2x600xf32> to vector<2xf32>
    %62 = vector.shape_cast %61 : vector<2xf32> to vector<2x1xf32>
    %c0_23 = arith.constant 0 : index
    %c0_24 = arith.constant 0 : index
    %63 = vector.load %arg8[%c0_23, %c0_24] : memref<1x1xf32, #tpu.memory_space<vmem>>, vector<1x1xf32>
    %64 = vector.broadcast %63 : vector<1x1xf32> to vector<2x1xf32>
    %65 = arith.addf %62, %64 : vector<2x1xf32>
    %c0_25 = arith.constant 0 : index
    %c0_26 = arith.constant 0 : index
    %66 = vector.load %arg9[%c0_25, %c0_26] : memref<2x1xf32, #tpu.memory_space<vmem>>, vector<2x1xf32>
    tpu.vector_store %arg9[%c0_25, %c0_26], %65 {strides = array<i32>} : memref<2x1xf32, #tpu.memory_space<vmem>>, vector<2x1xf32>,
    return
  }
  func.func @transform_0(%arg0: i32) -> (i32, i32) {
    %c0_i32 = arith.constant 0 : i32
    %c0_i32_0 = arith.constant 0 : i32
    %c0_i32_1 = arith.constant 0 : i32
    return %c0_i32, %c0_i32_0 : i32, i32
  }
  func.func @transform_1(%arg0: i32) -> (i32, i32) {
    %c0_i32 = arith.constant 0 : i32
    %c0_i32_0 = arith.constant 0 : i32
    %c0_i32_1 = arith.constant 0 : i32
    return %c0_i32, %c0_i32_0 : i32, i32
  }
  func.func @transform_2(%arg0: i32) -> (i32, i32) {
    %c0_i32 = arith.constant 0 : i32
    %c0_i32_0 = arith.constant 0 : i32
    %c0_i32_1 = arith.constant 0 : i32
    return %c0_i32, %c0_i32_0 : i32, i32
  }
  func.func @transform_3(%arg0: i32) -> (i32, i32) {
    %c0_i32 = arith.constant 0 : i32
    %c0_i32_0 = arith.constant 0 : i32
    %c0_i32_1 = arith.constant 0 : i32
    return %c0_i32, %c0_i32_0 : i32, i32
  }
  func.func @transform_5(%arg0: i32) -> (i32, i32) {
    %c0_i32 = arith.constant 0 : i32
    %c0_i32_0 = arith.constant 0 : i32
    %c0_i32_1 = arith.constant 0 : i32
    return %c0_i32, %c0_i32_0 : i32, i32
  }
  func.func @transform_6(%arg0: i32) -> (i32, i32) {
    %c0_i32 = arith.constant 0 : i32
    %c0_i32_0 = arith.constant 0 : i32
    %c0_i32_1 = arith.constant 0 : i32
    return %c0_i32, %c0_i32_0 : i32, i32
  }
  func.func @transform_7(%arg0: i32) -> (i32, i32) {
    %c0_i32 = arith.constant 0 : i32
    %c0_i32_0 = arith.constant 0 : i32
    %c0_i32_1 = arith.constant 0 : i32
    return %c0_i32, %c0_i32_0 : i32, i32
  }
  func.func @transform_8(%arg0: i32) -> (i32, i32) {
    %c0_i32 = arith.constant 0 : i32
    %c0_i32_0 = arith.constant 0 : i32
    %c0_i32_1 = arith.constant 0 : i32
    return %c0_i32, %c0_i32_0 : i32, i32
  }
}

</mosaic_0001>

<llo_original>
// kernel: discriminator_forward.1
$region0: #{discriminator_forward.1}
  #allocation0 [shape = 'u32[]', space=smem, size = 0x4, offset = 0x4, fixed_abs, tag = 'smem constant byte address 0x4 - core index']
  #allocation1 [shape = 'u32[144,128]{1,0:T(1,128)}', space=vmem, size = 0x12000, scoped, tag = 'internal scratch']
  #allocation2 [shape = 'bf16[1968,600]{1,0:T(16,128)(2,1)}', space=vmem, size = 0x267000, scoped, tag = 'scratch operand']
  #allocation3 [shape = 'f32[2,1968]{1,0:T(2,128)}', space=vmem, size = 0x4000, scoped, tag = 'scratch operand']
  #allocation4 [shape = 's32[1]{0}', space=sflag, size = 0x4, scoped, tag = 'scratch operand']
  #allocation5 [shape = 'f32[1,1]{1,0:T(1,128)S(1)}', space=vmem, size = 0x200, scoped, tag = 'scoped memory for discriminator_forward.1']
  #allocation6 [shape = 's32[]', space=sflag, size = 0x4, offset = 0, fixed_abs, tag = 'sflag constant byte address 0x0 - dummy sync flag']
  %s0 = inlined_call_operand.vmem [shape: f32[80,246], index: 0, kind: input, shape index: {}]
  %s1 = inlined_call_operand.vmem [shape: f32[80,246], index: 1, kind: input, shape index: {}]
  %s2 = inlined_call_operand.vmem [shape: f32[16,80], index: 2, kind: input, shape index: {}]
  %s3 = inlined_call_operand.vmem [shape: f32[16,1], index: 3, kind: input, shape index: {}]
  %s4 = inlined_call_operand.vmem [shape: bf16[1968,600], index: 4, kind: input, shape index: {}]
  %s5 = inlined_call_operand.vmem [shape: f32[1,600], index: 5, kind: input, shape index: {}]
  %s6 = inlined_call_operand.vmem [shape: f32[1,600], index: 6, kind: input, shape index: {}]
  %s7 = inlined_call_operand.<no memory space> [shape: f32[1,1], index: 7, kind: input, shape index: {}]
  %s8 = inlined_call_operand.vmem [shape: f32[2,1], index: 8, kind: output, shape index: {}]
  %s9 = sld [smem:[#allocation0]]
  $region86: #{discriminator_forward.1} parent=0
    _
  %s11 = ssub.s32 1, %s9
  %s12 = scalar_select 0, %s11, %s9
  %v13 = vstv %s7
  %14 = vst [vmem:[#allocation5] sm:$0x1] %v13
  // Predicated region
  $region2: #{discriminator_forward.1} parent=0 // pred_check
    _
  $region3: #{discriminator_forward.1} parent=0 // pred_check_branch
    %16 = sbr.rel (0) target = $region5
  $region4: #{discriminator_forward.1} parent=0 // pred_region
    _
  $region5: #{discriminator_forward.1} parent=0 // pred_fallthru
    _
  // Predicated region
  $region6: #{discriminator_forward.1} parent=0 // pred_check
    _
  $region7: #{discriminator_forward.1} parent=0 // pred_check_branch
    %18 = sbr.rel (0) target = $region9
  $region8: #{discriminator_forward.1} parent=0 // pred_region
    _
  $region9: #{discriminator_forward.1} parent=0 // pred_fallthru
    _
  // Predicated region
  $region10: #{discriminator_forward.1} parent=0 // pred_check
    _
  $region11: #{discriminator_forward.1} parent=0 // pred_check_branch
    %20 = sbr.rel (0) target = $region13
  $region12: #{discriminator_forward.1} parent=0 // pred_region
    _
  $region13: #{discriminator_forward.1} parent=0 // pred_fallthru
    _
  // Predicated region
  $region14: #{discriminator_forward.1} parent=0 // pred_check
    _
  $region15: #{discriminator_forward.1} parent=0 // pred_check_branch
    %22 = sbr.rel (0) target = $region17
  $region16: #{discriminator_forward.1} parent=0 // pred_region
    _
  $region17: #{discriminator_forward.1} parent=0 // pred_fallthru
    _
  // Predicated region
  $region18: #{discriminator_forward.1} parent=0 // pred_check
    _
  $region19: #{discriminator_forward.1} parent=0 // pred_check_branch
    %24 = sbr.rel (0) target = $region21
  $region20: #{discriminator_forward.1} parent=0 // pred_region
    _
  $region21: #{discriminator_forward.1} parent=0 // pred_fallthru
    _
  // Predicated region
  $region22: #{discriminator_forward.1} parent=0 // pred_check
    _
  $region23: #{discriminator_forward.1} parent=0 // pred_check_branch
    %26 = sbr.rel (0) target = $region25
  $region24: #{discriminator_forward.1} parent=0 // pred_region
    _
  $region25: #{discriminator_forward.1} parent=0 // pred_fallthru
    _
  // Predicated region
  $region26: #{discriminator_forward.1} parent=0 // pred_check
    _
  $region27: #{discriminator_forward.1} parent=0 // pred_check_branch
    %28 = sbr.rel (0) target = $region29
  $region28: #{discriminator_forward.1} parent=0 // pred_region
    _
  $region29: #{discriminator_forward.1} parent=0 // pred_fallthru
    _
  %p31 = scmp.lt.u32.totalorder 4, 8
  %p32 = pneg %p31
  // Predicated region
  $region30: #{discriminator_forward.1} parent=0 // pred_check
    _
  $region31: #{discriminator_forward.1} parent=0 // pred_check_branch
    %34 = sbr.rel (%p31) target = $region33
  $region32: #{discriminator_forward.1} parent=0 // pred_region
    %s1287 = sand.u32 4, 7
    %p1288 = scmp.eq.s32.totalorder %s1287, 0
    // Predicated region
    $region45: #{discriminator_forward.1} parent=32 // pred_check
      %p1289 = pneg %p1288
    $region46: #{discriminator_forward.1} parent=32 // pred_check_branch
      %1291 = sbr.rel (%p1289) target = $region48
    $region47: #{discriminator_forward.1} parent=32 // pred_region
      %s1292 = sshrl.u32 4, 3
      %s1293 = smul.u32 2, %s1292
      // While loop
      $region49: #{discriminator_forward.1} parent=47 // loop_pre_header
        _
      $region50: #{discriminator_forward.1} parent=47 // loop_header
        %s1299 = sphi 0, %s1301
        %p1300 = scmp.ge.s32.totalorder %s1299, %s1293
        %s1304 = sphi 0, %s2544
        %s1305 = sphi 0, %s2540
        %s1306 = sphi %s4, %s2551
        %s1307 = sphi [#allocation2], %s2552
      $region51: #{discriminator_forward.1} parent=47 // loop_header_branch
        %1303 = sbr.rel (%p1300) target = $region55
      $region52: #{discriminator_forward.1} parent=47 // loop_body
        %v1308 = vld [vmem:[%s1306] sm:$0xff]
        %1309 = vst [vmem:[%s1307] sm:$0xff] %v1308
        %v1310 = vld [vmem:[%s1306 + $0x4] sm:$0xff]
        %1311 = vst [vmem:[%s1307 + $0x8] sm:$0xff] %v1310
        %v1312 = vld [vmem:[%s1306 + $0x8] sm:$0xff]
        %1313 = vst [vmem:[%s1307 + $0x10] sm:$0xff] %v1312
        %v1314 = vld [vmem:[%s1306 + $0xc] sm:$0xff]
        %1315 = vst [vmem:[%s1307 + $0x18] sm:$0xff] %v1314
        %v1316 = vld [vmem:[%s1306 + $0x10] sm:$0xff]
        %1317 = vst [vmem:[%s1307 + $0x20] sm:$0xff] %v1316
        %v1318 = vld [vmem:[%s1306 + $0x28] sm:$0xff]
        %1319 = vst [vmem:[%s1307 + $0x28] sm:$0xff] %v1318
        %v1320 = vld [vmem:[%s1306 + $0x2c] sm:$0xff]
        %1321 = vst [vmem:[%s1307 + $0x30] sm:$0xff] %v1320
        %v1322 = vld [vmem:[%s1306 + $0x30] sm:$0xff]
        %1323 = vst [vmem:[%s1307 + $0x38] sm:$0xff] %v1322
        %v1324 = vld [vmem:[%s1306 + $0x34] sm:$0xff]
        %1325 = vst [vmem:[%s1307 + $0x40] sm:$0xff] %v1324
        %v1326 = vld [vmem:[%s1306 + $0x38] sm:$0xff]
        %1327 = vst [vmem:[%s1307 + $0x48] sm:$0xff] %v1326
        %v1328 = vld [vmem:[%s1306 + $0x50] sm:$0xff]
        %1329 = vst [vmem:[%s1307 + $0x50] sm:$0xff] %v1328
        %v1330 = vld [vmem:[%s1306 + $0x54] sm:$0xff]
        %1331 = vst [vmem:[%s1307 + $0x58] sm:$0xff] %v1330
        %v1332 = vld [vmem:[%s1306 + $0x58] sm:$0xff]
        %1333 = vst [vmem:[%s1307 + $0x60] sm:$0xff] %v1332
        %v1334 = vld [vmem:[%s1306 + $0x5c] sm:$0xff]
        %1335 = vst [vmem:[%s1307 + $0x68] sm:$0xff] %v1334
        %v1336 = vld [vmem:[%s1306 + $0x60] sm:$0xff]
        %1337 = vst [vmem:[%s1307 + $0x70] sm:$0xff] %v1336
        %v1338 = vld [vmem:[%s1306 + $0x78] sm:$0xff]
        %1339 = vst [vmem:[%s1307 + $0x78] sm:$0xff] %v1338
        %v1340 = vld [vmem:[%s1306 + $0x7c] sm:$0xff]
        %1341 = vst [vmem:[%s1307 + $0x80] sm:$0xff] %v1340
        %v1342 = vld [vmem:[%s1306 + $0x80] sm:$0xff]
        %1343 = vst [vmem:[%s1307 + $0x88] sm:$0xff] %v1342
        %v1344 = vld [vmem:[%s1306 + $0x84] sm:$0xff]
        %1345 = vst [vmem:[%s1307 + $0x90] sm:$0xff] %v1344
        %v1346 = vld [vmem:[%s1306 + $0x88] sm:$0xff]
        %1347 = vst [vmem:[%s1307 + $0x98] sm:$0xff] %v1346
        %v1348 = vld [vmem:[%s1306 + $0xa0] sm:$0xff]
        %1349 = vst [vmem:[%s1307 + $0xa0] sm:$0xff] %v1348
        %v1350 = vld [vmem:[%s1306 + $0xa4] sm:$0xff]
        %1351 = vst [vmem:[%s1307 + $0xa8] sm:$0xff] %v1350
        %v1352 = vld [vmem:[%s1306 + $0xa8] sm:$0xff]
        %1353 = vst [vmem:[%s1307 + $0xb0] sm:$0xff] %v1352
        %v1354 = vld [vmem:[%s1306 + $0xac] sm:$0xff]
        %1355 = vst [vmem:[%s1307 + $0xb8] sm:$0xff] %v1354
        %v1356 = vld [vmem:[%s1306 + $0xb0] sm:$0xff]
        %1357 = vst [vmem:[%s1307 + $0xc0] sm:$0xff] %v1356
        %v1358 = vld [vmem:[%s1306 + $0xc8] sm:$0xff]
        %1359 = vst [vmem:[%s1307 + $0xc8] sm:$0xff] %v1358
        %v1360 = vld [vmem:[%s1306 + $0xcc] sm:$0xff]
        %1361 = vst [vmem:[%s1307 + $0xd0] sm:$0xff] %v1360
        %v1362 = vld [vmem:[%s1306 + $0xd0] sm:$0xff]
        %1363 = vst [vmem:[%s1307 + $0xd8] sm:$0xff] %v1362
        %v1364 = vld [vmem:[%s1306 + $0xd4] sm:$0xff]
        %1365 = vst [vmem:[%s1307 + $0xe0] sm:$0xff] %v1364
        %v1366 = vld [vmem:[%s1306 + $0xd8] sm:$0xff]
        %1367 = vst [vmem:[%s1307 + $0xe8] sm:$0xff] %v1366
        %v1368 = vld [vmem:[%s1306 + $0xf0] sm:$0xff]
        %1369 = vst [vmem:[%s1307 + $0xf0] sm:$0xff] %v1368
        %v1370 = vld [vmem:[%s1306 + $0xf4] sm:$0xff]
        %1371 = vst [vmem:[%s1307 + $0xf8] sm:$0xff] %v1370
        %v1372 = vld [vmem:[%s1306 + $0xf8] sm:$0xff]
        %1373 = vst [vmem:[%s1307 + $0x100] sm:$0xff] %v1372
        %v1374 = vld [vmem:[%s1306 + $0xfc] sm:$0xff]
        %1375 = vst [vmem:[%s1307 + $0x108] sm:$0xff] %v1374
        %v1376 = vld [vmem:[%s1306 + $0x100] sm:$0xff]
        %1377 = vst [vmem:[%s1307 + $0x110] sm:$0xff] %v1376
        %v1378 = vld [vmem:[%s1306 + $0x118] sm:$0xff]
        %1379 = vst [vmem:[%s1307 + $0x118] sm:$0xff] %v1378
        %v1380 = vld [vmem:[%s1306 + $0x11c] sm:$0xff]
        %1381 = vst [vmem:[%s1307 + $0x120] sm:$0xff] %v1380
        %v1382 = vld [vmem:[%s1306 + $0x120] sm:$0xff]
        %1383 = vst [vmem:[%s1307 + $0x128] sm:$0xff] %v1382
        %v1384 = vld [vmem:[%s1306 + $0x124] sm:$0xff]
        %1385 = vst [vmem:[%s1307 + $0x130] sm:$0xff] %v1384
        %v1386 = vld [vmem:[%s1306 + $0x128] sm:$0xff]
        %1387 = vst [vmem:[%s1307 + $0x138] sm:$0xff] %v1386
        %v1388 = vld [vmem:[%s1306 + $0x140] sm:$0xff]
        %1389 = vst [vmem:[%s1307 + $0x140] sm:$0xff] %v1388
        %v1390 = vld [vmem:[%s1306 + $0x144] sm:$0xff]
        %1391 = vst [vmem:[%s1307 + $0x148] sm:$0xff] %v1390
        %v1392 = vld [vmem:[%s1306 + $0x148] sm:$0xff]
        %1393 = vst [vmem:[%s1307 + $0x150] sm:$0xff] %v1392
        %v1394 = vld [vmem:[%s1306 + $0x14c] sm:$0xff]
        %1395 = vst [vmem:[%s1307 + $0x158] sm:$0xff] %v1394
        %v1396 = vld [vmem:[%s1306 + $0x150] sm:$0xff]
        %1397 = vst [vmem:[%s1307 + $0x160] sm:$0xff] %v1396
        %v1398 = vld [vmem:[%s1306 + $0x168] sm:$0xff]
        %1399 = vst [vmem:[%s1307 + $0x168] sm:$0xff] %v1398
        %v1400 = vld [vmem:[%s1306 + $0x16c] sm:$0xff]
        %1401 = vst [vmem:[%s1307 + $0x170] sm:$0xff] %v1400
        %v1402 = vld [vmem:[%s1306 + $0x170] sm:$0xff]
        %1403 = vst [vmem:[%s1307 + $0x178] sm:$0xff] %v1402
        %v1404 = vld [vmem:[%s1306 + $0x174] sm:$0xff]
        %1405 = vst [vmem:[%s1307 + $0x180] sm:$0xff] %v1404
        %v1406 = vld [vmem:[%s1306 + $0x178] sm:$0xff]
        %1407 = vst [vmem:[%s1307 + $0x188] sm:$0xff] %v1406
        %v1408 = vld [vmem:[%s1306 + $0x190] sm:$0xff]
        %1409 = vst [vmem:[%s1307 + $0x190] sm:$0xff] %v1408
        %v1410 = vld [vmem:[%s1306 + $0x194] sm:$0xff]
        %1411 = vst [vmem:[%s1307 + $0x198] sm:$0xff] %v1410
        %v1412 = vld [vmem:[%s1306 + $0x198] sm:$0xff]
        %1413 = vst [vmem:[%s1307 + $0x1a0] sm:$0xff] %v1412
        %v1414 = vld [vmem:[%s1306 + $0x19c] sm:$0xff]
        %1415 = vst [vmem:[%s1307 + $0x1a8] sm:$0xff] %v1414
        %v1416 = vld [vmem:[%s1306 + $0x1a0] sm:$0xff]
        %1417 = vst [vmem:[%s1307 + $0x1b0] sm:$0xff] %v1416
        %v1418 = vld [vmem:[%s1306 + $0x1b8] sm:$0xff]
        %1419 = vst [vmem:[%s1307 + $0x1b8] sm:$0xff] %v1418
        %v1420 = vld [vmem:[%s1306 + $0x1bc] sm:$0xff]
        %1421 = vst [vmem:[%s1307 + $0x1c0] sm:$0xff] %v1420
        %v1422 = vld [vmem:[%s1306 + $0x1c0] sm:$0xff]
        %1423 = vst [vmem:[%s1307 + $0x1c8] sm:$0xff] %v1422
        %v1424 = vld [vmem:[%s1306 + $0x1c4] sm:$0xff]
        %1425 = vst [vmem:[%s1307 + $0x1d0] sm:$0xff] %v1424
        %v1426 = vld [vmem:[%s1306 + $0x1c8] sm:$0xff]
        %1427 = vst [vmem:[%s1307 + $0x1d8] sm:$0xff] %v1426
        %v1428 = vld [vmem:[%s1306 + $0x1e0] sm:$0xff]
        %1429 = vst [vmem:[%s1307 + $0x1e0] sm:$0xff] %v1428
        %v1430 = vld [vmem:[%s1306 + $0x1e4] sm:$0xff]
        %1431 = vst [vmem:[%s1307 + $0x1e8] sm:$0xff] %v1430
        %v1432 = vld [vmem:[%s1306 + $0x1e8] sm:$0xff]
        %1433 = vst [vmem:[%s1307 + $0x1f0] sm:$0xff] %v1432
        %v1434 = vld [vmem:[%s1306 + $0x1ec] sm:$0xff]
        %1435 = vst [vmem:[%s1307 + $0x1f8] sm:$0xff] %v1434
        %v1436 = vld [vmem:[%s1306 + $0x1f0] sm:$0xff]
        %1437 = vst [vmem:[%s1307 + $0x200] sm:$0xff] %v1436
        %v1438 = vld [vmem:[%s1306 + $0x208] sm:$0xff]
        %1439 = vst [vmem:[%s1307 + $0x208] sm:$0xff] %v1438
        %v1440 = vld [vmem:[%s1306 + $0x20c] sm:$0xff]
        %1441 = vst [vmem:[%s1307 + $0x210] sm:$0xff] %v1440
        %v1442 = vld [vmem:[%s1306 + $0x210] sm:$0xff]
        %1443 = vst [vmem:[%s1307 + $0x218] sm:$0xff] %v1442
        %v1444 = vld [vmem:[%s1306 + $0x214] sm:$0xff]
        %1445 = vst [vmem:[%s1307 + $0x220] sm:$0xff] %v1444
        %v1446 = vld [vmem:[%s1306 + $0x218] sm:$0xff]
        %1447 = vst [vmem:[%s1307 + $0x228] sm:$0xff] %v1446
        %v1448 = vld [vmem:[%s1306 + $0x230] sm:$0xff]
        %1449 = vst [vmem:[%s1307 + $0x230] sm:$0xff] %v1448
        %v1450 = vld [vmem:[%s1306 + $0x234] sm:$0xff]
        %1451 = vst [vmem:[%s1307 + $0x238] sm:$0xff] %v1450
        %v1452 = vld [vmem:[%s1306 + $0x238] sm:$0xff]
        %1453 = vst [vmem:[%s1307 + $0x240] sm:$0xff] %v1452
        %v1454 = vld [vmem:[%s1306 + $0x23c] sm:$0xff]
        %1455 = vst [vmem:[%s1307 + $0x248] sm:$0xff] %v1454
        %v1456 = vld [vmem:[%s1306 + $0x240] sm:$0xff]
        %1457 = vst [vmem:[%s1307 + $0x250] sm:$0xff] %v1456
        %v1458 = vld [vmem:[%s1306 + $0x258] sm:$0xff]
        %1459 = vst [vmem:[%s1307 + $0x258] sm:$0xff] %v1458
        %v1460 = vld [vmem:[%s1306 + $0x25c] sm:$0xff]
        %1461 = vst [vmem:[%s1307 + $0x260] sm:$0xff] %v1460
        %v1462 = vld [vmem:[%s1306 + $0x260] sm:$0xff]
        %1463 = vst [vmem:[%s1307 + $0x268] sm:$0xff] %v1462
        %v1464 = vld [vmem:[%s1306 + $0x264] sm:$0xff]
        %1465 = vst [vmem:[%s1307 + $0x270] sm:$0xff] %v1464
        %v1466 = vld [vmem:[%s1306 + $0x268] sm:$0xff]
        %1467 = vst [vmem:[%s1307 + $0x278] sm:$0xff] %v1466
        %v1468 = vld [vmem:[%s1306 + $0x280] sm:$0xff]
        %1469 = vst [vmem:[%s1307 + $0x280] sm:$0xff] %v1468
        %v1470 = vld [vmem:[%s1306 + $0x284] sm:$0xff]
        %1471 = vst [vmem:[%s1307 + $0x288] sm:$0xff] %v1470
        %v1472 = vld [vmem:[%s1306 + $0x288] sm:$0xff]
        %1473 = vst [vmem:[%s1307 + $0x290] sm:$0xff] %v1472
        %v1474 = vld [vmem:[%s1306 + $0x28c] sm:$0xff]
        %1475 = vst [vmem:[%s1307 + $0x298] sm:$0xff] %v1474
        %v1476 = vld [vmem:[%s1306 + $0x290] sm:$0xff]
        %1477 = vst [vmem:[%s1307 + $0x2a0] sm:$0xff] %v1476
        %v1478 = vld [vmem:[%s1306 + $0x2a8] sm:$0xff]
        %1479 = vst [vmem:[%s1307 + $0x2a8] sm:$0xff] %v1478
        %v1480 = vld [vmem:[%s1306 + $0x2ac] sm:$0xff]
        %1481 = vst [vmem:[%s1307 + $0x2b0] sm:$0xff] %v1480
        %v1482 = vld [vmem:[%s1306 + $0x2b0] sm:$0xff]
        %1483 = vst [vmem:[%s1307 + $0x2b8] sm:$0xff] %v1482
        %v1484 = vld [vmem:[%s1306 + $0x2b4] sm:$0xff]
        %1485 = vst [vmem:[%s1307 + $0x2c0] sm:$0xff] %v1484
        %v1486 = vld [vmem:[%s1306 + $0x2b8] sm:$0xff]
        %1487 = vst [vmem:[%s1307 + $0x2c8] sm:$0xff] %v1486
        %v1488 = vld [vmem:[%s1306 + $0x2d0] sm:$0xff]
        %1489 = vst [vmem:[%s1307 + $0x2d0] sm:$0xff] %v1488
        %v1490 = vld [vmem:[%s1306 + $0x2d4] sm:$0xff]
        %1491 = vst [vmem:[%s1307 + $0x2d8] sm:$0xff] %v1490
        %v1492 = vld [vmem:[%s1306 + $0x2d8] sm:$0xff]
        %1493 = vst [vmem:[%s1307 + $0x2e0] sm:$0xff] %v1492
        %v1494 = vld [vmem:[%s1306 + $0x2dc] sm:$0xff]
        %1495 = vst [vmem:[%s1307 + $0x2e8] sm:$0xff] %v1494
        %v1496 = vld [vmem:[%s1306 + $0x2e0] sm:$0xff]
        %1497 = vst [vmem:[%s1307 + $0x2f0] sm:$0xff] %v1496
        %v1498 = vld [vmem:[%s1306 + $0x2f8] sm:$0xff]
        %1499 = vst [vmem:[%s1307 + $0x2f8] sm:$0xff] %v1498
        %v1500 = vld [vmem:[%s1306 + $0x2fc] sm:$0xff]
        %1501 = vst [vmem:[%s1307 + $0x300] sm:$0xff] %v1500
        %v1502 = vld [vmem:[%s1306 + $0x300] sm:$0xff]
        %1503 = vst [vmem:[%s1307 + $0x308] sm:$0xff] %v1502
        %v1504 = vld [vmem:[%s1306 + $0x304] sm:$0xff]
        %1505 = vst [vmem:[%s1307 + $0x310] sm:$0xff] %v1504
        %v1506 = vld [vmem:[%s1306 + $0x308] sm:$0xff]
        %1507 = vst [vmem:[%s1307 + $0x318] sm:$0xff] %v1506
        %v1508 = vld [vmem:[%s1306 + $0x320] sm:$0xff]
        %1509 = vst [vmem:[%s1307 + $0x320] sm:$0xff] %v1508
        %v1510 = vld [vmem:[%s1306 + $0x324] sm:$0xff]
        %1511 = vst [vmem:[%s1307 + $0x328] sm:$0xff] %v1510
        %v1512 = vld [vmem:[%s1306 + $0x328] sm:$0xff]
        %1513 = vst [vmem:[%s1307 + $0x330] sm:$0xff] %v1512
        %v1514 = vld [vmem:[%s1306 + $0x32c] sm:$0xff]
        %1515 = vst [vmem:[%s1307 + $0x338] sm:$0xff] %v1514
        %v1516 = vld [vmem:[%s1306 + $0x330] sm:$0xff]
        %1517 = vst [vmem:[%s1307 + $0x340] sm:$0xff] %v1516
        %v1518 = vld [vmem:[%s1306 + $0x348] sm:$0xff]
        %1519 = vst [vmem:[%s1307 + $0x348] sm:$0xff] %v1518
        %v1520 = vld [vmem:[%s1306 + $0x34c] sm:$0xff]
        %1521 = vst [vmem:[%s1307 + $0x350] sm:$0xff] %v1520
        %v1522 = vld [vmem:[%s1306 + $0x350] sm:$0xff]
        %1523 = vst [vmem:[%s1307 + $0x358] sm:$0xff] %v1522
        %v1524 = vld [vmem:[%s1306 + $0x354] sm:$0xff]
        %1525 = vst [vmem:[%s1307 + $0x360] sm:$0xff] %v1524
        %v1526 = vld [vmem:[%s1306 + $0x358] sm:$0xff]
        %1527 = vst [vmem:[%s1307 + $0x368] sm:$0xff] %v1526
        %v1528 = vld [vmem:[%s1306 + $0x370] sm:$0xff]
        %1529 = vst [vmem:[%s1307 + $0x370] sm:$0xff] %v1528
        %v1530 = vld [vmem:[%s1306 + $0x374] sm:$0xff]
        %1531 = vst [vmem:[%s1307 + $0x378] sm:$0xff] %v1530
        %v1532 = vld [vmem:[%s1306 + $0x378] sm:$0xff]
        %1533 = vst [vmem:[%s1307 + $0x380] sm:$0xff] %v1532
        %v1534 = vld [vmem:[%s1306 + $0x37c] sm:$0xff]
        %1535 = vst [vmem:[%s1307 + $0x388] sm:$0xff] %v1534
        %v1536 = vld [vmem:[%s1306 + $0x380] sm:$0xff]
        %1537 = vst [vmem:[%s1307 + $0x390] sm:$0xff] %v1536
        %v1538 = vld [vmem:[%s1306 + $0x398] sm:$0xff]
        %1539 = vst [vmem:[%s1307 + $0x398] sm:$0xff] %v1538
        %v1540 = vld [vmem:[%s1306 + $0x39c] sm:$0xff]
        %1541 = vst [vmem:[%s1307 + $0x3a0] sm:$0xff] %v1540
        %v1542 = vld [vmem:[%s1306 + $0x3a0] sm:$0xff]
        %1543 = vst [vmem:[%s1307 + $0x3a8] sm:$0xff] %v1542
        %v1544 = vld [vmem:[%s1306 + $0x3a4] sm:$0xff]
        %1545 = vst [vmem:[%s1307 + $0x3b0] sm:$0xff] %v1544
        %v1546 = vld [vmem:[%s1306 + $0x3a8] sm:$0xff]
        %1547 = vst [vmem:[%s1307 + $0x3b8] sm:$0xff] %v1546
        %v1548 = vld [vmem:[%s1306 + $0x3c0] sm:$0xff]
        %1549 = vst [vmem:[%s1307 + $0x3c0] sm:$0xff] %v1548
        %v1550 = vld [vmem:[%s1306 + $0x3c4] sm:$0xff]
        %1551 = vst [vmem:[%s1307 + $0x3c8] sm:$0xff] %v1550
        %v1552 = vld [vmem:[%s1306 + $0x3c8] sm:$0xff]
        %1553 = vst [vmem:[%s1307 + $0x3d0] sm:$0xff] %v1552
        %v1554 = vld [vmem:[%s1306 + $0x3cc] sm:$0xff]
        %1555 = vst [vmem:[%s1307 + $0x3d8] sm:$0xff] %v1554
        %v1556 = vld [vmem:[%s1306 + $0x3d0] sm:$0xff]
        %1557 = vst [vmem:[%s1307 + $0x3e0] sm:$0xff] %v1556
        %v1558 = vld [vmem:[%s1306 + $0x3e8] sm:$0xff]
        %1559 = vst [vmem:[%s1307 + $0x3e8] sm:$0xff] %v1558
        %v1560 = vld [vmem:[%s1306 + $0x3ec] sm:$0xff]
        %1561 = vst [vmem:[%s1307 + $0x3f0] sm:$0xff] %v1560
        %v1562 = vld [vmem:[%s1306 + $0x3f0] sm:$0xff]
        %1563 = vst [vmem:[%s1307 + $0x3f8] sm:$0xff] %v1562
        %v1564 = vld [vmem:[%s1306 + $0x3f4] sm:$0xff]
        %1565 = vst [vmem:[%s1307 + $0x400] sm:$0xff] %v1564
        %v1566 = vld [vmem:[%s1306 + $0x3f8] sm:$0xff]
        %1567 = vst [vmem:[%s1307 + $0x408] sm:$0xff] %v1566
        %v1568 = vld [vmem:[%s1306 + $0x410] sm:$0xff]
        %1569 = vst [vmem:[%s1307 + $0x410] sm:$0xff] %v1568
        %v1570 = vld [vmem:[%s1306 + $0x414] sm:$0xff]
        %1571 = vst [vmem:[%s1307 + $0x418] sm:$0xff] %v1570
        %v1572 = vld [vmem:[%s1306 + $0x418] sm:$0xff]
        %1573 = vst [vmem:[%s1307 + $0x420] sm:$0xff] %v1572
        %v1574 = vld [vmem:[%s1306 + $0x41c] sm:$0xff]
        %1575 = vst [vmem:[%s1307 + $0x428] sm:$0xff] %v1574
        %v1576 = vld [vmem:[%s1306 + $0x420] sm:$0xff]
        %1577 = vst [vmem:[%s1307 + $0x430] sm:$0xff] %v1576
        %v1578 = vld [vmem:[%s1306 + $0x438] sm:$0xff]
        %1579 = vst [vmem:[%s1307 + $0x438] sm:$0xff] %v1578
        %v1580 = vld [vmem:[%s1306 + $0x43c] sm:$0xff]
        %1581 = vst [vmem:[%s1307 + $0x440] sm:$0xff] %v1580
        %v1582 = vld [vmem:[%s1306 + $0x440] sm:$0xff]
        %1583 = vst [vmem:[%s1307 + $0x448] sm:$0xff] %v1582
        %v1584 = vld [vmem:[%s1306 + $0x444] sm:$0xff]
        %1585 = vst [vmem:[%s1307 + $0x450] sm:$0xff] %v1584
        %v1586 = vld [vmem:[%s1306 + $0x448] sm:$0xff]
        %1587 = vst [vmem:[%s1307 + $0x458] sm:$0xff] %v1586
        %v1588 = vld [vmem:[%s1306 + $0x460] sm:$0xff]
        %1589 = vst [vmem:[%s1307 + $0x460] sm:$0xff] %v1588
        %v1590 = vld [vmem:[%s1306 + $0x464] sm:$0xff]
        %1591 = vst [vmem:[%s1307 + $0x468] sm:$0xff] %v1590
        %v1592 = vld [vmem:[%s1306 + $0x468] sm:$0xff]
        %1593 = vst [vmem:[%s1307 + $0x470] sm:$0xff] %v1592
        %v1594 = vld [vmem:[%s1306 + $0x46c] sm:$0xff]
        %1595 = vst [vmem:[%s1307 + $0x478] sm:$0xff] %v1594
        %v1596 = vld [vmem:[%s1306 + $0x470] sm:$0xff]
        %1597 = vst [vmem:[%s1307 + $0x480] sm:$0xff] %v1596
        %v1598 = vld [vmem:[%s1306 + $0x488] sm:$0xff]
        %1599 = vst [vmem:[%s1307 + $0x488] sm:$0xff] %v1598
        %v1600 = vld [vmem:[%s1306 + $0x48c] sm:$0xff]
        %1601 = vst [vmem:[%s1307 + $0x490] sm:$0xff] %v1600
        %v1602 = vld [vmem:[%s1306 + $0x490] sm:$0xff]
        %1603 = vst [vmem:[%s1307 + $0x498] sm:$0xff] %v1602
        %v1604 = vld [vmem:[%s1306 + $0x494] sm:$0xff]
        %1605 = vst [vmem:[%s1307 + $0x4a0] sm:$0xff] %v1604
        %v1606 = vld [vmem:[%s1306 + $0x498] sm:$0xff]
        %1607 = vst [vmem:[%s1307 + $0x4a8] sm:$0xff] %v1606
        %v1608 = vld [vmem:[%s1306 + $0x4b0] sm:$0xff]
        %1609 = vst [vmem:[%s1307 + $0x4b0] sm:$0xff] %v1608
        %v1610 = vld [vmem:[%s1306 + $0x4b4] sm:$0xff]
        %1611 = vst [vmem:[%s1307 + $0x4b8] sm:$0xff] %v1610
        %v1612 = vld [vmem:[%s1306 + $0x4b8] sm:$0xff]
        %1613 = vst [vmem:[%s1307 + $0x4c0] sm:$0xff] %v1612
        %v1614 = vld [vmem:[%s1306 + $0x4bc] sm:$0xff]
        %1615 = vst [vmem:[%s1307 + $0x4c8] sm:$0xff] %v1614
        %v1616 = vld [vmem:[%s1306 + $0x4c0] sm:$0xff]
        %1617 = vst [vmem:[%s1307 + $0x4d0] sm:$0xff] %v1616
        %v1618 = vld [vmem:[%s1306 + $0x4d8] sm:$0xff]
        %1619 = vst [vmem:[%s1307 + $0x4d8] sm:$0xff] %v1618
        %v1620 = vld [vmem:[%s1306 + $0x4dc] sm:$0xff]
        %1621 = vst [vmem:[%s1307 + $0x4e0] sm:$0xff] %v1620
        %v1622 = vld [vmem:[%s1306 + $0x4e0] sm:$0xff]
        %1623 = vst [vmem:[%s1307 + $0x4e8] sm:$0xff] %v1622
        %v1624 = vld [vmem:[%s1306 + $0x4e4] sm:$0xff]
        %1625 = vst [vmem:[%s1307 + $0x4f0] sm:$0xff] %v1624
        %v1626 = vld [vmem:[%s1306 + $0x4e8] sm:$0xff]
        %1627 = vst [vmem:[%s1307 + $0x4f8] sm:$0xff] %v1626
        %v1628 = vld [vmem:[%s1306 + $0x500] sm:$0xff]
        %1629 = vst [vmem:[%s1307 + $0x500] sm:$0xff] %v1628
        %v1630 = vld [vmem:[%s1306 + $0x504] sm:$0xff]
        %1631 = vst [vmem:[%s1307 + $0x508] sm:$0xff] %v1630
        %v1632 = vld [vmem:[%s1306 + $0x508] sm:$0xff]
        %1633 = vst [vmem:[%s1307 + $0x510] sm:$0xff] %v1632
        %v1634 = vld [vmem:[%s1306 + $0x50c] sm:$0xff]
        %1635 = vst [vmem:[%s1307 + $0x518] sm:$0xff] %v1634
        %v1636 = vld [vmem:[%s1306 + $0x510] sm:$0xff]
        %1637 = vst [vmem:[%s1307 + $0x520] sm:$0xff] %v1636
        %v1638 = vld [vmem:[%s1306 + $0x528] sm:$0xff]
        %1639 = vst [vmem:[%s1307 + $0x528] sm:$0xff] %v1638
        %v1640 = vld [vmem:[%s1306 + $0x52c] sm:$0xff]
        %1641 = vst [vmem:[%s1307 + $0x530] sm:$0xff] %v1640
        %v1642 = vld [vmem:[%s1306 + $0x530] sm:$0xff]
        %1643 = vst [vmem:[%s1307 + $0x538] sm:$0xff] %v1642
        %v1644 = vld [vmem:[%s1306 + $0x534] sm:$0xff]
        %1645 = vst [vmem:[%s1307 + $0x540] sm:$0xff] %v1644
        %v1646 = vld [vmem:[%s1306 + $0x538] sm:$0xff]
        %1647 = vst [vmem:[%s1307 + $0x548] sm:$0xff] %v1646
        %v1648 = vld [vmem:[%s1306 + $0x550] sm:$0xff]
        %1649 = vst [vmem:[%s1307 + $0x550] sm:$0xff] %v1648
        %v1650 = vld [vmem:[%s1306 + $0x554] sm:$0xff]
        %1651 = vst [vmem:[%s1307 + $0x558] sm:$0xff] %v1650
        %v1652 = vld [vmem:[%s1306 + $0x558] sm:$0xff]
        %1653 = vst [vmem:[%s1307 + $0x560] sm:$0xff] %v1652
        %v1654 = vld [vmem:[%s1306 + $0x55c] sm:$0xff]
        %1655 = vst [vmem:[%s1307 + $0x568] sm:$0xff] %v1654
        %v1656 = vld [vmem:[%s1306 + $0x560] sm:$0xff]
        %1657 = vst [vmem:[%s1307 + $0x570] sm:$0xff] %v1656
        %v1658 = vld [vmem:[%s1306 + $0x578] sm:$0xff]
        %1659 = vst [vmem:[%s1307 + $0x578] sm:$0xff] %v1658
        %v1660 = vld [vmem:[%s1306 + $0x57c] sm:$0xff]
        %1661 = vst [vmem:[%s1307 + $0x580] sm:$0xff] %v1660
        %v1662 = vld [vmem:[%s1306 + $0x580] sm:$0xff]
        %1663 = vst [vmem:[%s1307 + $0x588] sm:$0xff] %v1662
        %v1664 = vld [vmem:[%s1306 + $0x584] sm:$0xff]
        %1665 = vst [vmem:[%s1307 + $0x590] sm:$0xff] %v1664
        %v1666 = vld [vmem:[%s1306 + $0x588] sm:$0xff]
        %1667 = vst [vmem:[%s1307 + $0x598] sm:$0xff] %v1666
        %v1668 = vld [vmem:[%s1306 + $0x5a0] sm:$0xff]
        %1669 = vst [vmem:[%s1307 + $0x5a0] sm:$0xff] %v1668
        %v1670 = vld [vmem:[%s1306 + $0x5a4] sm:$0xff]
        %1671 = vst [vmem:[%s1307 + $0x5a8] sm:$0xff] %v1670
        %v1672 = vld [vmem:[%s1306 + $0x5a8] sm:$0xff]
        %1673 = vst [vmem:[%s1307 + $0x5b0] sm:$0xff] %v1672
        %v1674 = vld [vmem:[%s1306 + $0x5ac] sm:$0xff]
        %1675 = vst [vmem:[%s1307 + $0x5b8] sm:$0xff] %v1674
        %v1676 = vld [vmem:[%s1306 + $0x5b0] sm:$0xff]
        %1677 = vst [vmem:[%s1307 + $0x5c0] sm:$0xff] %v1676
        %v1678 = vld [vmem:[%s1306 + $0x5c8] sm:$0xff]
        %1679 = vst [vmem:[%s1307 + $0x5c8] sm:$0xff] %v1678
        %v1680 = vld [vmem:[%s1306 + $0x5cc] sm:$0xff]
        %1681 = vst [vmem:[%s1307 + $0x5d0] sm:$0xff] %v1680
        %v1682 = vld [vmem:[%s1306 + $0x5d0] sm:$0xff]
        %1683 = vst [vmem:[%s1307 + $0x5d8] sm:$0xff] %v1682
        %v1684 = vld [vmem:[%s1306 + $0x5d4] sm:$0xff]
        %1685 = vst [vmem:[%s1307 + $0x5e0] sm:$0xff] %v1684
        %v1686 = vld [vmem:[%s1306 + $0x5d8] sm:$0xff]
        %1687 = vst [vmem:[%s1307 + $0x5e8] sm:$0xff] %v1686
        %v1688 = vld [vmem:[%s1306 + $0x5f0] sm:$0xff]
        %1689 = vst [vmem:[%s1307 + $0x5f0] sm:$0xff] %v1688
        %v1690 = vld [vmem:[%s1306 + $0x5f4] sm:$0xff]
        %1691 = vst [vmem:[%s1307 + $0x5f8] sm:$0xff] %v1690
        %v1692 = vld [vmem:[%s1306 + $0x5f8] sm:$0xff]
        %1693 = vst [vmem:[%s1307 + $0x600] sm:$0xff] %v1692
        %v1694 = vld [vmem:[%s1306 + $0x5fc] sm:$0xff]
        %1695 = vst [vmem:[%s1307 + $0x608] sm:$0xff] %v1694
        %v1696 = vld [vmem:[%s1306 + $0x600] sm:$0xff]
        %1697 = vst [vmem:[%s1307 + $0x610] sm:$0xff] %v1696
        %v1698 = vld [vmem:[%s1306 + $0x618] sm:$0xff]
        %1699 = vst [vmem:[%s1307 + $0x618] sm:$0xff] %v1698
        %v1700 = vld [vmem:[%s1306 + $0x61c] sm:$0xff]
        %1701 = vst [vmem:[%s1307 + $0x620] sm:$0xff] %v1700
        %v1702 = vld [vmem:[%s1306 + $0x620] sm:$0xff]
        %1703 = vst [vmem:[%s1307 + $0x628] sm:$0xff] %v1702
        %v1704 = vld [vmem:[%s1306 + $0x624] sm:$0xff]
        %1705 = vst [vmem:[%s1307 + $0x630] sm:$0xff] %v1704
        %v1706 = vld [vmem:[%s1306 + $0x628] sm:$0xff]
        %1707 = vst [vmem:[%s1307 + $0x638] sm:$0xff] %v1706
        %v1708 = vld [vmem:[%s1306 + $0x640] sm:$0xff]
        %1709 = vst [vmem:[%s1307 + $0x640] sm:$0xff] %v1708
        %v1710 = vld [vmem:[%s1306 + $0x644] sm:$0xff]
        %1711 = vst [vmem:[%s1307 + $0x648] sm:$0xff] %v1710
        %v1712 = vld [vmem:[%s1306 + $0x648] sm:$0xff]
        %1713 = vst [vmem:[%s1307 + $0x650] sm:$0xff] %v1712
        %v1714 = vld [vmem:[%s1306 + $0x64c] sm:$0xff]
        %1715 = vst [vmem:[%s1307 + $0x658] sm:$0xff] %v1714
        %v1716 = vld [vmem:[%s1306 + $0x650] sm:$0xff]
        %1717 = vst [vmem:[%s1307 + $0x660] sm:$0xff] %v1716
        %v1718 = vld [vmem:[%s1306 + $0x668] sm:$0xff]
        %1719 = vst [vmem:[%s1307 + $0x668] sm:$0xff] %v1718
        %v1720 = vld [vmem:[%s1306 + $0x66c] sm:$0xff]
        %1721 = vst [vmem:[%s1307 + $0x670] sm:$0xff] %v1720
        %v1722 = vld [vmem:[%s1306 + $0x670] sm:$0xff]
        %1723 = vst [vmem:[%s1307 + $0x678] sm:$0xff] %v1722
        %v1724 = vld [vmem:[%s1306 + $0x674] sm:$0xff]
        %1725 = vst [vmem:[%s1307 + $0x680] sm:$0xff] %v1724
        %v1726 = vld [vmem:[%s1306 + $0x678] sm:$0xff]
        %1727 = vst [vmem:[%s1307 + $0x688] sm:$0xff] %v1726
        %v1728 = vld [vmem:[%s1306 + $0x690] sm:$0xff]
        %1729 = vst [vmem:[%s1307 + $0x690] sm:$0xff] %v1728
        %v1730 = vld [vmem:[%s1306 + $0x694] sm:$0xff]
        %1731 = vst [vmem:[%s1307 + $0x698] sm:$0xff] %v1730
        %v1732 = vld [vmem:[%s1306 + $0x698] sm:$0xff]
        %1733 = vst [vmem:[%s1307 + $0x6a0] sm:$0xff] %v1732
        %v1734 = vld [vmem:[%s1306 + $0x69c] sm:$0xff]
        %1735 = vst [vmem:[%s1307 + $0x6a8] sm:$0xff] %v1734
        %v1736 = vld [vmem:[%s1306 + $0x6a0] sm:$0xff]
        %1737 = vst [vmem:[%s1307 + $0x6b0] sm:$0xff] %v1736
        %v1738 = vld [vmem:[%s1306 + $0x6b8] sm:$0xff]
        %1739 = vst [vmem:[%s1307 + $0x6b8] sm:$0xff] %v1738
        %v1740 = vld [vmem:[%s1306 + $0x6bc] sm:$0xff]
        %1741 = vst [vmem:[%s1307 + $0x6c0] sm:$0xff] %v1740
        %v1742 = vld [vmem:[%s1306 + $0x6c0] sm:$0xff]
        %1743 = vst [vmem:[%s1307 + $0x6c8] sm:$0xff] %v1742
        %v1744 = vld [vmem:[%s1306 + $0x6c4] sm:$0xff]
        %1745 = vst [vmem:[%s1307 + $0x6d0] sm:$0xff] %v1744
        %v1746 = vld [vmem:[%s1306 + $0x6c8] sm:$0xff]
        %1747 = vst [vmem:[%s1307 + $0x6d8] sm:$0xff] %v1746
        %v1748 = vld [vmem:[%s1306 + $0x6e0] sm:$0xff]
        %1749 = vst [vmem:[%s1307 + $0x6e0] sm:$0xff] %v1748
        %v1750 = vld [vmem:[%s1306 + $0x6e4] sm:$0xff]
        %1751 = vst [vmem:[%s1307 + $0x6e8] sm:$0xff] %v1750
        %v1752 = vld [vmem:[%s1306 + $0x6e8] sm:$0xff]
        %1753 = vst [vmem:[%s1307 + $0x6f0] sm:$0xff] %v1752
        %v1754 = vld [vmem:[%s1306 + $0x6ec] sm:$0xff]
        %1755 = vst [vmem:[%s1307 + $0x6f8] sm:$0xff] %v1754
        %v1756 = vld [vmem:[%s1306 + $0x6f0] sm:$0xff]
        %1757 = vst [vmem:[%s1307 + $0x700] sm:$0xff] %v1756
        %v1758 = vld [vmem:[%s1306 + $0x708] sm:$0xff]
        %1759 = vst [vmem:[%s1307 + $0x708] sm:$0xff] %v1758
        %v1760 = vld [vmem:[%s1306 + $0x70c] sm:$0xff]
        %1761 = vst [vmem:[%s1307 + $0x710] sm:$0xff] %v1760
        %v1762 = vld [vmem:[%s1306 + $0x710] sm:$0xff]
        %1763 = vst [vmem:[%s1307 + $0x718] sm:$0xff] %v1762
        %v1764 = vld [vmem:[%s1306 + $0x714] sm:$0xff]
        %1765 = vst [vmem:[%s1307 + $0x720] sm:$0xff] %v1764
        %v1766 = vld [vmem:[%s1306 + $0x718] sm:$0xff]
        %1767 = vst [vmem:[%s1307 + $0x728] sm:$0xff] %v1766
        %v1768 = vld [vmem:[%s1306 + $0x730] sm:$0xff]
        %1769 = vst [vmem:[%s1307 + $0x730] sm:$0xff] %v1768
        %v1770 = vld [vmem:[%s1306 + $0x734] sm:$0xff]
        %1771 = vst [vmem:[%s1307 + $0x738] sm:$0xff] %v1770
        %v1772 = vld [vmem:[%s1306 + $0x738] sm:$0xff]
        %1773 = vst [vmem:[%s1307 + $0x740] sm:$0xff] %v1772
        %v1774 = vld [vmem:[%s1306 + $0x73c] sm:$0xff]
        %1775 = vst [vmem:[%s1307 + $0x748] sm:$0xff] %v1774
        %v1776 = vld [vmem:[%s1306 + $0x740] sm:$0xff]
        %1777 = vst [vmem:[%s1307 + $0x750] sm:$0xff] %v1776
        %v1778 = vld [vmem:[%s1306 + $0x758] sm:$0xff]
        %1779 = vst [vmem:[%s1307 + $0x758] sm:$0xff] %v1778
        %v1780 = vld [vmem:[%s1306 + $0x75c] sm:$0xff]
        %1781 = vst [vmem:[%s1307 + $0x760] sm:$0xff] %v1780
        %v1782 = vld [vmem:[%s1306 + $0x760] sm:$0xff]
        %1783 = vst [vmem:[%s1307 + $0x768] sm:$0xff] %v1782
        %v1784 = vld [vmem:[%s1306 + $0x764] sm:$0xff]
        %1785 = vst [vmem:[%s1307 + $0x770] sm:$0xff] %v1784
        %v1786 = vld [vmem:[%s1306 + $0x768] sm:$0xff]
        %1787 = vst [vmem:[%s1307 + $0x778] sm:$0xff] %v1786
        %v1788 = vld [vmem:[%s1306 + $0x780] sm:$0xff]
        %1789 = vst [vmem:[%s1307 + $0x780] sm:$0xff] %v1788
        %v1790 = vld [vmem:[%s1306 + $0x784] sm:$0xff]
        %1791 = vst [vmem:[%s1307 + $0x788] sm:$0xff] %v1790
        %v1792 = vld [vmem:[%s1306 + $0x788] sm:$0xff]
        %1793 = vst [vmem:[%s1307 + $0x790] sm:$0xff] %v1792
        %v1794 = vld [vmem:[%s1306 + $0x78c] sm:$0xff]
        %1795 = vst [vmem:[%s1307 + $0x798] sm:$0xff] %v1794
        %v1796 = vld [vmem:[%s1306 + $0x790] sm:$0xff]
        %1797 = vst [vmem:[%s1307 + $0x7a0] sm:$0xff] %v1796
        %v1798 = vld [vmem:[%s1306 + $0x7a8] sm:$0xff]
        %1799 = vst [vmem:[%s1307 + $0x7a8] sm:$0xff] %v1798
        %v1800 = vld [vmem:[%s1306 + $0x7ac] sm:$0xff]
        %1801 = vst [vmem:[%s1307 + $0x7b0] sm:$0xff] %v1800
        %v1802 = vld [vmem:[%s1306 + $0x7b0] sm:$0xff]
        %1803 = vst [vmem:[%s1307 + $0x7b8] sm:$0xff] %v1802
        %v1804 = vld [vmem:[%s1306 + $0x7b4] sm:$0xff]
        %1805 = vst [vmem:[%s1307 + $0x7c0] sm:$0xff] %v1804
        %v1806 = vld [vmem:[%s1306 + $0x7b8] sm:$0xff]
        %1807 = vst [vmem:[%s1307 + $0x7c8] sm:$0xff] %v1806
        %v1808 = vld [vmem:[%s1306 + $0x7d0] sm:$0xff]
        %1809 = vst [vmem:[%s1307 + $0x7d0] sm:$0xff] %v1808
        %v1810 = vld [vmem:[%s1306 + $0x7d4] sm:$0xff]
        %1811 = vst [vmem:[%s1307 + $0x7d8] sm:$0xff] %v1810
        %v1812 = vld [vmem:[%s1306 + $0x7d8] sm:$0xff]
        %1813 = vst [vmem:[%s1307 + $0x7e0] sm:$0xff] %v1812
        %v1814 = vld [vmem:[%s1306 + $0x7dc] sm:$0xff]
        %1815 = vst [vmem:[%s1307 + $0x7e8] sm:$0xff] %v1814
        %v1816 = vld [vmem:[%s1306 + $0x7e0] sm:$0xff]
        %1817 = vst [vmem:[%s1307 + $0x7f0] sm:$0xff] %v1816
        %v1818 = vld [vmem:[%s1306 + $0x7f8] sm:$0xff]
        %1819 = vst [vmem:[%s1307 + $0x7f8] sm:$0xff] %v1818
        %v1820 = vld [vmem:[%s1306 + $0x7fc] sm:$0xff]
        %1821 = vst [vmem:[%s1307 + $0x800] sm:$0xff] %v1820
        %v1822 = vld [vmem:[%s1306 + $0x800] sm:$0xff]
        %1823 = vst [vmem:[%s1307 + $0x808] sm:$0xff] %v1822
        %v1824 = vld [vmem:[%s1306 + $0x804] sm:$0xff]
        %1825 = vst [vmem:[%s1307 + $0x810] sm:$0xff] %v1824
        %v1826 = vld [vmem:[%s1306 + $0x808] sm:$0xff]
        %1827 = vst [vmem:[%s1307 + $0x818] sm:$0xff] %v1826
        %v1828 = vld [vmem:[%s1306 + $0x820] sm:$0xff]
        %1829 = vst [vmem:[%s1307 + $0x820] sm:$0xff] %v1828
        %v1830 = vld [vmem:[%s1306 + $0x824] sm:$0xff]
        %1831 = vst [vmem:[%s1307 + $0x828] sm:$0xff] %v1830
        %v1832 = vld [vmem:[%s1306 + $0x828] sm:$0xff]
        %1833 = vst [vmem:[%s1307 + $0x830] sm:$0xff] %v1832
        %v1834 = vld [vmem:[%s1306 + $0x82c] sm:$0xff]
        %1835 = vst [vmem:[%s1307 + $0x838] sm:$0xff] %v1834
        %v1836 = vld [vmem:[%s1306 + $0x830] sm:$0xff]
        %1837 = vst [vmem:[%s1307 + $0x840] sm:$0xff] %v1836
        %v1838 = vld [vmem:[%s1306 + $0x848] sm:$0xff]
        %1839 = vst [vmem:[%s1307 + $0x848] sm:$0xff] %v1838
        %v1840 = vld [vmem:[%s1306 + $0x84c] sm:$0xff]
        %1841 = vst [vmem:[%s1307 + $0x850] sm:$0xff] %v1840
        %v1842 = vld [vmem:[%s1306 + $0x850] sm:$0xff]
        %1843 = vst [vmem:[%s1307 + $0x858] sm:$0xff] %v1842
        %v1844 = vld [vmem:[%s1306 + $0x854] sm:$0xff]
        %1845 = vst [vmem:[%s1307 + $0x860] sm:$0xff] %v1844
        %v1846 = vld [vmem:[%s1306 + $0x858] sm:$0xff]
        %1847 = vst [vmem:[%s1307 + $0x868] sm:$0xff] %v1846
        %v1848 = vld [vmem:[%s1306 + $0x870] sm:$0xff]
        %1849 = vst [vmem:[%s1307 + $0x870] sm:$0xff] %v1848
        %v1850 = vld [vmem:[%s1306 + $0x874] sm:$0xff]
        %1851 = vst [vmem:[%s1307 + $0x878] sm:$0xff] %v1850
        %v1852 = vld [vmem:[%s1306 + $0x878] sm:$0xff]
        %1853 = vst [vmem:[%s1307 + $0x880] sm:$0xff] %v1852
        %v1854 = vld [vmem:[%s1306 + $0x87c] sm:$0xff]
        %1855 = vst [vmem:[%s1307 + $0x888] sm:$0xff] %v1854
        %v1856 = vld [vmem:[%s1306 + $0x880] sm:$0xff]
        %1857 = vst [vmem:[%s1307 + $0x890] sm:$0xff] %v1856
        %v1858 = vld [vmem:[%s1306 + $0x898] sm:$0xff]
        %1859 = vst [vmem:[%s1307 + $0x898] sm:$0xff] %v1858
        %v1860 = vld [vmem:[%s1306 + $0x89c] sm:$0xff]
        %1861 = vst [vmem:[%s1307 + $0x8a0] sm:$0xff] %v1860
        %v1862 = vld [vmem:[%s1306 + $0x8a0] sm:$0xff]
        %1863 = vst [vmem:[%s1307 + $0x8a8] sm:$0xff] %v1862
        %v1864 = vld [vmem:[%s1306 + $0x8a4] sm:$0xff]
        %1865 = vst [vmem:[%s1307 + $0x8b0] sm:$0xff] %v1864
        %v1866 = vld [vmem:[%s1306 + $0x8a8] sm:$0xff]
        %1867 = vst [vmem:[%s1307 + $0x8b8] sm:$0xff] %v1866
        %v1868 = vld [vmem:[%s1306 + $0x8c0] sm:$0xff]
        %1869 = vst [vmem:[%s1307 + $0x8c0] sm:$0xff] %v1868
        %v1870 = vld [vmem:[%s1306 + $0x8c4] sm:$0xff]
        %1871 = vst [vmem:[%s1307 + $0x8c8] sm:$0xff] %v1870
        %v1872 = vld [vmem:[%s1306 + $0x8c8] sm:$0xff]
        %1873 = vst [vmem:[%s1307 + $0x8d0] sm:$0xff] %v1872
        %v1874 = vld [vmem:[%s1306 + $0x8cc] sm:$0xff]
        %1875 = vst [vmem:[%s1307 + $0x8d8] sm:$0xff] %v1874
        %v1876 = vld [vmem:[%s1306 + $0x8d0] sm:$0xff]
        %1877 = vst [vmem:[%s1307 + $0x8e0] sm:$0xff] %v1876
        %v1878 = vld [vmem:[%s1306 + $0x8e8] sm:$0xff]
        %1879 = vst [vmem:[%s1307 + $0x8e8] sm:$0xff] %v1878
        %v1880 = vld [vmem:[%s1306 + $0x8ec] sm:$0xff]
        %1881 = vst [vmem:[%s1307 + $0x8f0] sm:$0xff] %v1880
        %v1882 = vld [vmem:[%s1306 + $0x8f0] sm:$0xff]
        %1883 = vst [vmem:[%s1307 + $0x8f8] sm:$0xff] %v1882
        %v1884 = vld [vmem:[%s1306 + $0x8f4] sm:$0xff]
        %1885 = vst [vmem:[%s1307 + $0x900] sm:$0xff] %v1884
        %v1886 = vld [vmem:[%s1306 + $0x8f8] sm:$0xff]
        %1887 = vst [vmem:[%s1307 + $0x908] sm:$0xff] %v1886
        %v1888 = vld [vmem:[%s1306 + $0x910] sm:$0xff]
        %1889 = vst [vmem:[%s1307 + $0x910] sm:$0xff] %v1888
        %v1890 = vld [vmem:[%s1306 + $0x914] sm:$0xff]
        %1891 = vst [vmem:[%s1307 + $0x918] sm:$0xff] %v1890
        %v1892 = vld [vmem:[%s1306 + $0x918] sm:$0xff]
        %1893 = vst [vmem:[%s1307 + $0x920] sm:$0xff] %v1892
        %v1894 = vld [vmem:[%s1306 + $0x91c] sm:$0xff]
        %1895 = vst [vmem:[%s1307 + $0x928] sm:$0xff] %v1894
        %v1896 = vld [vmem:[%s1306 + $0x920] sm:$0xff]
        %1897 = vst [vmem:[%s1307 + $0x930] sm:$0xff] %v1896
        %v1898 = vld [vmem:[%s1306 + $0x938] sm:$0xff]
        %1899 = vst [vmem:[%s1307 + $0x938] sm:$0xff] %v1898
        %v1900 = vld [vmem:[%s1306 + $0x93c] sm:$0xff]
        %1901 = vst [vmem:[%s1307 + $0x940] sm:$0xff] %v1900
        %v1902 = vld [vmem:[%s1306 + $0x940] sm:$0xff]
        %1903 = vst [vmem:[%s1307 + $0x948] sm:$0xff] %v1902
        %v1904 = vld [vmem:[%s1306 + $0x944] sm:$0xff]
        %1905 = vst [vmem:[%s1307 + $0x950] sm:$0xff] %v1904
        %v1906 = vld [vmem:[%s1306 + $0x948] sm:$0xff]
        %1907 = vst [vmem:[%s1307 + $0x958] sm:$0xff] %v1906
        %v1908 = vld [vmem:[%s1306 + $0x960] sm:$0xff]
        %1909 = vst [vmem:[%s1307 + $0x960] sm:$0xff] %v1908
        %v1910 = vld [vmem:[%s1306 + $0x964] sm:$0xff]
        %1911 = vst [vmem:[%s1307 + $0x968] sm:$0xff] %v1910
        %v1912 = vld [vmem:[%s1306 + $0x968] sm:$0xff]
        %1913 = vst [vmem:[%s1307 + $0x970] sm:$0xff] %v1912
        %v1914 = vld [vmem:[%s1306 + $0x96c] sm:$0xff]
        %1915 = vst [vmem:[%s1307 + $0x978] sm:$0xff] %v1914
        %v1916 = vld [vmem:[%s1306 + $0x970] sm:$0xff]
        %1917 = vst [vmem:[%s1307 + $0x980] sm:$0xff] %v1916
        %v1918 = vld [vmem:[%s1306 + $0x988] sm:$0xff]
        %1919 = vst [vmem:[%s1307 + $0x988] sm:$0xff] %v1918
        %v1920 = vld [vmem:[%s1306 + $0x98c] sm:$0xff]
        %1921 = vst [vmem:[%s1307 + $0x990] sm:$0xff] %v1920
        %v1922 = vld [vmem:[%s1306 + $0x990] sm:$0xff]
        %1923 = vst [vmem:[%s1307 + $0x998] sm:$0xff] %v1922
        %v1924 = vld [vmem:[%s1306 + $0x994] sm:$0xff]
        %1925 = vst [vmem:[%s1307 + $0x9a0] sm:$0xff] %v1924
        %v1926 = vld [vmem:[%s1306 + $0x998] sm:$0xff]
        %1927 = vst [vmem:[%s1307 + $0x9a8] sm:$0xff] %v1926
        %v1928 = vld [vmem:[%s1306 + $0x9b0] sm:$0xff]
        %1929 = vst [vmem:[%s1307 + $0x9b0] sm:$0xff] %v1928
        %v1930 = vld [vmem:[%s1306 + $0x9b4] sm:$0xff]
        %1931 = vst [vmem:[%s1307 + $0x9b8] sm:$0xff] %v1930
        %v1932 = vld [vmem:[%s1306 + $0x9b8] sm:$0xff]
        %1933 = vst [vmem:[%s1307 + $0x9c0] sm:$0xff] %v1932
        %v1934 = vld [vmem:[%s1306 + $0x9bc] sm:$0xff]
        %1935 = vst [vmem:[%s1307 + $0x9c8] sm:$0xff] %v1934
        %v1936 = vld [vmem:[%s1306 + $0x9c0] sm:$0xff]
        %1937 = vst [vmem:[%s1307 + $0x9d0] sm:$0xff] %v1936
        %v1938 = vld [vmem:[%s1306 + $0x9d8] sm:$0xff]
        %1939 = vst [vmem:[%s1307 + $0x9d8] sm:$0xff] %v1938
        %v1940 = vld [vmem:[%s1306 + $0x9dc] sm:$0xff]
        %1941 = vst [vmem:[%s1307 + $0x9e0] sm:$0xff] %v1940
        %v1942 = vld [vmem:[%s1306 + $0x9e0] sm:$0xff]
        %1943 = vst [vmem:[%s1307 + $0x9e8] sm:$0xff] %v1942
        %v1944 = vld [vmem:[%s1306 + $0x9e4] sm:$0xff]
        %1945 = vst [vmem:[%s1307 + $0x9f0] sm:$0xff] %v1944
        %v1946 = vld [vmem:[%s1306 + $0x9e8] sm:$0xff]
        %1947 = vst [vmem:[%s1307 + $0x9f8] sm:$0xff] %v1946
        %v1948 = vld [vmem:[%s1306 + $0xa00] sm:$0xff]
        %1949 = vst [vmem:[%s1307 + $0xa00] sm:$0xff] %v1948
        %v1950 = vld [vmem:[%s1306 + $0xa04] sm:$0xff]
        %1951 = vst [vmem:[%s1307 + $0xa08] sm:$0xff] %v1950
        %v1952 = vld [vmem:[%s1306 + $0xa08] sm:$0xff]
        %1953 = vst [vmem:[%s1307 + $0xa10] sm:$0xff] %v1952
        %v1954 = vld [vmem:[%s1306 + $0xa0c] sm:$0xff]
        %1955 = vst [vmem:[%s1307 + $0xa18] sm:$0xff] %v1954
        %v1956 = vld [vmem:[%s1306 + $0xa10] sm:$0xff]
        %1957 = vst [vmem:[%s1307 + $0xa20] sm:$0xff] %v1956
        %v1958 = vld [vmem:[%s1306 + $0xa28] sm:$0xff]
        %1959 = vst [vmem:[%s1307 + $0xa28] sm:$0xff] %v1958
        %v1960 = vld [vmem:[%s1306 + $0xa2c] sm:$0xff]
        %1961 = vst [vmem:[%s1307 + $0xa30] sm:$0xff] %v1960
        %v1962 = vld [vmem:[%s1306 + $0xa30] sm:$0xff]
        %1963 = vst [vmem:[%s1307 + $0xa38] sm:$0xff] %v1962
        %v1964 = vld [vmem:[%s1306 + $0xa34] sm:$0xff]
        %1965 = vst [vmem:[%s1307 + $0xa40] sm:$0xff] %v1964
        %v1966 = vld [vmem:[%s1306 + $0xa38] sm:$0xff]
        %1967 = vst [vmem:[%s1307 + $0xa48] sm:$0xff] %v1966
        %v1968 = vld [vmem:[%s1306 + $0xa50] sm:$0xff]
        %1969 = vst [vmem:[%s1307 + $0xa50] sm:$0xff] %v1968
        %v1970 = vld [vmem:[%s1306 + $0xa54] sm:$0xff]
        %1971 = vst [vmem:[%s1307 + $0xa58] sm:$0xff] %v1970
        %v1972 = vld [vmem:[%s1306 + $0xa58] sm:$0xff]
        %1973 = vst [vmem:[%s1307 + $0xa60] sm:$0xff] %v1972
        %v1974 = vld [vmem:[%s1306 + $0xa5c] sm:$0xff]
        %1975 = vst [vmem:[%s1307 + $0xa68] sm:$0xff] %v1974
        %v1976 = vld [vmem:[%s1306 + $0xa60] sm:$0xff]
        %1977 = vst [vmem:[%s1307 + $0xa70] sm:$0xff] %v1976
        %v1978 = vld [vmem:[%s1306 + $0xa78] sm:$0xff]
        %1979 = vst [vmem:[%s1307 + $0xa78] sm:$0xff] %v1978
        %v1980 = vld [vmem:[%s1306 + $0xa7c] sm:$0xff]
        %1981 = vst [vmem:[%s1307 + $0xa80] sm:$0xff] %v1980
        %v1982 = vld [vmem:[%s1306 + $0xa80] sm:$0xff]
        %1983 = vst [vmem:[%s1307 + $0xa88] sm:$0xff] %v1982
        %v1984 = vld [vmem:[%s1306 + $0xa84] sm:$0xff]
        %1985 = vst [vmem:[%s1307 + $0xa90] sm:$0xff] %v1984
        %v1986 = vld [vmem:[%s1306 + $0xa88] sm:$0xff]
        %1987 = vst [vmem:[%s1307 + $0xa98] sm:$0xff] %v1986
        %v1988 = vld [vmem:[%s1306 + $0xaa0] sm:$0xff]
        %1989 = vst [vmem:[%s1307 + $0xaa0] sm:$0xff] %v1988
        %v1990 = vld [vmem:[%s1306 + $0xaa4] sm:$0xff]
        %1991 = vst [vmem:[%s1307 + $0xaa8] sm:$0xff] %v1990
        %v1992 = vld [vmem:[%s1306 + $0xaa8] sm:$0xff]
        %1993 = vst [vmem:[%s1307 + $0xab0] sm:$0xff] %v1992
        %v1994 = vld [vmem:[%s1306 + $0xaac] sm:$0xff]
        %1995 = vst [vmem:[%s1307 + $0xab8] sm:$0xff] %v1994
        %v1996 = vld [vmem:[%s1306 + $0xab0] sm:$0xff]
        %1997 = vst [vmem:[%s1307 + $0xac0] sm:$0xff] %v1996
        %v1998 = vld [vmem:[%s1306 + $0xac8] sm:$0xff]
        %1999 = vst [vmem:[%s1307 + $0xac8] sm:$0xff] %v1998
        %v2000 = vld [vmem:[%s1306 + $0xacc] sm:$0xff]
        %2001 = vst [vmem:[%s1307 + $0xad0] sm:$0xff] %v2000
        %v2002 = vld [vmem:[%s1306 + $0xad0] sm:$0xff]
        %2003 = vst [vmem:[%s1307 + $0xad8] sm:$0xff] %v2002
        %v2004 = vld [vmem:[%s1306 + $0xad4] sm:$0xff]
        %2005 = vst [vmem:[%s1307 + $0xae0] sm:$0xff] %v2004
        %v2006 = vld [vmem:[%s1306 + $0xad8] sm:$0xff]
        %2007 = vst [vmem:[%s1307 + $0xae8] sm:$0xff] %v2006
        %v2008 = vld [vmem:[%s1306 + $0xaf0] sm:$0xff]
        %2009 = vst [vmem:[%s1307 + $0xaf0] sm:$0xff] %v2008
        %v2010 = vld [vmem:[%s1306 + $0xaf4] sm:$0xff]
        %2011 = vst [vmem:[%s1307 + $0xaf8] sm:$0xff] %v2010
        %v2012 = vld [vmem:[%s1306 + $0xaf8] sm:$0xff]
        %2013 = vst [vmem:[%s1307 + $0xb00] sm:$0xff] %v2012
        %v2014 = vld [vmem:[%s1306 + $0xafc] sm:$0xff]
        %2015 = vst [vmem:[%s1307 + $0xb08] sm:$0xff] %v2014
        %v2016 = vld [vmem:[%s1306 + $0xb00] sm:$0xff]
        %2017 = vst [vmem:[%s1307 + $0xb10] sm:$0xff] %v2016
        %v2018 = vld [vmem:[%s1306 + $0xb18] sm:$0xff]
        %2019 = vst [vmem:[%s1307 + $0xb18] sm:$0xff] %v2018
        %v2020 = vld [vmem:[%s1306 + $0xb1c] sm:$0xff]
        %2021 = vst [vmem:[%s1307 + $0xb20] sm:$0xff] %v2020
        %v2022 = vld [vmem:[%s1306 + $0xb20] sm:$0xff]
        %2023 = vst [vmem:[%s1307 + $0xb28] sm:$0xff] %v2022
        %v2024 = vld [vmem:[%s1306 + $0xb24] sm:$0xff]
        %2025 = vst [vmem:[%s1307 + $0xb30] sm:$0xff] %v2024
        %v2026 = vld [vmem:[%s1306 + $0xb28] sm:$0xff]
        %2027 = vst [vmem:[%s1307 + $0xb38] sm:$0xff] %v2026
        %v2028 = vld [vmem:[%s1306 + $0xb40] sm:$0xff]
        %2029 = vst [vmem:[%s1307 + $0xb40] sm:$0xff] %v2028
        %v2030 = vld [vmem:[%s1306 + $0xb44] sm:$0xff]
        %2031 = vst [vmem:[%s1307 + $0xb48] sm:$0xff] %v2030
        %v2032 = vld [vmem:[%s1306 + $0xb48] sm:$0xff]
        %2033 = vst [vmem:[%s1307 + $0xb50] sm:$0xff] %v2032
        %v2034 = vld [vmem:[%s1306 + $0xb4c] sm:$0xff]
        %2035 = vst [vmem:[%s1307 + $0xb58] sm:$0xff] %v2034
        %v2036 = vld [vmem:[%s1306 + $0xb50] sm:$0xff]
        %2037 = vst [vmem:[%s1307 + $0xb60] sm:$0xff] %v2036
        %v2038 = vld [vmem:[%s1306 + $0xb68] sm:$0xff]
        %2039 = vst [vmem:[%s1307 + $0xb68] sm:$0xff] %v2038
        %v2040 = vld [vmem:[%s1306 + $0xb6c] sm:$0xff]
        %2041 = vst [vmem:[%s1307 + $0xb70] sm:$0xff] %v2040
        %v2042 = vld [vmem:[%s1306 + $0xb70] sm:$0xff]
        %2043 = vst [vmem:[%s1307 + $0xb78] sm:$0xff] %v2042
        %v2044 = vld [vmem:[%s1306 + $0xb74] sm:$0xff]
        %2045 = vst [vmem:[%s1307 + $0xb80] sm:$0xff] %v2044
        %v2046 = vld [vmem:[%s1306 + $0xb78] sm:$0xff]
        %2047 = vst [vmem:[%s1307 + $0xb88] sm:$0xff] %v2046
        %v2048 = vld [vmem:[%s1306 + $0xb90] sm:$0xff]
        %2049 = vst [vmem:[%s1307 + $0xb90] sm:$0xff] %v2048
        %v2050 = vld [vmem:[%s1306 + $0xb94] sm:$0xff]
        %2051 = vst [vmem:[%s1307 + $0xb98] sm:$0xff] %v2050
        %v2052 = vld [vmem:[%s1306 + $0xb98] sm:$0xff]
        %2053 = vst [vmem:[%s1307 + $0xba0] sm:$0xff] %v2052
        %v2054 = vld [vmem:[%s1306 + $0xb9c] sm:$0xff]
        %2055 = vst [vmem:[%s1307 + $0xba8] sm:$0xff] %v2054
        %v2056 = vld [vmem:[%s1306 + $0xba0] sm:$0xff]
        %2057 = vst [vmem:[%s1307 + $0xbb0] sm:$0xff] %v2056
        %v2058 = vld [vmem:[%s1306 + $0xbb8] sm:$0xff]
        %2059 = vst [vmem:[%s1307 + $0xbb8] sm:$0xff] %v2058
        %v2060 = vld [vmem:[%s1306 + $0xbbc] sm:$0xff]
        %2061 = vst [vmem:[%s1307 + $0xbc0] sm:$0xff] %v2060
        %v2062 = vld [vmem:[%s1306 + $0xbc0] sm:$0xff]
        %2063 = vst [vmem:[%s1307 + $0xbc8] sm:$0xff] %v2062
        %v2064 = vld [vmem:[%s1306 + $0xbc4] sm:$0xff]
        %2065 = vst [vmem:[%s1307 + $0xbd0] sm:$0xff] %v2064
        %v2066 = vld [vmem:[%s1306 + $0xbc8] sm:$0xff]
        %2067 = vst [vmem:[%s1307 + $0xbd8] sm:$0xff] %v2066
        %v2068 = vld [vmem:[%s1306 + $0xbe0] sm:$0xff]
        %2069 = vst [vmem:[%s1307 + $0xbe0] sm:$0xff] %v2068
        %v2070 = vld [vmem:[%s1306 + $0xbe4] sm:$0xff]
        %2071 = vst [vmem:[%s1307 + $0xbe8] sm:$0xff] %v2070
        %v2072 = vld [vmem:[%s1306 + $0xbe8] sm:$0xff]
        %2073 = vst [vmem:[%s1307 + $0xbf0] sm:$0xff] %v2072
        %v2074 = vld [vmem:[%s1306 + $0xbec] sm:$0xff]
        %2075 = vst [vmem:[%s1307 + $0xbf8] sm:$0xff] %v2074
        %v2076 = vld [vmem:[%s1306 + $0xbf0] sm:$0xff]
        %2077 = vst [vmem:[%s1307 + $0xc00] sm:$0xff] %v2076
        %v2078 = vld [vmem:[%s1306 + $0xc08] sm:$0xff]
        %2079 = vst [vmem:[%s1307 + $0xc08] sm:$0xff] %v2078
        %v2080 = vld [vmem:[%s1306 + $0xc0c] sm:$0xff]
        %2081 = vst [vmem:[%s1307 + $0xc10] sm:$0xff] %v2080
        %v2082 = vld [vmem:[%s1306 + $0xc10] sm:$0xff]
        %2083 = vst [vmem:[%s1307 + $0xc18] sm:$0xff] %v2082
        %v2084 = vld [vmem:[%s1306 + $0xc14] sm:$0xff]
        %2085 = vst [vmem:[%s1307 + $0xc20] sm:$0xff] %v2084
        %v2086 = vld [vmem:[%s1306 + $0xc18] sm:$0xff]
        %2087 = vst [vmem:[%s1307 + $0xc28] sm:$0xff] %v2086
        %v2088 = vld [vmem:[%s1306 + $0xc30] sm:$0xff]
        %2089 = vst [vmem:[%s1307 + $0xc30] sm:$0xff] %v2088
        %v2090 = vld [vmem:[%s1306 + $0xc34] sm:$0xff]
        %2091 = vst [vmem:[%s1307 + $0xc38] sm:$0xff] %v2090
        %v2092 = vld [vmem:[%s1306 + $0xc38] sm:$0xff]
        %2093 = vst [vmem:[%s1307 + $0xc40] sm:$0xff] %v2092
        %v2094 = vld [vmem:[%s1306 + $0xc3c] sm:$0xff]
        %2095 = vst [vmem:[%s1307 + $0xc48] sm:$0xff] %v2094
        %v2096 = vld [vmem:[%s1306 + $0xc40] sm:$0xff]
        %2097 = vst [vmem:[%s1307 + $0xc50] sm:$0xff] %v2096
        %v2098 = vld [vmem:[%s1306 + $0xc58] sm:$0xff]
        %2099 = vst [vmem:[%s1307 + $0xc58] sm:$0xff] %v2098
        %v2100 = vld [vmem:[%s1306 + $0xc5c] sm:$0xff]
        %2101 = vst [vmem:[%s1307 + $0xc60] sm:$0xff] %v2100
        %v2102 = vld [vmem:[%s1306 + $0xc60] sm:$0xff]
        %2103 = vst [vmem:[%s1307 + $0xc68] sm:$0xff] %v2102
        %v2104 = vld [vmem:[%s1306 + $0xc64] sm:$0xff]
        %2105 = vst [vmem:[%s1307 + $0xc70] sm:$0xff] %v2104
        %v2106 = vld [vmem:[%s1306 + $0xc68] sm:$0xff]
        %2107 = vst [vmem:[%s1307 + $0xc78] sm:$0xff] %v2106
        %v2108 = vld [vmem:[%s1306 + $0xc80] sm:$0xff]
        %2109 = vst [vmem:[%s1307 + $0xc80] sm:$0xff] %v2108
        %v2110 = vld [vmem:[%s1306 + $0xc84] sm:$0xff]
        %2111 = vst [vmem:[%s1307 + $0xc88] sm:$0xff] %v2110
        %v2112 = vld [vmem:[%s1306 + $0xc88] sm:$0xff]
        %2113 = vst [vmem:[%s1307 + $0xc90] sm:$0xff] %v2112
        %v2114 = vld [vmem:[%s1306 + $0xc8c] sm:$0xff]
        %2115 = vst [vmem:[%s1307 + $0xc98] sm:$0xff] %v2114
        %v2116 = vld [vmem:[%s1306 + $0xc90] sm:$0xff]
        %2117 = vst [vmem:[%s1307 + $0xca0] sm:$0xff] %v2116
        %v2118 = vld [vmem:[%s1306 + $0xca8] sm:$0xff]
        %2119 = vst [vmem:[%s1307 + $0xca8] sm:$0xff] %v2118
        %v2120 = vld [vmem:[%s1306 + $0xcac] sm:$0xff]
        %2121 = vst [vmem:[%s1307 + $0xcb0] sm:$0xff] %v2120
        %v2122 = vld [vmem:[%s1306 + $0xcb0] sm:$0xff]
        %2123 = vst [vmem:[%s1307 + $0xcb8] sm:$0xff] %v2122
        %v2124 = vld [vmem:[%s1306 + $0xcb4] sm:$0xff]
        %2125 = vst [vmem:[%s1307 + $0xcc0] sm:$0xff] %v2124
        %v2126 = vld [vmem:[%s1306 + $0xcb8] sm:$0xff]
        %2127 = vst [vmem:[%s1307 + $0xcc8] sm:$0xff] %v2126
        %v2128 = vld [vmem:[%s1306 + $0xcd0] sm:$0xff]
        %2129 = vst [vmem:[%s1307 + $0xcd0] sm:$0xff] %v2128
        %v2130 = vld [vmem:[%s1306 + $0xcd4] sm:$0xff]
        %2131 = vst [vmem:[%s1307 + $0xcd8] sm:$0xff] %v2130
        %v2132 = vld [vmem:[%s1306 + $0xcd8] sm:$0xff]
        %2133 = vst [vmem:[%s1307 + $0xce0] sm:$0xff] %v2132
        %v2134 = vld [vmem:[%s1306 + $0xcdc] sm:$0xff]
        %2135 = vst [vmem:[%s1307 + $0xce8] sm:$0xff] %v2134
        %v2136 = vld [vmem:[%s1306 + $0xce0] sm:$0xff]
        %2137 = vst [vmem:[%s1307 + $0xcf0] sm:$0xff] %v2136
        %v2138 = vld [vmem:[%s1306 + $0xcf8] sm:$0xff]
        %2139 = vst [vmem:[%s1307 + $0xcf8] sm:$0xff] %v2138
        %v2140 = vld [vmem:[%s1306 + $0xcfc] sm:$0xff]
        %2141 = vst [vmem:[%s1307 + $0xd00] sm:$0xff] %v2140
        %v2142 = vld [vmem:[%s1306 + $0xd00] sm:$0xff]
        %2143 = vst [vmem:[%s1307 + $0xd08] sm:$0xff] %v2142
        %v2144 = vld [vmem:[%s1306 + $0xd04] sm:$0xff]
        %2145 = vst [vmem:[%s1307 + $0xd10] sm:$0xff] %v2144
        %v2146 = vld [vmem:[%s1306 + $0xd08] sm:$0xff]
        %2147 = vst [vmem:[%s1307 + $0xd18] sm:$0xff] %v2146
        %v2148 = vld [vmem:[%s1306 + $0xd20] sm:$0xff]
        %2149 = vst [vmem:[%s1307 + $0xd20] sm:$0xff] %v2148
        %v2150 = vld [vmem:[%s1306 + $0xd24] sm:$0xff]
        %2151 = vst [vmem:[%s1307 + $0xd28] sm:$0xff] %v2150
        %v2152 = vld [vmem:[%s1306 + $0xd28] sm:$0xff]
        %2153 = vst [vmem:[%s1307 + $0xd30] sm:$0xff] %v2152
        %v2154 = vld [vmem:[%s1306 + $0xd2c] sm:$0xff]
        %2155 = vst [vmem:[%s1307 + $0xd38] sm:$0xff] %v2154
        %v2156 = vld [vmem:[%s1306 + $0xd30] sm:$0xff]
        %2157 = vst [vmem:[%s1307 + $0xd40] sm:$0xff] %v2156
        %v2158 = vld [vmem:[%s1306 + $0xd48] sm:$0xff]
        %2159 = vst [vmem:[%s1307 + $0xd48] sm:$0xff] %v2158
        %v2160 = vld [vmem:[%s1306 + $0xd4c] sm:$0xff]
        %2161 = vst [vmem:[%s1307 + $0xd50] sm:$0xff] %v2160
        %v2162 = vld [vmem:[%s1306 + $0xd50] sm:$0xff]
        %2163 = vst [vmem:[%s1307 + $0xd58] sm:$0xff] %v2162
        %v2164 = vld [vmem:[%s1306 + $0xd54] sm:$0xff]
        %2165 = vst [vmem:[%s1307 + $0xd60] sm:$0xff] %v2164
        %v2166 = vld [vmem:[%s1306 + $0xd58] sm:$0xff]
        %2167 = vst [vmem:[%s1307 + $0xd68] sm:$0xff] %v2166
        %v2168 = vld [vmem:[%s1306 + $0xd70] sm:$0xff]
        %2169 = vst [vmem:[%s1307 + $0xd70] sm:$0xff] %v2168
        %v2170 = vld [vmem:[%s1306 + $0xd74] sm:$0xff]
        %2171 = vst [vmem:[%s1307 + $0xd78] sm:$0xff] %v2170
        %v2172 = vld [vmem:[%s1306 + $0xd78] sm:$0xff]
        %2173 = vst [vmem:[%s1307 + $0xd80] sm:$0xff] %v2172
        %v2174 = vld [vmem:[%s1306 + $0xd7c] sm:$0xff]
        %2175 = vst [vmem:[%s1307 + $0xd88] sm:$0xff] %v2174
        %v2176 = vld [vmem:[%s1306 + $0xd80] sm:$0xff]
        %2177 = vst [vmem:[%s1307 + $0xd90] sm:$0xff] %v2176
        %v2178 = vld [vmem:[%s1306 + $0xd98] sm:$0xff]
        %2179 = vst [vmem:[%s1307 + $0xd98] sm:$0xff] %v2178
        %v2180 = vld [vmem:[%s1306 + $0xd9c] sm:$0xff]
        %2181 = vst [vmem:[%s1307 + $0xda0] sm:$0xff] %v2180
        %v2182 = vld [vmem:[%s1306 + $0xda0] sm:$0xff]
        %2183 = vst [vmem:[%s1307 + $0xda8] sm:$0xff] %v2182
        %v2184 = vld [vmem:[%s1306 + $0xda4] sm:$0xff]
        %2185 = vst [vmem:[%s1307 + $0xdb0] sm:$0xff] %v2184
        %v2186 = vld [vmem:[%s1306 + $0xda8] sm:$0xff]
        %2187 = vst [vmem:[%s1307 + $0xdb8] sm:$0xff] %v2186
        %v2188 = vld [vmem:[%s1306 + $0xdc0] sm:$0xff]
        %2189 = vst [vmem:[%s1307 + $0xdc0] sm:$0xff] %v2188
        %v2190 = vld [vmem:[%s1306 + $0xdc4] sm:$0xff]
        %2191 = vst [vmem:[%s1307 + $0xdc8] sm:$0xff] %v2190
        %v2192 = vld [vmem:[%s1306 + $0xdc8] sm:$0xff]
        %2193 = vst [vmem:[%s1307 + $0xdd0] sm:$0xff] %v2192
        %v2194 = vld [vmem:[%s1306 + $0xdcc] sm:$0xff]
        %2195 = vst [vmem:[%s1307 + $0xdd8] sm:$0xff] %v2194
        %v2196 = vld [vmem:[%s1306 + $0xdd0] sm:$0xff]
        %2197 = vst [vmem:[%s1307 + $0xde0] sm:$0xff] %v2196
        %v2198 = vld [vmem:[%s1306 + $0xde8] sm:$0xff]
        %2199 = vst [vmem:[%s1307 + $0xde8] sm:$0xff] %v2198
        %v2200 = vld [vmem:[%s1306 + $0xdec] sm:$0xff]
        %2201 = vst [vmem:[%s1307 + $0xdf0] sm:$0xff] %v2200
        %v2202 = vld [vmem:[%s1306 + $0xdf0] sm:$0xff]
        %2203 = vst [vmem:[%s1307 + $0xdf8] sm:$0xff] %v2202
        %v2204 = vld [vmem:[%s1306 + $0xdf4] sm:$0xff]
        %2205 = vst [vmem:[%s1307 + $0xe00] sm:$0xff] %v2204
        %v2206 = vld [vmem:[%s1306 + $0xdf8] sm:$0xff]
        %2207 = vst [vmem:[%s1307 + $0xe08] sm:$0xff] %v2206
        %v2208 = vld [vmem:[%s1306 + $0xe10] sm:$0xff]
        %2209 = vst [vmem:[%s1307 + $0xe10] sm:$0xff] %v2208
        %v2210 = vld [vmem:[%s1306 + $0xe14] sm:$0xff]
        %2211 = vst [vmem:[%s1307 + $0xe18] sm:$0xff] %v2210
        %v2212 = vld [vmem:[%s1306 + $0xe18] sm:$0xff]
        %2213 = vst [vmem:[%s1307 + $0xe20] sm:$0xff] %v2212
        %v2214 = vld [vmem:[%s1306 + $0xe1c] sm:$0xff]
        %2215 = vst [vmem:[%s1307 + $0xe28] sm:$0xff] %v2214
        %v2216 = vld [vmem:[%s1306 + $0xe20] sm:$0xff]
        %2217 = vst [vmem:[%s1307 + $0xe30] sm:$0xff] %v2216
        %v2218 = vld [vmem:[%s1306 + $0xe38] sm:$0xff]
        %2219 = vst [vmem:[%s1307 + $0xe38] sm:$0xff] %v2218
        %v2220 = vld [vmem:[%s1306 + $0xe3c] sm:$0xff]
        %2221 = vst [vmem:[%s1307 + $0xe40] sm:$0xff] %v2220
        %v2222 = vld [vmem:[%s1306 + $0xe40] sm:$0xff]
        %2223 = vst [vmem:[%s1307 + $0xe48] sm:$0xff] %v2222
        %v2224 = vld [vmem:[%s1306 + $0xe44] sm:$0xff]
        %2225 = vst [vmem:[%s1307 + $0xe50] sm:$0xff] %v2224
        %v2226 = vld [vmem:[%s1306 + $0xe48] sm:$0xff]
        %2227 = vst [vmem:[%s1307 + $0xe58] sm:$0xff] %v2226
        %v2228 = vld [vmem:[%s1306 + $0xe60] sm:$0xff]
        %2229 = vst [vmem:[%s1307 + $0xe60] sm:$0xff] %v2228
        %v2230 = vld [vmem:[%s1306 + $0xe64] sm:$0xff]
        %2231 = vst [vmem:[%s1307 + $0xe68] sm:$0xff] %v2230
        %v2232 = vld [vmem:[%s1306 + $0xe68] sm:$0xff]
        %2233 = vst [vmem:[%s1307 + $0xe70] sm:$0xff] %v2232
        %v2234 = vld [vmem:[%s1306 + $0xe6c] sm:$0xff]
        %2235 = vst [vmem:[%s1307 + $0xe78] sm:$0xff] %v2234
        %v2236 = vld [vmem:[%s1306 + $0xe70] sm:$0xff]
        %2237 = vst [vmem:[%s1307 + $0xe80] sm:$0xff] %v2236
        %v2238 = vld [vmem:[%s1306 + $0xe88] sm:$0xff]
        %2239 = vst [vmem:[%s1307 + $0xe88] sm:$0xff] %v2238
        %v2240 = vld [vmem:[%s1306 + $0xe8c] sm:$0xff]
        %2241 = vst [vmem:[%s1307 + $0xe90] sm:$0xff] %v2240
        %v2242 = vld [vmem:[%s1306 + $0xe90] sm:$0xff]
        %2243 = vst [vmem:[%s1307 + $0xe98] sm:$0xff] %v2242
        %v2244 = vld [vmem:[%s1306 + $0xe94] sm:$0xff]
        %2245 = vst [vmem:[%s1307 + $0xea0] sm:$0xff] %v2244
        %v2246 = vld [vmem:[%s1306 + $0xe98] sm:$0xff]
        %2247 = vst [vmem:[%s1307 + $0xea8] sm:$0xff] %v2246
        %v2248 = vld [vmem:[%s1306 + $0xeb0] sm:$0xff]
        %2249 = vst [vmem:[%s1307 + $0xeb0] sm:$0xff] %v2248
        %v2250 = vld [vmem:[%s1306 + $0xeb4] sm:$0xff]
        %2251 = vst [vmem:[%s1307 + $0xeb8] sm:$0xff] %v2250
        %v2252 = vld [vmem:[%s1306 + $0xeb8] sm:$0xff]
        %2253 = vst [vmem:[%s1307 + $0xec0] sm:$0xff] %v2252
        %v2254 = vld [vmem:[%s1306 + $0xebc] sm:$0xff]
        %2255 = vst [vmem:[%s1307 + $0xec8] sm:$0xff] %v2254
        %v2256 = vld [vmem:[%s1306 + $0xec0] sm:$0xff]
        %2257 = vst [vmem:[%s1307 + $0xed0] sm:$0xff] %v2256
        %v2258 = vld [vmem:[%s1306 + $0xed8] sm:$0xff]
        %2259 = vst [vmem:[%s1307 + $0xed8] sm:$0xff] %v2258
        %v2260 = vld [vmem:[%s1306 + $0xedc] sm:$0xff]
        %2261 = vst [vmem:[%s1307 + $0xee0] sm:$0xff] %v2260
        %v2262 = vld [vmem:[%s1306 + $0xee0] sm:$0xff]
        %2263 = vst [vmem:[%s1307 + $0xee8] sm:$0xff] %v2262
        %v2264 = vld [vmem:[%s1306 + $0xee4] sm:$0xff]
        %2265 = vst [vmem:[%s1307 + $0xef0] sm:$0xff] %v2264
        %v2266 = vld [vmem:[%s1306 + $0xee8] sm:$0xff]
        %2267 = vst [vmem:[%s1307 + $0xef8] sm:$0xff] %v2266
        %v2268 = vld [vmem:[%s1306 + $0xf00] sm:$0xff]
        %2269 = vst [vmem:[%s1307 + $0xf00] sm:$0xff] %v2268
        %v2270 = vld [vmem:[%s1306 + $0xf04] sm:$0xff]
        %2271 = vst [vmem:[%s1307 + $0xf08] sm:$0xff] %v2270
        %v2272 = vld [vmem:[%s1306 + $0xf08] sm:$0xff]
        %2273 = vst [vmem:[%s1307 + $0xf10] sm:$0xff] %v2272
        %v2274 = vld [vmem:[%s1306 + $0xf0c] sm:$0xff]
        %2275 = vst [vmem:[%s1307 + $0xf18] sm:$0xff] %v2274
        %v2276 = vld [vmem:[%s1306 + $0xf10] sm:$0xff]
        %2277 = vst [vmem:[%s1307 + $0xf20] sm:$0xff] %v2276
        %v2278 = vld [vmem:[%s1306 + $0xf28] sm:$0xff]
        %2279 = vst [vmem:[%s1307 + $0xf28] sm:$0xff] %v2278
        %v2280 = vld [vmem:[%s1306 + $0xf2c] sm:$0xff]
        %2281 = vst [vmem:[%s1307 + $0xf30] sm:$0xff] %v2280
        %v2282 = vld [vmem:[%s1306 + $0xf30] sm:$0xff]
        %2283 = vst [vmem:[%s1307 + $0xf38] sm:$0xff] %v2282
        %v2284 = vld [vmem:[%s1306 + $0xf34] sm:$0xff]
        %2285 = vst [vmem:[%s1307 + $0xf40] sm:$0xff] %v2284
        %v2286 = vld [vmem:[%s1306 + $0xf38] sm:$0xff]
        %2287 = vst [vmem:[%s1307 + $0xf48] sm:$0xff] %v2286
        %v2288 = vld [vmem:[%s1306 + $0xf50] sm:$0xff]
        %2289 = vst [vmem:[%s1307 + $0xf50] sm:$0xff] %v2288
        %v2290 = vld [vmem:[%s1306 + $0xf54] sm:$0xff]
        %2291 = vst [vmem:[%s1307 + $0xf58] sm:$0xff] %v2290
        %v2292 = vld [vmem:[%s1306 + $0xf58] sm:$0xff]
        %2293 = vst [vmem:[%s1307 + $0xf60] sm:$0xff] %v2292
        %v2294 = vld [vmem:[%s1306 + $0xf5c] sm:$0xff]
        %2295 = vst [vmem:[%s1307 + $0xf68] sm:$0xff] %v2294
        %v2296 = vld [vmem:[%s1306 + $0xf60] sm:$0xff]
        %2297 = vst [vmem:[%s1307 + $0xf70] sm:$0xff] %v2296
        %v2298 = vld [vmem:[%s1306 + $0xf78] sm:$0xff]
        %2299 = vst [vmem:[%s1307 + $0xf78] sm:$0xff] %v2298
        %v2300 = vld [vmem:[%s1306 + $0xf7c] sm:$0xff]
        %2301 = vst [vmem:[%s1307 + $0xf80] sm:$0xff] %v2300
        %v2302 = vld [vmem:[%s1306 + $0xf80] sm:$0xff]
        %2303 = vst [vmem:[%s1307 + $0xf88] sm:$0xff] %v2302
        %v2304 = vld [vmem:[%s1306 + $0xf84] sm:$0xff]
        %2305 = vst [vmem:[%s1307 + $0xf90] sm:$0xff] %v2304
        %v2306 = vld [vmem:[%s1306 + $0xf88] sm:$0xff]
        %2307 = vst [vmem:[%s1307 + $0xf98] sm:$0xff] %v2306
        %v2308 = vld [vmem:[%s1306 + $0xfa0] sm:$0xff]
        %2309 = vst [vmem:[%s1307 + $0xfa0] sm:$0xff] %v2308
        %v2310 = vld [vmem:[%s1306 + $0xfa4] sm:$0xff]
        %2311 = vst [vmem:[%s1307 + $0xfa8] sm:$0xff] %v2310
        %v2312 = vld [vmem:[%s1306 + $0xfa8] sm:$0xff]
        %2313 = vst [vmem:[%s1307 + $0xfb0] sm:$0xff] %v2312
        %v2314 = vld [vmem:[%s1306 + $0xfac] sm:$0xff]
        %2315 = vst [vmem:[%s1307 + $0xfb8] sm:$0xff] %v2314
        %v2316 = vld [vmem:[%s1306 + $0xfb0] sm:$0xff]
        %2317 = vst [vmem:[%s1307 + $0xfc0] sm:$0xff] %v2316
        %v2318 = vld [vmem:[%s1306 + $0xfc8] sm:$0xff]
        %2319 = vst [vmem:[%s1307 + $0xfc8] sm:$0xff] %v2318
        %v2320 = vld [vmem:[%s1306 + $0xfcc] sm:$0xff]
        %2321 = vst [vmem:[%s1307 + $0xfd0] sm:$0xff] %v2320
        %v2322 = vld [vmem:[%s1306 + $0xfd0] sm:$0xff]
        %2323 = vst [vmem:[%s1307 + $0xfd8] sm:$0xff] %v2322
        %v2324 = vld [vmem:[%s1306 + $0xfd4] sm:$0xff]
        %2325 = vst [vmem:[%s1307 + $0xfe0] sm:$0xff] %v2324
        %v2326 = vld [vmem:[%s1306 + $0xfd8] sm:$0xff]
        %2327 = vst [vmem:[%s1307 + $0xfe8] sm:$0xff] %v2326
        %v2328 = vld [vmem:[%s1306 + $0xff0] sm:$0xff]
        %2329 = vst [vmem:[%s1307 + $0xff0] sm:$0xff] %v2328
        %v2330 = vld [vmem:[%s1306 + $0xff4] sm:$0xff]
        %2331 = vst [vmem:[%s1307 + $0xff8] sm:$0xff] %v2330
        %v2332 = vld [vmem:[%s1306 + $0xff8] sm:$0xff]
        %2333 = vst [vmem:[%s1307 + $0x1000] sm:$0xff] %v2332
        %v2334 = vld [vmem:[%s1306 + $0xffc] sm:$0xff]
        %2335 = vst [vmem:[%s1307 + $0x1008] sm:$0xff] %v2334
        %v2336 = vld [vmem:[%s1306 + $0x1000] sm:$0xff]
        %2337 = vst [vmem:[%s1307 + $0x1010] sm:$0xff] %v2336
        %v2338 = vld [vmem:[%s1306 + $0x1018] sm:$0xff]
        %2339 = vst [vmem:[%s1307 + $0x1018] sm:$0xff] %v2338
        %v2340 = vld [vmem:[%s1306 + $0x101c] sm:$0xff]
        %2341 = vst [vmem:[%s1307 + $0x1020] sm:$0xff] %v2340
        %v2342 = vld [vmem:[%s1306 + $0x1020] sm:$0xff]
        %2343 = vst [vmem:[%s1307 + $0x1028] sm:$0xff] %v2342
        %v2344 = vld [vmem:[%s1306 + $0x1024] sm:$0xff]
        %2345 = vst [vmem:[%s1307 + $0x1030] sm:$0xff] %v2344
        %v2346 = vld [vmem:[%s1306 + $0x1028] sm:$0xff]
        %2347 = vst [vmem:[%s1307 + $0x1038] sm:$0xff] %v2346
        %v2348 = vld [vmem:[%s1306 + $0x1040] sm:$0xff]
        %2349 = vst [vmem:[%s1307 + $0x1040] sm:$0xff] %v2348
        %v2350 = vld [vmem:[%s1306 + $0x1044] sm:$0xff]
        %2351 = vst [vmem:[%s1307 + $0x1048] sm:$0xff] %v2350
        %v2352 = vld [vmem:[%s1306 + $0x1048] sm:$0xff]
        %2353 = vst [vmem:[%s1307 + $0x1050] sm:$0xff] %v2352
        %v2354 = vld [vmem:[%s1306 + $0x104c] sm:$0xff]
        %2355 = vst [vmem:[%s1307 + $0x1058] sm:$0xff] %v2354
        %v2356 = vld [vmem:[%s1306 + $0x1050] sm:$0xff]
        %2357 = vst [vmem:[%s1307 + $0x1060] sm:$0xff] %v2356
        %v2358 = vld [vmem:[%s1306 + $0x1068] sm:$0xff]
        %2359 = vst [vmem:[%s1307 + $0x1068] sm:$0xff] %v2358
        %v2360 = vld [vmem:[%s1306 + $0x106c] sm:$0xff]
        %2361 = vst [vmem:[%s1307 + $0x1070] sm:$0xff] %v2360
        %v2362 = vld [vmem:[%s1306 + $0x1070] sm:$0xff]
        %2363 = vst [vmem:[%s1307 + $0x1078] sm:$0xff] %v2362
        %v2364 = vld [vmem:[%s1306 + $0x1074] sm:$0xff]
        %2365 = vst [vmem:[%s1307 + $0x1080] sm:$0xff] %v2364
        %v2366 = vld [vmem:[%s1306 + $0x1078] sm:$0xff]
        %2367 = vst [vmem:[%s1307 + $0x1088] sm:$0xff] %v2366
        %v2368 = vld [vmem:[%s1306 + $0x1090] sm:$0xff]
        %2369 = vst [vmem:[%s1307 + $0x1090] sm:$0xff] %v2368
        %v2370 = vld [vmem:[%s1306 + $0x1094] sm:$0xff]
        %2371 = vst [vmem:[%s1307 + $0x1098] sm:$0xff] %v2370
        %v2372 = vld [vmem:[%s1306 + $0x1098] sm:$0xff]
        %2373 = vst [vmem:[%s1307 + $0x10a0] sm:$0xff] %v2372
        %v2374 = vld [vmem:[%s1306 + $0x109c] sm:$0xff]
        %2375 = vst [vmem:[%s1307 + $0x10a8] sm:$0xff] %v2374
        %v2376 = vld [vmem:[%s1306 + $0x10a0] sm:$0xff]
        %2377 = vst [vmem:[%s1307 + $0x10b0] sm:$0xff] %v2376
        %v2378 = vld [vmem:[%s1306 + $0x10b8] sm:$0xff]
        %2379 = vst [vmem:[%s1307 + $0x10b8] sm:$0xff] %v2378
        %v2380 = vld [vmem:[%s1306 + $0x10bc] sm:$0xff]
        %2381 = vst [vmem:[%s1307 + $0x10c0] sm:$0xff] %v2380
        %v2382 = vld [vmem:[%s1306 + $0x10c0] sm:$0xff]
        %2383 = vst [vmem:[%s1307 + $0x10c8] sm:$0xff] %v2382
        %v2384 = vld [vmem:[%s1306 + $0x10c4] sm:$0xff]
        %2385 = vst [vmem:[%s1307 + $0x10d0] sm:$0xff] %v2384
        %v2386 = vld [vmem:[%s1306 + $0x10c8] sm:$0xff]
        %2387 = vst [vmem:[%s1307 + $0x10d8] sm:$0xff] %v2386
        %v2388 = vld [vmem:[%s1306 + $0x10e0] sm:$0xff]
        %2389 = vst [vmem:[%s1307 + $0x10e0] sm:$0xff] %v2388
        %v2390 = vld [vmem:[%s1306 + $0x10e4] sm:$0xff]
        %2391 = vst [vmem:[%s1307 + $0x10e8] sm:$0xff] %v2390
        %v2392 = vld [vmem:[%s1306 + $0x10e8] sm:$0xff]
        %2393 = vst [vmem:[%s1307 + $0x10f0] sm:$0xff] %v2392
        %v2394 = vld [vmem:[%s1306 + $0x10ec] sm:$0xff]
        %2395 = vst [vmem:[%s1307 + $0x10f8] sm:$0xff] %v2394
        %v2396 = vld [vmem:[%s1306 + $0x10f0] sm:$0xff]
        %2397 = vst [vmem:[%s1307 + $0x1100] sm:$0xff] %v2396
        %v2398 = vld [vmem:[%s1306 + $0x1108] sm:$0xff]
        %2399 = vst [vmem:[%s1307 + $0x1108] sm:$0xff] %v2398
        %v2400 = vld [vmem:[%s1306 + $0x110c] sm:$0xff]
        %2401 = vst [vmem:[%s1307 + $0x1110] sm:$0xff] %v2400
        %v2402 = vld [vmem:[%s1306 + $0x1110] sm:$0xff]
        %2403 = vst [vmem:[%s1307 + $0x1118] sm:$0xff] %v2402
        %v2404 = vld [vmem:[%s1306 + $0x1114] sm:$0xff]
        %2405 = vst [vmem:[%s1307 + $0x1120] sm:$0xff] %v2404
        %v2406 = vld [vmem:[%s1306 + $0x1118] sm:$0xff]
        %2407 = vst [vmem:[%s1307 + $0x1128] sm:$0xff] %v2406
        %v2408 = vld [vmem:[%s1306 + $0x1130] sm:$0xff]
        %2409 = vst [vmem:[%s1307 + $0x1130] sm:$0xff] %v2408
        %v2410 = vld [vmem:[%s1306 + $0x1134] sm:$0xff]
        %2411 = vst [vmem:[%s1307 + $0x1138] sm:$0xff] %v2410
        %v2412 = vld [vmem:[%s1306 + $0x1138] sm:$0xff]
        %2413 = vst [vmem:[%s1307 + $0x1140] sm:$0xff] %v2412
        %v2414 = vld [vmem:[%s1306 + $0x113c] sm:$0xff]
        %2415 = vst [vmem:[%s1307 + $0x1148] sm:$0xff] %v2414
        %v2416 = vld [vmem:[%s1306 + $0x1140] sm:$0xff]
        %2417 = vst [vmem:[%s1307 + $0x1150] sm:$0xff] %v2416
        %v2418 = vld [vmem:[%s1306 + $0x1158] sm:$0xff]
        %2419 = vst [vmem:[%s1307 + $0x1158] sm:$0xff] %v2418
        %v2420 = vld [vmem:[%s1306 + $0x115c] sm:$0xff]
        %2421 = vst [vmem:[%s1307 + $0x1160] sm:$0xff] %v2420
        %v2422 = vld [vmem:[%s1306 + $0x1160] sm:$0xff]
        %2423 = vst [vmem:[%s1307 + $0x1168] sm:$0xff] %v2422
        %v2424 = vld [vmem:[%s1306 + $0x1164] sm:$0xff]
        %2425 = vst [vmem:[%s1307 + $0x1170] sm:$0xff] %v2424
        %v2426 = vld [vmem:[%s1306 + $0x1168] sm:$0xff]
        %2427 = vst [vmem:[%s1307 + $0x1178] sm:$0xff] %v2426
        %v2428 = vld [vmem:[%s1306 + $0x1180] sm:$0xff]
        %2429 = vst [vmem:[%s1307 + $0x1180] sm:$0xff] %v2428
        %v2430 = vld [vmem:[%s1306 + $0x1184] sm:$0xff]
        %2431 = vst [vmem:[%s1307 + $0x1188] sm:$0xff] %v2430
        %v2432 = vld [vmem:[%s1306 + $0x1188] sm:$0xff]
        %2433 = vst [vmem:[%s1307 + $0x1190] sm:$0xff] %v2432
        %v2434 = vld [vmem:[%s1306 + $0x118c] sm:$0xff]
        %2435 = vst [vmem:[%s1307 + $0x1198] sm:$0xff] %v2434
        %v2436 = vld [vmem:[%s1306 + $0x1190] sm:$0xff]
        %2437 = vst [vmem:[%s1307 + $0x11a0] sm:$0xff] %v2436
        %v2438 = vld [vmem:[%s1306 + $0x11a8] sm:$0xff]
        %2439 = vst [vmem:[%s1307 + $0x11a8] sm:$0xff] %v2438
        %v2440 = vld [vmem:[%s1306 + $0x11ac] sm:$0xff]
        %2441 = vst [vmem:[%s1307 + $0x11b0] sm:$0xff] %v2440
        %v2442 = vld [vmem:[%s1306 + $0x11b0] sm:$0xff]
        %2443 = vst [vmem:[%s1307 + $0x11b8] sm:$0xff] %v2442
        %v2444 = vld [vmem:[%s1306 + $0x11b4] sm:$0xff]
        %2445 = vst [vmem:[%s1307 + $0x11c0] sm:$0xff] %v2444
        %v2446 = vld [vmem:[%s1306 + $0x11b8] sm:$0xff]
        %2447 = vst [vmem:[%s1307 + $0x11c8] sm:$0xff] %v2446
        %v2448 = vld [vmem:[%s1306 + $0x11d0] sm:$0xff]
        %2449 = vst [vmem:[%s1307 + $0x11d0] sm:$0xff] %v2448
        %v2450 = vld [vmem:[%s1306 + $0x11d4] sm:$0xff]
        %2451 = vst [vmem:[%s1307 + $0x11d8] sm:$0xff] %v2450
        %v2452 = vld [vmem:[%s1306 + $0x11d8] sm:$0xff]
        %2453 = vst [vmem:[%s1307 + $0x11e0] sm:$0xff] %v2452
        %v2454 = vld [vmem:[%s1306 + $0x11dc] sm:$0xff]
        %2455 = vst [vmem:[%s1307 + $0x11e8] sm:$0xff] %v2454
        %v2456 = vld [vmem:[%s1306 + $0x11e0] sm:$0xff]
        %2457 = vst [vmem:[%s1307 + $0x11f0] sm:$0xff] %v2456
        %v2458 = vld [vmem:[%s1306 + $0x11f8] sm:$0xff]
        %2459 = vst [vmem:[%s1307 + $0x11f8] sm:$0xff] %v2458
        %v2460 = vld [vmem:[%s1306 + $0x11fc] sm:$0xff]
        %2461 = vst [vmem:[%s1307 + $0x1200] sm:$0xff] %v2460
        %v2462 = vld [vmem:[%s1306 + $0x1200] sm:$0xff]
        %2463 = vst [vmem:[%s1307 + $0x1208] sm:$0xff] %v2462
        %v2464 = vld [vmem:[%s1306 + $0x1204] sm:$0xff]
        %2465 = vst [vmem:[%s1307 + $0x1210] sm:$0xff] %v2464
        %v2466 = vld [vmem:[%s1306 + $0x1208] sm:$0xff]
        %2467 = vst [vmem:[%s1307 + $0x1218] sm:$0xff] %v2466
        %v2468 = vld [vmem:[%s1306 + $0x1220] sm:$0xff]
        %2469 = vst [vmem:[%s1307 + $0x1220] sm:$0xff] %v2468
        %v2470 = vld [vmem:[%s1306 + $0x1224] sm:$0xff]
        %2471 = vst [vmem:[%s1307 + $0x1228] sm:$0xff] %v2470
        %v2472 = vld [vmem:[%s1306 + $0x1228] sm:$0xff]
        %2473 = vst [vmem:[%s1307 + $0x1230] sm:$0xff] %v2472
        %v2474 = vld [vmem:[%s1306 + $0x122c] sm:$0xff]
        %2475 = vst [vmem:[%s1307 + $0x1238] sm:$0xff] %v2474
        %v2476 = vld [vmem:[%s1306 + $0x1230] sm:$0xff]
        %2477 = vst [vmem:[%s1307 + $0x1240] sm:$0xff] %v2476
        %v2478 = vld [vmem:[%s1306 + $0x1248] sm:$0xff]
        %2479 = vst [vmem:[%s1307 + $0x1248] sm:$0xff] %v2478
        %v2480 = vld [vmem:[%s1306 + $0x124c] sm:$0xff]
        %2481 = vst [vmem:[%s1307 + $0x1250] sm:$0xff] %v2480
        %v2482 = vld [vmem:[%s1306 + $0x1250] sm:$0xff]
        %2483 = vst [vmem:[%s1307 + $0x1258] sm:$0xff] %v2482
        %v2484 = vld [vmem:[%s1306 + $0x1254] sm:$0xff]
        %2485 = vst [vmem:[%s1307 + $0x1260] sm:$0xff] %v2484
        %v2486 = vld [vmem:[%s1306 + $0x1258] sm:$0xff]
        %2487 = vst [vmem:[%s1307 + $0x1268] sm:$0xff] %v2486
        %v2488 = vld [vmem:[%s1306 + $0x1270] sm:$0xff]
        %2489 = vst [vmem:[%s1307 + $0x1270] sm:$0xff] %v2488
        %v2490 = vld [vmem:[%s1306 + $0x1274] sm:$0xff]
        %2491 = vst [vmem:[%s1307 + $0x1278] sm:$0xff] %v2490
        %v2492 = vld [vmem:[%s1306 + $0x1278] sm:$0xff]
        %2493 = vst [vmem:[%s1307 + $0x1280] sm:$0xff] %v2492
        %v2494 = vld [vmem:[%s1306 + $0x127c] sm:$0xff]
        %2495 = vst [vmem:[%s1307 + $0x1288] sm:$0xff] %v2494
        %v2496 = vld [vmem:[%s1306 + $0x1280] sm:$0xff]
        %2497 = vst [vmem:[%s1307 + $0x1290] sm:$0xff] %v2496
        %v2498 = vld [vmem:[%s1306 + $0x1298] sm:$0xff]
        %2499 = vst [vmem:[%s1307 + $0x1298] sm:$0xff] %v2498
        %v2500 = vld [vmem:[%s1306 + $0x129c] sm:$0xff]
        %2501 = vst [vmem:[%s1307 + $0x12a0] sm:$0xff] %v2500
        %v2502 = vld [vmem:[%s1306 + $0x12a0] sm:$0xff]
        %2503 = vst [vmem:[%s1307 + $0x12a8] sm:$0xff] %v2502
        %v2504 = vld [vmem:[%s1306 + $0x12a4] sm:$0xff]
        %2505 = vst [vmem:[%s1307 + $0x12b0] sm:$0xff] %v2504
        %v2506 = vld [vmem:[%s1306 + $0x12a8] sm:$0xff]
        %2507 = vst [vmem:[%s1307 + $0x12b8] sm:$0xff] %v2506
        %v2508 = vld [vmem:[%s1306 + $0x12c0] sm:$0xff]
        %2509 = vst [vmem:[%s1307 + $0x12c0] sm:$0xff] %v2508
        %v2510 = vld [vmem:[%s1306 + $0x12c4] sm:$0xff]
        %2511 = vst [vmem:[%s1307 + $0x12c8] sm:$0xff] %v2510
        %v2512 = vld [vmem:[%s1306 + $0x12c8] sm:$0xff]
        %2513 = vst [vmem:[%s1307 + $0x12d0] sm:$0xff] %v2512
        %v2514 = vld [vmem:[%s1306 + $0x12cc] sm:$0xff]
        %2515 = vst [vmem:[%s1307 + $0x12d8] sm:$0xff] %v2514
        %v2516 = vld [vmem:[%s1306 + $0x12d0] sm:$0xff]
        %2517 = vst [vmem:[%s1307 + $0x12e0] sm:$0xff] %v2516
        %v2518 = vld [vmem:[%s1306 + $0x12e8] sm:$0xff]
        %2519 = vst [vmem:[%s1307 + $0x12e8] sm:$0xff] %v2518
        %v2520 = vld [vmem:[%s1306 + $0x12ec] sm:$0xff]
        %2521 = vst [vmem:[%s1307 + $0x12f0] sm:$0xff] %v2520
        %v2522 = vld [vmem:[%s1306 + $0x12f0] sm:$0xff]
        %2523 = vst [vmem:[%s1307 + $0x12f8] sm:$0xff] %v2522
        %v2524 = vld [vmem:[%s1306 + $0x12f4] sm:$0xff]
        %2525 = vst [vmem:[%s1307 + $0x1300] sm:$0xff] %v2524
        %v2526 = vld [vmem:[%s1306 + $0x12f8] sm:$0xff]
        %2527 = vst [vmem:[%s1307 + $0x1308] sm:$0xff] %v2526
        %v2528 = vld [vmem:[%s1306 + $0x1310] sm:$0xff]
        %2529 = vst [vmem:[%s1307 + $0x1310] sm:$0xff] %v2528
        %v2530 = vld [vmem:[%s1306 + $0x1314] sm:$0xff]
        %2531 = vst [vmem:[%s1307 + $0x1318] sm:$0xff] %v2530
        %v2532 = vld [vmem:[%s1306 + $0x1318] sm:$0xff]
        %2533 = vst [vmem:[%s1307 + $0x1320] sm:$0xff] %v2532
        %v2534 = vld [vmem:[%s1306 + $0x131c] sm:$0xff]
        %2535 = vst [vmem:[%s1307 + $0x1328] sm:$0xff] %v2534
        %v2536 = vld [vmem:[%s1306 + $0x1320] sm:$0xff]
        %2537 = vst [vmem:[%s1307 + $0x1330] sm:$0xff] %v2536
        %s2538 = sadd.s32 1, %s1305
        %p2539 = scmp.ge.s32.totalorder %s2538, %s1292
        %s2540 = scalar_select %p2539, 0, %s2538
        %s2541 = sadd.s32 1, %s1304
        %s2542 = scalar_select %p2539, %s2541, %s1304
        %p2543 = scmp.ge.s32.totalorder %s2542, 2
        %s2544 = scalar_select %p2543, 0, %s2542
        %s2545 = smul.u32 %s2544, 20
        %s2546 = smul.u32 %s2540, 8
        %s2547 = sadd.s32 %s2545, %s2546
        %s2548 = smul.u32 %s2544, 4
        %s2549 = smul.u32 %s2540, 8
        %s2550 = sadd.s32 %s2548, %s2549
        %s2551 = scalar_lea.vmem %s4, %s2547
        %s2552 = scalar_lea.vmem [#allocation2], %s2550
      $region53: #{discriminator_forward.1} parent=47 // loop_footer
        %s1301 = sadd.s32 %s1299, 1
      $region54: #{discriminator_forward.1} parent=47 // loop_footer_branch
        %1298 = sbr.rel target = $region50
      $region55: #{discriminator_forward.1} parent=47 // loop_exit
        _
    $region48: #{discriminator_forward.1} parent=32 // pred_fallthru
      _
    %p2553 = pneg %p1288
    // Predicated region
    $region56: #{discriminator_forward.1} parent=32 // pred_check
      _
    $region57: #{discriminator_forward.1} parent=32 // pred_check_branch
      %2555 = sbr.rel (%p1288) target = $region59
    $region58: #{discriminator_forward.1} parent=32 // pred_region
      %s2556 = sand.u32 4, 7
      %s2557 = ssub.s32 4, %s2556
      %s2558 = scalar_lea.vmem %s4, %s2557
      %s2559 = ssub.s32 4, %s2556
      %s2560 = scalar_lea.vmem [#allocation2], %s2559
      %s2561 = sshrl.u32 4, 3
      %s2562 = smul.u32 2, %s2561
      // While loop
      $region60: #{discriminator_forward.1} parent=58 // loop_pre_header
        _
      $region61: #{discriminator_forward.1} parent=58 // loop_header
        %s2568 = sphi 0, %s2570
        %p2569 = scmp.ge.s32.totalorder %s2568, %s2562
        %s2573 = sphi 0, %s3813
        %s2574 = sphi 0, %s3809
        %s2575 = sphi %s4, %s3820
        %s2576 = sphi [#allocation2], %s3821
      $region62: #{discriminator_forward.1} parent=58 // loop_header_branch
        %2572 = sbr.rel (%p2569) target = $region66
      $region63: #{discriminator_forward.1} parent=58 // loop_body
        %v2577 = vld [vmem:[%s2575] sm:$0xff]
        %2578 = vst [vmem:[%s2576] sm:$0xff] %v2577
        %v2579 = vld [vmem:[%s2575 + $0x4] sm:$0xff]
        %2580 = vst [vmem:[%s2576 + $0x8] sm:$0xff] %v2579
        %v2581 = vld [vmem:[%s2575 + $0x8] sm:$0xff]
        %2582 = vst [vmem:[%s2576 + $0x10] sm:$0xff] %v2581
        %v2583 = vld [vmem:[%s2575 + $0xc] sm:$0xff]
        %2584 = vst [vmem:[%s2576 + $0x18] sm:$0xff] %v2583
        %v2585 = vld [vmem:[%s2575 + $0x10] sm:$0xff]
        %2586 = vst [vmem:[%s2576 + $0x20] sm:$0xff] %v2585
        %v2587 = vld [vmem:[%s2575 + $0x28] sm:$0xff]
        %2588 = vst [vmem:[%s2576 + $0x28] sm:$0xff] %v2587
        %v2589 = vld [vmem:[%s2575 + $0x2c] sm:$0xff]
        %2590 = vst [vmem:[%s2576 + $0x30] sm:$0xff] %v2589
        %v2591 = vld [vmem:[%s2575 + $0x30] sm:$0xff]
        %2592 = vst [vmem:[%s2576 + $0x38] sm:$0xff] %v2591
        %v2593 = vld [vmem:[%s2575 + $0x34] sm:$0xff]
        %2594 = vst [vmem:[%s2576 + $0x40] sm:$0xff] %v2593
        %v2595 = vld [vmem:[%s2575 + $0x38] sm:$0xff]
        %2596 = vst [vmem:[%s2576 + $0x48] sm:$0xff] %v2595
        %v2597 = vld [vmem:[%s2575 + $0x50] sm:$0xff]
        %2598 = vst [vmem:[%s2576 + $0x50] sm:$0xff] %v2597
        %v2599 = vld [vmem:[%s2575 + $0x54] sm:$0xff]
        %2600 = vst [vmem:[%s2576 + $0x58] sm:$0xff] %v2599
        %v2601 = vld [vmem:[%s2575 + $0x58] sm:$0xff]
        %2602 = vst [vmem:[%s2576 + $0x60] sm:$0xff] %v2601
        %v2603 = vld [vmem:[%s2575 + $0x5c] sm:$0xff]
        %2604 = vst [vmem:[%s2576 + $0x68] sm:$0xff] %v2603
        %v2605 = vld [vmem:[%s2575 + $0x60] sm:$0xff]
        %2606 = vst [vmem:[%s2576 + $0x70] sm:$0xff] %v2605
        %v2607 = vld [vmem:[%s2575 + $0x78] sm:$0xff]
        %2608 = vst [vmem:[%s2576 + $0x78] sm:$0xff] %v2607
        %v2609 = vld [vmem:[%s2575 + $0x7c] sm:$0xff]
        %2610 = vst [vmem:[%s2576 + $0x80] sm:$0xff] %v2609
        %v2611 = vld [vmem:[%s2575 + $0x80] sm:$0xff]
        %2612 = vst [vmem:[%s2576 + $0x88] sm:$0xff] %v2611
        %v2613 = vld [vmem:[%s2575 + $0x84] sm:$0xff]
        %2614 = vst [vmem:[%s2576 + $0x90] sm:$0xff] %v2613
        %v2615 = vld [vmem:[%s2575 + $0x88] sm:$0xff]
        %2616 = vst [vmem:[%s2576 + $0x98] sm:$0xff] %v2615
        %v2617 = vld [vmem:[%s2575 + $0xa0] sm:$0xff]
        %2618 = vst [vmem:[%s2576 + $0xa0] sm:$0xff] %v2617
        %v2619 = vld [vmem:[%s2575 + $0xa4] sm:$0xff]
        %2620 = vst [vmem:[%s2576 + $0xa8] sm:$0xff] %v2619
        %v2621 = vld [vmem:[%s2575 + $0xa8] sm:$0xff]
        %2622 = vst [vmem:[%s2576 + $0xb0] sm:$0xff] %v2621
        %v2623 = vld [vmem:[%s2575 + $0xac] sm:$0xff]
        %2624 = vst [vmem:[%s2576 + $0xb8] sm:$0xff] %v2623
        %v2625 = vld [vmem:[%s2575 + $0xb0] sm:$0xff]
        %2626 = vst [vmem:[%s2576 + $0xc0] sm:$0xff] %v2625
        %v2627 = vld [vmem:[%s2575 + $0xc8] sm:$0xff]
        %2628 = vst [vmem:[%s2576 + $0xc8] sm:$0xff] %v2627
        %v2629 = vld [vmem:[%s2575 + $0xcc] sm:$0xff]
        %2630 = vst [vmem:[%s2576 + $0xd0] sm:$0xff] %v2629
        %v2631 = vld [vmem:[%s2575 + $0xd0] sm:$0xff]
        %2632 = vst [vmem:[%s2576 + $0xd8] sm:$0xff] %v2631
        %v2633 = vld [vmem:[%s2575 + $0xd4] sm:$0xff]
        %2634 = vst [vmem:[%s2576 + $0xe0] sm:$0xff] %v2633
        %v2635 = vld [vmem:[%s2575 + $0xd8] sm:$0xff]
        %2636 = vst [vmem:[%s2576 + $0xe8] sm:$0xff] %v2635
        %v2637 = vld [vmem:[%s2575 + $0xf0] sm:$0xff]
        %2638 = vst [vmem:[%s2576 + $0xf0] sm:$0xff] %v2637
        %v2639 = vld [vmem:[%s2575 + $0xf4] sm:$0xff]
        %2640 = vst [vmem:[%s2576 + $0xf8] sm:$0xff] %v2639
        %v2641 = vld [vmem:[%s2575 + $0xf8] sm:$0xff]
        %2642 = vst [vmem:[%s2576 + $0x100] sm:$0xff] %v2641
        %v2643 = vld [vmem:[%s2575 + $0xfc] sm:$0xff]
        %2644 = vst [vmem:[%s2576 + $0x108] sm:$0xff] %v2643
        %v2645 = vld [vmem:[%s2575 + $0x100] sm:$0xff]
        %2646 = vst [vmem:[%s2576 + $0x110] sm:$0xff] %v2645
        %v2647 = vld [vmem:[%s2575 + $0x118] sm:$0xff]
        %2648 = vst [vmem:[%s2576 + $0x118] sm:$0xff] %v2647
        %v2649 = vld [vmem:[%s2575 + $0x11c] sm:$0xff]
        %2650 = vst [vmem:[%s2576 + $0x120] sm:$0xff] %v2649
        %v2651 = vld [vmem:[%s2575 + $0x120] sm:$0xff]
        %2652 = vst [vmem:[%s2576 + $0x128] sm:$0xff] %v2651
        %v2653 = vld [vmem:[%s2575 + $0x124] sm:$0xff]
        %2654 = vst [vmem:[%s2576 + $0x130] sm:$0xff] %v2653
        %v2655 = vld [vmem:[%s2575 + $0x128] sm:$0xff]
        %2656 = vst [vmem:[%s2576 + $0x138] sm:$0xff] %v2655
        %v2657 = vld [vmem:[%s2575 + $0x140] sm:$0xff]
        %2658 = vst [vmem:[%s2576 + $0x140] sm:$0xff] %v2657
        %v2659 = vld [vmem:[%s2575 + $0x144] sm:$0xff]
        %2660 = vst [vmem:[%s2576 + $0x148] sm:$0xff] %v2659
        %v2661 = vld [vmem:[%s2575 + $0x148] sm:$0xff]
        %2662 = vst [vmem:[%s2576 + $0x150] sm:$0xff] %v2661
        %v2663 = vld [vmem:[%s2575 + $0x14c] sm:$0xff]
        %2664 = vst [vmem:[%s2576 + $0x158] sm:$0xff] %v2663
        %v2665 = vld [vmem:[%s2575 + $0x150] sm:$0xff]
        %2666 = vst [vmem:[%s2576 + $0x160] sm:$0xff] %v2665
        %v2667 = vld [vmem:[%s2575 + $0x168] sm:$0xff]
        %2668 = vst [vmem:[%s2576 + $0x168] sm:$0xff] %v2667
        %v2669 = vld [vmem:[%s2575 + $0x16c] sm:$0xff]
        %2670 = vst [vmem:[%s2576 + $0x170] sm:$0xff] %v2669
        %v2671 = vld [vmem:[%s2575 + $0x170] sm:$0xff]
        %2672 = vst [vmem:[%s2576 + $0x178] sm:$0xff] %v2671
        %v2673 = vld [vmem:[%s2575 + $0x174] sm:$0xff]
        %2674 = vst [vmem:[%s2576 + $0x180] sm:$0xff] %v2673
        %v2675 = vld [vmem:[%s2575 + $0x178] sm:$0xff]
        %2676 = vst [vmem:[%s2576 + $0x188] sm:$0xff] %v2675
        %v2677 = vld [vmem:[%s2575 + $0x190] sm:$0xff]
        %2678 = vst [vmem:[%s2576 + $0x190] sm:$0xff] %v2677
        %v2679 = vld [vmem:[%s2575 + $0x194] sm:$0xff]
        %2680 = vst [vmem:[%s2576 + $0x198] sm:$0xff] %v2679
        %v2681 = vld [vmem:[%s2575 + $0x198] sm:$0xff]
        %2682 = vst [vmem:[%s2576 + $0x1a0] sm:$0xff] %v2681
        %v2683 = vld [vmem:[%s2575 + $0x19c] sm:$0xff]
        %2684 = vst [vmem:[%s2576 + $0x1a8] sm:$0xff] %v2683
        %v2685 = vld [vmem:[%s2575 + $0x1a0] sm:$0xff]
        %2686 = vst [vmem:[%s2576 + $0x1b0] sm:$0xff] %v2685
        %v2687 = vld [vmem:[%s2575 + $0x1b8] sm:$0xff]
        %2688 = vst [vmem:[%s2576 + $0x1b8] sm:$0xff] %v2687
        %v2689 = vld [vmem:[%s2575 + $0x1bc] sm:$0xff]
        %2690 = vst [vmem:[%s2576 + $0x1c0] sm:$0xff] %v2689
        %v2691 = vld [vmem:[%s2575 + $0x1c0] sm:$0xff]
        %2692 = vst [vmem:[%s2576 + $0x1c8] sm:$0xff] %v2691
        %v2693 = vld [vmem:[%s2575 + $0x1c4] sm:$0xff]
        %2694 = vst [vmem:[%s2576 + $0x1d0] sm:$0xff] %v2693
        %v2695 = vld [vmem:[%s2575 + $0x1c8] sm:$0xff]
        %2696 = vst [vmem:[%s2576 + $0x1d8] sm:$0xff] %v2695
        %v2697 = vld [vmem:[%s2575 + $0x1e0] sm:$0xff]
        %2698 = vst [vmem:[%s2576 + $0x1e0] sm:$0xff] %v2697
        %v2699 = vld [vmem:[%s2575 + $0x1e4] sm:$0xff]
        %2700 = vst [vmem:[%s2576 + $0x1e8] sm:$0xff] %v2699
        %v2701 = vld [vmem:[%s2575 + $0x1e8] sm:$0xff]
        %2702 = vst [vmem:[%s2576 + $0x1f0] sm:$0xff] %v2701
        %v2703 = vld [vmem:[%s2575 + $0x1ec] sm:$0xff]
        %2704 = vst [vmem:[%s2576 + $0x1f8] sm:$0xff] %v2703
        %v2705 = vld [vmem:[%s2575 + $0x1f0] sm:$0xff]
        %2706 = vst [vmem:[%s2576 + $0x200] sm:$0xff] %v2705
        %v2707 = vld [vmem:[%s2575 + $0x208] sm:$0xff]
        %2708 = vst [vmem:[%s2576 + $0x208] sm:$0xff] %v2707
        %v2709 = vld [vmem:[%s2575 + $0x20c] sm:$0xff]
        %2710 = vst [vmem:[%s2576 + $0x210] sm:$0xff] %v2709
        %v2711 = vld [vmem:[%s2575 + $0x210] sm:$0xff]
        %2712 = vst [vmem:[%s2576 + $0x218] sm:$0xff] %v2711
        %v2713 = vld [vmem:[%s2575 + $0x214] sm:$0xff]
        %2714 = vst [vmem:[%s2576 + $0x220] sm:$0xff] %v2713
        %v2715 = vld [vmem:[%s2575 + $0x218] sm:$0xff]
        %2716 = vst [vmem:[%s2576 + $0x228] sm:$0xff] %v2715
        %v2717 = vld [vmem:[%s2575 + $0x230] sm:$0xff]
        %2718 = vst [vmem:[%s2576 + $0x230] sm:$0xff] %v2717
        %v2719 = vld [vmem:[%s2575 + $0x234] sm:$0xff]
        %2720 = vst [vmem:[%s2576 + $0x238] sm:$0xff] %v2719
        %v2721 = vld [vmem:[%s2575 + $0x238] sm:$0xff]
        %2722 = vst [vmem:[%s2576 + $0x240] sm:$0xff] %v2721
        %v2723 = vld [vmem:[%s2575 + $0x23c] sm:$0xff]
        %2724 = vst [vmem:[%s2576 + $0x248] sm:$0xff] %v2723
        %v2725 = vld [vmem:[%s2575 + $0x240] sm:$0xff]
        %2726 = vst [vmem:[%s2576 + $0x250] sm:$0xff] %v2725
        %v2727 = vld [vmem:[%s2575 + $0x258] sm:$0xff]
        %2728 = vst [vmem:[%s2576 + $0x258] sm:$0xff] %v2727
        %v2729 = vld [vmem:[%s2575 + $0x25c] sm:$0xff]
        %2730 = vst [vmem:[%s2576 + $0x260] sm:$0xff] %v2729
        %v2731 = vld [vmem:[%s2575 + $0x260] sm:$0xff]
        %2732 = vst [vmem:[%s2576 + $0x268] sm:$0xff] %v2731
        %v2733 = vld [vmem:[%s2575 + $0x264] sm:$0xff]
        %2734 = vst [vmem:[%s2576 + $0x270] sm:$0xff] %v2733
        %v2735 = vld [vmem:[%s2575 + $0x268] sm:$0xff]
        %2736 = vst [vmem:[%s2576 + $0x278] sm:$0xff] %v2735
        %v2737 = vld [vmem:[%s2575 + $0x280] sm:$0xff]
        %2738 = vst [vmem:[%s2576 + $0x280] sm:$0xff] %v2737
        %v2739 = vld [vmem:[%s2575 + $0x284] sm:$0xff]
        %2740 = vst [vmem:[%s2576 + $0x288] sm:$0xff] %v2739
        %v2741 = vld [vmem:[%s2575 + $0x288] sm:$0xff]
        %2742 = vst [vmem:[%s2576 + $0x290] sm:$0xff] %v2741
        %v2743 = vld [vmem:[%s2575 + $0x28c] sm:$0xff]
        %2744 = vst [vmem:[%s2576 + $0x298] sm:$0xff] %v2743
        %v2745 = vld [vmem:[%s2575 + $0x290] sm:$0xff]
        %2746 = vst [vmem:[%s2576 + $0x2a0] sm:$0xff] %v2745
        %v2747 = vld [vmem:[%s2575 + $0x2a8] sm:$0xff]
        %2748 = vst [vmem:[%s2576 + $0x2a8] sm:$0xff] %v2747
        %v2749 = vld [vmem:[%s2575 + $0x2ac] sm:$0xff]
        %2750 = vst [vmem:[%s2576 + $0x2b0] sm:$0xff] %v2749
        %v2751 = vld [vmem:[%s2575 + $0x2b0] sm:$0xff]
        %2752 = vst [vmem:[%s2576 + $0x2b8] sm:$0xff] %v2751
        %v2753 = vld [vmem:[%s2575 + $0x2b4] sm:$0xff]
        %2754 = vst [vmem:[%s2576 + $0x2c0] sm:$0xff] %v2753
        %v2755 = vld [vmem:[%s2575 + $0x2b8] sm:$0xff]
        %2756 = vst [vmem:[%s2576 + $0x2c8] sm:$0xff] %v2755
        %v2757 = vld [vmem:[%s2575 + $0x2d0] sm:$0xff]
        %2758 = vst [vmem:[%s2576 + $0x2d0] sm:$0xff] %v2757
        %v2759 = vld [vmem:[%s2575 + $0x2d4] sm:$0xff]
        %2760 = vst [vmem:[%s2576 + $0x2d8] sm:$0xff] %v2759
        %v2761 = vld [vmem:[%s2575 + $0x2d8] sm:$0xff]
        %2762 = vst [vmem:[%s2576 + $0x2e0] sm:$0xff] %v2761
        %v2763 = vld [vmem:[%s2575 + $0x2dc] sm:$0xff]
        %2764 = vst [vmem:[%s2576 + $0x2e8] sm:$0xff] %v2763
        %v2765 = vld [vmem:[%s2575 + $0x2e0] sm:$0xff]
        %2766 = vst [vmem:[%s2576 + $0x2f0] sm:$0xff] %v2765
        %v2767 = vld [vmem:[%s2575 + $0x2f8] sm:$0xff]
        %2768 = vst [vmem:[%s2576 + $0x2f8] sm:$0xff] %v2767
        %v2769 = vld [vmem:[%s2575 + $0x2fc] sm:$0xff]
        %2770 = vst [vmem:[%s2576 + $0x300] sm:$0xff] %v2769
        %v2771 = vld [vmem:[%s2575 + $0x300] sm:$0xff]
        %2772 = vst [vmem:[%s2576 + $0x308] sm:$0xff] %v2771
        %v2773 = vld [vmem:[%s2575 + $0x304] sm:$0xff]
        %2774 = vst [vmem:[%s2576 + $0x310] sm:$0xff] %v2773
        %v2775 = vld [vmem:[%s2575 + $0x308] sm:$0xff]
        %2776 = vst [vmem:[%s2576 + $0x318] sm:$0xff] %v2775
        %v2777 = vld [vmem:[%s2575 + $0x320] sm:$0xff]
        %2778 = vst [vmem:[%s2576 + $0x320] sm:$0xff] %v2777
        %v2779 = vld [vmem:[%s2575 + $0x324] sm:$0xff]
        %2780 = vst [vmem:[%s2576 + $0x328] sm:$0xff] %v2779
        %v2781 = vld [vmem:[%s2575 + $0x328] sm:$0xff]
        %2782 = vst [vmem:[%s2576 + $0x330] sm:$0xff] %v2781
        %v2783 = vld [vmem:[%s2575 + $0x32c] sm:$0xff]
        %2784 = vst [vmem:[%s2576 + $0x338] sm:$0xff] %v2783
        %v2785 = vld [vmem:[%s2575 + $0x330] sm:$0xff]
        %2786 = vst [vmem:[%s2576 + $0x340] sm:$0xff] %v2785
        %v2787 = vld [vmem:[%s2575 + $0x348] sm:$0xff]
        %2788 = vst [vmem:[%s2576 + $0x348] sm:$0xff] %v2787
        %v2789 = vld [vmem:[%s2575 + $0x34c] sm:$0xff]
        %2790 = vst [vmem:[%s2576 + $0x350] sm:$0xff] %v2789
        %v2791 = vld [vmem:[%s2575 + $0x350] sm:$0xff]
        %2792 = vst [vmem:[%s2576 + $0x358] sm:$0xff] %v2791
        %v2793 = vld [vmem:[%s2575 + $0x354] sm:$0xff]
        %2794 = vst [vmem:[%s2576 + $0x360] sm:$0xff] %v2793
        %v2795 = vld [vmem:[%s2575 + $0x358] sm:$0xff]
        %2796 = vst [vmem:[%s2576 + $0x368] sm:$0xff] %v2795
        %v2797 = vld [vmem:[%s2575 + $0x370] sm:$0xff]
        %2798 = vst [vmem:[%s2576 + $0x370] sm:$0xff] %v2797
        %v2799 = vld [vmem:[%s2575 + $0x374] sm:$0xff]
        %2800 = vst [vmem:[%s2576 + $0x378] sm:$0xff] %v2799
        %v2801 = vld [vmem:[%s2575 + $0x378] sm:$0xff]
        %2802 = vst [vmem:[%s2576 + $0x380] sm:$0xff] %v2801
        %v2803 = vld [vmem:[%s2575 + $0x37c] sm:$0xff]
        %2804 = vst [vmem:[%s2576 + $0x388] sm:$0xff] %v2803
        %v2805 = vld [vmem:[%s2575 + $0x380] sm:$0xff]
        %2806 = vst [vmem:[%s2576 + $0x390] sm:$0xff] %v2805
        %v2807 = vld [vmem:[%s2575 + $0x398] sm:$0xff]
        %2808 = vst [vmem:[%s2576 + $0x398] sm:$0xff] %v2807
        %v2809 = vld [vmem:[%s2575 + $0x39c] sm:$0xff]
        %2810 = vst [vmem:[%s2576 + $0x3a0] sm:$0xff] %v2809
        %v2811 = vld [vmem:[%s2575 + $0x3a0] sm:$0xff]
        %2812 = vst [vmem:[%s2576 + $0x3a8] sm:$0xff] %v2811
        %v2813 = vld [vmem:[%s2575 + $0x3a4] sm:$0xff]
        %2814 = vst [vmem:[%s2576 + $0x3b0] sm:$0xff] %v2813
        %v2815 = vld [vmem:[%s2575 + $0x3a8] sm:$0xff]
        %2816 = vst [vmem:[%s2576 + $0x3b8] sm:$0xff] %v2815
        %v2817 = vld [vmem:[%s2575 + $0x3c0] sm:$0xff]
        %2818 = vst [vmem:[%s2576 + $0x3c0] sm:$0xff] %v2817
        %v2819 = vld [vmem:[%s2575 + $0x3c4] sm:$0xff]
        %2820 = vst [vmem:[%s2576 + $0x3c8] sm:$0xff] %v2819
        %v2821 = vld [vmem:[%s2575 + $0x3c8] sm:$0xff]
        %2822 = vst [vmem:[%s2576 + $0x3d0] sm:$0xff] %v2821
        %v2823 = vld [vmem:[%s2575 + $0x3cc] sm:$0xff]
        %2824 = vst [vmem:[%s2576 + $0x3d8] sm:$0xff] %v2823
        %v2825 = vld [vmem:[%s2575 + $0x3d0] sm:$0xff]
        %2826 = vst [vmem:[%s2576 + $0x3e0] sm:$0xff] %v2825
        %v2827 = vld [vmem:[%s2575 + $0x3e8] sm:$0xff]
        %2828 = vst [vmem:[%s2576 + $0x3e8] sm:$0xff] %v2827
        %v2829 = vld [vmem:[%s2575 + $0x3ec] sm:$0xff]
        %2830 = vst [vmem:[%s2576 + $0x3f0] sm:$0xff] %v2829
        %v2831 = vld [vmem:[%s2575 + $0x3f0] sm:$0xff]
        %2832 = vst [vmem:[%s2576 + $0x3f8] sm:$0xff] %v2831
        %v2833 = vld [vmem:[%s2575 + $0x3f4] sm:$0xff]
        %2834 = vst [vmem:[%s2576 + $0x400] sm:$0xff] %v2833
        %v2835 = vld [vmem:[%s2575 + $0x3f8] sm:$0xff]
        %2836 = vst [vmem:[%s2576 + $0x408] sm:$0xff] %v2835
        %v2837 = vld [vmem:[%s2575 + $0x410] sm:$0xff]
        %2838 = vst [vmem:[%s2576 + $0x410] sm:$0xff] %v2837
        %v2839 = vld [vmem:[%s2575 + $0x414] sm:$0xff]
        %2840 = vst [vmem:[%s2576 + $0x418] sm:$0xff] %v2839
        %v2841 = vld [vmem:[%s2575 + $0x418] sm:$0xff]
        %2842 = vst [vmem:[%s2576 + $0x420] sm:$0xff] %v2841
        %v2843 = vld [vmem:[%s2575 + $0x41c] sm:$0xff]
        %2844 = vst [vmem:[%s2576 + $0x428] sm:$0xff] %v2843
        %v2845 = vld [vmem:[%s2575 + $0x420] sm:$0xff]
        %2846 = vst [vmem:[%s2576 + $0x430] sm:$0xff] %v2845
        %v2847 = vld [vmem:[%s2575 + $0x438] sm:$0xff]
        %2848 = vst [vmem:[%s2576 + $0x438] sm:$0xff] %v2847
        %v2849 = vld [vmem:[%s2575 + $0x43c] sm:$0xff]
        %2850 = vst [vmem:[%s2576 + $0x440] sm:$0xff] %v2849
        %v2851 = vld [vmem:[%s2575 + $0x440] sm:$0xff]
        %2852 = vst [vmem:[%s2576 + $0x448] sm:$0xff] %v2851
        %v2853 = vld [vmem:[%s2575 + $0x444] sm:$0xff]
        %2854 = vst [vmem:[%s2576 + $0x450] sm:$0xff] %v2853
        %v2855 = vld [vmem:[%s2575 + $0x448] sm:$0xff]
        %2856 = vst [vmem:[%s2576 + $0x458] sm:$0xff] %v2855
        %v2857 = vld [vmem:[%s2575 + $0x460] sm:$0xff]
        %2858 = vst [vmem:[%s2576 + $0x460] sm:$0xff] %v2857
        %v2859 = vld [vmem:[%s2575 + $0x464] sm:$0xff]
        %2860 = vst [vmem:[%s2576 + $0x468] sm:$0xff] %v2859
        %v2861 = vld [vmem:[%s2575 + $0x468] sm:$0xff]
        %2862 = vst [vmem:[%s2576 + $0x470] sm:$0xff] %v2861
        %v2863 = vld [vmem:[%s2575 + $0x46c] sm:$0xff]
        %2864 = vst [vmem:[%s2576 + $0x478] sm:$0xff] %v2863
        %v2865 = vld [vmem:[%s2575 + $0x470] sm:$0xff]
        %2866 = vst [vmem:[%s2576 + $0x480] sm:$0xff] %v2865
        %v2867 = vld [vmem:[%s2575 + $0x488] sm:$0xff]
        %2868 = vst [vmem:[%s2576 + $0x488] sm:$0xff] %v2867
        %v2869 = vld [vmem:[%s2575 + $0x48c] sm:$0xff]
        %2870 = vst [vmem:[%s2576 + $0x490] sm:$0xff] %v2869
        %v2871 = vld [vmem:[%s2575 + $0x490] sm:$0xff]
        %2872 = vst [vmem:[%s2576 + $0x498] sm:$0xff] %v2871
        %v2873 = vld [vmem:[%s2575 + $0x494] sm:$0xff]
        %2874 = vst [vmem:[%s2576 + $0x4a0] sm:$0xff] %v2873
        %v2875 = vld [vmem:[%s2575 + $0x498] sm:$0xff]
        %2876 = vst [vmem:[%s2576 + $0x4a8] sm:$0xff] %v2875
        %v2877 = vld [vmem:[%s2575 + $0x4b0] sm:$0xff]
        %2878 = vst [vmem:[%s2576 + $0x4b0] sm:$0xff] %v2877
        %v2879 = vld [vmem:[%s2575 + $0x4b4] sm:$0xff]
        %2880 = vst [vmem:[%s2576 + $0x4b8] sm:$0xff] %v2879
        %v2881 = vld [vmem:[%s2575 + $0x4b8] sm:$0xff]
        %2882 = vst [vmem:[%s2576 + $0x4c0] sm:$0xff] %v2881
        %v2883 = vld [vmem:[%s2575 + $0x4bc] sm:$0xff]
        %2884 = vst [vmem:[%s2576 + $0x4c8] sm:$0xff] %v2883
        %v2885 = vld [vmem:[%s2575 + $0x4c0] sm:$0xff]
        %2886 = vst [vmem:[%s2576 + $0x4d0] sm:$0xff] %v2885
        %v2887 = vld [vmem:[%s2575 + $0x4d8] sm:$0xff]
        %2888 = vst [vmem:[%s2576 + $0x4d8] sm:$0xff] %v2887
        %v2889 = vld [vmem:[%s2575 + $0x4dc] sm:$0xff]
        %2890 = vst [vmem:[%s2576 + $0x4e0] sm:$0xff] %v2889
        %v2891 = vld [vmem:[%s2575 + $0x4e0] sm:$0xff]
        %2892 = vst [vmem:[%s2576 + $0x4e8] sm:$0xff] %v2891
        %v2893 = vld [vmem:[%s2575 + $0x4e4] sm:$0xff]
        %2894 = vst [vmem:[%s2576 + $0x4f0] sm:$0xff] %v2893
        %v2895 = vld [vmem:[%s2575 + $0x4e8] sm:$0xff]
        %2896 = vst [vmem:[%s2576 + $0x4f8] sm:$0xff] %v2895
        %v2897 = vld [vmem:[%s2575 + $0x500] sm:$0xff]
        %2898 = vst [vmem:[%s2576 + $0x500] sm:$0xff] %v2897
        %v2899 = vld [vmem:[%s2575 + $0x504] sm:$0xff]
        %2900 = vst [vmem:[%s2576 + $0x508] sm:$0xff] %v2899
        %v2901 = vld [vmem:[%s2575 + $0x508] sm:$0xff]
        %2902 = vst [vmem:[%s2576 + $0x510] sm:$0xff] %v2901
        %v2903 = vld [vmem:[%s2575 + $0x50c] sm:$0xff]
        %2904 = vst [vmem:[%s2576 + $0x518] sm:$0xff] %v2903
        %v2905 = vld [vmem:[%s2575 + $0x510] sm:$0xff]
        %2906 = vst [vmem:[%s2576 + $0x520] sm:$0xff] %v2905
        %v2907 = vld [vmem:[%s2575 + $0x528] sm:$0xff]
        %2908 = vst [vmem:[%s2576 + $0x528] sm:$0xff] %v2907
        %v2909 = vld [vmem:[%s2575 + $0x52c] sm:$0xff]
        %2910 = vst [vmem:[%s2576 + $0x530] sm:$0xff] %v2909
        %v2911 = vld [vmem:[%s2575 + $0x530] sm:$0xff]
        %2912 = vst [vmem:[%s2576 + $0x538] sm:$0xff] %v2911
        %v2913 = vld [vmem:[%s2575 + $0x534] sm:$0xff]
        %2914 = vst [vmem:[%s2576 + $0x540] sm:$0xff] %v2913
        %v2915 = vld [vmem:[%s2575 + $0x538] sm:$0xff]
        %2916 = vst [vmem:[%s2576 + $0x548] sm:$0xff] %v2915
        %v2917 = vld [vmem:[%s2575 + $0x550] sm:$0xff]
        %2918 = vst [vmem:[%s2576 + $0x550] sm:$0xff] %v2917
        %v2919 = vld [vmem:[%s2575 + $0x554] sm:$0xff]
        %2920 = vst [vmem:[%s2576 + $0x558] sm:$0xff] %v2919
        %v2921 = vld [vmem:[%s2575 + $0x558] sm:$0xff]
        %2922 = vst [vmem:[%s2576 + $0x560] sm:$0xff] %v2921
        %v2923 = vld [vmem:[%s2575 + $0x55c] sm:$0xff]
        %2924 = vst [vmem:[%s2576 + $0x568] sm:$0xff] %v2923
        %v2925 = vld [vmem:[%s2575 + $0x560] sm:$0xff]
        %2926 = vst [vmem:[%s2576 + $0x570] sm:$0xff] %v2925
        %v2927 = vld [vmem:[%s2575 + $0x578] sm:$0xff]
        %2928 = vst [vmem:[%s2576 + $0x578] sm:$0xff] %v2927
        %v2929 = vld [vmem:[%s2575 + $0x57c] sm:$0xff]
        %2930 = vst [vmem:[%s2576 + $0x580] sm:$0xff] %v2929
        %v2931 = vld [vmem:[%s2575 + $0x580] sm:$0xff]
        %2932 = vst [vmem:[%s2576 + $0x588] sm:$0xff] %v2931
        %v2933 = vld [vmem:[%s2575 + $0x584] sm:$0xff]
        %2934 = vst [vmem:[%s2576 + $0x590] sm:$0xff] %v2933
        %v2935 = vld [vmem:[%s2575 + $0x588] sm:$0xff]
        %2936 = vst [vmem:[%s2576 + $0x598] sm:$0xff] %v2935
        %v2937 = vld [vmem:[%s2575 + $0x5a0] sm:$0xff]
        %2938 = vst [vmem:[%s2576 + $0x5a0] sm:$0xff] %v2937
        %v2939 = vld [vmem:[%s2575 + $0x5a4] sm:$0xff]
        %2940 = vst [vmem:[%s2576 + $0x5a8] sm:$0xff] %v2939
        %v2941 = vld [vmem:[%s2575 + $0x5a8] sm:$0xff]
        %2942 = vst [vmem:[%s2576 + $0x5b0] sm:$0xff] %v2941
        %v2943 = vld [vmem:[%s2575 + $0x5ac] sm:$0xff]
        %2944 = vst [vmem:[%s2576 + $0x5b8] sm:$0xff] %v2943
        %v2945 = vld [vmem:[%s2575 + $0x5b0] sm:$0xff]
        %2946 = vst [vmem:[%s2576 + $0x5c0] sm:$0xff] %v2945
        %v2947 = vld [vmem:[%s2575 + $0x5c8] sm:$0xff]
        %2948 = vst [vmem:[%s2576 + $0x5c8] sm:$0xff] %v2947
        %v2949 = vld [vmem:[%s2575 + $0x5cc] sm:$0xff]
        %2950 = vst [vmem:[%s2576 + $0x5d0] sm:$0xff] %v2949
        %v2951 = vld [vmem:[%s2575 + $0x5d0] sm:$0xff]
        %2952 = vst [vmem:[%s2576 + $0x5d8] sm:$0xff] %v2951
        %v2953 = vld [vmem:[%s2575 + $0x5d4] sm:$0xff]
        %2954 = vst [vmem:[%s2576 + $0x5e0] sm:$0xff] %v2953
        %v2955 = vld [vmem:[%s2575 + $0x5d8] sm:$0xff]
        %2956 = vst [vmem:[%s2576 + $0x5e8] sm:$0xff] %v2955
        %v2957 = vld [vmem:[%s2575 + $0x5f0] sm:$0xff]
        %2958 = vst [vmem:[%s2576 + $0x5f0] sm:$0xff] %v2957
        %v2959 = vld [vmem:[%s2575 + $0x5f4] sm:$0xff]
        %2960 = vst [vmem:[%s2576 + $0x5f8] sm:$0xff] %v2959
        %v2961 = vld [vmem:[%s2575 + $0x5f8] sm:$0xff]
        %2962 = vst [vmem:[%s2576 + $0x600] sm:$0xff] %v2961
        %v2963 = vld [vmem:[%s2575 + $0x5fc] sm:$0xff]
        %2964 = vst [vmem:[%s2576 + $0x608] sm:$0xff] %v2963
        %v2965 = vld [vmem:[%s2575 + $0x600] sm:$0xff]
        %2966 = vst [vmem:[%s2576 + $0x610] sm:$0xff] %v2965
        %v2967 = vld [vmem:[%s2575 + $0x618] sm:$0xff]
        %2968 = vst [vmem:[%s2576 + $0x618] sm:$0xff] %v2967
        %v2969 = vld [vmem:[%s2575 + $0x61c] sm:$0xff]
        %2970 = vst [vmem:[%s2576 + $0x620] sm:$0xff] %v2969
        %v2971 = vld [vmem:[%s2575 + $0x620] sm:$0xff]
        %2972 = vst [vmem:[%s2576 + $0x628] sm:$0xff] %v2971
        %v2973 = vld [vmem:[%s2575 + $0x624] sm:$0xff]
        %2974 = vst [vmem:[%s2576 + $0x630] sm:$0xff] %v2973
        %v2975 = vld [vmem:[%s2575 + $0x628] sm:$0xff]
        %2976 = vst [vmem:[%s2576 + $0x638] sm:$0xff] %v2975
        %v2977 = vld [vmem:[%s2575 + $0x640] sm:$0xff]
        %2978 = vst [vmem:[%s2576 + $0x640] sm:$0xff] %v2977
        %v2979 = vld [vmem:[%s2575 + $0x644] sm:$0xff]
        %2980 = vst [vmem:[%s2576 + $0x648] sm:$0xff] %v2979
        %v2981 = vld [vmem:[%s2575 + $0x648] sm:$0xff]
        %2982 = vst [vmem:[%s2576 + $0x650] sm:$0xff] %v2981
        %v2983 = vld [vmem:[%s2575 + $0x64c] sm:$0xff]
        %2984 = vst [vmem:[%s2576 + $0x658] sm:$0xff] %v2983
        %v2985 = vld [vmem:[%s2575 + $0x650] sm:$0xff]
        %2986 = vst [vmem:[%s2576 + $0x660] sm:$0xff] %v2985
        %v2987 = vld [vmem:[%s2575 + $0x668] sm:$0xff]
        %2988 = vst [vmem:[%s2576 + $0x668] sm:$0xff] %v2987
        %v2989 = vld [vmem:[%s2575 + $0x66c] sm:$0xff]
        %2990 = vst [vmem:[%s2576 + $0x670] sm:$0xff] %v2989
        %v2991 = vld [vmem:[%s2575 + $0x670] sm:$0xff]
        %2992 = vst [vmem:[%s2576 + $0x678] sm:$0xff] %v2991
        %v2993 = vld [vmem:[%s2575 + $0x674] sm:$0xff]
        %2994 = vst [vmem:[%s2576 + $0x680] sm:$0xff] %v2993
        %v2995 = vld [vmem:[%s2575 + $0x678] sm:$0xff]
        %2996 = vst [vmem:[%s2576 + $0x688] sm:$0xff] %v2995
        %v2997 = vld [vmem:[%s2575 + $0x690] sm:$0xff]
        %2998 = vst [vmem:[%s2576 + $0x690] sm:$0xff] %v2997
        %v2999 = vld [vmem:[%s2575 + $0x694] sm:$0xff]
        %3000 = vst [vmem:[%s2576 + $0x698] sm:$0xff] %v2999
        %v3001 = vld [vmem:[%s2575 + $0x698] sm:$0xff]
        %3002 = vst [vmem:[%s2576 + $0x6a0] sm:$0xff] %v3001
        %v3003 = vld [vmem:[%s2575 + $0x69c] sm:$0xff]
        %3004 = vst [vmem:[%s2576 + $0x6a8] sm:$0xff] %v3003
        %v3005 = vld [vmem:[%s2575 + $0x6a0] sm:$0xff]
        %3006 = vst [vmem:[%s2576 + $0x6b0] sm:$0xff] %v3005
        %v3007 = vld [vmem:[%s2575 + $0x6b8] sm:$0xff]
        %3008 = vst [vmem:[%s2576 + $0x6b8] sm:$0xff] %v3007
        %v3009 = vld [vmem:[%s2575 + $0x6bc] sm:$0xff]
        %3010 = vst [vmem:[%s2576 + $0x6c0] sm:$0xff] %v3009
        %v3011 = vld [vmem:[%s2575 + $0x6c0] sm:$0xff]
        %3012 = vst [vmem:[%s2576 + $0x6c8] sm:$0xff] %v3011
        %v3013 = vld [vmem:[%s2575 + $0x6c4] sm:$0xff]
        %3014 = vst [vmem:[%s2576 + $0x6d0] sm:$0xff] %v3013
        %v3015 = vld [vmem:[%s2575 + $0x6c8] sm:$0xff]
        %3016 = vst [vmem:[%s2576 + $0x6d8] sm:$0xff] %v3015
        %v3017 = vld [vmem:[%s2575 + $0x6e0] sm:$0xff]
        %3018 = vst [vmem:[%s2576 + $0x6e0] sm:$0xff] %v3017
        %v3019 = vld [vmem:[%s2575 + $0x6e4] sm:$0xff]
        %3020 = vst [vmem:[%s2576 + $0x6e8] sm:$0xff] %v3019
        %v3021 = vld [vmem:[%s2575 + $0x6e8] sm:$0xff]
        %3022 = vst [vmem:[%s2576 + $0x6f0] sm:$0xff] %v3021
        %v3023 = vld [vmem:[%s2575 + $0x6ec] sm:$0xff]
        %3024 = vst [vmem:[%s2576 + $0x6f8] sm:$0xff] %v3023
        %v3025 = vld [vmem:[%s2575 + $0x6f0] sm:$0xff]
        %3026 = vst [vmem:[%s2576 + $0x700] sm:$0xff] %v3025
        %v3027 = vld [vmem:[%s2575 + $0x708] sm:$0xff]
        %3028 = vst [vmem:[%s2576 + $0x708] sm:$0xff] %v3027
        %v3029 = vld [vmem:[%s2575 + $0x70c] sm:$0xff]
        %3030 = vst [vmem:[%s2576 + $0x710] sm:$0xff] %v3029
        %v3031 = vld [vmem:[%s2575 + $0x710] sm:$0xff]
        %3032 = vst [vmem:[%s2576 + $0x718] sm:$0xff] %v3031
        %v3033 = vld [vmem:[%s2575 + $0x714] sm:$0xff]
        %3034 = vst [vmem:[%s2576 + $0x720] sm:$0xff] %v3033
        %v3035 = vld [vmem:[%s2575 + $0x718] sm:$0xff]
        %3036 = vst [vmem:[%s2576 + $0x728] sm:$0xff] %v3035
        %v3037 = vld [vmem:[%s2575 + $0x730] sm:$0xff]
        %3038 = vst [vmem:[%s2576 + $0x730] sm:$0xff] %v3037
        %v3039 = vld [vmem:[%s2575 + $0x734] sm:$0xff]
        %3040 = vst [vmem:[%s2576 + $0x738] sm:$0xff] %v3039
        %v3041 = vld [vmem:[%s2575 + $0x738] sm:$0xff]
        %3042 = vst [vmem:[%s2576 + $0x740] sm:$0xff] %v3041
        %v3043 = vld [vmem:[%s2575 + $0x73c] sm:$0xff]
        %3044 = vst [vmem:[%s2576 + $0x748] sm:$0xff] %v3043
        %v3045 = vld [vmem:[%s2575 + $0x740] sm:$0xff]
        %3046 = vst [vmem:[%s2576 + $0x750] sm:$0xff] %v3045
        %v3047 = vld [vmem:[%s2575 + $0x758] sm:$0xff]
        %3048 = vst [vmem:[%s2576 + $0x758] sm:$0xff] %v3047
        %v3049 = vld [vmem:[%s2575 + $0x75c] sm:$0xff]
        %3050 = vst [vmem:[%s2576 + $0x760] sm:$0xff] %v3049
        %v3051 = vld [vmem:[%s2575 + $0x760] sm:$0xff]
        %3052 = vst [vmem:[%s2576 + $0x768] sm:$0xff] %v3051
        %v3053 = vld [vmem:[%s2575 + $0x764] sm:$0xff]
        %3054 = vst [vmem:[%s2576 + $0x770] sm:$0xff] %v3053
        %v3055 = vld [vmem:[%s2575 + $0x768] sm:$0xff]
        %3056 = vst [vmem:[%s2576 + $0x778] sm:$0xff] %v3055
        %v3057 = vld [vmem:[%s2575 + $0x780] sm:$0xff]
        %3058 = vst [vmem:[%s2576 + $0x780] sm:$0xff] %v3057
        %v3059 = vld [vmem:[%s2575 + $0x784] sm:$0xff]
        %3060 = vst [vmem:[%s2576 + $0x788] sm:$0xff] %v3059
        %v3061 = vld [vmem:[%s2575 + $0x788] sm:$0xff]
        %3062 = vst [vmem:[%s2576 + $0x790] sm:$0xff] %v3061
        %v3063 = vld [vmem:[%s2575 + $0x78c] sm:$0xff]
        %3064 = vst [vmem:[%s2576 + $0x798] sm:$0xff] %v3063
        %v3065 = vld [vmem:[%s2575 + $0x790] sm:$0xff]
        %3066 = vst [vmem:[%s2576 + $0x7a0] sm:$0xff] %v3065
        %v3067 = vld [vmem:[%s2575 + $0x7a8] sm:$0xff]
        %3068 = vst [vmem:[%s2576 + $0x7a8] sm:$0xff] %v3067
        %v3069 = vld [vmem:[%s2575 + $0x7ac] sm:$0xff]
        %3070 = vst [vmem:[%s2576 + $0x7b0] sm:$0xff] %v3069
        %v3071 = vld [vmem:[%s2575 + $0x7b0] sm:$0xff]
        %3072 = vst [vmem:[%s2576 + $0x7b8] sm:$0xff] %v3071
        %v3073 = vld [vmem:[%s2575 + $0x7b4] sm:$0xff]
        %3074 = vst [vmem:[%s2576 + $0x7c0] sm:$0xff] %v3073
        %v3075 = vld [vmem:[%s2575 + $0x7b8] sm:$0xff]
        %3076 = vst [vmem:[%s2576 + $0x7c8] sm:$0xff] %v3075
        %v3077 = vld [vmem:[%s2575 + $0x7d0] sm:$0xff]
        %3078 = vst [vmem:[%s2576 + $0x7d0] sm:$0xff] %v3077
        %v3079 = vld [vmem:[%s2575 + $0x7d4] sm:$0xff]
        %3080 = vst [vmem:[%s2576 + $0x7d8] sm:$0xff] %v3079
        %v3081 = vld [vmem:[%s2575 + $0x7d8] sm:$0xff]
        %3082 = vst [vmem:[%s2576 + $0x7e0] sm:$0xff] %v3081
        %v3083 = vld [vmem:[%s2575 + $0x7dc] sm:$0xff]
        %3084 = vst [vmem:[%s2576 + $0x7e8] sm:$0xff] %v3083
        %v3085 = vld [vmem:[%s2575 + $0x7e0] sm:$0xff]
        %3086 = vst [vmem:[%s2576 + $0x7f0] sm:$0xff] %v3085
        %v3087 = vld [vmem:[%s2575 + $0x7f8] sm:$0xff]
        %3088 = vst [vmem:[%s2576 + $0x7f8] sm:$0xff] %v3087
        %v3089 = vld [vmem:[%s2575 + $0x7fc] sm:$0xff]
        %3090 = vst [vmem:[%s2576 + $0x800] sm:$0xff] %v3089
        %v3091 = vld [vmem:[%s2575 + $0x800] sm:$0xff]
        %3092 = vst [vmem:[%s2576 + $0x808] sm:$0xff] %v3091
        %v3093 = vld [vmem:[%s2575 + $0x804] sm:$0xff]
        %3094 = vst [vmem:[%s2576 + $0x810] sm:$0xff] %v3093
        %v3095 = vld [vmem:[%s2575 + $0x808] sm:$0xff]
        %3096 = vst [vmem:[%s2576 + $0x818] sm:$0xff] %v3095
        %v3097 = vld [vmem:[%s2575 + $0x820] sm:$0xff]
        %3098 = vst [vmem:[%s2576 + $0x820] sm:$0xff] %v3097
        %v3099 = vld [vmem:[%s2575 + $0x824] sm:$0xff]
        %3100 = vst [vmem:[%s2576 + $0x828] sm:$0xff] %v3099
        %v3101 = vld [vmem:[%s2575 + $0x828] sm:$0xff]
        %3102 = vst [vmem:[%s2576 + $0x830] sm:$0xff] %v3101
        %v3103 = vld [vmem:[%s2575 + $0x82c] sm:$0xff]
        %3104 = vst [vmem:[%s2576 + $0x838] sm:$0xff] %v3103
        %v3105 = vld [vmem:[%s2575 + $0x830] sm:$0xff]
        %3106 = vst [vmem:[%s2576 + $0x840] sm:$0xff] %v3105
        %v3107 = vld [vmem:[%s2575 + $0x848] sm:$0xff]
        %3108 = vst [vmem:[%s2576 + $0x848] sm:$0xff] %v3107
        %v3109 = vld [vmem:[%s2575 + $0x84c] sm:$0xff]
        %3110 = vst [vmem:[%s2576 + $0x850] sm:$0xff] %v3109
        %v3111 = vld [vmem:[%s2575 + $0x850] sm:$0xff]
        %3112 = vst [vmem:[%s2576 + $0x858] sm:$0xff] %v3111
        %v3113 = vld [vmem:[%s2575 + $0x854] sm:$0xff]
        %3114 = vst [vmem:[%s2576 + $0x860] sm:$0xff] %v3113
        %v3115 = vld [vmem:[%s2575 + $0x858] sm:$0xff]
        %3116 = vst [vmem:[%s2576 + $0x868] sm:$0xff] %v3115
        %v3117 = vld [vmem:[%s2575 + $0x870] sm:$0xff]
        %3118 = vst [vmem:[%s2576 + $0x870] sm:$0xff] %v3117
        %v3119 = vld [vmem:[%s2575 + $0x874] sm:$0xff]
        %3120 = vst [vmem:[%s2576 + $0x878] sm:$0xff] %v3119
        %v3121 = vld [vmem:[%s2575 + $0x878] sm:$0xff]
        %3122 = vst [vmem:[%s2576 + $0x880] sm:$0xff] %v3121
        %v3123 = vld [vmem:[%s2575 + $0x87c] sm:$0xff]
        %3124 = vst [vmem:[%s2576 + $0x888] sm:$0xff] %v3123
        %v3125 = vld [vmem:[%s2575 + $0x880] sm:$0xff]
        %3126 = vst [vmem:[%s2576 + $0x890] sm:$0xff] %v3125
        %v3127 = vld [vmem:[%s2575 + $0x898] sm:$0xff]
        %3128 = vst [vmem:[%s2576 + $0x898] sm:$0xff] %v3127
        %v3129 = vld [vmem:[%s2575 + $0x89c] sm:$0xff]
        %3130 = vst [vmem:[%s2576 + $0x8a0] sm:$0xff] %v3129
        %v3131 = vld [vmem:[%s2575 + $0x8a0] sm:$0xff]
        %3132 = vst [vmem:[%s2576 + $0x8a8] sm:$0xff] %v3131
        %v3133 = vld [vmem:[%s2575 + $0x8a4] sm:$0xff]
        %3134 = vst [vmem:[%s2576 + $0x8b0] sm:$0xff] %v3133
        %v3135 = vld [vmem:[%s2575 + $0x8a8] sm:$0xff]
        %3136 = vst [vmem:[%s2576 + $0x8b8] sm:$0xff] %v3135
        %v3137 = vld [vmem:[%s2575 + $0x8c0] sm:$0xff]
        %3138 = vst [vmem:[%s2576 + $0x8c0] sm:$0xff] %v3137
        %v3139 = vld [vmem:[%s2575 + $0x8c4] sm:$0xff]
        %3140 = vst [vmem:[%s2576 + $0x8c8] sm:$0xff] %v3139
        %v3141 = vld [vmem:[%s2575 + $0x8c8] sm:$0xff]
        %3142 = vst [vmem:[%s2576 + $0x8d0] sm:$0xff] %v3141
        %v3143 = vld [vmem:[%s2575 + $0x8cc] sm:$0xff]
        %3144 = vst [vmem:[%s2576 + $0x8d8] sm:$0xff] %v3143
        %v3145 = vld [vmem:[%s2575 + $0x8d0] sm:$0xff]
        %3146 = vst [vmem:[%s2576 + $0x8e0] sm:$0xff] %v3145
        %v3147 = vld [vmem:[%s2575 + $0x8e8] sm:$0xff]
        %3148 = vst [vmem:[%s2576 + $0x8e8] sm:$0xff] %v3147
        %v3149 = vld [vmem:[%s2575 + $0x8ec] sm:$0xff]
        %3150 = vst [vmem:[%s2576 + $0x8f0] sm:$0xff] %v3149
        %v3151 = vld [vmem:[%s2575 + $0x8f0] sm:$0xff]
        %3152 = vst [vmem:[%s2576 + $0x8f8] sm:$0xff] %v3151
        %v3153 = vld [vmem:[%s2575 + $0x8f4] sm:$0xff]
        %3154 = vst [vmem:[%s2576 + $0x900] sm:$0xff] %v3153
        %v3155 = vld [vmem:[%s2575 + $0x8f8] sm:$0xff]
        %3156 = vst [vmem:[%s2576 + $0x908] sm:$0xff] %v3155
        %v3157 = vld [vmem:[%s2575 + $0x910] sm:$0xff]
        %3158 = vst [vmem:[%s2576 + $0x910] sm:$0xff] %v3157
        %v3159 = vld [vmem:[%s2575 + $0x914] sm:$0xff]
        %3160 = vst [vmem:[%s2576 + $0x918] sm:$0xff] %v3159
        %v3161 = vld [vmem:[%s2575 + $0x918] sm:$0xff]
        %3162 = vst [vmem:[%s2576 + $0x920] sm:$0xff] %v3161
        %v3163 = vld [vmem:[%s2575 + $0x91c] sm:$0xff]
        %3164 = vst [vmem:[%s2576 + $0x928] sm:$0xff] %v3163
        %v3165 = vld [vmem:[%s2575 + $0x920] sm:$0xff]
        %3166 = vst [vmem:[%s2576 + $0x930] sm:$0xff] %v3165
        %v3167 = vld [vmem:[%s2575 + $0x938] sm:$0xff]
        %3168 = vst [vmem:[%s2576 + $0x938] sm:$0xff] %v3167
        %v3169 = vld [vmem:[%s2575 + $0x93c] sm:$0xff]
        %3170 = vst [vmem:[%s2576 + $0x940] sm:$0xff] %v3169
        %v3171 = vld [vmem:[%s2575 + $0x940] sm:$0xff]
        %3172 = vst [vmem:[%s2576 + $0x948] sm:$0xff] %v3171
        %v3173 = vld [vmem:[%s2575 + $0x944] sm:$0xff]
        %3174 = vst [vmem:[%s2576 + $0x950] sm:$0xff] %v3173
        %v3175 = vld [vmem:[%s2575 + $0x948] sm:$0xff]
        %3176 = vst [vmem:[%s2576 + $0x958] sm:$0xff] %v3175
        %v3177 = vld [vmem:[%s2575 + $0x960] sm:$0xff]
        %3178 = vst [vmem:[%s2576 + $0x960] sm:$0xff] %v3177
        %v3179 = vld [vmem:[%s2575 + $0x964] sm:$0xff]
        %3180 = vst [vmem:[%s2576 + $0x968] sm:$0xff] %v3179
        %v3181 = vld [vmem:[%s2575 + $0x968] sm:$0xff]
        %3182 = vst [vmem:[%s2576 + $0x970] sm:$0xff] %v3181
        %v3183 = vld [vmem:[%s2575 + $0x96c] sm:$0xff]
        %3184 = vst [vmem:[%s2576 + $0x978] sm:$0xff] %v3183
        %v3185 = vld [vmem:[%s2575 + $0x970] sm:$0xff]
        %3186 = vst [vmem:[%s2576 + $0x980] sm:$0xff] %v3185
        %v3187 = vld [vmem:[%s2575 + $0x988] sm:$0xff]
        %3188 = vst [vmem:[%s2576 + $0x988] sm:$0xff] %v3187
        %v3189 = vld [vmem:[%s2575 + $0x98c] sm:$0xff]
        %3190 = vst [vmem:[%s2576 + $0x990] sm:$0xff] %v3189
        %v3191 = vld [vmem:[%s2575 + $0x990] sm:$0xff]
        %3192 = vst [vmem:[%s2576 + $0x998] sm:$0xff] %v3191
        %v3193 = vld [vmem:[%s2575 + $0x994] sm:$0xff]
        %3194 = vst [vmem:[%s2576 + $0x9a0] sm:$0xff] %v3193
        %v3195 = vld [vmem:[%s2575 + $0x998] sm:$0xff]
        %3196 = vst [vmem:[%s2576 + $0x9a8] sm:$0xff] %v3195
        %v3197 = vld [vmem:[%s2575 + $0x9b0] sm:$0xff]
        %3198 = vst [vmem:[%s2576 + $0x9b0] sm:$0xff] %v3197
        %v3199 = vld [vmem:[%s2575 + $0x9b4] sm:$0xff]
        %3200 = vst [vmem:[%s2576 + $0x9b8] sm:$0xff] %v3199
        %v3201 = vld [vmem:[%s2575 + $0x9b8] sm:$0xff]
        %3202 = vst [vmem:[%s2576 + $0x9c0] sm:$0xff] %v3201
        %v3203 = vld [vmem:[%s2575 + $0x9bc] sm:$0xff]
        %3204 = vst [vmem:[%s2576 + $0x9c8] sm:$0xff] %v3203
        %v3205 = vld [vmem:[%s2575 + $0x9c0] sm:$0xff]
        %3206 = vst [vmem:[%s2576 + $0x9d0] sm:$0xff] %v3205
        %v3207 = vld [vmem:[%s2575 + $0x9d8] sm:$0xff]
        %3208 = vst [vmem:[%s2576 + $0x9d8] sm:$0xff] %v3207
        %v3209 = vld [vmem:[%s2575 + $0x9dc] sm:$0xff]
        %3210 = vst [vmem:[%s2576 + $0x9e0] sm:$0xff] %v3209
        %v3211 = vld [vmem:[%s2575 + $0x9e0] sm:$0xff]
        %3212 = vst [vmem:[%s2576 + $0x9e8] sm:$0xff] %v3211
        %v3213 = vld [vmem:[%s2575 + $0x9e4] sm:$0xff]
        %3214 = vst [vmem:[%s2576 + $0x9f0] sm:$0xff] %v3213
        %v3215 = vld [vmem:[%s2575 + $0x9e8] sm:$0xff]
        %3216 = vst [vmem:[%s2576 + $0x9f8] sm:$0xff] %v3215
        %v3217 = vld [vmem:[%s2575 + $0xa00] sm:$0xff]
        %3218 = vst [vmem:[%s2576 + $0xa00] sm:$0xff] %v3217
        %v3219 = vld [vmem:[%s2575 + $0xa04] sm:$0xff]
        %3220 = vst [vmem:[%s2576 + $0xa08] sm:$0xff] %v3219
        %v3221 = vld [vmem:[%s2575 + $0xa08] sm:$0xff]
        %3222 = vst [vmem:[%s2576 + $0xa10] sm:$0xff] %v3221
        %v3223 = vld [vmem:[%s2575 + $0xa0c] sm:$0xff]
        %3224 = vst [vmem:[%s2576 + $0xa18] sm:$0xff] %v3223
        %v3225 = vld [vmem:[%s2575 + $0xa10] sm:$0xff]
        %3226 = vst [vmem:[%s2576 + $0xa20] sm:$0xff] %v3225
        %v3227 = vld [vmem:[%s2575 + $0xa28] sm:$0xff]
        %3228 = vst [vmem:[%s2576 + $0xa28] sm:$0xff] %v3227
        %v3229 = vld [vmem:[%s2575 + $0xa2c] sm:$0xff]
        %3230 = vst [vmem:[%s2576 + $0xa30] sm:$0xff] %v3229
        %v3231 = vld [vmem:[%s2575 + $0xa30] sm:$0xff]
        %3232 = vst [vmem:[%s2576 + $0xa38] sm:$0xff] %v3231
        %v3233 = vld [vmem:[%s2575 + $0xa34] sm:$0xff]
        %3234 = vst [vmem:[%s2576 + $0xa40] sm:$0xff] %v3233
        %v3235 = vld [vmem:[%s2575 + $0xa38] sm:$0xff]
        %3236 = vst [vmem:[%s2576 + $0xa48] sm:$0xff] %v3235
        %v3237 = vld [vmem:[%s2575 + $0xa50] sm:$0xff]
        %3238 = vst [vmem:[%s2576 + $0xa50] sm:$0xff] %v3237
        %v3239 = vld [vmem:[%s2575 + $0xa54] sm:$0xff]
        %3240 = vst [vmem:[%s2576 + $0xa58] sm:$0xff] %v3239
        %v3241 = vld [vmem:[%s2575 + $0xa58] sm:$0xff]
        %3242 = vst [vmem:[%s2576 + $0xa60] sm:$0xff] %v3241
        %v3243 = vld [vmem:[%s2575 + $0xa5c] sm:$0xff]
        %3244 = vst [vmem:[%s2576 + $0xa68] sm:$0xff] %v3243
        %v3245 = vld [vmem:[%s2575 + $0xa60] sm:$0xff]
        %3246 = vst [vmem:[%s2576 + $0xa70] sm:$0xff] %v3245
        %v3247 = vld [vmem:[%s2575 + $0xa78] sm:$0xff]
        %3248 = vst [vmem:[%s2576 + $0xa78] sm:$0xff] %v3247
        %v3249 = vld [vmem:[%s2575 + $0xa7c] sm:$0xff]
        %3250 = vst [vmem:[%s2576 + $0xa80] sm:$0xff] %v3249
        %v3251 = vld [vmem:[%s2575 + $0xa80] sm:$0xff]
        %3252 = vst [vmem:[%s2576 + $0xa88] sm:$0xff] %v3251
        %v3253 = vld [vmem:[%s2575 + $0xa84] sm:$0xff]
        %3254 = vst [vmem:[%s2576 + $0xa90] sm:$0xff] %v3253
        %v3255 = vld [vmem:[%s2575 + $0xa88] sm:$0xff]
        %3256 = vst [vmem:[%s2576 + $0xa98] sm:$0xff] %v3255
        %v3257 = vld [vmem:[%s2575 + $0xaa0] sm:$0xff]
        %3258 = vst [vmem:[%s2576 + $0xaa0] sm:$0xff] %v3257
        %v3259 = vld [vmem:[%s2575 + $0xaa4] sm:$0xff]
        %3260 = vst [vmem:[%s2576 + $0xaa8] sm:$0xff] %v3259
        %v3261 = vld [vmem:[%s2575 + $0xaa8] sm:$0xff]
        %3262 = vst [vmem:[%s2576 + $0xab0] sm:$0xff] %v3261
        %v3263 = vld [vmem:[%s2575 + $0xaac] sm:$0xff]
        %3264 = vst [vmem:[%s2576 + $0xab8] sm:$0xff] %v3263
        %v3265 = vld [vmem:[%s2575 + $0xab0] sm:$0xff]
        %3266 = vst [vmem:[%s2576 + $0xac0] sm:$0xff] %v3265
        %v3267 = vld [vmem:[%s2575 + $0xac8] sm:$0xff]
        %3268 = vst [vmem:[%s2576 + $0xac8] sm:$0xff] %v3267
        %v3269 = vld [vmem:[%s2575 + $0xacc] sm:$0xff]
        %3270 = vst [vmem:[%s2576 + $0xad0] sm:$0xff] %v3269
        %v3271 = vld [vmem:[%s2575 + $0xad0] sm:$0xff]
        %3272 = vst [vmem:[%s2576 + $0xad8] sm:$0xff] %v3271
        %v3273 = vld [vmem:[%s2575 + $0xad4] sm:$0xff]
        %3274 = vst [vmem:[%s2576 + $0xae0] sm:$0xff] %v3273
        %v3275 = vld [vmem:[%s2575 + $0xad8] sm:$0xff]
        %3276 = vst [vmem:[%s2576 + $0xae8] sm:$0xff] %v3275
        %v3277 = vld [vmem:[%s2575 + $0xaf0] sm:$0xff]
        %3278 = vst [vmem:[%s2576 + $0xaf0] sm:$0xff] %v3277
        %v3279 = vld [vmem:[%s2575 + $0xaf4] sm:$0xff]
        %3280 = vst [vmem:[%s2576 + $0xaf8] sm:$0xff] %v3279
        %v3281 = vld [vmem:[%s2575 + $0xaf8] sm:$0xff]
        %3282 = vst [vmem:[%s2576 + $0xb00] sm:$0xff] %v3281
        %v3283 = vld [vmem:[%s2575 + $0xafc] sm:$0xff]
        %3284 = vst [vmem:[%s2576 + $0xb08] sm:$0xff] %v3283
        %v3285 = vld [vmem:[%s2575 + $0xb00] sm:$0xff]
        %3286 = vst [vmem:[%s2576 + $0xb10] sm:$0xff] %v3285
        %v3287 = vld [vmem:[%s2575 + $0xb18] sm:$0xff]
        %3288 = vst [vmem:[%s2576 + $0xb18] sm:$0xff] %v3287
        %v3289 = vld [vmem:[%s2575 + $0xb1c] sm:$0xff]
        %3290 = vst [vmem:[%s2576 + $0xb20] sm:$0xff] %v3289
        %v3291 = vld [vmem:[%s2575 + $0xb20] sm:$0xff]
        %3292 = vst [vmem:[%s2576 + $0xb28] sm:$0xff] %v3291
        %v3293 = vld [vmem:[%s2575 + $0xb24] sm:$0xff]
        %3294 = vst [vmem:[%s2576 + $0xb30] sm:$0xff] %v3293
        %v3295 = vld [vmem:[%s2575 + $0xb28] sm:$0xff]
        %3296 = vst [vmem:[%s2576 + $0xb38] sm:$0xff] %v3295
        %v3297 = vld [vmem:[%s2575 + $0xb40] sm:$0xff]
        %3298 = vst [vmem:[%s2576 + $0xb40] sm:$0xff] %v3297
        %v3299 = vld [vmem:[%s2575 + $0xb44] sm:$0xff]
        %3300 = vst [vmem:[%s2576 + $0xb48] sm:$0xff] %v3299
        %v3301 = vld [vmem:[%s2575 + $0xb48] sm:$0xff]
        %3302 = vst [vmem:[%s2576 + $0xb50] sm:$0xff] %v3301
        %v3303 = vld [vmem:[%s2575 + $0xb4c] sm:$0xff]
        %3304 = vst [vmem:[%s2576 + $0xb58] sm:$0xff] %v3303
        %v3305 = vld [vmem:[%s2575 + $0xb50] sm:$0xff]
        %3306 = vst [vmem:[%s2576 + $0xb60] sm:$0xff] %v3305
        %v3307 = vld [vmem:[%s2575 + $0xb68] sm:$0xff]
        %3308 = vst [vmem:[%s2576 + $0xb68] sm:$0xff] %v3307
        %v3309 = vld [vmem:[%s2575 + $0xb6c] sm:$0xff]
        %3310 = vst [vmem:[%s2576 + $0xb70] sm:$0xff] %v3309
        %v3311 = vld [vmem:[%s2575 + $0xb70] sm:$0xff]
        %3312 = vst [vmem:[%s2576 + $0xb78] sm:$0xff] %v3311
        %v3313 = vld [vmem:[%s2575 + $0xb74] sm:$0xff]
        %3314 = vst [vmem:[%s2576 + $0xb80] sm:$0xff] %v3313
        %v3315 = vld [vmem:[%s2575 + $0xb78] sm:$0xff]
        %3316 = vst [vmem:[%s2576 + $0xb88] sm:$0xff] %v3315
        %v3317 = vld [vmem:[%s2575 + $0xb90] sm:$0xff]
        %3318 = vst [vmem:[%s2576 + $0xb90] sm:$0xff] %v3317
        %v3319 = vld [vmem:[%s2575 + $0xb94] sm:$0xff]
        %3320 = vst [vmem:[%s2576 + $0xb98] sm:$0xff] %v3319
        %v3321 = vld [vmem:[%s2575 + $0xb98] sm:$0xff]
        %3322 = vst [vmem:[%s2576 + $0xba0] sm:$0xff] %v3321
        %v3323 = vld [vmem:[%s2575 + $0xb9c] sm:$0xff]
        %3324 = vst [vmem:[%s2576 + $0xba8] sm:$0xff] %v3323
        %v3325 = vld [vmem:[%s2575 + $0xba0] sm:$0xff]
        %3326 = vst [vmem:[%s2576 + $0xbb0] sm:$0xff] %v3325
        %v3327 = vld [vmem:[%s2575 + $0xbb8] sm:$0xff]
        %3328 = vst [vmem:[%s2576 + $0xbb8] sm:$0xff] %v3327
        %v3329 = vld [vmem:[%s2575 + $0xbbc] sm:$0xff]
        %3330 = vst [vmem:[%s2576 + $0xbc0] sm:$0xff] %v3329
        %v3331 = vld [vmem:[%s2575 + $0xbc0] sm:$0xff]
        %3332 = vst [vmem:[%s2576 + $0xbc8] sm:$0xff] %v3331
        %v3333 = vld [vmem:[%s2575 + $0xbc4] sm:$0xff]
        %3334 = vst [vmem:[%s2576 + $0xbd0] sm:$0xff] %v3333
        %v3335 = vld [vmem:[%s2575 + $0xbc8] sm:$0xff]
        %3336 = vst [vmem:[%s2576 + $0xbd8] sm:$0xff] %v3335
        %v3337 = vld [vmem:[%s2575 + $0xbe0] sm:$0xff]
        %3338 = vst [vmem:[%s2576 + $0xbe0] sm:$0xff] %v3337
        %v3339 = vld [vmem:[%s2575 + $0xbe4] sm:$0xff]
        %3340 = vst [vmem:[%s2576 + $0xbe8] sm:$0xff] %v3339
        %v3341 = vld [vmem:[%s2575 + $0xbe8] sm:$0xff]
        %3342 = vst [vmem:[%s2576 + $0xbf0] sm:$0xff] %v3341
        %v3343 = vld [vmem:[%s2575 + $0xbec] sm:$0xff]
        %3344 = vst [vmem:[%s2576 + $0xbf8] sm:$0xff] %v3343
        %v3345 = vld [vmem:[%s2575 + $0xbf0] sm:$0xff]
        %3346 = vst [vmem:[%s2576 + $0xc00] sm:$0xff] %v3345
        %v3347 = vld [vmem:[%s2575 + $0xc08] sm:$0xff]
        %3348 = vst [vmem:[%s2576 + $0xc08] sm:$0xff] %v3347
        %v3349 = vld [vmem:[%s2575 + $0xc0c] sm:$0xff]
        %3350 = vst [vmem:[%s2576 + $0xc10] sm:$0xff] %v3349
        %v3351 = vld [vmem:[%s2575 + $0xc10] sm:$0xff]
        %3352 = vst [vmem:[%s2576 + $0xc18] sm:$0xff] %v3351
        %v3353 = vld [vmem:[%s2575 + $0xc14] sm:$0xff]
        %3354 = vst [vmem:[%s2576 + $0xc20] sm:$0xff] %v3353
        %v3355 = vld [vmem:[%s2575 + $0xc18] sm:$0xff]
        %3356 = vst [vmem:[%s2576 + $0xc28] sm:$0xff] %v3355
        %v3357 = vld [vmem:[%s2575 + $0xc30] sm:$0xff]
        %3358 = vst [vmem:[%s2576 + $0xc30] sm:$0xff] %v3357
        %v3359 = vld [vmem:[%s2575 + $0xc34] sm:$0xff]
        %3360 = vst [vmem:[%s2576 + $0xc38] sm:$0xff] %v3359
        %v3361 = vld [vmem:[%s2575 + $0xc38] sm:$0xff]
        %3362 = vst [vmem:[%s2576 + $0xc40] sm:$0xff] %v3361
        %v3363 = vld [vmem:[%s2575 + $0xc3c] sm:$0xff]
        %3364 = vst [vmem:[%s2576 + $0xc48] sm:$0xff] %v3363
        %v3365 = vld [vmem:[%s2575 + $0xc40] sm:$0xff]
        %3366 = vst [vmem:[%s2576 + $0xc50] sm:$0xff] %v3365
        %v3367 = vld [vmem:[%s2575 + $0xc58] sm:$0xff]
        %3368 = vst [vmem:[%s2576 + $0xc58] sm:$0xff] %v3367
        %v3369 = vld [vmem:[%s2575 + $0xc5c] sm:$0xff]
        %3370 = vst [vmem:[%s2576 + $0xc60] sm:$0xff] %v3369
        %v3371 = vld [vmem:[%s2575 + $0xc60] sm:$0xff]
        %3372 = vst [vmem:[%s2576 + $0xc68] sm:$0xff] %v3371
        %v3373 = vld [vmem:[%s2575 + $0xc64] sm:$0xff]
        %3374 = vst [vmem:[%s2576 + $0xc70] sm:$0xff] %v3373
        %v3375 = vld [vmem:[%s2575 + $0xc68] sm:$0xff]
        %3376 = vst [vmem:[%s2576 + $0xc78] sm:$0xff] %v3375
        %v3377 = vld [vmem:[%s2575 + $0xc80] sm:$0xff]
        %3378 = vst [vmem:[%s2576 + $0xc80] sm:$0xff] %v3377
        %v3379 = vld [vmem:[%s2575 + $0xc84] sm:$0xff]
        %3380 = vst [vmem:[%s2576 + $0xc88] sm:$0xff] %v3379
        %v3381 = vld [vmem:[%s2575 + $0xc88] sm:$0xff]
        %3382 = vst [vmem:[%s2576 + $0xc90] sm:$0xff] %v3381
        %v3383 = vld [vmem:[%s2575 + $0xc8c] sm:$0xff]
        %3384 = vst [vmem:[%s2576 + $0xc98] sm:$0xff] %v3383
        %v3385 = vld [vmem:[%s2575 + $0xc90] sm:$0xff]
        %3386 = vst [vmem:[%s2576 + $0xca0] sm:$0xff] %v3385
        %v3387 = vld [vmem:[%s2575 + $0xca8] sm:$0xff]
        %3388 = vst [vmem:[%s2576 + $0xca8] sm:$0xff] %v3387
        %v3389 = vld [vmem:[%s2575 + $0xcac] sm:$0xff]
        %3390 = vst [vmem:[%s2576 + $0xcb0] sm:$0xff] %v3389
        %v3391 = vld [vmem:[%s2575 + $0xcb0] sm:$0xff]
        %3392 = vst [vmem:[%s2576 + $0xcb8] sm:$0xff] %v3391
        %v3393 = vld [vmem:[%s2575 + $0xcb4] sm:$0xff]
        %3394 = vst [vmem:[%s2576 + $0xcc0] sm:$0xff] %v3393
        %v3395 = vld [vmem:[%s2575 + $0xcb8] sm:$0xff]
        %3396 = vst [vmem:[%s2576 + $0xcc8] sm:$0xff] %v3395
        %v3397 = vld [vmem:[%s2575 + $0xcd0] sm:$0xff]
        %3398 = vst [vmem:[%s2576 + $0xcd0] sm:$0xff] %v3397
        %v3399 = vld [vmem:[%s2575 + $0xcd4] sm:$0xff]
        %3400 = vst [vmem:[%s2576 + $0xcd8] sm:$0xff] %v3399
        %v3401 = vld [vmem:[%s2575 + $0xcd8] sm:$0xff]
        %3402 = vst [vmem:[%s2576 + $0xce0] sm:$0xff] %v3401
        %v3403 = vld [vmem:[%s2575 + $0xcdc] sm:$0xff]
        %3404 = vst [vmem:[%s2576 + $0xce8] sm:$0xff] %v3403
        %v3405 = vld [vmem:[%s2575 + $0xce0] sm:$0xff]
        %3406 = vst [vmem:[%s2576 + $0xcf0] sm:$0xff] %v3405
        %v3407 = vld [vmem:[%s2575 + $0xcf8] sm:$0xff]
        %3408 = vst [vmem:[%s2576 + $0xcf8] sm:$0xff] %v3407
        %v3409 = vld [vmem:[%s2575 + $0xcfc] sm:$0xff]
        %3410 = vst [vmem:[%s2576 + $0xd00] sm:$0xff] %v3409
        %v3411 = vld [vmem:[%s2575 + $0xd00] sm:$0xff]
        %3412 = vst [vmem:[%s2576 + $0xd08] sm:$0xff] %v3411
        %v3413 = vld [vmem:[%s2575 + $0xd04] sm:$0xff]
        %3414 = vst [vmem:[%s2576 + $0xd10] sm:$0xff] %v3413
        %v3415 = vld [vmem:[%s2575 + $0xd08] sm:$0xff]
        %3416 = vst [vmem:[%s2576 + $0xd18] sm:$0xff] %v3415
        %v3417 = vld [vmem:[%s2575 + $0xd20] sm:$0xff]
        %3418 = vst [vmem:[%s2576 + $0xd20] sm:$0xff] %v3417
        %v3419 = vld [vmem:[%s2575 + $0xd24] sm:$0xff]
        %3420 = vst [vmem:[%s2576 + $0xd28] sm:$0xff] %v3419
        %v3421 = vld [vmem:[%s2575 + $0xd28] sm:$0xff]
        %3422 = vst [vmem:[%s2576 + $0xd30] sm:$0xff] %v3421
        %v3423 = vld [vmem:[%s2575 + $0xd2c] sm:$0xff]
        %3424 = vst [vmem:[%s2576 + $0xd38] sm:$0xff] %v3423
        %v3425 = vld [vmem:[%s2575 + $0xd30] sm:$0xff]
        %3426 = vst [vmem:[%s2576 + $0xd40] sm:$0xff] %v3425
        %v3427 = vld [vmem:[%s2575 + $0xd48] sm:$0xff]
        %3428 = vst [vmem:[%s2576 + $0xd48] sm:$0xff] %v3427
        %v3429 = vld [vmem:[%s2575 + $0xd4c] sm:$0xff]
        %3430 = vst [vmem:[%s2576 + $0xd50] sm:$0xff] %v3429
        %v3431 = vld [vmem:[%s2575 + $0xd50] sm:$0xff]
        %3432 = vst [vmem:[%s2576 + $0xd58] sm:$0xff] %v3431
        %v3433 = vld [vmem:[%s2575 + $0xd54] sm:$0xff]
        %3434 = vst [vmem:[%s2576 + $0xd60] sm:$0xff] %v3433
        %v3435 = vld [vmem:[%s2575 + $0xd58] sm:$0xff]
        %3436 = vst [vmem:[%s2576 + $0xd68] sm:$0xff] %v3435
        %v3437 = vld [vmem:[%s2575 + $0xd70] sm:$0xff]
        %3438 = vst [vmem:[%s2576 + $0xd70] sm:$0xff] %v3437
        %v3439 = vld [vmem:[%s2575 + $0xd74] sm:$0xff]
        %3440 = vst [vmem:[%s2576 + $0xd78] sm:$0xff] %v3439
        %v3441 = vld [vmem:[%s2575 + $0xd78] sm:$0xff]
        %3442 = vst [vmem:[%s2576 + $0xd80] sm:$0xff] %v3441
        %v3443 = vld [vmem:[%s2575 + $0xd7c] sm:$0xff]
        %3444 = vst [vmem:[%s2576 + $0xd88] sm:$0xff] %v3443
        %v3445 = vld [vmem:[%s2575 + $0xd80] sm:$0xff]
        %3446 = vst [vmem:[%s2576 + $0xd90] sm:$0xff] %v3445
        %v3447 = vld [vmem:[%s2575 + $0xd98] sm:$0xff]
        %3448 = vst [vmem:[%s2576 + $0xd98] sm:$0xff] %v3447
        %v3449 = vld [vmem:[%s2575 + $0xd9c] sm:$0xff]
        %3450 = vst [vmem:[%s2576 + $0xda0] sm:$0xff] %v3449
        %v3451 = vld [vmem:[%s2575 + $0xda0] sm:$0xff]
        %3452 = vst [vmem:[%s2576 + $0xda8] sm:$0xff] %v3451
        %v3453 = vld [vmem:[%s2575 + $0xda4] sm:$0xff]
        %3454 = vst [vmem:[%s2576 + $0xdb0] sm:$0xff] %v3453
        %v3455 = vld [vmem:[%s2575 + $0xda8] sm:$0xff]
        %3456 = vst [vmem:[%s2576 + $0xdb8] sm:$0xff] %v3455
        %v3457 = vld [vmem:[%s2575 + $0xdc0] sm:$0xff]
        %3458 = vst [vmem:[%s2576 + $0xdc0] sm:$0xff] %v3457
        %v3459 = vld [vmem:[%s2575 + $0xdc4] sm:$0xff]
        %3460 = vst [vmem:[%s2576 + $0xdc8] sm:$0xff] %v3459
        %v3461 = vld [vmem:[%s2575 + $0xdc8] sm:$0xff]
        %3462 = vst [vmem:[%s2576 + $0xdd0] sm:$0xff] %v3461
        %v3463 = vld [vmem:[%s2575 + $0xdcc] sm:$0xff]
        %3464 = vst [vmem:[%s2576 + $0xdd8] sm:$0xff] %v3463
        %v3465 = vld [vmem:[%s2575 + $0xdd0] sm:$0xff]
        %3466 = vst [vmem:[%s2576 + $0xde0] sm:$0xff] %v3465
        %v3467 = vld [vmem:[%s2575 + $0xde8] sm:$0xff]
        %3468 = vst [vmem:[%s2576 + $0xde8] sm:$0xff] %v3467
        %v3469 = vld [vmem:[%s2575 + $0xdec] sm:$0xff]
        %3470 = vst [vmem:[%s2576 + $0xdf0] sm:$0xff] %v3469
        %v3471 = vld [vmem:[%s2575 + $0xdf0] sm:$0xff]
        %3472 = vst [vmem:[%s2576 + $0xdf8] sm:$0xff] %v3471
        %v3473 = vld [vmem:[%s2575 + $0xdf4] sm:$0xff]
        %3474 = vst [vmem:[%s2576 + $0xe00] sm:$0xff] %v3473
        %v3475 = vld [vmem:[%s2575 + $0xdf8] sm:$0xff]
        %3476 = vst [vmem:[%s2576 + $0xe08] sm:$0xff] %v3475
        %v3477 = vld [vmem:[%s2575 + $0xe10] sm:$0xff]
        %3478 = vst [vmem:[%s2576 + $0xe10] sm:$0xff] %v3477
        %v3479 = vld [vmem:[%s2575 + $0xe14] sm:$0xff]
        %3480 = vst [vmem:[%s2576 + $0xe18] sm:$0xff] %v3479
        %v3481 = vld [vmem:[%s2575 + $0xe18] sm:$0xff]
        %3482 = vst [vmem:[%s2576 + $0xe20] sm:$0xff] %v3481
        %v3483 = vld [vmem:[%s2575 + $0xe1c] sm:$0xff]
        %3484 = vst [vmem:[%s2576 + $0xe28] sm:$0xff] %v3483
        %v3485 = vld [vmem:[%s2575 + $0xe20] sm:$0xff]
        %3486 = vst [vmem:[%s2576 + $0xe30] sm:$0xff] %v3485
        %v3487 = vld [vmem:[%s2575 + $0xe38] sm:$0xff]
        %3488 = vst [vmem:[%s2576 + $0xe38] sm:$0xff] %v3487
        %v3489 = vld [vmem:[%s2575 + $0xe3c] sm:$0xff]
        %3490 = vst [vmem:[%s2576 + $0xe40] sm:$0xff] %v3489
        %v3491 = vld [vmem:[%s2575 + $0xe40] sm:$0xff]
        %3492 = vst [vmem:[%s2576 + $0xe48] sm:$0xff] %v3491
        %v3493 = vld [vmem:[%s2575 + $0xe44] sm:$0xff]
        %3494 = vst [vmem:[%s2576 + $0xe50] sm:$0xff] %v3493
        %v3495 = vld [vmem:[%s2575 + $0xe48] sm:$0xff]
        %3496 = vst [vmem:[%s2576 + $0xe58] sm:$0xff] %v3495
        %v3497 = vld [vmem:[%s2575 + $0xe60] sm:$0xff]
        %3498 = vst [vmem:[%s2576 + $0xe60] sm:$0xff] %v3497
        %v3499 = vld [vmem:[%s2575 + $0xe64] sm:$0xff]
        %3500 = vst [vmem:[%s2576 + $0xe68] sm:$0xff] %v3499
        %v3501 = vld [vmem:[%s2575 + $0xe68] sm:$0xff]
        %3502 = vst [vmem:[%s2576 + $0xe70] sm:$0xff] %v3501
        %v3503 = vld [vmem:[%s2575 + $0xe6c] sm:$0xff]
        %3504 = vst [vmem:[%s2576 + $0xe78] sm:$0xff] %v3503
        %v3505 = vld [vmem:[%s2575 + $0xe70] sm:$0xff]
        %3506 = vst [vmem:[%s2576 + $0xe80] sm:$0xff] %v3505
        %v3507 = vld [vmem:[%s2575 + $0xe88] sm:$0xff]
        %3508 = vst [vmem:[%s2576 + $0xe88] sm:$0xff] %v3507
        %v3509 = vld [vmem:[%s2575 + $0xe8c] sm:$0xff]
        %3510 = vst [vmem:[%s2576 + $0xe90] sm:$0xff] %v3509
        %v3511 = vld [vmem:[%s2575 + $0xe90] sm:$0xff]
        %3512 = vst [vmem:[%s2576 + $0xe98] sm:$0xff] %v3511
        %v3513 = vld [vmem:[%s2575 + $0xe94] sm:$0xff]
        %3514 = vst [vmem:[%s2576 + $0xea0] sm:$0xff] %v3513
        %v3515 = vld [vmem:[%s2575 + $0xe98] sm:$0xff]
        %3516 = vst [vmem:[%s2576 + $0xea8] sm:$0xff] %v3515
        %v3517 = vld [vmem:[%s2575 + $0xeb0] sm:$0xff]
        %3518 = vst [vmem:[%s2576 + $0xeb0] sm:$0xff] %v3517
        %v3519 = vld [vmem:[%s2575 + $0xeb4] sm:$0xff]
        %3520 = vst [vmem:[%s2576 + $0xeb8] sm:$0xff] %v3519
        %v3521 = vld [vmem:[%s2575 + $0xeb8] sm:$0xff]
        %3522 = vst [vmem:[%s2576 + $0xec0] sm:$0xff] %v3521
        %v3523 = vld [vmem:[%s2575 + $0xebc] sm:$0xff]
        %3524 = vst [vmem:[%s2576 + $0xec8] sm:$0xff] %v3523
        %v3525 = vld [vmem:[%s2575 + $0xec0] sm:$0xff]
        %3526 = vst [vmem:[%s2576 + $0xed0] sm:$0xff] %v3525
        %v3527 = vld [vmem:[%s2575 + $0xed8] sm:$0xff]
        %3528 = vst [vmem:[%s2576 + $0xed8] sm:$0xff] %v3527
        %v3529 = vld [vmem:[%s2575 + $0xedc] sm:$0xff]
        %3530 = vst [vmem:[%s2576 + $0xee0] sm:$0xff] %v3529
        %v3531 = vld [vmem:[%s2575 + $0xee0] sm:$0xff]
        %3532 = vst [vmem:[%s2576 + $0xee8] sm:$0xff] %v3531
        %v3533 = vld [vmem:[%s2575 + $0xee4] sm:$0xff]
        %3534 = vst [vmem:[%s2576 + $0xef0] sm:$0xff] %v3533
        %v3535 = vld [vmem:[%s2575 + $0xee8] sm:$0xff]
        %3536 = vst [vmem:[%s2576 + $0xef8] sm:$0xff] %v3535
        %v3537 = vld [vmem:[%s2575 + $0xf00] sm:$0xff]
        %3538 = vst [vmem:[%s2576 + $0xf00] sm:$0xff] %v3537
        %v3539 = vld [vmem:[%s2575 + $0xf04] sm:$0xff]
        %3540 = vst [vmem:[%s2576 + $0xf08] sm:$0xff] %v3539
        %v3541 = vld [vmem:[%s2575 + $0xf08] sm:$0xff]
        %3542 = vst [vmem:[%s2576 + $0xf10] sm:$0xff] %v3541
        %v3543 = vld [vmem:[%s2575 + $0xf0c] sm:$0xff]
        %3544 = vst [vmem:[%s2576 + $0xf18] sm:$0xff] %v3543
        %v3545 = vld [vmem:[%s2575 + $0xf10] sm:$0xff]
        %3546 = vst [vmem:[%s2576 + $0xf20] sm:$0xff] %v3545
        %v3547 = vld [vmem:[%s2575 + $0xf28] sm:$0xff]
        %3548 = vst [vmem:[%s2576 + $0xf28] sm:$0xff] %v3547
        %v3549 = vld [vmem:[%s2575 + $0xf2c] sm:$0xff]
        %3550 = vst [vmem:[%s2576 + $0xf30] sm:$0xff] %v3549
        %v3551 = vld [vmem:[%s2575 + $0xf30] sm:$0xff]
        %3552 = vst [vmem:[%s2576 + $0xf38] sm:$0xff] %v3551
        %v3553 = vld [vmem:[%s2575 + $0xf34] sm:$0xff]
        %3554 = vst [vmem:[%s2576 + $0xf40] sm:$0xff] %v3553
        %v3555 = vld [vmem:[%s2575 + $0xf38] sm:$0xff]
        %3556 = vst [vmem:[%s2576 + $0xf48] sm:$0xff] %v3555
        %v3557 = vld [vmem:[%s2575 + $0xf50] sm:$0xff]
        %3558 = vst [vmem:[%s2576 + $0xf50] sm:$0xff] %v3557
        %v3559 = vld [vmem:[%s2575 + $0xf54] sm:$0xff]
        %3560 = vst [vmem:[%s2576 + $0xf58] sm:$0xff] %v3559
        %v3561 = vld [vmem:[%s2575 + $0xf58] sm:$0xff]
        %3562 = vst [vmem:[%s2576 + $0xf60] sm:$0xff] %v3561
        %v3563 = vld [vmem:[%s2575 + $0xf5c] sm:$0xff]
        %3564 = vst [vmem:[%s2576 + $0xf68] sm:$0xff] %v3563
        %v3565 = vld [vmem:[%s2575 + $0xf60] sm:$0xff]
        %3566 = vst [vmem:[%s2576 + $0xf70] sm:$0xff] %v3565
        %v3567 = vld [vmem:[%s2575 + $0xf78] sm:$0xff]
        %3568 = vst [vmem:[%s2576 + $0xf78] sm:$0xff] %v3567
        %v3569 = vld [vmem:[%s2575 + $0xf7c] sm:$0xff]
        %3570 = vst [vmem:[%s2576 + $0xf80] sm:$0xff] %v3569
        %v3571 = vld [vmem:[%s2575 + $0xf80] sm:$0xff]
        %3572 = vst [vmem:[%s2576 + $0xf88] sm:$0xff] %v3571
        %v3573 = vld [vmem:[%s2575 + $0xf84] sm:$0xff]
        %3574 = vst [vmem:[%s2576 + $0xf90] sm:$0xff] %v3573
        %v3575 = vld [vmem:[%s2575 + $0xf88] sm:$0xff]
        %3576 = vst [vmem:[%s2576 + $0xf98] sm:$0xff] %v3575
        %v3577 = vld [vmem:[%s2575 + $0xfa0] sm:$0xff]
        %3578 = vst [vmem:[%s2576 + $0xfa0] sm:$0xff] %v3577
        %v3579 = vld [vmem:[%s2575 + $0xfa4] sm:$0xff]
        %3580 = vst [vmem:[%s2576 + $0xfa8] sm:$0xff] %v3579
        %v3581 = vld [vmem:[%s2575 + $0xfa8] sm:$0xff]
        %3582 = vst [vmem:[%s2576 + $0xfb0] sm:$0xff] %v3581
        %v3583 = vld [vmem:[%s2575 + $0xfac] sm:$0xff]
        %3584 = vst [vmem:[%s2576 + $0xfb8] sm:$0xff] %v3583
        %v3585 = vld [vmem:[%s2575 + $0xfb0] sm:$0xff]
        %3586 = vst [vmem:[%s2576 + $0xfc0] sm:$0xff] %v3585
        %v3587 = vld [vmem:[%s2575 + $0xfc8] sm:$0xff]
        %3588 = vst [vmem:[%s2576 + $0xfc8] sm:$0xff] %v3587
        %v3589 = vld [vmem:[%s2575 + $0xfcc] sm:$0xff]
        %3590 = vst [vmem:[%s2576 + $0xfd0] sm:$0xff] %v3589
        %v3591 = vld [vmem:[%s2575 + $0xfd0] sm:$0xff]
        %3592 = vst [vmem:[%s2576 + $0xfd8] sm:$0xff] %v3591
        %v3593 = vld [vmem:[%s2575 + $0xfd4] sm:$0xff]
        %3594 = vst [vmem:[%s2576 + $0xfe0] sm:$0xff] %v3593
        %v3595 = vld [vmem:[%s2575 + $0xfd8] sm:$0xff]
        %3596 = vst [vmem:[%s2576 + $0xfe8] sm:$0xff] %v3595
        %v3597 = vld [vmem:[%s2575 + $0xff0] sm:$0xff]
        %3598 = vst [vmem:[%s2576 + $0xff0] sm:$0xff] %v3597
        %v3599 = vld [vmem:[%s2575 + $0xff4] sm:$0xff]
        %3600 = vst [vmem:[%s2576 + $0xff8] sm:$0xff] %v3599
        %v3601 = vld [vmem:[%s2575 + $0xff8] sm:$0xff]
        %3602 = vst [vmem:[%s2576 + $0x1000] sm:$0xff] %v3601
        %v3603 = vld [vmem:[%s2575 + $0xffc] sm:$0xff]
        %3604 = vst [vmem:[%s2576 + $0x1008] sm:$0xff] %v3603
        %v3605 = vld [vmem:[%s2575 + $0x1000] sm:$0xff]
        %3606 = vst [vmem:[%s2576 + $0x1010] sm:$0xff] %v3605
        %v3607 = vld [vmem:[%s2575 + $0x1018] sm:$0xff]
        %3608 = vst [vmem:[%s2576 + $0x1018] sm:$0xff] %v3607
        %v3609 = vld [vmem:[%s2575 + $0x101c] sm:$0xff]
        %3610 = vst [vmem:[%s2576 + $0x1020] sm:$0xff] %v3609
        %v3611 = vld [vmem:[%s2575 + $0x1020] sm:$0xff]
        %3612 = vst [vmem:[%s2576 + $0x1028] sm:$0xff] %v3611
        %v3613 = vld [vmem:[%s2575 + $0x1024] sm:$0xff]
        %3614 = vst [vmem:[%s2576 + $0x1030] sm:$0xff] %v3613
        %v3615 = vld [vmem:[%s2575 + $0x1028] sm:$0xff]
        %3616 = vst [vmem:[%s2576 + $0x1038] sm:$0xff] %v3615
        %v3617 = vld [vmem:[%s2575 + $0x1040] sm:$0xff]
        %3618 = vst [vmem:[%s2576 + $0x1040] sm:$0xff] %v3617
        %v3619 = vld [vmem:[%s2575 + $0x1044] sm:$0xff]
        %3620 = vst [vmem:[%s2576 + $0x1048] sm:$0xff] %v3619
        %v3621 = vld [vmem:[%s2575 + $0x1048] sm:$0xff]
        %3622 = vst [vmem:[%s2576 + $0x1050] sm:$0xff] %v3621
        %v3623 = vld [vmem:[%s2575 + $0x104c] sm:$0xff]
        %3624 = vst [vmem:[%s2576 + $0x1058] sm:$0xff] %v3623
        %v3625 = vld [vmem:[%s2575 + $0x1050] sm:$0xff]
        %3626 = vst [vmem:[%s2576 + $0x1060] sm:$0xff] %v3625
        %v3627 = vld [vmem:[%s2575 + $0x1068] sm:$0xff]
        %3628 = vst [vmem:[%s2576 + $0x1068] sm:$0xff] %v3627
        %v3629 = vld [vmem:[%s2575 + $0x106c] sm:$0xff]
        %3630 = vst [vmem:[%s2576 + $0x1070] sm:$0xff] %v3629
        %v3631 = vld [vmem:[%s2575 + $0x1070] sm:$0xff]
        %3632 = vst [vmem:[%s2576 + $0x1078] sm:$0xff] %v3631
        %v3633 = vld [vmem:[%s2575 + $0x1074] sm:$0xff]
        %3634 = vst [vmem:[%s2576 + $0x1080] sm:$0xff] %v3633
        %v3635 = vld [vmem:[%s2575 + $0x1078] sm:$0xff]
        %3636 = vst [vmem:[%s2576 + $0x1088] sm:$0xff] %v3635
        %v3637 = vld [vmem:[%s2575 + $0x1090] sm:$0xff]
        %3638 = vst [vmem:[%s2576 + $0x1090] sm:$0xff] %v3637
        %v3639 = vld [vmem:[%s2575 + $0x1094] sm:$0xff]
        %3640 = vst [vmem:[%s2576 + $0x1098] sm:$0xff] %v3639
        %v3641 = vld [vmem:[%s2575 + $0x1098] sm:$0xff]
        %3642 = vst [vmem:[%s2576 + $0x10a0] sm:$0xff] %v3641
        %v3643 = vld [vmem:[%s2575 + $0x109c] sm:$0xff]
        %3644 = vst [vmem:[%s2576 + $0x10a8] sm:$0xff] %v3643
        %v3645 = vld [vmem:[%s2575 + $0x10a0] sm:$0xff]
        %3646 = vst [vmem:[%s2576 + $0x10b0] sm:$0xff] %v3645
        %v3647 = vld [vmem:[%s2575 + $0x10b8] sm:$0xff]
        %3648 = vst [vmem:[%s2576 + $0x10b8] sm:$0xff] %v3647
        %v3649 = vld [vmem:[%s2575 + $0x10bc] sm:$0xff]
        %3650 = vst [vmem:[%s2576 + $0x10c0] sm:$0xff] %v3649
        %v3651 = vld [vmem:[%s2575 + $0x10c0] sm:$0xff]
        %3652 = vst [vmem:[%s2576 + $0x10c8] sm:$0xff] %v3651
        %v3653 = vld [vmem:[%s2575 + $0x10c4] sm:$0xff]
        %3654 = vst [vmem:[%s2576 + $0x10d0] sm:$0xff] %v3653
        %v3655 = vld [vmem:[%s2575 + $0x10c8] sm:$0xff]
        %3656 = vst [vmem:[%s2576 + $0x10d8] sm:$0xff] %v3655
        %v3657 = vld [vmem:[%s2575 + $0x10e0] sm:$0xff]
        %3658 = vst [vmem:[%s2576 + $0x10e0] sm:$0xff] %v3657
        %v3659 = vld [vmem:[%s2575 + $0x10e4] sm:$0xff]
        %3660 = vst [vmem:[%s2576 + $0x10e8] sm:$0xff] %v3659
        %v3661 = vld [vmem:[%s2575 + $0x10e8] sm:$0xff]
        %3662 = vst [vmem:[%s2576 + $0x10f0] sm:$0xff] %v3661
        %v3663 = vld [vmem:[%s2575 + $0x10ec] sm:$0xff]
        %3664 = vst [vmem:[%s2576 + $0x10f8] sm:$0xff] %v3663
        %v3665 = vld [vmem:[%s2575 + $0x10f0] sm:$0xff]
        %3666 = vst [vmem:[%s2576 + $0x1100] sm:$0xff] %v3665
        %v3667 = vld [vmem:[%s2575 + $0x1108] sm:$0xff]
        %3668 = vst [vmem:[%s2576 + $0x1108] sm:$0xff] %v3667
        %v3669 = vld [vmem:[%s2575 + $0x110c] sm:$0xff]
        %3670 = vst [vmem:[%s2576 + $0x1110] sm:$0xff] %v3669
        %v3671 = vld [vmem:[%s2575 + $0x1110] sm:$0xff]
        %3672 = vst [vmem:[%s2576 + $0x1118] sm:$0xff] %v3671
        %v3673 = vld [vmem:[%s2575 + $0x1114] sm:$0xff]
        %3674 = vst [vmem:[%s2576 + $0x1120] sm:$0xff] %v3673
        %v3675 = vld [vmem:[%s2575 + $0x1118] sm:$0xff]
        %3676 = vst [vmem:[%s2576 + $0x1128] sm:$0xff] %v3675
        %v3677 = vld [vmem:[%s2575 + $0x1130] sm:$0xff]
        %3678 = vst [vmem:[%s2576 + $0x1130] sm:$0xff] %v3677
        %v3679 = vld [vmem:[%s2575 + $0x1134] sm:$0xff]
        %3680 = vst [vmem:[%s2576 + $0x1138] sm:$0xff] %v3679
        %v3681 = vld [vmem:[%s2575 + $0x1138] sm:$0xff]
        %3682 = vst [vmem:[%s2576 + $0x1140] sm:$0xff] %v3681
        %v3683 = vld [vmem:[%s2575 + $0x113c] sm:$0xff]
        %3684 = vst [vmem:[%s2576 + $0x1148] sm:$0xff] %v3683
        %v3685 = vld [vmem:[%s2575 + $0x1140] sm:$0xff]
        %3686 = vst [vmem:[%s2576 + $0x1150] sm:$0xff] %v3685
        %v3687 = vld [vmem:[%s2575 + $0x1158] sm:$0xff]
        %3688 = vst [vmem:[%s2576 + $0x1158] sm:$0xff] %v3687
        %v3689 = vld [vmem:[%s2575 + $0x115c] sm:$0xff]
        %3690 = vst [vmem:[%s2576 + $0x1160] sm:$0xff] %v3689
        %v3691 = vld [vmem:[%s2575 + $0x1160] sm:$0xff]
        %3692 = vst [vmem:[%s2576 + $0x1168] sm:$0xff] %v3691
        %v3693 = vld [vmem:[%s2575 + $0x1164] sm:$0xff]
        %3694 = vst [vmem:[%s2576 + $0x1170] sm:$0xff] %v3693
        %v3695 = vld [vmem:[%s2575 + $0x1168] sm:$0xff]
        %3696 = vst [vmem:[%s2576 + $0x1178] sm:$0xff] %v3695
        %v3697 = vld [vmem:[%s2575 + $0x1180] sm:$0xff]
        %3698 = vst [vmem:[%s2576 + $0x1180] sm:$0xff] %v3697
        %v3699 = vld [vmem:[%s2575 + $0x1184] sm:$0xff]
        %3700 = vst [vmem:[%s2576 + $0x1188] sm:$0xff] %v3699
        %v3701 = vld [vmem:[%s2575 + $0x1188] sm:$0xff]
        %3702 = vst [vmem:[%s2576 + $0x1190] sm:$0xff] %v3701
        %v3703 = vld [vmem:[%s2575 + $0x118c] sm:$0xff]
        %3704 = vst [vmem:[%s2576 + $0x1198] sm:$0xff] %v3703
        %v3705 = vld [vmem:[%s2575 + $0x1190] sm:$0xff]
        %3706 = vst [vmem:[%s2576 + $0x11a0] sm:$0xff] %v3705
        %v3707 = vld [vmem:[%s2575 + $0x11a8] sm:$0xff]
        %3708 = vst [vmem:[%s2576 + $0x11a8] sm:$0xff] %v3707
        %v3709 = vld [vmem:[%s2575 + $0x11ac] sm:$0xff]
        %3710 = vst [vmem:[%s2576 + $0x11b0] sm:$0xff] %v3709
        %v3711 = vld [vmem:[%s2575 + $0x11b0] sm:$0xff]
        %3712 = vst [vmem:[%s2576 + $0x11b8] sm:$0xff] %v3711
        %v3713 = vld [vmem:[%s2575 + $0x11b4] sm:$0xff]
        %3714 = vst [vmem:[%s2576 + $0x11c0] sm:$0xff] %v3713
        %v3715 = vld [vmem:[%s2575 + $0x11b8] sm:$0xff]
        %3716 = vst [vmem:[%s2576 + $0x11c8] sm:$0xff] %v3715
        %v3717 = vld [vmem:[%s2575 + $0x11d0] sm:$0xff]
        %3718 = vst [vmem:[%s2576 + $0x11d0] sm:$0xff] %v3717
        %v3719 = vld [vmem:[%s2575 + $0x11d4] sm:$0xff]
        %3720 = vst [vmem:[%s2576 + $0x11d8] sm:$0xff] %v3719
        %v3721 = vld [vmem:[%s2575 + $0x11d8] sm:$0xff]
        %3722 = vst [vmem:[%s2576 + $0x11e0] sm:$0xff] %v3721
        %v3723 = vld [vmem:[%s2575 + $0x11dc] sm:$0xff]
        %3724 = vst [vmem:[%s2576 + $0x11e8] sm:$0xff] %v3723
        %v3725 = vld [vmem:[%s2575 + $0x11e0] sm:$0xff]
        %3726 = vst [vmem:[%s2576 + $0x11f0] sm:$0xff] %v3725
        %v3727 = vld [vmem:[%s2575 + $0x11f8] sm:$0xff]
        %3728 = vst [vmem:[%s2576 + $0x11f8] sm:$0xff] %v3727
        %v3729 = vld [vmem:[%s2575 + $0x11fc] sm:$0xff]
        %3730 = vst [vmem:[%s2576 + $0x1200] sm:$0xff] %v3729
        %v3731 = vld [vmem:[%s2575 + $0x1200] sm:$0xff]
        %3732 = vst [vmem:[%s2576 + $0x1208] sm:$0xff] %v3731
        %v3733 = vld [vmem:[%s2575 + $0x1204] sm:$0xff]
        %3734 = vst [vmem:[%s2576 + $0x1210] sm:$0xff] %v3733
        %v3735 = vld [vmem:[%s2575 + $0x1208] sm:$0xff]
        %3736 = vst [vmem:[%s2576 + $0x1218] sm:$0xff] %v3735
        %v3737 = vld [vmem:[%s2575 + $0x1220] sm:$0xff]
        %3738 = vst [vmem:[%s2576 + $0x1220] sm:$0xff] %v3737
        %v3739 = vld [vmem:[%s2575 + $0x1224] sm:$0xff]
        %3740 = vst [vmem:[%s2576 + $0x1228] sm:$0xff] %v3739
        %v3741 = vld [vmem:[%s2575 + $0x1228] sm:$0xff]
        %3742 = vst [vmem:[%s2576 + $0x1230] sm:$0xff] %v3741
        %v3743 = vld [vmem:[%s2575 + $0x122c] sm:$0xff]
        %3744 = vst [vmem:[%s2576 + $0x1238] sm:$0xff] %v3743
        %v3745 = vld [vmem:[%s2575 + $0x1230] sm:$0xff]
        %3746 = vst [vmem:[%s2576 + $0x1240] sm:$0xff] %v3745
        %v3747 = vld [vmem:[%s2575 + $0x1248] sm:$0xff]
        %3748 = vst [vmem:[%s2576 + $0x1248] sm:$0xff] %v3747
        %v3749 = vld [vmem:[%s2575 + $0x124c] sm:$0xff]
        %3750 = vst [vmem:[%s2576 + $0x1250] sm:$0xff] %v3749
        %v3751 = vld [vmem:[%s2575 + $0x1250] sm:$0xff]
        %3752 = vst [vmem:[%s2576 + $0x1258] sm:$0xff] %v3751
        %v3753 = vld [vmem:[%s2575 + $0x1254] sm:$0xff]
        %3754 = vst [vmem:[%s2576 + $0x1260] sm:$0xff] %v3753
        %v3755 = vld [vmem:[%s2575 + $0x1258] sm:$0xff]
        %3756 = vst [vmem:[%s2576 + $0x1268] sm:$0xff] %v3755
        %v3757 = vld [vmem:[%s2575 + $0x1270] sm:$0xff]
        %3758 = vst [vmem:[%s2576 + $0x1270] sm:$0xff] %v3757
        %v3759 = vld [vmem:[%s2575 + $0x1274] sm:$0xff]
        %3760 = vst [vmem:[%s2576 + $0x1278] sm:$0xff] %v3759
        %v3761 = vld [vmem:[%s2575 + $0x1278] sm:$0xff]
        %3762 = vst [vmem:[%s2576 + $0x1280] sm:$0xff] %v3761
        %v3763 = vld [vmem:[%s2575 + $0x127c] sm:$0xff]
        %3764 = vst [vmem:[%s2576 + $0x1288] sm:$0xff] %v3763
        %v3765 = vld [vmem:[%s2575 + $0x1280] sm:$0xff]
        %3766 = vst [vmem:[%s2576 + $0x1290] sm:$0xff] %v3765
        %v3767 = vld [vmem:[%s2575 + $0x1298] sm:$0xff]
        %3768 = vst [vmem:[%s2576 + $0x1298] sm:$0xff] %v3767
        %v3769 = vld [vmem:[%s2575 + $0x129c] sm:$0xff]
        %3770 = vst [vmem:[%s2576 + $0x12a0] sm:$0xff] %v3769
        %v3771 = vld [vmem:[%s2575 + $0x12a0] sm:$0xff]
        %3772 = vst [vmem:[%s2576 + $0x12a8] sm:$0xff] %v3771
        %v3773 = vld [vmem:[%s2575 + $0x12a4] sm:$0xff]
        %3774 = vst [vmem:[%s2576 + $0x12b0] sm:$0xff] %v3773
        %v3775 = vld [vmem:[%s2575 + $0x12a8] sm:$0xff]
        %3776 = vst [vmem:[%s2576 + $0x12b8] sm:$0xff] %v3775
        %v3777 = vld [vmem:[%s2575 + $0x12c0] sm:$0xff]
        %3778 = vst [vmem:[%s2576 + $0x12c0] sm:$0xff] %v3777
        %v3779 = vld [vmem:[%s2575 + $0x12c4] sm:$0xff]
        %3780 = vst [vmem:[%s2576 + $0x12c8] sm:$0xff] %v3779
        %v3781 = vld [vmem:[%s2575 + $0x12c8] sm:$0xff]
        %3782 = vst [vmem:[%s2576 + $0x12d0] sm:$0xff] %v3781
        %v3783 = vld [vmem:[%s2575 + $0x12cc] sm:$0xff]
        %3784 = vst [vmem:[%s2576 + $0x12d8] sm:$0xff] %v3783
        %v3785 = vld [vmem:[%s2575 + $0x12d0] sm:$0xff]
        %3786 = vst [vmem:[%s2576 + $0x12e0] sm:$0xff] %v3785
        %v3787 = vld [vmem:[%s2575 + $0x12e8] sm:$0xff]
        %3788 = vst [vmem:[%s2576 + $0x12e8] sm:$0xff] %v3787
        %v3789 = vld [vmem:[%s2575 + $0x12ec] sm:$0xff]
        %3790 = vst [vmem:[%s2576 + $0x12f0] sm:$0xff] %v3789
        %v3791 = vld [vmem:[%s2575 + $0x12f0] sm:$0xff]
        %3792 = vst [vmem:[%s2576 + $0x12f8] sm:$0xff] %v3791
        %v3793 = vld [vmem:[%s2575 + $0x12f4] sm:$0xff]
        %3794 = vst [vmem:[%s2576 + $0x1300] sm:$0xff] %v3793
        %v3795 = vld [vmem:[%s2575 + $0x12f8] sm:$0xff]
        %3796 = vst [vmem:[%s2576 + $0x1308] sm:$0xff] %v3795
        %v3797 = vld [vmem:[%s2575 + $0x1310] sm:$0xff]
        %3798 = vst [vmem:[%s2576 + $0x1310] sm:$0xff] %v3797
        %v3799 = vld [vmem:[%s2575 + $0x1314] sm:$0xff]
        %3800 = vst [vmem:[%s2576 + $0x1318] sm:$0xff] %v3799
        %v3801 = vld [vmem:[%s2575 + $0x1318] sm:$0xff]
        %3802 = vst [vmem:[%s2576 + $0x1320] sm:$0xff] %v3801
        %v3803 = vld [vmem:[%s2575 + $0x131c] sm:$0xff]
        %3804 = vst [vmem:[%s2576 + $0x1328] sm:$0xff] %v3803
        %v3805 = vld [vmem:[%s2575 + $0x1320] sm:$0xff]
        %3806 = vst [vmem:[%s2576 + $0x1330] sm:$0xff] %v3805
        %s3807 = sadd.s32 1, %s2574
        %p3808 = scmp.ge.s32.totalorder %s3807, %s2561
        %s3809 = scalar_select %p3808, 0, %s3807
        %s3810 = sadd.s32 1, %s2573
        %s3811 = scalar_select %p3808, %s3810, %s2573
        %p3812 = scmp.ge.s32.totalorder %s3811, 2
        %s3813 = scalar_select %p3812, 0, %s3811
        %s3814 = smul.u32 %s3813, 20
        %s3815 = smul.u32 %s3809, 8
        %s3816 = sadd.s32 %s3814, %s3815
        %s3817 = smul.u32 %s3813, 4
        %s3818 = smul.u32 %s3809, 8
        %s3819 = sadd.s32 %s3817, %s3818
        %s3820 = scalar_lea.vmem %s4, %s3816
        %s3821 = scalar_lea.vmem [#allocation2], %s3819
      $region64: #{discriminator_forward.1} parent=58 // loop_footer
        %s2570 = sadd.s32 %s2568, 1
      $region65: #{discriminator_forward.1} parent=58 // loop_footer_branch
        %2567 = sbr.rel target = $region61
      $region66: #{discriminator_forward.1} parent=58 // loop_exit
        _
      %s3822 = sshllo.u32 0, %s2556
      loop: start=0, step=1, limit=2
      $region67: #{discriminator_forward.1} parent=58 // loop_pre_header
        _
      $region68: #{discriminator_forward.1} parent=58 // loop_header
        %s3826 = sphi 0, %s3830
        %p3827 = scmp.ge.s32.totalorder %s3826, 2
        %s3831 = sphi 0, %s5066
        %s3832 = sphi %s2558, %s5069
        %s3833 = sphi %s2560, %s5070
      $region69: #{discriminator_forward.1} parent=58 // loop_header_branch
        %3829 = sbr.rel (%p3827) target = $region73
      $region70: #{discriminator_forward.1} parent=58 // loop_body
        %v3834 = vld [vmem:[%s3832] sm:%s3822]
        %3835 = vst [vmem:[%s3833] sm:%s3822] %v3834
        %v3836 = vld [vmem:[%s3832 + $0x4] sm:%s3822]
        %3837 = vst [vmem:[%s3833 + $0x8] sm:%s3822] %v3836
        %v3838 = vld [vmem:[%s3832 + $0x8] sm:%s3822]
        %3839 = vst [vmem:[%s3833 + $0x10] sm:%s3822] %v3838
        %v3840 = vld [vmem:[%s3832 + $0xc] sm:%s3822]
        %3841 = vst [vmem:[%s3833 + $0x18] sm:%s3822] %v3840
        %v3842 = vld [vmem:[%s3832 + $0x10] sm:%s3822]
        %3843 = vst [vmem:[%s3833 + $0x20] sm:%s3822] %v3842
        %v3844 = vld [vmem:[%s3832 + $0x28] sm:%s3822]
        %3845 = vst [vmem:[%s3833 + $0x28] sm:%s3822] %v3844
        %v3846 = vld [vmem:[%s3832 + $0x2c] sm:%s3822]
        %3847 = vst [vmem:[%s3833 + $0x30] sm:%s3822] %v3846
        %v3848 = vld [vmem:[%s3832 + $0x30] sm:%s3822]
        %3849 = vst [vmem:[%s3833 + $0x38] sm:%s3822] %v3848
        %v3850 = vld [vmem:[%s3832 + $0x34] sm:%s3822]
        %3851 = vst [vmem:[%s3833 + $0x40] sm:%s3822] %v3850
        %v3852 = vld [vmem:[%s3832 + $0x38] sm:%s3822]
        %3853 = vst [vmem:[%s3833 + $0x48] sm:%s3822] %v3852
        %v3854 = vld [vmem:[%s3832 + $0x50] sm:%s3822]
        %3855 = vst [vmem:[%s3833 + $0x50] sm:%s3822] %v3854
        %v3856 = vld [vmem:[%s3832 + $0x54] sm:%s3822]
        %3857 = vst [vmem:[%s3833 + $0x58] sm:%s3822] %v3856
        %v3858 = vld [vmem:[%s3832 + $0x58] sm:%s3822]
        %3859 = vst [vmem:[%s3833 + $0x60] sm:%s3822] %v3858
        %v3860 = vld [vmem:[%s3832 + $0x5c] sm:%s3822]
        %3861 = vst [vmem:[%s3833 + $0x68] sm:%s3822] %v3860
        %v3862 = vld [vmem:[%s3832 + $0x60] sm:%s3822]
        %3863 = vst [vmem:[%s3833 + $0x70] sm:%s3822] %v3862
        %v3864 = vld [vmem:[%s3832 + $0x78] sm:%s3822]
        %3865 = vst [vmem:[%s3833 + $0x78] sm:%s3822] %v3864
        %v3866 = vld [vmem:[%s3832 + $0x7c] sm:%s3822]
        %3867 = vst [vmem:[%s3833 + $0x80] sm:%s3822] %v3866
        %v3868 = vld [vmem:[%s3832 + $0x80] sm:%s3822]
        %3869 = vst [vmem:[%s3833 + $0x88] sm:%s3822] %v3868
        %v3870 = vld [vmem:[%s3832 + $0x84] sm:%s3822]
        %3871 = vst [vmem:[%s3833 + $0x90] sm:%s3822] %v3870
        %v3872 = vld [vmem:[%s3832 + $0x88] sm:%s3822]
        %3873 = vst [vmem:[%s3833 + $0x98] sm:%s3822] %v3872
        %v3874 = vld [vmem:[%s3832 + $0xa0] sm:%s3822]
        %3875 = vst [vmem:[%s3833 + $0xa0] sm:%s3822] %v3874
        %v3876 = vld [vmem:[%s3832 + $0xa4] sm:%s3822]
        %3877 = vst [vmem:[%s3833 + $0xa8] sm:%s3822] %v3876
        %v3878 = vld [vmem:[%s3832 + $0xa8] sm:%s3822]
        %3879 = vst [vmem:[%s3833 + $0xb0] sm:%s3822] %v3878
        %v3880 = vld [vmem:[%s3832 + $0xac] sm:%s3822]
        %3881 = vst [vmem:[%s3833 + $0xb8] sm:%s3822] %v3880
        %v3882 = vld [vmem:[%s3832 + $0xb0] sm:%s3822]
        %3883 = vst [vmem:[%s3833 + $0xc0] sm:%s3822] %v3882
        %v3884 = vld [vmem:[%s3832 + $0xc8] sm:%s3822]
        %3885 = vst [vmem:[%s3833 + $0xc8] sm:%s3822] %v3884
        %v3886 = vld [vmem:[%s3832 + $0xcc] sm:%s3822]
        %3887 = vst [vmem:[%s3833 + $0xd0] sm:%s3822] %v3886
        %v3888 = vld [vmem:[%s3832 + $0xd0] sm:%s3822]
        %3889 = vst [vmem:[%s3833 + $0xd8] sm:%s3822] %v3888
        %v3890 = vld [vmem:[%s3832 + $0xd4] sm:%s3822]
        %3891 = vst [vmem:[%s3833 + $0xe0] sm:%s3822] %v3890
        %v3892 = vld [vmem:[%s3832 + $0xd8] sm:%s3822]
        %3893 = vst [vmem:[%s3833 + $0xe8] sm:%s3822] %v3892
        %v3894 = vld [vmem:[%s3832 + $0xf0] sm:%s3822]
        %3895 = vst [vmem:[%s3833 + $0xf0] sm:%s3822] %v3894
        %v3896 = vld [vmem:[%s3832 + $0xf4] sm:%s3822]
        %3897 = vst [vmem:[%s3833 + $0xf8] sm:%s3822] %v3896
        %v3898 = vld [vmem:[%s3832 + $0xf8] sm:%s3822]
        %3899 = vst [vmem:[%s3833 + $0x100] sm:%s3822] %v3898
        %v3900 = vld [vmem:[%s3832 + $0xfc] sm:%s3822]
        %3901 = vst [vmem:[%s3833 + $0x108] sm:%s3822] %v3900
        %v3902 = vld [vmem:[%s3832 + $0x100] sm:%s3822]
        %3903 = vst [vmem:[%s3833 + $0x110] sm:%s3822] %v3902
        %v3904 = vld [vmem:[%s3832 + $0x118] sm:%s3822]
        %3905 = vst [vmem:[%s3833 + $0x118] sm:%s3822] %v3904
        %v3906 = vld [vmem:[%s3832 + $0x11c] sm:%s3822]
        %3907 = vst [vmem:[%s3833 + $0x120] sm:%s3822] %v3906
        %v3908 = vld [vmem:[%s3832 + $0x120] sm:%s3822]
        %3909 = vst [vmem:[%s3833 + $0x128] sm:%s3822] %v3908
        %v3910 = vld [vmem:[%s3832 + $0x124] sm:%s3822]
        %3911 = vst [vmem:[%s3833 + $0x130] sm:%s3822] %v3910
        %v3912 = vld [vmem:[%s3832 + $0x128] sm:%s3822]
        %3913 = vst [vmem:[%s3833 + $0x138] sm:%s3822] %v3912
        %v3914 = vld [vmem:[%s3832 + $0x140] sm:%s3822]
        %3915 = vst [vmem:[%s3833 + $0x140] sm:%s3822] %v3914
        %v3916 = vld [vmem:[%s3832 + $0x144] sm:%s3822]
        %3917 = vst [vmem:[%s3833 + $0x148] sm:%s3822] %v3916
        %v3918 = vld [vmem:[%s3832 + $0x148] sm:%s3822]
        %3919 = vst [vmem:[%s3833 + $0x150] sm:%s3822] %v3918
        %v3920 = vld [vmem:[%s3832 + $0x14c] sm:%s3822]
        %3921 = vst [vmem:[%s3833 + $0x158] sm:%s3822] %v3920
        %v3922 = vld [vmem:[%s3832 + $0x150] sm:%s3822]
        %3923 = vst [vmem:[%s3833 + $0x160] sm:%s3822] %v3922
        %v3924 = vld [vmem:[%s3832 + $0x168] sm:%s3822]
        %3925 = vst [vmem:[%s3833 + $0x168] sm:%s3822] %v3924
        %v3926 = vld [vmem:[%s3832 + $0x16c] sm:%s3822]
        %3927 = vst [vmem:[%s3833 + $0x170] sm:%s3822] %v3926
        %v3928 = vld [vmem:[%s3832 + $0x170] sm:%s3822]
        %3929 = vst [vmem:[%s3833 + $0x178] sm:%s3822] %v3928
        %v3930 = vld [vmem:[%s3832 + $0x174] sm:%s3822]
        %3931 = vst [vmem:[%s3833 + $0x180] sm:%s3822] %v3930
        %v3932 = vld [vmem:[%s3832 + $0x178] sm:%s3822]
        %3933 = vst [vmem:[%s3833 + $0x188] sm:%s3822] %v3932
        %v3934 = vld [vmem:[%s3832 + $0x190] sm:%s3822]
        %3935 = vst [vmem:[%s3833 + $0x190] sm:%s3822] %v3934
        %v3936 = vld [vmem:[%s3832 + $0x194] sm:%s3822]
        %3937 = vst [vmem:[%s3833 + $0x198] sm:%s3822] %v3936
        %v3938 = vld [vmem:[%s3832 + $0x198] sm:%s3822]
        %3939 = vst [vmem:[%s3833 + $0x1a0] sm:%s3822] %v3938
        %v3940 = vld [vmem:[%s3832 + $0x19c] sm:%s3822]
        %3941 = vst [vmem:[%s3833 + $0x1a8] sm:%s3822] %v3940
        %v3942 = vld [vmem:[%s3832 + $0x1a0] sm:%s3822]
        %3943 = vst [vmem:[%s3833 + $0x1b0] sm:%s3822] %v3942
        %v3944 = vld [vmem:[%s3832 + $0x1b8] sm:%s3822]
        %3945 = vst [vmem:[%s3833 + $0x1b8] sm:%s3822] %v3944
        %v3946 = vld [vmem:[%s3832 + $0x1bc] sm:%s3822]
        %3947 = vst [vmem:[%s3833 + $0x1c0] sm:%s3822] %v3946
        %v3948 = vld [vmem:[%s3832 + $0x1c0] sm:%s3822]
        %3949 = vst [vmem:[%s3833 + $0x1c8] sm:%s3822] %v3948
        %v3950 = vld [vmem:[%s3832 + $0x1c4] sm:%s3822]
        %3951 = vst [vmem:[%s3833 + $0x1d0] sm:%s3822] %v3950
        %v3952 = vld [vmem:[%s3832 + $0x1c8] sm:%s3822]
        %3953 = vst [vmem:[%s3833 + $0x1d8] sm:%s3822] %v3952
        %v3954 = vld [vmem:[%s3832 + $0x1e0] sm:%s3822]
        %3955 = vst [vmem:[%s3833 + $0x1e0] sm:%s3822] %v3954
        %v3956 = vld [vmem:[%s3832 + $0x1e4] sm:%s3822]
        %3957 = vst [vmem:[%s3833 + $0x1e8] sm:%s3822] %v3956
        %v3958 = vld [vmem:[%s3832 + $0x1e8] sm:%s3822]
        %3959 = vst [vmem:[%s3833 + $0x1f0] sm:%s3822] %v3958
        %v3960 = vld [vmem:[%s3832 + $0x1ec] sm:%s3822]
        %3961 = vst [vmem:[%s3833 + $0x1f8] sm:%s3822] %v3960
        %v3962 = vld [vmem:[%s3832 + $0x1f0] sm:%s3822]
        %3963 = vst [vmem:[%s3833 + $0x200] sm:%s3822] %v3962
        %v3964 = vld [vmem:[%s3832 + $0x208] sm:%s3822]
        %3965 = vst [vmem:[%s3833 + $0x208] sm:%s3822] %v3964
        %v3966 = vld [vmem:[%s3832 + $0x20c] sm:%s3822]
        %3967 = vst [vmem:[%s3833 + $0x210] sm:%s3822] %v3966
        %v3968 = vld [vmem:[%s3832 + $0x210] sm:%s3822]
        %3969 = vst [vmem:[%s3833 + $0x218] sm:%s3822] %v3968
        %v3970 = vld [vmem:[%s3832 + $0x214] sm:%s3822]
        %3971 = vst [vmem:[%s3833 + $0x220] sm:%s3822] %v3970
        %v3972 = vld [vmem:[%s3832 + $0x218] sm:%s3822]
        %3973 = vst [vmem:[%s3833 + $0x228] sm:%s3822] %v3972
        %v3974 = vld [vmem:[%s3832 + $0x230] sm:%s3822]
        %3975 = vst [vmem:[%s3833 + $0x230] sm:%s3822] %v3974
        %v3976 = vld [vmem:[%s3832 + $0x234] sm:%s3822]
        %3977 = vst [vmem:[%s3833 + $0x238] sm:%s3822] %v3976
        %v3978 = vld [vmem:[%s3832 + $0x238] sm:%s3822]
        %3979 = vst [vmem:[%s3833 + $0x240] sm:%s3822] %v3978
        %v3980 = vld [vmem:[%s3832 + $0x23c] sm:%s3822]
        %3981 = vst [vmem:[%s3833 + $0x248] sm:%s3822] %v3980
        %v3982 = vld [vmem:[%s3832 + $0x240] sm:%s3822]
        %3983 = vst [vmem:[%s3833 + $0x250] sm:%s3822] %v3982
        %v3984 = vld [vmem:[%s3832 + $0x258] sm:%s3822]
        %3985 = vst [vmem:[%s3833 + $0x258] sm:%s3822] %v3984
        %v3986 = vld [vmem:[%s3832 + $0x25c] sm:%s3822]
        %3987 = vst [vmem:[%s3833 + $0x260] sm:%s3822] %v3986
        %v3988 = vld [vmem:[%s3832 + $0x260] sm:%s3822]
        %3989 = vst [vmem:[%s3833 + $0x268] sm:%s3822] %v3988
        %v3990 = vld [vmem:[%s3832 + $0x264] sm:%s3822]
        %3991 = vst [vmem:[%s3833 + $0x270] sm:%s3822] %v3990
        %v3992 = vld [vmem:[%s3832 + $0x268] sm:%s3822]
        %3993 = vst [vmem:[%s3833 + $0x278] sm:%s3822] %v3992
        %v3994 = vld [vmem:[%s3832 + $0x280] sm:%s3822]
        %3995 = vst [vmem:[%s3833 + $0x280] sm:%s3822] %v3994
        %v3996 = vld [vmem:[%s3832 + $0x284] sm:%s3822]
        %3997 = vst [vmem:[%s3833 + $0x288] sm:%s3822] %v3996
        %v3998 = vld [vmem:[%s3832 + $0x288] sm:%s3822]
        %3999 = vst [vmem:[%s3833 + $0x290] sm:%s3822] %v3998
        %v4000 = vld [vmem:[%s3832 + $0x28c] sm:%s3822]
        %4001 = vst [vmem:[%s3833 + $0x298] sm:%s3822] %v4000
        %v4002 = vld [vmem:[%s3832 + $0x290] sm:%s3822]
        %4003 = vst [vmem:[%s3833 + $0x2a0] sm:%s3822] %v4002
        %v4004 = vld [vmem:[%s3832 + $0x2a8] sm:%s3822]
        %4005 = vst [vmem:[%s3833 + $0x2a8] sm:%s3822] %v4004
        %v4006 = vld [vmem:[%s3832 + $0x2ac] sm:%s3822]
        %4007 = vst [vmem:[%s3833 + $0x2b0] sm:%s3822] %v4006
        %v4008 = vld [vmem:[%s3832 + $0x2b0] sm:%s3822]
        %4009 = vst [vmem:[%s3833 + $0x2b8] sm:%s3822] %v4008
        %v4010 = vld [vmem:[%s3832 + $0x2b4] sm:%s3822]
        %4011 = vst [vmem:[%s3833 + $0x2c0] sm:%s3822] %v4010
        %v4012 = vld [vmem:[%s3832 + $0x2b8] sm:%s3822]
        %4013 = vst [vmem:[%s3833 + $0x2c8] sm:%s3822] %v4012
        %v4014 = vld [vmem:[%s3832 + $0x2d0] sm:%s3822]
        %4015 = vst [vmem:[%s3833 + $0x2d0] sm:%s3822] %v4014
        %v4016 = vld [vmem:[%s3832 + $0x2d4] sm:%s3822]
        %4017 = vst [vmem:[%s3833 + $0x2d8] sm:%s3822] %v4016
        %v4018 = vld [vmem:[%s3832 + $0x2d8] sm:%s3822]
        %4019 = vst [vmem:[%s3833 + $0x2e0] sm:%s3822] %v4018
        %v4020 = vld [vmem:[%s3832 + $0x2dc] sm:%s3822]
        %4021 = vst [vmem:[%s3833 + $0x2e8] sm:%s3822] %v4020
        %v4022 = vld [vmem:[%s3832 + $0x2e0] sm:%s3822]
        %4023 = vst [vmem:[%s3833 + $0x2f0] sm:%s3822] %v4022
        %v4024 = vld [vmem:[%s3832 + $0x2f8] sm:%s3822]
        %4025 = vst [vmem:[%s3833 + $0x2f8] sm:%s3822] %v4024
        %v4026 = vld [vmem:[%s3832 + $0x2fc] sm:%s3822]
        %4027 = vst [vmem:[%s3833 + $0x300] sm:%s3822] %v4026
        %v4028 = vld [vmem:[%s3832 + $0x300] sm:%s3822]
        %4029 = vst [vmem:[%s3833 + $0x308] sm:%s3822] %v4028
        %v4030 = vld [vmem:[%s3832 + $0x304] sm:%s3822]
        %4031 = vst [vmem:[%s3833 + $0x310] sm:%s3822] %v4030
        %v4032 = vld [vmem:[%s3832 + $0x308] sm:%s3822]
        %4033 = vst [vmem:[%s3833 + $0x318] sm:%s3822] %v4032
        %v4034 = vld [vmem:[%s3832 + $0x320] sm:%s3822]
        %4035 = vst [vmem:[%s3833 + $0x320] sm:%s3822] %v4034
        %v4036 = vld [vmem:[%s3832 + $0x324] sm:%s3822]
        %4037 = vst [vmem:[%s3833 + $0x328] sm:%s3822] %v4036
        %v4038 = vld [vmem:[%s3832 + $0x328] sm:%s3822]
        %4039 = vst [vmem:[%s3833 + $0x330] sm:%s3822] %v4038
        %v4040 = vld [vmem:[%s3832 + $0x32c] sm:%s3822]
        %4041 = vst [vmem:[%s3833 + $0x338] sm:%s3822] %v4040
        %v4042 = vld [vmem:[%s3832 + $0x330] sm:%s3822]
        %4043 = vst [vmem:[%s3833 + $0x340] sm:%s3822] %v4042
        %v4044 = vld [vmem:[%s3832 + $0x348] sm:%s3822]
        %4045 = vst [vmem:[%s3833 + $0x348] sm:%s3822] %v4044
        %v4046 = vld [vmem:[%s3832 + $0x34c] sm:%s3822]
        %4047 = vst [vmem:[%s3833 + $0x350] sm:%s3822] %v4046
        %v4048 = vld [vmem:[%s3832 + $0x350] sm:%s3822]
        %4049 = vst [vmem:[%s3833 + $0x358] sm:%s3822] %v4048
        %v4050 = vld [vmem:[%s3832 + $0x354] sm:%s3822]
        %4051 = vst [vmem:[%s3833 + $0x360] sm:%s3822] %v4050
        %v4052 = vld [vmem:[%s3832 + $0x358] sm:%s3822]
        %4053 = vst [vmem:[%s3833 + $0x368] sm:%s3822] %v4052
        %v4054 = vld [vmem:[%s3832 + $0x370] sm:%s3822]
        %4055 = vst [vmem:[%s3833 + $0x370] sm:%s3822] %v4054
        %v4056 = vld [vmem:[%s3832 + $0x374] sm:%s3822]
        %4057 = vst [vmem:[%s3833 + $0x378] sm:%s3822] %v4056
        %v4058 = vld [vmem:[%s3832 + $0x378] sm:%s3822]
        %4059 = vst [vmem:[%s3833 + $0x380] sm:%s3822] %v4058
        %v4060 = vld [vmem:[%s3832 + $0x37c] sm:%s3822]
        %4061 = vst [vmem:[%s3833 + $0x388] sm:%s3822] %v4060
        %v4062 = vld [vmem:[%s3832 + $0x380] sm:%s3822]
        %4063 = vst [vmem:[%s3833 + $0x390] sm:%s3822] %v4062
        %v4064 = vld [vmem:[%s3832 + $0x398] sm:%s3822]
        %4065 = vst [vmem:[%s3833 + $0x398] sm:%s3822] %v4064
        %v4066 = vld [vmem:[%s3832 + $0x39c] sm:%s3822]
        %4067 = vst [vmem:[%s3833 + $0x3a0] sm:%s3822] %v4066
        %v4068 = vld [vmem:[%s3832 + $0x3a0] sm:%s3822]
        %4069 = vst [vmem:[%s3833 + $0x3a8] sm:%s3822] %v4068
        %v4070 = vld [vmem:[%s3832 + $0x3a4] sm:%s3822]
        %4071 = vst [vmem:[%s3833 + $0x3b0] sm:%s3822] %v4070
        %v4072 = vld [vmem:[%s3832 + $0x3a8] sm:%s3822]
        %4073 = vst [vmem:[%s3833 + $0x3b8] sm:%s3822] %v4072
        %v4074 = vld [vmem:[%s3832 + $0x3c0] sm:%s3822]
        %4075 = vst [vmem:[%s3833 + $0x3c0] sm:%s3822] %v4074
        %v4076 = vld [vmem:[%s3832 + $0x3c4] sm:%s3822]
        %4077 = vst [vmem:[%s3833 + $0x3c8] sm:%s3822] %v4076
        %v4078 = vld [vmem:[%s3832 + $0x3c8] sm:%s3822]
        %4079 = vst [vmem:[%s3833 + $0x3d0] sm:%s3822] %v4078
        %v4080 = vld [vmem:[%s3832 + $0x3cc] sm:%s3822]
        %4081 = vst [vmem:[%s3833 + $0x3d8] sm:%s3822] %v4080
        %v4082 = vld [vmem:[%s3832 + $0x3d0] sm:%s3822]
        %4083 = vst [vmem:[%s3833 + $0x3e0] sm:%s3822] %v4082
        %v4084 = vld [vmem:[%s3832 + $0x3e8] sm:%s3822]
        %4085 = vst [vmem:[%s3833 + $0x3e8] sm:%s3822] %v4084
        %v4086 = vld [vmem:[%s3832 + $0x3ec] sm:%s3822]
        %4087 = vst [vmem:[%s3833 + $0x3f0] sm:%s3822] %v4086
        %v4088 = vld [vmem:[%s3832 + $0x3f0] sm:%s3822]
        %4089 = vst [vmem:[%s3833 + $0x3f8] sm:%s3822] %v4088
        %v4090 = vld [vmem:[%s3832 + $0x3f4] sm:%s3822]
        %4091 = vst [vmem:[%s3833 + $0x400] sm:%s3822] %v4090
        %v4092 = vld [vmem:[%s3832 + $0x3f8] sm:%s3822]
        %4093 = vst [vmem:[%s3833 + $0x408] sm:%s3822] %v4092
        %v4094 = vld [vmem:[%s3832 + $0x410] sm:%s3822]
        %4095 = vst [vmem:[%s3833 + $0x410] sm:%s3822] %v4094
        %v4096 = vld [vmem:[%s3832 + $0x414] sm:%s3822]
        %4097 = vst [vmem:[%s3833 + $0x418] sm:%s3822] %v4096
        %v4098 = vld [vmem:[%s3832 + $0x418] sm:%s3822]
        %4099 = vst [vmem:[%s3833 + $0x420] sm:%s3822] %v4098
        %v4100 = vld [vmem:[%s3832 + $0x41c] sm:%s3822]
        %4101 = vst [vmem:[%s3833 + $0x428] sm:%s3822] %v4100
        %v4102 = vld [vmem:[%s3832 + $0x420] sm:%s3822]
        %4103 = vst [vmem:[%s3833 + $0x430] sm:%s3822] %v4102
        %v4104 = vld [vmem:[%s3832 + $0x438] sm:%s3822]
        %4105 = vst [vmem:[%s3833 + $0x438] sm:%s3822] %v4104
        %v4106 = vld [vmem:[%s3832 + $0x43c] sm:%s3822]
        %4107 = vst [vmem:[%s3833 + $0x440] sm:%s3822] %v4106
        %v4108 = vld [vmem:[%s3832 + $0x440] sm:%s3822]
        %4109 = vst [vmem:[%s3833 + $0x448] sm:%s3822] %v4108
        %v4110 = vld [vmem:[%s3832 + $0x444] sm:%s3822]
        %4111 = vst [vmem:[%s3833 + $0x450] sm:%s3822] %v4110
        %v4112 = vld [vmem:[%s3832 + $0x448] sm:%s3822]
        %4113 = vst [vmem:[%s3833 + $0x458] sm:%s3822] %v4112
        %v4114 = vld [vmem:[%s3832 + $0x460] sm:%s3822]
        %4115 = vst [vmem:[%s3833 + $0x460] sm:%s3822] %v4114
        %v4116 = vld [vmem:[%s3832 + $0x464] sm:%s3822]
        %4117 = vst [vmem:[%s3833 + $0x468] sm:%s3822] %v4116
        %v4118 = vld [vmem:[%s3832 + $0x468] sm:%s3822]
        %4119 = vst [vmem:[%s3833 + $0x470] sm:%s3822] %v4118
        %v4120 = vld [vmem:[%s3832 + $0x46c] sm:%s3822]
        %4121 = vst [vmem:[%s3833 + $0x478] sm:%s3822] %v4120
        %v4122 = vld [vmem:[%s3832 + $0x470] sm:%s3822]
        %4123 = vst [vmem:[%s3833 + $0x480] sm:%s3822] %v4122
        %v4124 = vld [vmem:[%s3832 + $0x488] sm:%s3822]
        %4125 = vst [vmem:[%s3833 + $0x488] sm:%s3822] %v4124
        %v4126 = vld [vmem:[%s3832 + $0x48c] sm:%s3822]
        %4127 = vst [vmem:[%s3833 + $0x490] sm:%s3822] %v4126
        %v4128 = vld [vmem:[%s3832 + $0x490] sm:%s3822]
        %4129 = vst [vmem:[%s3833 + $0x498] sm:%s3822] %v4128
        %v4130 = vld [vmem:[%s3832 + $0x494] sm:%s3822]
        %4131 = vst [vmem:[%s3833 + $0x4a0] sm:%s3822] %v4130
        %v4132 = vld [vmem:[%s3832 + $0x498] sm:%s3822]
        %4133 = vst [vmem:[%s3833 + $0x4a8] sm:%s3822] %v4132
        %v4134 = vld [vmem:[%s3832 + $0x4b0] sm:%s3822]
        %4135 = vst [vmem:[%s3833 + $0x4b0] sm:%s3822] %v4134
        %v4136 = vld [vmem:[%s3832 + $0x4b4] sm:%s3822]
        %4137 = vst [vmem:[%s3833 + $0x4b8] sm:%s3822] %v4136
        %v4138 = vld [vmem:[%s3832 + $0x4b8] sm:%s3822]
        %4139 = vst [vmem:[%s3833 + $0x4c0] sm:%s3822] %v4138
        %v4140 = vld [vmem:[%s3832 + $0x4bc] sm:%s3822]
        %4141 = vst [vmem:[%s3833 + $0x4c8] sm:%s3822] %v4140
        %v4142 = vld [vmem:[%s3832 + $0x4c0] sm:%s3822]
        %4143 = vst [vmem:[%s3833 + $0x4d0] sm:%s3822] %v4142
        %v4144 = vld [vmem:[%s3832 + $0x4d8] sm:%s3822]
        %4145 = vst [vmem:[%s3833 + $0x4d8] sm:%s3822] %v4144
        %v4146 = vld [vmem:[%s3832 + $0x4dc] sm:%s3822]
        %4147 = vst [vmem:[%s3833 + $0x4e0] sm:%s3822] %v4146
        %v4148 = vld [vmem:[%s3832 + $0x4e0] sm:%s3822]
        %4149 = vst [vmem:[%s3833 + $0x4e8] sm:%s3822] %v4148
        %v4150 = vld [vmem:[%s3832 + $0x4e4] sm:%s3822]
        %4151 = vst [vmem:[%s3833 + $0x4f0] sm:%s3822] %v4150
        %v4152 = vld [vmem:[%s3832 + $0x4e8] sm:%s3822]
        %4153 = vst [vmem:[%s3833 + $0x4f8] sm:%s3822] %v4152
        %v4154 = vld [vmem:[%s3832 + $0x500] sm:%s3822]
        %4155 = vst [vmem:[%s3833 + $0x500] sm:%s3822] %v4154
        %v4156 = vld [vmem:[%s3832 + $0x504] sm:%s3822]
        %4157 = vst [vmem:[%s3833 + $0x508] sm:%s3822] %v4156
        %v4158 = vld [vmem:[%s3832 + $0x508] sm:%s3822]
        %4159 = vst [vmem:[%s3833 + $0x510] sm:%s3822] %v4158
        %v4160 = vld [vmem:[%s3832 + $0x50c] sm:%s3822]
        %4161 = vst [vmem:[%s3833 + $0x518] sm:%s3822] %v4160
        %v4162 = vld [vmem:[%s3832 + $0x510] sm:%s3822]
        %4163 = vst [vmem:[%s3833 + $0x520] sm:%s3822] %v4162
        %v4164 = vld [vmem:[%s3832 + $0x528] sm:%s3822]
        %4165 = vst [vmem:[%s3833 + $0x528] sm:%s3822] %v4164
        %v4166 = vld [vmem:[%s3832 + $0x52c] sm:%s3822]
        %4167 = vst [vmem:[%s3833 + $0x530] sm:%s3822] %v4166
        %v4168 = vld [vmem:[%s3832 + $0x530] sm:%s3822]
        %4169 = vst [vmem:[%s3833 + $0x538] sm:%s3822] %v4168
        %v4170 = vld [vmem:[%s3832 + $0x534] sm:%s3822]
        %4171 = vst [vmem:[%s3833 + $0x540] sm:%s3822] %v4170
        %v4172 = vld [vmem:[%s3832 + $0x538] sm:%s3822]
        %4173 = vst [vmem:[%s3833 + $0x548] sm:%s3822] %v4172
        %v4174 = vld [vmem:[%s3832 + $0x550] sm:%s3822]
        %4175 = vst [vmem:[%s3833 + $0x550] sm:%s3822] %v4174
        %v4176 = vld [vmem:[%s3832 + $0x554] sm:%s3822]
        %4177 = vst [vmem:[%s3833 + $0x558] sm:%s3822] %v4176
        %v4178 = vld [vmem:[%s3832 + $0x558] sm:%s3822]
        %4179 = vst [vmem:[%s3833 + $0x560] sm:%s3822] %v4178
        %v4180 = vld [vmem:[%s3832 + $0x55c] sm:%s3822]
        %4181 = vst [vmem:[%s3833 + $0x568] sm:%s3822] %v4180
        %v4182 = vld [vmem:[%s3832 + $0x560] sm:%s3822]
        %4183 = vst [vmem:[%s3833 + $0x570] sm:%s3822] %v4182
        %v4184 = vld [vmem:[%s3832 + $0x578] sm:%s3822]
        %4185 = vst [vmem:[%s3833 + $0x578] sm:%s3822] %v4184
        %v4186 = vld [vmem:[%s3832 + $0x57c] sm:%s3822]
        %4187 = vst [vmem:[%s3833 + $0x580] sm:%s3822] %v4186
        %v4188 = vld [vmem:[%s3832 + $0x580] sm:%s3822]
        %4189 = vst [vmem:[%s3833 + $0x588] sm:%s3822] %v4188
        %v4190 = vld [vmem:[%s3832 + $0x584] sm:%s3822]
        %4191 = vst [vmem:[%s3833 + $0x590] sm:%s3822] %v4190
        %v4192 = vld [vmem:[%s3832 + $0x588] sm:%s3822]
        %4193 = vst [vmem:[%s3833 + $0x598] sm:%s3822] %v4192
        %v4194 = vld [vmem:[%s3832 + $0x5a0] sm:%s3822]
        %4195 = vst [vmem:[%s3833 + $0x5a0] sm:%s3822] %v4194
        %v4196 = vld [vmem:[%s3832 + $0x5a4] sm:%s3822]
        %4197 = vst [vmem:[%s3833 + $0x5a8] sm:%s3822] %v4196
        %v4198 = vld [vmem:[%s3832 + $0x5a8] sm:%s3822]
        %4199 = vst [vmem:[%s3833 + $0x5b0] sm:%s3822] %v4198
        %v4200 = vld [vmem:[%s3832 + $0x5ac] sm:%s3822]
        %4201 = vst [vmem:[%s3833 + $0x5b8] sm:%s3822] %v4200
        %v4202 = vld [vmem:[%s3832 + $0x5b0] sm:%s3822]
        %4203 = vst [vmem:[%s3833 + $0x5c0] sm:%s3822] %v4202
        %v4204 = vld [vmem:[%s3832 + $0x5c8] sm:%s3822]
        %4205 = vst [vmem:[%s3833 + $0x5c8] sm:%s3822] %v4204
        %v4206 = vld [vmem:[%s3832 + $0x5cc] sm:%s3822]
        %4207 = vst [vmem:[%s3833 + $0x5d0] sm:%s3822] %v4206
        %v4208 = vld [vmem:[%s3832 + $0x5d0] sm:%s3822]
        %4209 = vst [vmem:[%s3833 + $0x5d8] sm:%s3822] %v4208
        %v4210 = vld [vmem:[%s3832 + $0x5d4] sm:%s3822]
        %4211 = vst [vmem:[%s3833 + $0x5e0] sm:%s3822] %v4210
        %v4212 = vld [vmem:[%s3832 + $0x5d8] sm:%s3822]
        %4213 = vst [vmem:[%s3833 + $0x5e8] sm:%s3822] %v4212
        %v4214 = vld [vmem:[%s3832 + $0x5f0] sm:%s3822]
        %4215 = vst [vmem:[%s3833 + $0x5f0] sm:%s3822] %v4214
        %v4216 = vld [vmem:[%s3832 + $0x5f4] sm:%s3822]
        %4217 = vst [vmem:[%s3833 + $0x5f8] sm:%s3822] %v4216
        %v4218 = vld [vmem:[%s3832 + $0x5f8] sm:%s3822]
        %4219 = vst [vmem:[%s3833 + $0x600] sm:%s3822] %v4218
        %v4220 = vld [vmem:[%s3832 + $0x5fc] sm:%s3822]
        %4221 = vst [vmem:[%s3833 + $0x608] sm:%s3822] %v4220
        %v4222 = vld [vmem:[%s3832 + $0x600] sm:%s3822]
        %4223 = vst [vmem:[%s3833 + $0x610] sm:%s3822] %v4222
        %v4224 = vld [vmem:[%s3832 + $0x618] sm:%s3822]
        %4225 = vst [vmem:[%s3833 + $0x618] sm:%s3822] %v4224
        %v4226 = vld [vmem:[%s3832 + $0x61c] sm:%s3822]
        %4227 = vst [vmem:[%s3833 + $0x620] sm:%s3822] %v4226
        %v4228 = vld [vmem:[%s3832 + $0x620] sm:%s3822]
        %4229 = vst [vmem:[%s3833 + $0x628] sm:%s3822] %v4228
        %v4230 = vld [vmem:[%s3832 + $0x624] sm:%s3822]
        %4231 = vst [vmem:[%s3833 + $0x630] sm:%s3822] %v4230
        %v4232 = vld [vmem:[%s3832 + $0x628] sm:%s3822]
        %4233 = vst [vmem:[%s3833 + $0x638] sm:%s3822] %v4232
        %v4234 = vld [vmem:[%s3832 + $0x640] sm:%s3822]
        %4235 = vst [vmem:[%s3833 + $0x640] sm:%s3822] %v4234
        %v4236 = vld [vmem:[%s3832 + $0x644] sm:%s3822]
        %4237 = vst [vmem:[%s3833 + $0x648] sm:%s3822] %v4236
        %v4238 = vld [vmem:[%s3832 + $0x648] sm:%s3822]
        %4239 = vst [vmem:[%s3833 + $0x650] sm:%s3822] %v4238
        %v4240 = vld [vmem:[%s3832 + $0x64c] sm:%s3822]
        %4241 = vst [vmem:[%s3833 + $0x658] sm:%s3822] %v4240
        %v4242 = vld [vmem:[%s3832 + $0x650] sm:%s3822]
        %4243 = vst [vmem:[%s3833 + $0x660] sm:%s3822] %v4242
        %v4244 = vld [vmem:[%s3832 + $0x668] sm:%s3822]
        %4245 = vst [vmem:[%s3833 + $0x668] sm:%s3822] %v4244
        %v4246 = vld [vmem:[%s3832 + $0x66c] sm:%s3822]
        %4247 = vst [vmem:[%s3833 + $0x670] sm:%s3822] %v4246
        %v4248 = vld [vmem:[%s3832 + $0x670] sm:%s3822]
        %4249 = vst [vmem:[%s3833 + $0x678] sm:%s3822] %v4248
        %v4250 = vld [vmem:[%s3832 + $0x674] sm:%s3822]
        %4251 = vst [vmem:[%s3833 + $0x680] sm:%s3822] %v4250
        %v4252 = vld [vmem:[%s3832 + $0x678] sm:%s3822]
        %4253 = vst [vmem:[%s3833 + $0x688] sm:%s3822] %v4252
        %v4254 = vld [vmem:[%s3832 + $0x690] sm:%s3822]
        %4255 = vst [vmem:[%s3833 + $0x690] sm:%s3822] %v4254
        %v4256 = vld [vmem:[%s3832 + $0x694] sm:%s3822]
        %4257 = vst [vmem:[%s3833 + $0x698] sm:%s3822] %v4256
        %v4258 = vld [vmem:[%s3832 + $0x698] sm:%s3822]
        %4259 = vst [vmem:[%s3833 + $0x6a0] sm:%s3822] %v4258
        %v4260 = vld [vmem:[%s3832 + $0x69c] sm:%s3822]
        %4261 = vst [vmem:[%s3833 + $0x6a8] sm:%s3822] %v4260
        %v4262 = vld [vmem:[%s3832 + $0x6a0] sm:%s3822]
        %4263 = vst [vmem:[%s3833 + $0x6b0] sm:%s3822] %v4262
        %v4264 = vld [vmem:[%s3832 + $0x6b8] sm:%s3822]
        %4265 = vst [vmem:[%s3833 + $0x6b8] sm:%s3822] %v4264
        %v4266 = vld [vmem:[%s3832 + $0x6bc] sm:%s3822]
        %4267 = vst [vmem:[%s3833 + $0x6c0] sm:%s3822] %v4266
        %v4268 = vld [vmem:[%s3832 + $0x6c0] sm:%s3822]
        %4269 = vst [vmem:[%s3833 + $0x6c8] sm:%s3822] %v4268
        %v4270 = vld [vmem:[%s3832 + $0x6c4] sm:%s3822]
        %4271 = vst [vmem:[%s3833 + $0x6d0] sm:%s3822] %v4270
        %v4272 = vld [vmem:[%s3832 + $0x6c8] sm:%s3822]
        %4273 = vst [vmem:[%s3833 + $0x6d8] sm:%s3822] %v4272
        %v4274 = vld [vmem:[%s3832 + $0x6e0] sm:%s3822]
        %4275 = vst [vmem:[%s3833 + $0x6e0] sm:%s3822] %v4274
        %v4276 = vld [vmem:[%s3832 + $0x6e4] sm:%s3822]
        %4277 = vst [vmem:[%s3833 + $0x6e8] sm:%s3822] %v4276
        %v4278 = vld [vmem:[%s3832 + $0x6e8] sm:%s3822]
        %4279 = vst [vmem:[%s3833 + $0x6f0] sm:%s3822] %v4278
        %v4280 = vld [vmem:[%s3832 + $0x6ec] sm:%s3822]
        %4281 = vst [vmem:[%s3833 + $0x6f8] sm:%s3822] %v4280
        %v4282 = vld [vmem:[%s3832 + $0x6f0] sm:%s3822]
        %4283 = vst [vmem:[%s3833 + $0x700] sm:%s3822] %v4282
        %v4284 = vld [vmem:[%s3832 + $0x708] sm:%s3822]
        %4285 = vst [vmem:[%s3833 + $0x708] sm:%s3822] %v4284
        %v4286 = vld [vmem:[%s3832 + $0x70c] sm:%s3822]
        %4287 = vst [vmem:[%s3833 + $0x710] sm:%s3822] %v4286
        %v4288 = vld [vmem:[%s3832 + $0x710] sm:%s3822]
        %4289 = vst [vmem:[%s3833 + $0x718] sm:%s3822] %v4288
        %v4290 = vld [vmem:[%s3832 + $0x714] sm:%s3822]
        %4291 = vst [vmem:[%s3833 + $0x720] sm:%s3822] %v4290
        %v4292 = vld [vmem:[%s3832 + $0x718] sm:%s3822]
        %4293 = vst [vmem:[%s3833 + $0x728] sm:%s3822] %v4292
        %v4294 = vld [vmem:[%s3832 + $0x730] sm:%s3822]
        %4295 = vst [vmem:[%s3833 + $0x730] sm:%s3822] %v4294
        %v4296 = vld [vmem:[%s3832 + $0x734] sm:%s3822]
        %4297 = vst [vmem:[%s3833 + $0x738] sm:%s3822] %v4296
        %v4298 = vld [vmem:[%s3832 + $0x738] sm:%s3822]
        %4299 = vst [vmem:[%s3833 + $0x740] sm:%s3822] %v4298
        %v4300 = vld [vmem:[%s3832 + $0x73c] sm:%s3822]
        %4301 = vst [vmem:[%s3833 + $0x748] sm:%s3822] %v4300
        %v4302 = vld [vmem:[%s3832 + $0x740] sm:%s3822]
        %4303 = vst [vmem:[%s3833 + $0x750] sm:%s3822] %v4302
        %v4304 = vld [vmem:[%s3832 + $0x758] sm:%s3822]
        %4305 = vst [vmem:[%s3833 + $0x758] sm:%s3822] %v4304
        %v4306 = vld [vmem:[%s3832 + $0x75c] sm:%s3822]
        %4307 = vst [vmem:[%s3833 + $0x760] sm:%s3822] %v4306
        %v4308 = vld [vmem:[%s3832 + $0x760] sm:%s3822]
        %4309 = vst [vmem:[%s3833 + $0x768] sm:%s3822] %v4308
        %v4310 = vld [vmem:[%s3832 + $0x764] sm:%s3822]
        %4311 = vst [vmem:[%s3833 + $0x770] sm:%s3822] %v4310
        %v4312 = vld [vmem:[%s3832 + $0x768] sm:%s3822]
        %4313 = vst [vmem:[%s3833 + $0x778] sm:%s3822] %v4312
        %v4314 = vld [vmem:[%s3832 + $0x780] sm:%s3822]
        %4315 = vst [vmem:[%s3833 + $0x780] sm:%s3822] %v4314
        %v4316 = vld [vmem:[%s3832 + $0x784] sm:%s3822]
        %4317 = vst [vmem:[%s3833 + $0x788] sm:%s3822] %v4316
        %v4318 = vld [vmem:[%s3832 + $0x788] sm:%s3822]
        %4319 = vst [vmem:[%s3833 + $0x790] sm:%s3822] %v4318
        %v4320 = vld [vmem:[%s3832 + $0x78c] sm:%s3822]
        %4321 = vst [vmem:[%s3833 + $0x798] sm:%s3822] %v4320
        %v4322 = vld [vmem:[%s3832 + $0x790] sm:%s3822]
        %4323 = vst [vmem:[%s3833 + $0x7a0] sm:%s3822] %v4322
        %v4324 = vld [vmem:[%s3832 + $0x7a8] sm:%s3822]
        %4325 = vst [vmem:[%s3833 + $0x7a8] sm:%s3822] %v4324
        %v4326 = vld [vmem:[%s3832 + $0x7ac] sm:%s3822]
        %4327 = vst [vmem:[%s3833 + $0x7b0] sm:%s3822] %v4326
        %v4328 = vld [vmem:[%s3832 + $0x7b0] sm:%s3822]
        %4329 = vst [vmem:[%s3833 + $0x7b8] sm:%s3822] %v4328
        %v4330 = vld [vmem:[%s3832 + $0x7b4] sm:%s3822]
        %4331 = vst [vmem:[%s3833 + $0x7c0] sm:%s3822] %v4330
        %v4332 = vld [vmem:[%s3832 + $0x7b8] sm:%s3822]
        %4333 = vst [vmem:[%s3833 + $0x7c8] sm:%s3822] %v4332
        %v4334 = vld [vmem:[%s3832 + $0x7d0] sm:%s3822]
        %4335 = vst [vmem:[%s3833 + $0x7d0] sm:%s3822] %v4334
        %v4336 = vld [vmem:[%s3832 + $0x7d4] sm:%s3822]
        %4337 = vst [vmem:[%s3833 + $0x7d8] sm:%s3822] %v4336
        %v4338 = vld [vmem:[%s3832 + $0x7d8] sm:%s3822]
        %4339 = vst [vmem:[%s3833 + $0x7e0] sm:%s3822] %v4338
        %v4340 = vld [vmem:[%s3832 + $0x7dc] sm:%s3822]
        %4341 = vst [vmem:[%s3833 + $0x7e8] sm:%s3822] %v4340
        %v4342 = vld [vmem:[%s3832 + $0x7e0] sm:%s3822]
        %4343 = vst [vmem:[%s3833 + $0x7f0] sm:%s3822] %v4342
        %v4344 = vld [vmem:[%s3832 + $0x7f8] sm:%s3822]
        %4345 = vst [vmem:[%s3833 + $0x7f8] sm:%s3822] %v4344
        %v4346 = vld [vmem:[%s3832 + $0x7fc] sm:%s3822]
        %4347 = vst [vmem:[%s3833 + $0x800] sm:%s3822] %v4346
        %v4348 = vld [vmem:[%s3832 + $0x800] sm:%s3822]
        %4349 = vst [vmem:[%s3833 + $0x808] sm:%s3822] %v4348
        %v4350 = vld [vmem:[%s3832 + $0x804] sm:%s3822]
        %4351 = vst [vmem:[%s3833 + $0x810] sm:%s3822] %v4350
        %v4352 = vld [vmem:[%s3832 + $0x808] sm:%s3822]
        %4353 = vst [vmem:[%s3833 + $0x818] sm:%s3822] %v4352
        %v4354 = vld [vmem:[%s3832 + $0x820] sm:%s3822]
        %4355 = vst [vmem:[%s3833 + $0x820] sm:%s3822] %v4354
        %v4356 = vld [vmem:[%s3832 + $0x824] sm:%s3822]
        %4357 = vst [vmem:[%s3833 + $0x828] sm:%s3822] %v4356
        %v4358 = vld [vmem:[%s3832 + $0x828] sm:%s3822]
        %4359 = vst [vmem:[%s3833 + $0x830] sm:%s3822] %v4358
        %v4360 = vld [vmem:[%s3832 + $0x82c] sm:%s3822]
        %4361 = vst [vmem:[%s3833 + $0x838] sm:%s3822] %v4360
        %v4362 = vld [vmem:[%s3832 + $0x830] sm:%s3822]
        %4363 = vst [vmem:[%s3833 + $0x840] sm:%s3822] %v4362
        %v4364 = vld [vmem:[%s3832 + $0x848] sm:%s3822]
        %4365 = vst [vmem:[%s3833 + $0x848] sm:%s3822] %v4364
        %v4366 = vld [vmem:[%s3832 + $0x84c] sm:%s3822]
        %4367 = vst [vmem:[%s3833 + $0x850] sm:%s3822] %v4366
        %v4368 = vld [vmem:[%s3832 + $0x850] sm:%s3822]
        %4369 = vst [vmem:[%s3833 + $0x858] sm:%s3822] %v4368
        %v4370 = vld [vmem:[%s3832 + $0x854] sm:%s3822]
        %4371 = vst [vmem:[%s3833 + $0x860] sm:%s3822] %v4370
        %v4372 = vld [vmem:[%s3832 + $0x858] sm:%s3822]
        %4373 = vst [vmem:[%s3833 + $0x868] sm:%s3822] %v4372
        %v4374 = vld [vmem:[%s3832 + $0x870] sm:%s3822]
        %4375 = vst [vmem:[%s3833 + $0x870] sm:%s3822] %v4374
        %v4376 = vld [vmem:[%s3832 + $0x874] sm:%s3822]
        %4377 = vst [vmem:[%s3833 + $0x878] sm:%s3822] %v4376
        %v4378 = vld [vmem:[%s3832 + $0x878] sm:%s3822]
        %4379 = vst [vmem:[%s3833 + $0x880] sm:%s3822] %v4378
        %v4380 = vld [vmem:[%s3832 + $0x87c] sm:%s3822]
        %4381 = vst [vmem:[%s3833 + $0x888] sm:%s3822] %v4380
        %v4382 = vld [vmem:[%s3832 + $0x880] sm:%s3822]
        %4383 = vst [vmem:[%s3833 + $0x890] sm:%s3822] %v4382
        %v4384 = vld [vmem:[%s3832 + $0x898] sm:%s3822]
        %4385 = vst [vmem:[%s3833 + $0x898] sm:%s3822] %v4384
        %v4386 = vld [vmem:[%s3832 + $0x89c] sm:%s3822]
        %4387 = vst [vmem:[%s3833 + $0x8a0] sm:%s3822] %v4386
        %v4388 = vld [vmem:[%s3832 + $0x8a0] sm:%s3822]
        %4389 = vst [vmem:[%s3833 + $0x8a8] sm:%s3822] %v4388
        %v4390 = vld [vmem:[%s3832 + $0x8a4] sm:%s3822]
        %4391 = vst [vmem:[%s3833 + $0x8b0] sm:%s3822] %v4390
        %v4392 = vld [vmem:[%s3832 + $0x8a8] sm:%s3822]
        %4393 = vst [vmem:[%s3833 + $0x8b8] sm:%s3822] %v4392
        %v4394 = vld [vmem:[%s3832 + $0x8c0] sm:%s3822]
        %4395 = vst [vmem:[%s3833 + $0x8c0] sm:%s3822] %v4394
        %v4396 = vld [vmem:[%s3832 + $0x8c4] sm:%s3822]
        %4397 = vst [vmem:[%s3833 + $0x8c8] sm:%s3822] %v4396
        %v4398 = vld [vmem:[%s3832 + $0x8c8] sm:%s3822]
        %4399 = vst [vmem:[%s3833 + $0x8d0] sm:%s3822] %v4398
        %v4400 = vld [vmem:[%s3832 + $0x8cc] sm:%s3822]
        %4401 = vst [vmem:[%s3833 + $0x8d8] sm:%s3822] %v4400
        %v4402 = vld [vmem:[%s3832 + $0x8d0] sm:%s3822]
        %4403 = vst [vmem:[%s3833 + $0x8e0] sm:%s3822] %v4402
        %v4404 = vld [vmem:[%s3832 + $0x8e8] sm:%s3822]
        %4405 = vst [vmem:[%s3833 + $0x8e8] sm:%s3822] %v4404
        %v4406 = vld [vmem:[%s3832 + $0x8ec] sm:%s3822]
        %4407 = vst [vmem:[%s3833 + $0x8f0] sm:%s3822] %v4406
        %v4408 = vld [vmem:[%s3832 + $0x8f0] sm:%s3822]
        %4409 = vst [vmem:[%s3833 + $0x8f8] sm:%s3822] %v4408
        %v4410 = vld [vmem:[%s3832 + $0x8f4] sm:%s3822]
        %4411 = vst [vmem:[%s3833 + $0x900] sm:%s3822] %v4410
        %v4412 = vld [vmem:[%s3832 + $0x8f8] sm:%s3822]
        %4413 = vst [vmem:[%s3833 + $0x908] sm:%s3822] %v4412
        %v4414 = vld [vmem:[%s3832 + $0x910] sm:%s3822]
        %4415 = vst [vmem:[%s3833 + $0x910] sm:%s3822] %v4414
        %v4416 = vld [vmem:[%s3832 + $0x914] sm:%s3822]
        %4417 = vst [vmem:[%s3833 + $0x918] sm:%s3822] %v4416
        %v4418 = vld [vmem:[%s3832 + $0x918] sm:%s3822]
        %4419 = vst [vmem:[%s3833 + $0x920] sm:%s3822] %v4418
        %v4420 = vld [vmem:[%s3832 + $0x91c] sm:%s3822]
        %4421 = vst [vmem:[%s3833 + $0x928] sm:%s3822] %v4420
        %v4422 = vld [vmem:[%s3832 + $0x920] sm:%s3822]
        %4423 = vst [vmem:[%s3833 + $0x930] sm:%s3822] %v4422
        %v4424 = vld [vmem:[%s3832 + $0x938] sm:%s3822]
        %4425 = vst [vmem:[%s3833 + $0x938] sm:%s3822] %v4424
        %v4426 = vld [vmem:[%s3832 + $0x93c] sm:%s3822]
        %4427 = vst [vmem:[%s3833 + $0x940] sm:%s3822] %v4426
        %v4428 = vld [vmem:[%s3832 + $0x940] sm:%s3822]
        %4429 = vst [vmem:[%s3833 + $0x948] sm:%s3822] %v4428
        %v4430 = vld [vmem:[%s3832 + $0x944] sm:%s3822]
        %4431 = vst [vmem:[%s3833 + $0x950] sm:%s3822] %v4430
        %v4432 = vld [vmem:[%s3832 + $0x948] sm:%s3822]
        %4433 = vst [vmem:[%s3833 + $0x958] sm:%s3822] %v4432
        %v4434 = vld [vmem:[%s3832 + $0x960] sm:%s3822]
        %4435 = vst [vmem:[%s3833 + $0x960] sm:%s3822] %v4434
        %v4436 = vld [vmem:[%s3832 + $0x964] sm:%s3822]
        %4437 = vst [vmem:[%s3833 + $0x968] sm:%s3822] %v4436
        %v4438 = vld [vmem:[%s3832 + $0x968] sm:%s3822]
        %4439 = vst [vmem:[%s3833 + $0x970] sm:%s3822] %v4438
        %v4440 = vld [vmem:[%s3832 + $0x96c] sm:%s3822]
        %4441 = vst [vmem:[%s3833 + $0x978] sm:%s3822] %v4440
        %v4442 = vld [vmem:[%s3832 + $0x970] sm:%s3822]
        %4443 = vst [vmem:[%s3833 + $0x980] sm:%s3822] %v4442
        %v4444 = vld [vmem:[%s3832 + $0x988] sm:%s3822]
        %4445 = vst [vmem:[%s3833 + $0x988] sm:%s3822] %v4444
        %v4446 = vld [vmem:[%s3832 + $0x98c] sm:%s3822]
        %4447 = vst [vmem:[%s3833 + $0x990] sm:%s3822] %v4446
        %v4448 = vld [vmem:[%s3832 + $0x990] sm:%s3822]
        %4449 = vst [vmem:[%s3833 + $0x998] sm:%s3822] %v4448
        %v4450 = vld [vmem:[%s3832 + $0x994] sm:%s3822]
        %4451 = vst [vmem:[%s3833 + $0x9a0] sm:%s3822] %v4450
        %v4452 = vld [vmem:[%s3832 + $0x998] sm:%s3822]
        %4453 = vst [vmem:[%s3833 + $0x9a8] sm:%s3822] %v4452
        %v4454 = vld [vmem:[%s3832 + $0x9b0] sm:%s3822]
        %4455 = vst [vmem:[%s3833 + $0x9b0] sm:%s3822] %v4454
        %v4456 = vld [vmem:[%s3832 + $0x9b4] sm:%s3822]
        %4457 = vst [vmem:[%s3833 + $0x9b8] sm:%s3822] %v4456
        %v4458 = vld [vmem:[%s3832 + $0x9b8] sm:%s3822]
        %4459 = vst [vmem:[%s3833 + $0x9c0] sm:%s3822] %v4458
        %v4460 = vld [vmem:[%s3832 + $0x9bc] sm:%s3822]
        %4461 = vst [vmem:[%s3833 + $0x9c8] sm:%s3822] %v4460
        %v4462 = vld [vmem:[%s3832 + $0x9c0] sm:%s3822]
        %4463 = vst [vmem:[%s3833 + $0x9d0] sm:%s3822] %v4462
        %v4464 = vld [vmem:[%s3832 + $0x9d8] sm:%s3822]
        %4465 = vst [vmem:[%s3833 + $0x9d8] sm:%s3822] %v4464
        %v4466 = vld [vmem:[%s3832 + $0x9dc] sm:%s3822]
        %4467 = vst [vmem:[%s3833 + $0x9e0] sm:%s3822] %v4466
        %v4468 = vld [vmem:[%s3832 + $0x9e0] sm:%s3822]
        %4469 = vst [vmem:[%s3833 + $0x9e8] sm:%s3822] %v4468
        %v4470 = vld [vmem:[%s3832 + $0x9e4] sm:%s3822]
        %4471 = vst [vmem:[%s3833 + $0x9f0] sm:%s3822] %v4470
        %v4472 = vld [vmem:[%s3832 + $0x9e8] sm:%s3822]
        %4473 = vst [vmem:[%s3833 + $0x9f8] sm:%s3822] %v4472
        %v4474 = vld [vmem:[%s3832 + $0xa00] sm:%s3822]
        %4475 = vst [vmem:[%s3833 + $0xa00] sm:%s3822] %v4474
        %v4476 = vld [vmem:[%s3832 + $0xa04] sm:%s3822]
        %4477 = vst [vmem:[%s3833 + $0xa08] sm:%s3822] %v4476
        %v4478 = vld [vmem:[%s3832 + $0xa08] sm:%s3822]
        %4479 = vst [vmem:[%s3833 + $0xa10] sm:%s3822] %v4478
        %v4480 = vld [vmem:[%s3832 + $0xa0c] sm:%s3822]
        %4481 = vst [vmem:[%s3833 + $0xa18] sm:%s3822] %v4480
        %v4482 = vld [vmem:[%s3832 + $0xa10] sm:%s3822]
        %4483 = vst [vmem:[%s3833 + $0xa20] sm:%s3822] %v4482
        %v4484 = vld [vmem:[%s3832 + $0xa28] sm:%s3822]
        %4485 = vst [vmem:[%s3833 + $0xa28] sm:%s3822] %v4484
        %v4486 = vld [vmem:[%s3832 + $0xa2c] sm:%s3822]
        %4487 = vst [vmem:[%s3833 + $0xa30] sm:%s3822] %v4486
        %v4488 = vld [vmem:[%s3832 + $0xa30] sm:%s3822]
        %4489 = vst [vmem:[%s3833 + $0xa38] sm:%s3822] %v4488
        %v4490 = vld [vmem:[%s3832 + $0xa34] sm:%s3822]
        %4491 = vst [vmem:[%s3833 + $0xa40] sm:%s3822] %v4490
        %v4492 = vld [vmem:[%s3832 + $0xa38] sm:%s3822]
        %4493 = vst [vmem:[%s3833 + $0xa48] sm:%s3822] %v4492
        %v4494 = vld [vmem:[%s3832 + $0xa50] sm:%s3822]
        %4495 = vst [vmem:[%s3833 + $0xa50] sm:%s3822] %v4494
        %v4496 = vld [vmem:[%s3832 + $0xa54] sm:%s3822]
        %4497 = vst [vmem:[%s3833 + $0xa58] sm:%s3822] %v4496
        %v4498 = vld [vmem:[%s3832 + $0xa58] sm:%s3822]
        %4499 = vst [vmem:[%s3833 + $0xa60] sm:%s3822] %v4498
        %v4500 = vld [vmem:[%s3832 + $0xa5c] sm:%s3822]
        %4501 = vst [vmem:[%s3833 + $0xa68] sm:%s3822] %v4500
        %v4502 = vld [vmem:[%s3832 + $0xa60] sm:%s3822]
        %4503 = vst [vmem:[%s3833 + $0xa70] sm:%s3822] %v4502
        %v4504 = vld [vmem:[%s3832 + $0xa78] sm:%s3822]
        %4505 = vst [vmem:[%s3833 + $0xa78] sm:%s3822] %v4504
        %v4506 = vld [vmem:[%s3832 + $0xa7c] sm:%s3822]
        %4507 = vst [vmem:[%s3833 + $0xa80] sm:%s3822] %v4506
        %v4508 = vld [vmem:[%s3832 + $0xa80] sm:%s3822]
        %4509 = vst [vmem:[%s3833 + $0xa88] sm:%s3822] %v4508
        %v4510 = vld [vmem:[%s3832 + $0xa84] sm:%s3822]
        %4511 = vst [vmem:[%s3833 + $0xa90] sm:%s3822] %v4510
        %v4512 = vld [vmem:[%s3832 + $0xa88] sm:%s3822]
        %4513 = vst [vmem:[%s3833 + $0xa98] sm:%s3822] %v4512
        %v4514 = vld [vmem:[%s3832 + $0xaa0] sm:%s3822]
        %4515 = vst [vmem:[%s3833 + $0xaa0] sm:%s3822] %v4514
        %v4516 = vld [vmem:[%s3832 + $0xaa4] sm:%s3822]
        %4517 = vst [vmem:[%s3833 + $0xaa8] sm:%s3822] %v4516
        %v4518 = vld [vmem:[%s3832 + $0xaa8] sm:%s3822]
        %4519 = vst [vmem:[%s3833 + $0xab0] sm:%s3822] %v4518
        %v4520 = vld [vmem:[%s3832 + $0xaac] sm:%s3822]
        %4521 = vst [vmem:[%s3833 + $0xab8] sm:%s3822] %v4520
        %v4522 = vld [vmem:[%s3832 + $0xab0] sm:%s3822]
        %4523 = vst [vmem:[%s3833 + $0xac0] sm:%s3822] %v4522
        %v4524 = vld [vmem:[%s3832 + $0xac8] sm:%s3822]
        %4525 = vst [vmem:[%s3833 + $0xac8] sm:%s3822] %v4524
        %v4526 = vld [vmem:[%s3832 + $0xacc] sm:%s3822]
        %4527 = vst [vmem:[%s3833 + $0xad0] sm:%s3822] %v4526
        %v4528 = vld [vmem:[%s3832 + $0xad0] sm:%s3822]
        %4529 = vst [vmem:[%s3833 + $0xad8] sm:%s3822] %v4528
        %v4530 = vld [vmem:[%s3832 + $0xad4] sm:%s3822]
        %4531 = vst [vmem:[%s3833 + $0xae0] sm:%s3822] %v4530
        %v4532 = vld [vmem:[%s3832 + $0xad8] sm:%s3822]
        %4533 = vst [vmem:[%s3833 + $0xae8] sm:%s3822] %v4532
        %v4534 = vld [vmem:[%s3832 + $0xaf0] sm:%s3822]
        %4535 = vst [vmem:[%s3833 + $0xaf0] sm:%s3822] %v4534
        %v4536 = vld [vmem:[%s3832 + $0xaf4] sm:%s3822]
        %4537 = vst [vmem:[%s3833 + $0xaf8] sm:%s3822] %v4536
        %v4538 = vld [vmem:[%s3832 + $0xaf8] sm:%s3822]
        %4539 = vst [vmem:[%s3833 + $0xb00] sm:%s3822] %v4538
        %v4540 = vld [vmem:[%s3832 + $0xafc] sm:%s3822]
        %4541 = vst [vmem:[%s3833 + $0xb08] sm:%s3822] %v4540
        %v4542 = vld [vmem:[%s3832 + $0xb00] sm:%s3822]
        %4543 = vst [vmem:[%s3833 + $0xb10] sm:%s3822] %v4542
        %v4544 = vld [vmem:[%s3832 + $0xb18] sm:%s3822]
        %4545 = vst [vmem:[%s3833 + $0xb18] sm:%s3822] %v4544
        %v4546 = vld [vmem:[%s3832 + $0xb1c] sm:%s3822]
        %4547 = vst [vmem:[%s3833 + $0xb20] sm:%s3822] %v4546
        %v4548 = vld [vmem:[%s3832 + $0xb20] sm:%s3822]
        %4549 = vst [vmem:[%s3833 + $0xb28] sm:%s3822] %v4548
        %v4550 = vld [vmem:[%s3832 + $0xb24] sm:%s3822]
        %4551 = vst [vmem:[%s3833 + $0xb30] sm:%s3822] %v4550
        %v4552 = vld [vmem:[%s3832 + $0xb28] sm:%s3822]
        %4553 = vst [vmem:[%s3833 + $0xb38] sm:%s3822] %v4552
        %v4554 = vld [vmem:[%s3832 + $0xb40] sm:%s3822]
        %4555 = vst [vmem:[%s3833 + $0xb40] sm:%s3822] %v4554
        %v4556 = vld [vmem:[%s3832 + $0xb44] sm:%s3822]
        %4557 = vst [vmem:[%s3833 + $0xb48] sm:%s3822] %v4556
        %v4558 = vld [vmem:[%s3832 + $0xb48] sm:%s3822]
        %4559 = vst [vmem:[%s3833 + $0xb50] sm:%s3822] %v4558
        %v4560 = vld [vmem:[%s3832 + $0xb4c] sm:%s3822]
        %4561 = vst [vmem:[%s3833 + $0xb58] sm:%s3822] %v4560
        %v4562 = vld [vmem:[%s3832 + $0xb50] sm:%s3822]
        %4563 = vst [vmem:[%s3833 + $0xb60] sm:%s3822] %v4562
        %v4564 = vld [vmem:[%s3832 + $0xb68] sm:%s3822]
        %4565 = vst [vmem:[%s3833 + $0xb68] sm:%s3822] %v4564
        %v4566 = vld [vmem:[%s3832 + $0xb6c] sm:%s3822]
        %4567 = vst [vmem:[%s3833 + $0xb70] sm:%s3822] %v4566
        %v4568 = vld [vmem:[%s3832 + $0xb70] sm:%s3822]
        %4569 = vst [vmem:[%s3833 + $0xb78] sm:%s3822] %v4568
        %v4570 = vld [vmem:[%s3832 + $0xb74] sm:%s3822]
        %4571 = vst [vmem:[%s3833 + $0xb80] sm:%s3822] %v4570
        %v4572 = vld [vmem:[%s3832 + $0xb78] sm:%s3822]
        %4573 = vst [vmem:[%s3833 + $0xb88] sm:%s3822] %v4572
        %v4574 = vld [vmem:[%s3832 + $0xb90] sm:%s3822]
        %4575 = vst [vmem:[%s3833 + $0xb90] sm:%s3822] %v4574
        %v4576 = vld [vmem:[%s3832 + $0xb94] sm:%s3822]
        %4577 = vst [vmem:[%s3833 + $0xb98] sm:%s3822] %v4576
        %v4578 = vld [vmem:[%s3832 + $0xb98] sm:%s3822]
        %4579 = vst [vmem:[%s3833 + $0xba0] sm:%s3822] %v4578
        %v4580 = vld [vmem:[%s3832 + $0xb9c] sm:%s3822]
        %4581 = vst [vmem:[%s3833 + $0xba8] sm:%s3822] %v4580
        %v4582 = vld [vmem:[%s3832 + $0xba0] sm:%s3822]
        %4583 = vst [vmem:[%s3833 + $0xbb0] sm:%s3822] %v4582
        %v4584 = vld [vmem:[%s3832 + $0xbb8] sm:%s3822]
        %4585 = vst [vmem:[%s3833 + $0xbb8] sm:%s3822] %v4584
        %v4586 = vld [vmem:[%s3832 + $0xbbc] sm:%s3822]
        %4587 = vst [vmem:[%s3833 + $0xbc0] sm:%s3822] %v4586
        %v4588 = vld [vmem:[%s3832 + $0xbc0] sm:%s3822]
        %4589 = vst [vmem:[%s3833 + $0xbc8] sm:%s3822] %v4588
        %v4590 = vld [vmem:[%s3832 + $0xbc4] sm:%s3822]
        %4591 = vst [vmem:[%s3833 + $0xbd0] sm:%s3822] %v4590
        %v4592 = vld [vmem:[%s3832 + $0xbc8] sm:%s3822]
        %4593 = vst [vmem:[%s3833 + $0xbd8] sm:%s3822] %v4592
        %v4594 = vld [vmem:[%s3832 + $0xbe0] sm:%s3822]
        %4595 = vst [vmem:[%s3833 + $0xbe0] sm:%s3822] %v4594
        %v4596 = vld [vmem:[%s3832 + $0xbe4] sm:%s3822]
        %4597 = vst [vmem:[%s3833 + $0xbe8] sm:%s3822] %v4596
        %v4598 = vld [vmem:[%s3832 + $0xbe8] sm:%s3822]
        %4599 = vst [vmem:[%s3833 + $0xbf0] sm:%s3822] %v4598
        %v4600 = vld [vmem:[%s3832 + $0xbec] sm:%s3822]
        %4601 = vst [vmem:[%s3833 + $0xbf8] sm:%s3822] %v4600
        %v4602 = vld [vmem:[%s3832 + $0xbf0] sm:%s3822]
        %4603 = vst [vmem:[%s3833 + $0xc00] sm:%s3822] %v4602
        %v4604 = vld [vmem:[%s3832 + $0xc08] sm:%s3822]
        %4605 = vst [vmem:[%s3833 + $0xc08] sm:%s3822] %v4604
        %v4606 = vld [vmem:[%s3832 + $0xc0c] sm:%s3822]
        %4607 = vst [vmem:[%s3833 + $0xc10] sm:%s3822] %v4606
        %v4608 = vld [vmem:[%s3832 + $0xc10] sm:%s3822]
        %4609 = vst [vmem:[%s3833 + $0xc18] sm:%s3822] %v4608
        %v4610 = vld [vmem:[%s3832 + $0xc14] sm:%s3822]
        %4611 = vst [vmem:[%s3833 + $0xc20] sm:%s3822] %v4610
        %v4612 = vld [vmem:[%s3832 + $0xc18] sm:%s3822]
        %4613 = vst [vmem:[%s3833 + $0xc28] sm:%s3822] %v4612
        %v4614 = vld [vmem:[%s3832 + $0xc30] sm:%s3822]
        %4615 = vst [vmem:[%s3833 + $0xc30] sm:%s3822] %v4614
        %v4616 = vld [vmem:[%s3832 + $0xc34] sm:%s3822]
        %4617 = vst [vmem:[%s3833 + $0xc38] sm:%s3822] %v4616
        %v4618 = vld [vmem:[%s3832 + $0xc38] sm:%s3822]
        %4619 = vst [vmem:[%s3833 + $0xc40] sm:%s3822] %v4618
        %v4620 = vld [vmem:[%s3832 + $0xc3c] sm:%s3822]
        %4621 = vst [vmem:[%s3833 + $0xc48] sm:%s3822] %v4620
        %v4622 = vld [vmem:[%s3832 + $0xc40] sm:%s3822]
        %4623 = vst [vmem:[%s3833 + $0xc50] sm:%s3822] %v4622
        %v4624 = vld [vmem:[%s3832 + $0xc58] sm:%s3822]
        %4625 = vst [vmem:[%s3833 + $0xc58] sm:%s3822] %v4624
        %v4626 = vld [vmem:[%s3832 + $0xc5c] sm:%s3822]
        %4627 = vst [vmem:[%s3833 + $0xc60] sm:%s3822] %v4626
        %v4628 = vld [vmem:[%s3832 + $0xc60] sm:%s3822]
        %4629 = vst [vmem:[%s3833 + $0xc68] sm:%s3822] %v4628
        %v4630 = vld [vmem:[%s3832 + $0xc64] sm:%s3822]
        %4631 = vst [vmem:[%s3833 + $0xc70] sm:%s3822] %v4630
        %v4632 = vld [vmem:[%s3832 + $0xc68] sm:%s3822]
        %4633 = vst [vmem:[%s3833 + $0xc78] sm:%s3822] %v4632
        %v4634 = vld [vmem:[%s3832 + $0xc80] sm:%s3822]
        %4635 = vst [vmem:[%s3833 + $0xc80] sm:%s3822] %v4634
        %v4636 = vld [vmem:[%s3832 + $0xc84] sm:%s3822]
        %4637 = vst [vmem:[%s3833 + $0xc88] sm:%s3822] %v4636
        %v4638 = vld [vmem:[%s3832 + $0xc88] sm:%s3822]
        %4639 = vst [vmem:[%s3833 + $0xc90] sm:%s3822] %v4638
        %v4640 = vld [vmem:[%s3832 + $0xc8c] sm:%s3822]
        %4641 = vst [vmem:[%s3833 + $0xc98] sm:%s3822] %v4640
        %v4642 = vld [vmem:[%s3832 + $0xc90] sm:%s3822]
        %4643 = vst [vmem:[%s3833 + $0xca0] sm:%s3822] %v4642
        %v4644 = vld [vmem:[%s3832 + $0xca8] sm:%s3822]
        %4645 = vst [vmem:[%s3833 + $0xca8] sm:%s3822] %v4644
        %v4646 = vld [vmem:[%s3832 + $0xcac] sm:%s3822]
        %4647 = vst [vmem:[%s3833 + $0xcb0] sm:%s3822] %v4646
        %v4648 = vld [vmem:[%s3832 + $0xcb0] sm:%s3822]
        %4649 = vst [vmem:[%s3833 + $0xcb8] sm:%s3822] %v4648
        %v4650 = vld [vmem:[%s3832 + $0xcb4] sm:%s3822]
        %4651 = vst [vmem:[%s3833 + $0xcc0] sm:%s3822] %v4650
        %v4652 = vld [vmem:[%s3832 + $0xcb8] sm:%s3822]
        %4653 = vst [vmem:[%s3833 + $0xcc8] sm:%s3822] %v4652
        %v4654 = vld [vmem:[%s3832 + $0xcd0] sm:%s3822]
        %4655 = vst [vmem:[%s3833 + $0xcd0] sm:%s3822] %v4654
        %v4656 = vld [vmem:[%s3832 + $0xcd4] sm:%s3822]
        %4657 = vst [vmem:[%s3833 + $0xcd8] sm:%s3822] %v4656
        %v4658 = vld [vmem:[%s3832 + $0xcd8] sm:%s3822]
        %4659 = vst [vmem:[%s3833 + $0xce0] sm:%s3822] %v4658
        %v4660 = vld [vmem:[%s3832 + $0xcdc] sm:%s3822]
        %4661 = vst [vmem:[%s3833 + $0xce8] sm:%s3822] %v4660
        %v4662 = vld [vmem:[%s3832 + $0xce0] sm:%s3822]
        %4663 = vst [vmem:[%s3833 + $0xcf0] sm:%s3822] %v4662
        %v4664 = vld [vmem:[%s3832 + $0xcf8] sm:%s3822]
        %4665 = vst [vmem:[%s3833 + $0xcf8] sm:%s3822] %v4664
        %v4666 = vld [vmem:[%s3832 + $0xcfc] sm:%s3822]
        %4667 = vst [vmem:[%s3833 + $0xd00] sm:%s3822] %v4666
        %v4668 = vld [vmem:[%s3832 + $0xd00] sm:%s3822]
        %4669 = vst [vmem:[%s3833 + $0xd08] sm:%s3822] %v4668
        %v4670 = vld [vmem:[%s3832 + $0xd04] sm:%s3822]
        %4671 = vst [vmem:[%s3833 + $0xd10] sm:%s3822] %v4670
        %v4672 = vld [vmem:[%s3832 + $0xd08] sm:%s3822]
        %4673 = vst [vmem:[%s3833 + $0xd18] sm:%s3822] %v4672
        %v4674 = vld [vmem:[%s3832 + $0xd20] sm:%s3822]
        %4675 = vst [vmem:[%s3833 + $0xd20] sm:%s3822] %v4674
        %v4676 = vld [vmem:[%s3832 + $0xd24] sm:%s3822]
        %4677 = vst [vmem:[%s3833 + $0xd28] sm:%s3822] %v4676
        %v4678 = vld [vmem:[%s3832 + $0xd28] sm:%s3822]
        %4679 = vst [vmem:[%s3833 + $0xd30] sm:%s3822] %v4678
        %v4680 = vld [vmem:[%s3832 + $0xd2c] sm:%s3822]
        %4681 = vst [vmem:[%s3833 + $0xd38] sm:%s3822] %v4680
        %v4682 = vld [vmem:[%s3832 + $0xd30] sm:%s3822]
        %4683 = vst [vmem:[%s3833 + $0xd40] sm:%s3822] %v4682
        %v4684 = vld [vmem:[%s3832 + $0xd48] sm:%s3822]
        %4685 = vst [vmem:[%s3833 + $0xd48] sm:%s3822] %v4684
        %v4686 = vld [vmem:[%s3832 + $0xd4c] sm:%s3822]
        %4687 = vst [vmem:[%s3833 + $0xd50] sm:%s3822] %v4686
        %v4688 = vld [vmem:[%s3832 + $0xd50] sm:%s3822]
        %4689 = vst [vmem:[%s3833 + $0xd58] sm:%s3822] %v4688
        %v4690 = vld [vmem:[%s3832 + $0xd54] sm:%s3822]
        %4691 = vst [vmem:[%s3833 + $0xd60] sm:%s3822] %v4690
        %v4692 = vld [vmem:[%s3832 + $0xd58] sm:%s3822]
        %4693 = vst [vmem:[%s3833 + $0xd68] sm:%s3822] %v4692
        %v4694 = vld [vmem:[%s3832 + $0xd70] sm:%s3822]
        %4695 = vst [vmem:[%s3833 + $0xd70] sm:%s3822] %v4694
        %v4696 = vld [vmem:[%s3832 + $0xd74] sm:%s3822]
        %4697 = vst [vmem:[%s3833 + $0xd78] sm:%s3822] %v4696
        %v4698 = vld [vmem:[%s3832 + $0xd78] sm:%s3822]
        %4699 = vst [vmem:[%s3833 + $0xd80] sm:%s3822] %v4698
        %v4700 = vld [vmem:[%s3832 + $0xd7c] sm:%s3822]
        %4701 = vst [vmem:[%s3833 + $0xd88] sm:%s3822] %v4700
        %v4702 = vld [vmem:[%s3832 + $0xd80] sm:%s3822]
        %4703 = vst [vmem:[%s3833 + $0xd90] sm:%s3822] %v4702
        %v4704 = vld [vmem:[%s3832 + $0xd98] sm:%s3822]
        %4705 = vst [vmem:[%s3833 + $0xd98] sm:%s3822] %v4704
        %v4706 = vld [vmem:[%s3832 + $0xd9c] sm:%s3822]
        %4707 = vst [vmem:[%s3833 + $0xda0] sm:%s3822] %v4706
        %v4708 = vld [vmem:[%s3832 + $0xda0] sm:%s3822]
        %4709 = vst [vmem:[%s3833 + $0xda8] sm:%s3822] %v4708
        %v4710 = vld [vmem:[%s3832 + $0xda4] sm:%s3822]
        %4711 = vst [vmem:[%s3833 + $0xdb0] sm:%s3822] %v4710
        %v4712 = vld [vmem:[%s3832 + $0xda8] sm:%s3822]
        %4713 = vst [vmem:[%s3833 + $0xdb8] sm:%s3822] %v4712
        %v4714 = vld [vmem:[%s3832 + $0xdc0] sm:%s3822]
        %4715 = vst [vmem:[%s3833 + $0xdc0] sm:%s3822] %v4714
        %v4716 = vld [vmem:[%s3832 + $0xdc4] sm:%s3822]
        %4717 = vst [vmem:[%s3833 + $0xdc8] sm:%s3822] %v4716
        %v4718 = vld [vmem:[%s3832 + $0xdc8] sm:%s3822]
        %4719 = vst [vmem:[%s3833 + $0xdd0] sm:%s3822] %v4718
        %v4720 = vld [vmem:[%s3832 + $0xdcc] sm:%s3822]
        %4721 = vst [vmem:[%s3833 + $0xdd8] sm:%s3822] %v4720
        %v4722 = vld [vmem:[%s3832 + $0xdd0] sm:%s3822]
        %4723 = vst [vmem:[%s3833 + $0xde0] sm:%s3822] %v4722
        %v4724 = vld [vmem:[%s3832 + $0xde8] sm:%s3822]
        %4725 = vst [vmem:[%s3833 + $0xde8] sm:%s3822] %v4724
        %v4726 = vld [vmem:[%s3832 + $0xdec] sm:%s3822]
        %4727 = vst [vmem:[%s3833 + $0xdf0] sm:%s3822] %v4726
        %v4728 = vld [vmem:[%s3832 + $0xdf0] sm:%s3822]
        %4729 = vst [vmem:[%s3833 + $0xdf8] sm:%s3822] %v4728
        %v4730 = vld [vmem:[%s3832 + $0xdf4] sm:%s3822]
        %4731 = vst [vmem:[%s3833 + $0xe00] sm:%s3822] %v4730
        %v4732 = vld [vmem:[%s3832 + $0xdf8] sm:%s3822]
        %4733 = vst [vmem:[%s3833 + $0xe08] sm:%s3822] %v4732
        %v4734 = vld [vmem:[%s3832 + $0xe10] sm:%s3822]
        %4735 = vst [vmem:[%s3833 + $0xe10] sm:%s3822] %v4734
        %v4736 = vld [vmem:[%s3832 + $0xe14] sm:%s3822]
        %4737 = vst [vmem:[%s3833 + $0xe18] sm:%s3822] %v4736
        %v4738 = vld [vmem:[%s3832 + $0xe18] sm:%s3822]
        %4739 = vst [vmem:[%s3833 + $0xe20] sm:%s3822] %v4738
        %v4740 = vld [vmem:[%s3832 + $0xe1c] sm:%s3822]
        %4741 = vst [vmem:[%s3833 + $0xe28] sm:%s3822] %v4740
        %v4742 = vld [vmem:[%s3832 + $0xe20] sm:%s3822]
        %4743 = vst [vmem:[%s3833 + $0xe30] sm:%s3822] %v4742
        %v4744 = vld [vmem:[%s3832 + $0xe38] sm:%s3822]
        %4745 = vst [vmem:[%s3833 + $0xe38] sm:%s3822] %v4744
        %v4746 = vld [vmem:[%s3832 + $0xe3c] sm:%s3822]
        %4747 = vst [vmem:[%s3833 + $0xe40] sm:%s3822] %v4746
        %v4748 = vld [vmem:[%s3832 + $0xe40] sm:%s3822]
        %4749 = vst [vmem:[%s3833 + $0xe48] sm:%s3822] %v4748
        %v4750 = vld [vmem:[%s3832 + $0xe44] sm:%s3822]
        %4751 = vst [vmem:[%s3833 + $0xe50] sm:%s3822] %v4750
        %v4752 = vld [vmem:[%s3832 + $0xe48] sm:%s3822]
        %4753 = vst [vmem:[%s3833 + $0xe58] sm:%s3822] %v4752
        %v4754 = vld [vmem:[%s3832 + $0xe60] sm:%s3822]
        %4755 = vst [vmem:[%s3833 + $0xe60] sm:%s3822] %v4754
        %v4756 = vld [vmem:[%s3832 + $0xe64] sm:%s3822]
        %4757 = vst [vmem:[%s3833 + $0xe68] sm:%s3822] %v4756
        %v4758 = vld [vmem:[%s3832 + $0xe68] sm:%s3822]
        %4759 = vst [vmem:[%s3833 + $0xe70] sm:%s3822] %v4758
        %v4760 = vld [vmem:[%s3832 + $0xe6c] sm:%s3822]
        %4761 = vst [vmem:[%s3833 + $0xe78] sm:%s3822] %v4760
        %v4762 = vld [vmem:[%s3832 + $0xe70] sm:%s3822]
        %4763 = vst [vmem:[%s3833 + $0xe80] sm:%s3822] %v4762
        %v4764 = vld [vmem:[%s3832 + $0xe88] sm:%s3822]
        %4765 = vst [vmem:[%s3833 + $0xe88] sm:%s3822] %v4764
        %v4766 = vld [vmem:[%s3832 + $0xe8c] sm:%s3822]
        %4767 = vst [vmem:[%s3833 + $0xe90] sm:%s3822] %v4766
        %v4768 = vld [vmem:[%s3832 + $0xe90] sm:%s3822]
        %4769 = vst [vmem:[%s3833 + $0xe98] sm:%s3822] %v4768
        %v4770 = vld [vmem:[%s3832 + $0xe94] sm:%s3822]
        %4771 = vst [vmem:[%s3833 + $0xea0] sm:%s3822] %v4770
        %v4772 = vld [vmem:[%s3832 + $0xe98] sm:%s3822]
        %4773 = vst [vmem:[%s3833 + $0xea8] sm:%s3822] %v4772
        %v4774 = vld [vmem:[%s3832 + $0xeb0] sm:%s3822]
        %4775 = vst [vmem:[%s3833 + $0xeb0] sm:%s3822] %v4774
        %v4776 = vld [vmem:[%s3832 + $0xeb4] sm:%s3822]
        %4777 = vst [vmem:[%s3833 + $0xeb8] sm:%s3822] %v4776
        %v4778 = vld [vmem:[%s3832 + $0xeb8] sm:%s3822]
        %4779 = vst [vmem:[%s3833 + $0xec0] sm:%s3822] %v4778
        %v4780 = vld [vmem:[%s3832 + $0xebc] sm:%s3822]
        %4781 = vst [vmem:[%s3833 + $0xec8] sm:%s3822] %v4780
        %v4782 = vld [vmem:[%s3832 + $0xec0] sm:%s3822]
        %4783 = vst [vmem:[%s3833 + $0xed0] sm:%s3822] %v4782
        %v4784 = vld [vmem:[%s3832 + $0xed8] sm:%s3822]
        %4785 = vst [vmem:[%s3833 + $0xed8] sm:%s3822] %v4784
        %v4786 = vld [vmem:[%s3832 + $0xedc] sm:%s3822]
        %4787 = vst [vmem:[%s3833 + $0xee0] sm:%s3822] %v4786
        %v4788 = vld [vmem:[%s3832 + $0xee0] sm:%s3822]
        %4789 = vst [vmem:[%s3833 + $0xee8] sm:%s3822] %v4788
        %v4790 = vld [vmem:[%s3832 + $0xee4] sm:%s3822]
        %4791 = vst [vmem:[%s3833 + $0xef0] sm:%s3822] %v4790
        %v4792 = vld [vmem:[%s3832 + $0xee8] sm:%s3822]
        %4793 = vst [vmem:[%s3833 + $0xef8] sm:%s3822] %v4792
        %v4794 = vld [vmem:[%s3832 + $0xf00] sm:%s3822]
        %4795 = vst [vmem:[%s3833 + $0xf00] sm:%s3822] %v4794
        %v4796 = vld [vmem:[%s3832 + $0xf04] sm:%s3822]
        %4797 = vst [vmem:[%s3833 + $0xf08] sm:%s3822] %v4796
        %v4798 = vld [vmem:[%s3832 + $0xf08] sm:%s3822]
        %4799 = vst [vmem:[%s3833 + $0xf10] sm:%s3822] %v4798
        %v4800 = vld [vmem:[%s3832 + $0xf0c] sm:%s3822]
        %4801 = vst [vmem:[%s3833 + $0xf18] sm:%s3822] %v4800
        %v4802 = vld [vmem:[%s3832 + $0xf10] sm:%s3822]
        %4803 = vst [vmem:[%s3833 + $0xf20] sm:%s3822] %v4802
        %v4804 = vld [vmem:[%s3832 + $0xf28] sm:%s3822]
        %4805 = vst [vmem:[%s3833 + $0xf28] sm:%s3822] %v4804
        %v4806 = vld [vmem:[%s3832 + $0xf2c] sm:%s3822]
        %4807 = vst [vmem:[%s3833 + $0xf30] sm:%s3822] %v4806
        %v4808 = vld [vmem:[%s3832 + $0xf30] sm:%s3822]
        %4809 = vst [vmem:[%s3833 + $0xf38] sm:%s3822] %v4808
        %v4810 = vld [vmem:[%s3832 + $0xf34] sm:%s3822]
        %4811 = vst [vmem:[%s3833 + $0xf40] sm:%s3822] %v4810
        %v4812 = vld [vmem:[%s3832 + $0xf38] sm:%s3822]
        %4813 = vst [vmem:[%s3833 + $0xf48] sm:%s3822] %v4812
        %v4814 = vld [vmem:[%s3832 + $0xf50] sm:%s3822]
        %4815 = vst [vmem:[%s3833 + $0xf50] sm:%s3822] %v4814
        %v4816 = vld [vmem:[%s3832 + $0xf54] sm:%s3822]
        %4817 = vst [vmem:[%s3833 + $0xf58] sm:%s3822] %v4816
        %v4818 = vld [vmem:[%s3832 + $0xf58] sm:%s3822]
        %4819 = vst [vmem:[%s3833 + $0xf60] sm:%s3822] %v4818
        %v4820 = vld [vmem:[%s3832 + $0xf5c] sm:%s3822]
        %4821 = vst [vmem:[%s3833 + $0xf68] sm:%s3822] %v4820
        %v4822 = vld [vmem:[%s3832 + $0xf60] sm:%s3822]
        %4823 = vst [vmem:[%s3833 + $0xf70] sm:%s3822] %v4822
        %v4824 = vld [vmem:[%s3832 + $0xf78] sm:%s3822]
        %4825 = vst [vmem:[%s3833 + $0xf78] sm:%s3822] %v4824
        %v4826 = vld [vmem:[%s3832 + $0xf7c] sm:%s3822]
        %4827 = vst [vmem:[%s3833 + $0xf80] sm:%s3822] %v4826
        %v4828 = vld [vmem:[%s3832 + $0xf80] sm:%s3822]
        %4829 = vst [vmem:[%s3833 + $0xf88] sm:%s3822] %v4828
        %v4830 = vld [vmem:[%s3832 + $0xf84] sm:%s3822]
        %4831 = vst [vmem:[%s3833 + $0xf90] sm:%s3822] %v4830
        %v4832 = vld [vmem:[%s3832 + $0xf88] sm:%s3822]
        %4833 = vst [vmem:[%s3833 + $0xf98] sm:%s3822] %v4832
        %v4834 = vld [vmem:[%s3832 + $0xfa0] sm:%s3822]
        %4835 = vst [vmem:[%s3833 + $0xfa0] sm:%s3822] %v4834
        %v4836 = vld [vmem:[%s3832 + $0xfa4] sm:%s3822]
        %4837 = vst [vmem:[%s3833 + $0xfa8] sm:%s3822] %v4836
        %v4838 = vld [vmem:[%s3832 + $0xfa8] sm:%s3822]
        %4839 = vst [vmem:[%s3833 + $0xfb0] sm:%s3822] %v4838
        %v4840 = vld [vmem:[%s3832 + $0xfac] sm:%s3822]
        %4841 = vst [vmem:[%s3833 + $0xfb8] sm:%s3822] %v4840
        %v4842 = vld [vmem:[%s3832 + $0xfb0] sm:%s3822]
        %4843 = vst [vmem:[%s3833 + $0xfc0] sm:%s3822] %v4842
        %v4844 = vld [vmem:[%s3832 + $0xfc8] sm:%s3822]
        %4845 = vst [vmem:[%s3833 + $0xfc8] sm:%s3822] %v4844
        %v4846 = vld [vmem:[%s3832 + $0xfcc] sm:%s3822]
        %4847 = vst [vmem:[%s3833 + $0xfd0] sm:%s3822] %v4846
        %v4848 = vld [vmem:[%s3832 + $0xfd0] sm:%s3822]
        %4849 = vst [vmem:[%s3833 + $0xfd8] sm:%s3822] %v4848
        %v4850 = vld [vmem:[%s3832 + $0xfd4] sm:%s3822]
        %4851 = vst [vmem:[%s3833 + $0xfe0] sm:%s3822] %v4850
        %v4852 = vld [vmem:[%s3832 + $0xfd8] sm:%s3822]
        %4853 = vst [vmem:[%s3833 + $0xfe8] sm:%s3822] %v4852
        %v4854 = vld [vmem:[%s3832 + $0xff0] sm:%s3822]
        %4855 = vst [vmem:[%s3833 + $0xff0] sm:%s3822] %v4854
        %v4856 = vld [vmem:[%s3832 + $0xff4] sm:%s3822]
        %4857 = vst [vmem:[%s3833 + $0xff8] sm:%s3822] %v4856
        %v4858 = vld [vmem:[%s3832 + $0xff8] sm:%s3822]
        %4859 = vst [vmem:[%s3833 + $0x1000] sm:%s3822] %v4858
        %v4860 = vld [vmem:[%s3832 + $0xffc] sm:%s3822]
        %4861 = vst [vmem:[%s3833 + $0x1008] sm:%s3822] %v4860
        %v4862 = vld [vmem:[%s3832 + $0x1000] sm:%s3822]
        %4863 = vst [vmem:[%s3833 + $0x1010] sm:%s3822] %v4862
        %v4864 = vld [vmem:[%s3832 + $0x1018] sm:%s3822]
        %4865 = vst [vmem:[%s3833 + $0x1018] sm:%s3822] %v4864
        %v4866 = vld [vmem:[%s3832 + $0x101c] sm:%s3822]
        %4867 = vst [vmem:[%s3833 + $0x1020] sm:%s3822] %v4866
        %v4868 = vld [vmem:[%s3832 + $0x1020] sm:%s3822]
        %4869 = vst [vmem:[%s3833 + $0x1028] sm:%s3822] %v4868
        %v4870 = vld [vmem:[%s3832 + $0x1024] sm:%s3822]
        %4871 = vst [vmem:[%s3833 + $0x1030] sm:%s3822] %v4870
        %v4872 = vld [vmem:[%s3832 + $0x1028] sm:%s3822]
        %4873 = vst [vmem:[%s3833 + $0x1038] sm:%s3822] %v4872
        %v4874 = vld [vmem:[%s3832 + $0x1040] sm:%s3822]
        %4875 = vst [vmem:[%s3833 + $0x1040] sm:%s3822] %v4874
        %v4876 = vld [vmem:[%s3832 + $0x1044] sm:%s3822]
        %4877 = vst [vmem:[%s3833 + $0x1048] sm:%s3822] %v4876
        %v4878 = vld [vmem:[%s3832 + $0x1048] sm:%s3822]
        %4879 = vst [vmem:[%s3833 + $0x1050] sm:%s3822] %v4878
        %v4880 = vld [vmem:[%s3832 + $0x104c] sm:%s3822]
        %4881 = vst [vmem:[%s3833 + $0x1058] sm:%s3822] %v4880
        %v4882 = vld [vmem:[%s3832 + $0x1050] sm:%s3822]
        %4883 = vst [vmem:[%s3833 + $0x1060] sm:%s3822] %v4882
        %v4884 = vld [vmem:[%s3832 + $0x1068] sm:%s3822]
        %4885 = vst [vmem:[%s3833 + $0x1068] sm:%s3822] %v4884
        %v4886 = vld [vmem:[%s3832 + $0x106c] sm:%s3822]
        %4887 = vst [vmem:[%s3833 + $0x1070] sm:%s3822] %v4886
        %v4888 = vld [vmem:[%s3832 + $0x1070] sm:%s3822]
        %4889 = vst [vmem:[%s3833 + $0x1078] sm:%s3822] %v4888
        %v4890 = vld [vmem:[%s3832 + $0x1074] sm:%s3822]
        %4891 = vst [vmem:[%s3833 + $0x1080] sm:%s3822] %v4890
        %v4892 = vld [vmem:[%s3832 + $0x1078] sm:%s3822]
        %4893 = vst [vmem:[%s3833 + $0x1088] sm:%s3822] %v4892
        %v4894 = vld [vmem:[%s3832 + $0x1090] sm:%s3822]
        %4895 = vst [vmem:[%s3833 + $0x1090] sm:%s3822] %v4894
        %v4896 = vld [vmem:[%s3832 + $0x1094] sm:%s3822]
        %4897 = vst [vmem:[%s3833 + $0x1098] sm:%s3822] %v4896
        %v4898 = vld [vmem:[%s3832 + $0x1098] sm:%s3822]
        %4899 = vst [vmem:[%s3833 + $0x10a0] sm:%s3822] %v4898
        %v4900 = vld [vmem:[%s3832 + $0x109c] sm:%s3822]
        %4901 = vst [vmem:[%s3833 + $0x10a8] sm:%s3822] %v4900
        %v4902 = vld [vmem:[%s3832 + $0x10a0] sm:%s3822]
        %4903 = vst [vmem:[%s3833 + $0x10b0] sm:%s3822] %v4902
        %v4904 = vld [vmem:[%s3832 + $0x10b8] sm:%s3822]
        %4905 = vst [vmem:[%s3833 + $0x10b8] sm:%s3822] %v4904
        %v4906 = vld [vmem:[%s3832 + $0x10bc] sm:%s3822]
        %4907 = vst [vmem:[%s3833 + $0x10c0] sm:%s3822] %v4906
        %v4908 = vld [vmem:[%s3832 + $0x10c0] sm:%s3822]
        %4909 = vst [vmem:[%s3833 + $0x10c8] sm:%s3822] %v4908
        %v4910 = vld [vmem:[%s3832 + $0x10c4] sm:%s3822]
        %4911 = vst [vmem:[%s3833 + $0x10d0] sm:%s3822] %v4910
        %v4912 = vld [vmem:[%s3832 + $0x10c8] sm:%s3822]
        %4913 = vst [vmem:[%s3833 + $0x10d8] sm:%s3822] %v4912
        %v4914 = vld [vmem:[%s3832 + $0x10e0] sm:%s3822]
        %4915 = vst [vmem:[%s3833 + $0x10e0] sm:%s3822] %v4914
        %v4916 = vld [vmem:[%s3832 + $0x10e4] sm:%s3822]
        %4917 = vst [vmem:[%s3833 + $0x10e8] sm:%s3822] %v4916
        %v4918 = vld [vmem:[%s3832 + $0x10e8] sm:%s3822]
        %4919 = vst [vmem:[%s3833 + $0x10f0] sm:%s3822] %v4918
        %v4920 = vld [vmem:[%s3832 + $0x10ec] sm:%s3822]
        %4921 = vst [vmem:[%s3833 + $0x10f8] sm:%s3822] %v4920
        %v4922 = vld [vmem:[%s3832 + $0x10f0] sm:%s3822]
        %4923 = vst [vmem:[%s3833 + $0x1100] sm:%s3822] %v4922
        %v4924 = vld [vmem:[%s3832 + $0x1108] sm:%s3822]
        %4925 = vst [vmem:[%s3833 + $0x1108] sm:%s3822] %v4924
        %v4926 = vld [vmem:[%s3832 + $0x110c] sm:%s3822]
        %4927 = vst [vmem:[%s3833 + $0x1110] sm:%s3822] %v4926
        %v4928 = vld [vmem:[%s3832 + $0x1110] sm:%s3822]
        %4929 = vst [vmem:[%s3833 + $0x1118] sm:%s3822] %v4928
        %v4930 = vld [vmem:[%s3832 + $0x1114] sm:%s3822]
        %4931 = vst [vmem:[%s3833 + $0x1120] sm:%s3822] %v4930
        %v4932 = vld [vmem:[%s3832 + $0x1118] sm:%s3822]
        %4933 = vst [vmem:[%s3833 + $0x1128] sm:%s3822] %v4932
        %v4934 = vld [vmem:[%s3832 + $0x1130] sm:%s3822]
        %4935 = vst [vmem:[%s3833 + $0x1130] sm:%s3822] %v4934
        %v4936 = vld [vmem:[%s3832 + $0x1134] sm:%s3822]
        %4937 = vst [vmem:[%s3833 + $0x1138] sm:%s3822] %v4936
        %v4938 = vld [vmem:[%s3832 + $0x1138] sm:%s3822]
        %4939 = vst [vmem:[%s3833 + $0x1140] sm:%s3822] %v4938
        %v4940 = vld [vmem:[%s3832 + $0x113c] sm:%s3822]
        %4941 = vst [vmem:[%s3833 + $0x1148] sm:%s3822] %v4940
        %v4942 = vld [vmem:[%s3832 + $0x1140] sm:%s3822]
        %4943 = vst [vmem:[%s3833 + $0x1150] sm:%s3822] %v4942
        %v4944 = vld [vmem:[%s3832 + $0x1158] sm:%s3822]
        %4945 = vst [vmem:[%s3833 + $0x1158] sm:%s3822] %v4944
        %v4946 = vld [vmem:[%s3832 + $0x115c] sm:%s3822]
        %4947 = vst [vmem:[%s3833 + $0x1160] sm:%s3822] %v4946
        %v4948 = vld [vmem:[%s3832 + $0x1160] sm:%s3822]
        %4949 = vst [vmem:[%s3833 + $0x1168] sm:%s3822] %v4948
        %v4950 = vld [vmem:[%s3832 + $0x1164] sm:%s3822]
        %4951 = vst [vmem:[%s3833 + $0x1170] sm:%s3822] %v4950
        %v4952 = vld [vmem:[%s3832 + $0x1168] sm:%s3822]
        %4953 = vst [vmem:[%s3833 + $0x1178] sm:%s3822] %v4952
        %v4954 = vld [vmem:[%s3832 + $0x1180] sm:%s3822]
        %4955 = vst [vmem:[%s3833 + $0x1180] sm:%s3822] %v4954
        %v4956 = vld [vmem:[%s3832 + $0x1184] sm:%s3822]
        %4957 = vst [vmem:[%s3833 + $0x1188] sm:%s3822] %v4956
        %v4958 = vld [vmem:[%s3832 + $0x1188] sm:%s3822]
        %4959 = vst [vmem:[%s3833 + $0x1190] sm:%s3822] %v4958
        %v4960 = vld [vmem:[%s3832 + $0x118c] sm:%s3822]
        %4961 = vst [vmem:[%s3833 + $0x1198] sm:%s3822] %v4960
        %v4962 = vld [vmem:[%s3832 + $0x1190] sm:%s3822]
        %4963 = vst [vmem:[%s3833 + $0x11a0] sm:%s3822] %v4962
        %v4964 = vld [vmem:[%s3832 + $0x11a8] sm:%s3822]
        %4965 = vst [vmem:[%s3833 + $0x11a8] sm:%s3822] %v4964
        %v4966 = vld [vmem:[%s3832 + $0x11ac] sm:%s3822]
        %4967 = vst [vmem:[%s3833 + $0x11b0] sm:%s3822] %v4966
        %v4968 = vld [vmem:[%s3832 + $0x11b0] sm:%s3822]
        %4969 = vst [vmem:[%s3833 + $0x11b8] sm:%s3822] %v4968
        %v4970 = vld [vmem:[%s3832 + $0x11b4] sm:%s3822]
        %4971 = vst [vmem:[%s3833 + $0x11c0] sm:%s3822] %v4970
        %v4972 = vld [vmem:[%s3832 + $0x11b8] sm:%s3822]
        %4973 = vst [vmem:[%s3833 + $0x11c8] sm:%s3822] %v4972
        %v4974 = vld [vmem:[%s3832 + $0x11d0] sm:%s3822]
        %4975 = vst [vmem:[%s3833 + $0x11d0] sm:%s3822] %v4974
        %v4976 = vld [vmem:[%s3832 + $0x11d4] sm:%s3822]
        %4977 = vst [vmem:[%s3833 + $0x11d8] sm:%s3822] %v4976
        %v4978 = vld [vmem:[%s3832 + $0x11d8] sm:%s3822]
        %4979 = vst [vmem:[%s3833 + $0x11e0] sm:%s3822] %v4978
        %v4980 = vld [vmem:[%s3832 + $0x11dc] sm:%s3822]
        %4981 = vst [vmem:[%s3833 + $0x11e8] sm:%s3822] %v4980
        %v4982 = vld [vmem:[%s3832 + $0x11e0] sm:%s3822]
        %4983 = vst [vmem:[%s3833 + $0x11f0] sm:%s3822] %v4982
        %v4984 = vld [vmem:[%s3832 + $0x11f8] sm:%s3822]
        %4985 = vst [vmem:[%s3833 + $0x11f8] sm:%s3822] %v4984
        %v4986 = vld [vmem:[%s3832 + $0x11fc] sm:%s3822]
        %4987 = vst [vmem:[%s3833 + $0x1200] sm:%s3822] %v4986
        %v4988 = vld [vmem:[%s3832 + $0x1200] sm:%s3822]
        %4989 = vst [vmem:[%s3833 + $0x1208] sm:%s3822] %v4988
        %v4990 = vld [vmem:[%s3832 + $0x1204] sm:%s3822]
        %4991 = vst [vmem:[%s3833 + $0x1210] sm:%s3822] %v4990
        %v4992 = vld [vmem:[%s3832 + $0x1208] sm:%s3822]
        %4993 = vst [vmem:[%s3833 + $0x1218] sm:%s3822] %v4992
        %v4994 = vld [vmem:[%s3832 + $0x1220] sm:%s3822]
        %4995 = vst [vmem:[%s3833 + $0x1220] sm:%s3822] %v4994
        %v4996 = vld [vmem:[%s3832 + $0x1224] sm:%s3822]
        %4997 = vst [vmem:[%s3833 + $0x1228] sm:%s3822] %v4996
        %v4998 = vld [vmem:[%s3832 + $0x1228] sm:%s3822]
        %4999 = vst [vmem:[%s3833 + $0x1230] sm:%s3822] %v4998
        %v5000 = vld [vmem:[%s3832 + $0x122c] sm:%s3822]
        %5001 = vst [vmem:[%s3833 + $0x1238] sm:%s3822] %v5000
        %v5002 = vld [vmem:[%s3832 + $0x1230] sm:%s3822]
        %5003 = vst [vmem:[%s3833 + $0x1240] sm:%s3822] %v5002
        %v5004 = vld [vmem:[%s3832 + $0x1248] sm:%s3822]
        %5005 = vst [vmem:[%s3833 + $0x1248] sm:%s3822] %v5004
        %v5006 = vld [vmem:[%s3832 + $0x124c] sm:%s3822]
        %5007 = vst [vmem:[%s3833 + $0x1250] sm:%s3822] %v5006
        %v5008 = vld [vmem:[%s3832 + $0x1250] sm:%s3822]
        %5009 = vst [vmem:[%s3833 + $0x1258] sm:%s3822] %v5008
        %v5010 = vld [vmem:[%s3832 + $0x1254] sm:%s3822]
        %5011 = vst [vmem:[%s3833 + $0x1260] sm:%s3822] %v5010
        %v5012 = vld [vmem:[%s3832 + $0x1258] sm:%s3822]
        %5013 = vst [vmem:[%s3833 + $0x1268] sm:%s3822] %v5012
        %v5014 = vld [vmem:[%s3832 + $0x1270] sm:%s3822]
        %5015 = vst [vmem:[%s3833 + $0x1270] sm:%s3822] %v5014
        %v5016 = vld [vmem:[%s3832 + $0x1274] sm:%s3822]
        %5017 = vst [vmem:[%s3833 + $0x1278] sm:%s3822] %v5016
        %v5018 = vld [vmem:[%s3832 + $0x1278] sm:%s3822]
        %5019 = vst [vmem:[%s3833 + $0x1280] sm:%s3822] %v5018
        %v5020 = vld [vmem:[%s3832 + $0x127c] sm:%s3822]
        %5021 = vst [vmem:[%s3833 + $0x1288] sm:%s3822] %v5020
        %v5022 = vld [vmem:[%s3832 + $0x1280] sm:%s3822]
        %5023 = vst [vmem:[%s3833 + $0x1290] sm:%s3822] %v5022
        %v5024 = vld [vmem:[%s3832 + $0x1298] sm:%s3822]
        %5025 = vst [vmem:[%s3833 + $0x1298] sm:%s3822] %v5024
        %v5026 = vld [vmem:[%s3832 + $0x129c] sm:%s3822]
        %5027 = vst [vmem:[%s3833 + $0x12a0] sm:%s3822] %v5026
        %v5028 = vld [vmem:[%s3832 + $0x12a0] sm:%s3822]
        %5029 = vst [vmem:[%s3833 + $0x12a8] sm:%s3822] %v5028
        %v5030 = vld [vmem:[%s3832 + $0x12a4] sm:%s3822]
        %5031 = vst [vmem:[%s3833 + $0x12b0] sm:%s3822] %v5030
        %v5032 = vld [vmem:[%s3832 + $0x12a8] sm:%s3822]
        %5033 = vst [vmem:[%s3833 + $0x12b8] sm:%s3822] %v5032
        %v5034 = vld [vmem:[%s3832 + $0x12c0] sm:%s3822]
        %5035 = vst [vmem:[%s3833 + $0x12c0] sm:%s3822] %v5034
        %v5036 = vld [vmem:[%s3832 + $0x12c4] sm:%s3822]
        %5037 = vst [vmem:[%s3833 + $0x12c8] sm:%s3822] %v5036
        %v5038 = vld [vmem:[%s3832 + $0x12c8] sm:%s3822]
        %5039 = vst [vmem:[%s3833 + $0x12d0] sm:%s3822] %v5038
        %v5040 = vld [vmem:[%s3832 + $0x12cc] sm:%s3822]
        %5041 = vst [vmem:[%s3833 + $0x12d8] sm:%s3822] %v5040
        %v5042 = vld [vmem:[%s3832 + $0x12d0] sm:%s3822]
        %5043 = vst [vmem:[%s3833 + $0x12e0] sm:%s3822] %v5042
        %v5044 = vld [vmem:[%s3832 + $0x12e8] sm:%s3822]
        %5045 = vst [vmem:[%s3833 + $0x12e8] sm:%s3822] %v5044
        %v5046 = vld [vmem:[%s3832 + $0x12ec] sm:%s3822]
        %5047 = vst [vmem:[%s3833 + $0x12f0] sm:%s3822] %v5046
        %v5048 = vld [vmem:[%s3832 + $0x12f0] sm:%s3822]
        %5049 = vst [vmem:[%s3833 + $0x12f8] sm:%s3822] %v5048
        %v5050 = vld [vmem:[%s3832 + $0x12f4] sm:%s3822]
        %5051 = vst [vmem:[%s3833 + $0x1300] sm:%s3822] %v5050
        %v5052 = vld [vmem:[%s3832 + $0x12f8] sm:%s3822]
        %5053 = vst [vmem:[%s3833 + $0x1308] sm:%s3822] %v5052
        %v5054 = vld [vmem:[%s3832 + $0x1310] sm:%s3822]
        %5055 = vst [vmem:[%s3833 + $0x1310] sm:%s3822] %v5054
        %v5056 = vld [vmem:[%s3832 + $0x1314] sm:%s3822]
        %5057 = vst [vmem:[%s3833 + $0x1318] sm:%s3822] %v5056
        %v5058 = vld [vmem:[%s3832 + $0x1318] sm:%s3822]
        %5059 = vst [vmem:[%s3833 + $0x1320] sm:%s3822] %v5058
        %v5060 = vld [vmem:[%s3832 + $0x131c] sm:%s3822]
        %5061 = vst [vmem:[%s3833 + $0x1328] sm:%s3822] %v5060
        %v5062 = vld [vmem:[%s3832 + $0x1320] sm:%s3822]
        %5063 = vst [vmem:[%s3833 + $0x1330] sm:%s3822] %v5062
        %s5064 = sadd.s32 1, %s3831
        %p5065 = scmp.ge.s32.totalorder %s5064, 2
        %s5066 = scalar_select %p5065, 0, %s5064
        %s5067 = smul.u32 %s5066, 20
        %s5068 = smul.u32 %s5066, 4
        %s5069 = scalar_lea.vmem %s2558, %s5067
        %s5070 = scalar_lea.vmem %s2560, %s5068 [#allocation2]
      $region71: #{discriminator_forward.1} parent=58 // loop_footer
        %s3830 = sadd.s32 1, %s3826
      $region72: #{discriminator_forward.1} parent=58 // loop_footer_branch
        %3825 = sbr.rel target = $region68
      $region73: #{discriminator_forward.1} parent=58 // loop_exit
        _
    $region59: #{discriminator_forward.1} parent=32 // pred_fallthru
      _
  $region33: #{discriminator_forward.1} parent=0 // pred_fallthru
    _
  // Predicated region
  $region34: #{discriminator_forward.1} parent=0 // pred_check
    %p35 = pneg %p31
  $region35: #{discriminator_forward.1} parent=0 // pred_check_branch
    %37 = sbr.rel (%p35) target = $region37
  $region36: #{discriminator_forward.1} parent=0 // pred_region
    %s38 = sshllo.u32 0, 4
    loop: start=0, step=1, limit=2
    $region38: #{discriminator_forward.1} parent=36 // loop_pre_header
      _
    $region39: #{discriminator_forward.1} parent=36 // loop_header
      %s42 = sphi 0, %s46
      %p43 = scmp.ge.s32.totalorder %s42, 2
      %s47 = sphi 0, %s1282
      %s48 = sphi %s4, %s1285
      %s49 = sphi [#allocation2], %s1286
    $region40: #{discriminator_forward.1} parent=36 // loop_header_branch
      %45 = sbr.rel (%p43) target = $region44
    $region41: #{discriminator_forward.1} parent=36 // loop_body
      %v50 = vld [vmem:[%s48] sm:%s38]
      %51 = vst [vmem:[%s49] sm:%s38] %v50
      %v52 = vld [vmem:[%s48 + $0x4] sm:%s38]
      %53 = vst [vmem:[%s49 + $0x8] sm:%s38] %v52
      %v54 = vld [vmem:[%s48 + $0x8] sm:%s38]
      %55 = vst [vmem:[%s49 + $0x10] sm:%s38] %v54
      %v56 = vld [vmem:[%s48 + $0xc] sm:%s38]
      %57 = vst [vmem:[%s49 + $0x18] sm:%s38] %v56
      %v58 = vld [vmem:[%s48 + $0x10] sm:%s38]
      %59 = vst [vmem:[%s49 + $0x20] sm:%s38] %v58
      %v60 = vld [vmem:[%s48 + $0x28] sm:%s38]
      %61 = vst [vmem:[%s49 + $0x28] sm:%s38] %v60
      %v62 = vld [vmem:[%s48 + $0x2c] sm:%s38]
      %63 = vst [vmem:[%s49 + $0x30] sm:%s38] %v62
      %v64 = vld [vmem:[%s48 + $0x30] sm:%s38]
      %65 = vst [vmem:[%s49 + $0x38] sm:%s38] %v64
      %v66 = vld [vmem:[%s48 + $0x34] sm:%s38]
      %67 = vst [vmem:[%s49 + $0x40] sm:%s38] %v66
      %v68 = vld [vmem:[%s48 + $0x38] sm:%s38]
      %69 = vst [vmem:[%s49 + $0x48] sm:%s38] %v68
      %v70 = vld [vmem:[%s48 + $0x50] sm:%s38]
      %71 = vst [vmem:[%s49 + $0x50] sm:%s38] %v70
      %v72 = vld [vmem:[%s48 + $0x54] sm:%s38]
      %73 = vst [vmem:[%s49 + $0x58] sm:%s38] %v72
      %v74 = vld [vmem:[%s48 + $0x58] sm:%s38]
      %75 = vst [vmem:[%s49 + $0x60] sm:%s38] %v74
      %v76 = vld [vmem:[%s48 + $0x5c] sm:%s38]
      %77 = vst [vmem:[%s49 + $0x68] sm:%s38] %v76
      %v78 = vld [vmem:[%s48 + $0x60] sm:%s38]
      %79 = vst [vmem:[%s49 + $0x70] sm:%s38] %v78
      %v80 = vld [vmem:[%s48 + $0x78] sm:%s38]
      %81 = vst [vmem:[%s49 + $0x78] sm:%s38] %v80
      %v82 = vld [vmem:[%s48 + $0x7c] sm:%s38]
      %83 = vst [vmem:[%s49 + $0x80] sm:%s38] %v82
      %v84 = vld [vmem:[%s48 + $0x80] sm:%s38]
      %85 = vst [vmem:[%s49 + $0x88] sm:%s38] %v84
      %v86 = vld [vmem:[%s48 + $0x84] sm:%s38]
      %87 = vst [vmem:[%s49 + $0x90] sm:%s38] %v86
      %v88 = vld [vmem:[%s48 + $0x88] sm:%s38]
      %89 = vst [vmem:[%s49 + $0x98] sm:%s38] %v88
      %v90 = vld [vmem:[%s48 + $0xa0] sm:%s38]
      %91 = vst [vmem:[%s49 + $0xa0] sm:%s38] %v90
      %v92 = vld [vmem:[%s48 + $0xa4] sm:%s38]
      %93 = vst [vmem:[%s49 + $0xa8] sm:%s38] %v92
      %v94 = vld [vmem:[%s48 + $0xa8] sm:%s38]
      %95 = vst [vmem:[%s49 + $0xb0] sm:%s38] %v94
      %v96 = vld [vmem:[%s48 + $0xac] sm:%s38]
      %97 = vst [vmem:[%s49 + $0xb8] sm:%s38] %v96
      %v98 = vld [vmem:[%s48 + $0xb0] sm:%s38]
      %99 = vst [vmem:[%s49 + $0xc0] sm:%s38] %v98
      %v100 = vld [vmem:[%s48 + $0xc8] sm:%s38]
      %101 = vst [vmem:[%s49 + $0xc8] sm:%s38] %v100
      %v102 = vld [vmem:[%s48 + $0xcc] sm:%s38]
      %103 = vst [vmem:[%s49 + $0xd0] sm:%s38] %v102
      %v104 = vld [vmem:[%s48 + $0xd0] sm:%s38]
      %105 = vst [vmem:[%s49 + $0xd8] sm:%s38] %v104
      %v106 = vld [vmem:[%s48 + $0xd4] sm:%s38]
      %107 = vst [vmem:[%s49 + $0xe0] sm:%s38] %v106
      %v108 = vld [vmem:[%s48 + $0xd8] sm:%s38]
      %109 = vst [vmem:[%s49 + $0xe8] sm:%s38] %v108
      %v110 = vld [vmem:[%s48 + $0xf0] sm:%s38]
      %111 = vst [vmem:[%s49 + $0xf0] sm:%s38] %v110
      %v112 = vld [vmem:[%s48 + $0xf4] sm:%s38]
      %113 = vst [vmem:[%s49 + $0xf8] sm:%s38] %v112
      %v114 = vld [vmem:[%s48 + $0xf8] sm:%s38]
      %115 = vst [vmem:[%s49 + $0x100] sm:%s38] %v114
      %v116 = vld [vmem:[%s48 + $0xfc] sm:%s38]
      %117 = vst [vmem:[%s49 + $0x108] sm:%s38] %v116
      %v118 = vld [vmem:[%s48 + $0x100] sm:%s38]
      %119 = vst [vmem:[%s49 + $0x110] sm:%s38] %v118
      %v120 = vld [vmem:[%s48 + $0x118] sm:%s38]
      %121 = vst [vmem:[%s49 + $0x118] sm:%s38] %v120
      %v122 = vld [vmem:[%s48 + $0x11c] sm:%s38]
      %123 = vst [vmem:[%s49 + $0x120] sm:%s38] %v122
      %v124 = vld [vmem:[%s48 + $0x120] sm:%s38]
      %125 = vst [vmem:[%s49 + $0x128] sm:%s38] %v124
      %v126 = vld [vmem:[%s48 + $0x124] sm:%s38]
      %127 = vst [vmem:[%s49 + $0x130] sm:%s38] %v126
      %v128 = vld [vmem:[%s48 + $0x128] sm:%s38]
      %129 = vst [vmem:[%s49 + $0x138] sm:%s38] %v128
      %v130 = vld [vmem:[%s48 + $0x140] sm:%s38]
      %131 = vst [vmem:[%s49 + $0x140] sm:%s38] %v130
      %v132 = vld [vmem:[%s48 + $0x144] sm:%s38]
      %133 = vst [vmem:[%s49 + $0x148] sm:%s38] %v132
      %v134 = vld [vmem:[%s48 + $0x148] sm:%s38]
      %135 = vst [vmem:[%s49 + $0x150] sm:%s38] %v134
      %v136 = vld [vmem:[%s48 + $0x14c] sm:%s38]
      %137 = vst [vmem:[%s49 + $0x158] sm:%s38] %v136
      %v138 = vld [vmem:[%s48 + $0x150] sm:%s38]
      %139 = vst [vmem:[%s49 + $0x160] sm:%s38] %v138
      %v140 = vld [vmem:[%s48 + $0x168] sm:%s38]
      %141 = vst [vmem:[%s49 + $0x168] sm:%s38] %v140
      %v142 = vld [vmem:[%s48 + $0x16c] sm:%s38]
      %143 = vst [vmem:[%s49 + $0x170] sm:%s38] %v142
      %v144 = vld [vmem:[%s48 + $0x170] sm:%s38]
      %145 = vst [vmem:[%s49 + $0x178] sm:%s38] %v144
      %v146 = vld [vmem:[%s48 + $0x174] sm:%s38]
      %147 = vst [vmem:[%s49 + $0x180] sm:%s38] %v146
      %v148 = vld [vmem:[%s48 + $0x178] sm:%s38]
      %149 = vst [vmem:[%s49 + $0x188] sm:%s38] %v148
      %v150 = vld [vmem:[%s48 + $0x190] sm:%s38]
      %151 = vst [vmem:[%s49 + $0x190] sm:%s38] %v150
      %v152 = vld [vmem:[%s48 + $0x194] sm:%s38]
      %153 = vst [vmem:[%s49 + $0x198] sm:%s38] %v152
      %v154 = vld [vmem:[%s48 + $0x198] sm:%s38]
      %155 = vst [vmem:[%s49 + $0x1a0] sm:%s38] %v154
      %v156 = vld [vmem:[%s48 + $0x19c] sm:%s38]
      %157 = vst [vmem:[%s49 + $0x1a8] sm:%s38] %v156
      %v158 = vld [vmem:[%s48 + $0x1a0] sm:%s38]
      %159 = vst [vmem:[%s49 + $0x1b0] sm:%s38] %v158
      %v160 = vld [vmem:[%s48 + $0x1b8] sm:%s38]
      %161 = vst [vmem:[%s49 + $0x1b8] sm:%s38] %v160
      %v162 = vld [vmem:[%s48 + $0x1bc] sm:%s38]
      %163 = vst [vmem:[%s49 + $0x1c0] sm:%s38] %v162
      %v164 = vld [vmem:[%s48 + $0x1c0] sm:%s38]
      %165 = vst [vmem:[%s49 + $0x1c8] sm:%s38] %v164
      %v166 = vld [vmem:[%s48 + $0x1c4] sm:%s38]
      %167 = vst [vmem:[%s49 + $0x1d0] sm:%s38] %v166
      %v168 = vld [vmem:[%s48 + $0x1c8] sm:%s38]
      %169 = vst [vmem:[%s49 + $0x1d8] sm:%s38] %v168
      %v170 = vld [vmem:[%s48 + $0x1e0] sm:%s38]
      %171 = vst [vmem:[%s49 + $0x1e0] sm:%s38] %v170
      %v172 = vld [vmem:[%s48 + $0x1e4] sm:%s38]
      %173 = vst [vmem:[%s49 + $0x1e8] sm:%s38] %v172
      %v174 = vld [vmem:[%s48 + $0x1e8] sm:%s38]
      %175 = vst [vmem:[%s49 + $0x1f0] sm:%s38] %v174
      %v176 = vld [vmem:[%s48 + $0x1ec] sm:%s38]
      %177 = vst [vmem:[%s49 + $0x1f8] sm:%s38] %v176
      %v178 = vld [vmem:[%s48 + $0x1f0] sm:%s38]
      %179 = vst [vmem:[%s49 + $0x200] sm:%s38] %v178
      %v180 = vld [vmem:[%s48 + $0x208] sm:%s38]
      %181 = vst [vmem:[%s49 + $0x208] sm:%s38] %v180
      %v182 = vld [vmem:[%s48 + $0x20c] sm:%s38]
      %183 = vst [vmem:[%s49 + $0x210] sm:%s38] %v182
      %v184 = vld [vmem:[%s48 + $0x210] sm:%s38]
      %185 = vst [vmem:[%s49 + $0x218] sm:%s38] %v184
      %v186 = vld [vmem:[%s48 + $0x214] sm:%s38]
      %187 = vst [vmem:[%s49 + $0x220] sm:%s38] %v186
      %v188 = vld [vmem:[%s48 + $0x218] sm:%s38]
      %189 = vst [vmem:[%s49 + $0x228] sm:%s38] %v188
      %v190 = vld [vmem:[%s48 + $0x230] sm:%s38]
      %191 = vst [vmem:[%s49 + $0x230] sm:%s38] %v190
      %v192 = vld [vmem:[%s48 + $0x234] sm:%s38]
      %193 = vst [vmem:[%s49 + $0x238] sm:%s38] %v192
      %v194 = vld [vmem:[%s48 + $0x238] sm:%s38]
      %195 = vst [vmem:[%s49 + $0x240] sm:%s38] %v194
      %v196 = vld [vmem:[%s48 + $0x23c] sm:%s38]
      %197 = vst [vmem:[%s49 + $0x248] sm:%s38] %v196
      %v198 = vld [vmem:[%s48 + $0x240] sm:%s38]
      %199 = vst [vmem:[%s49 + $0x250] sm:%s38] %v198
      %v200 = vld [vmem:[%s48 + $0x258] sm:%s38]
      %201 = vst [vmem:[%s49 + $0x258] sm:%s38] %v200
      %v202 = vld [vmem:[%s48 + $0x25c] sm:%s38]
      %203 = vst [vmem:[%s49 + $0x260] sm:%s38] %v202
      %v204 = vld [vmem:[%s48 + $0x260] sm:%s38]
      %205 = vst [vmem:[%s49 + $0x268] sm:%s38] %v204
      %v206 = vld [vmem:[%s48 + $0x264] sm:%s38]
      %207 = vst [vmem:[%s49 + $0x270] sm:%s38] %v206
      %v208 = vld [vmem:[%s48 + $0x268] sm:%s38]
      %209 = vst [vmem:[%s49 + $0x278] sm:%s38] %v208
      %v210 = vld [vmem:[%s48 + $0x280] sm:%s38]
      %211 = vst [vmem:[%s49 + $0x280] sm:%s38] %v210
      %v212 = vld [vmem:[%s48 + $0x284] sm:%s38]
      %213 = vst [vmem:[%s49 + $0x288] sm:%s38] %v212
      %v214 = vld [vmem:[%s48 + $0x288] sm:%s38]
      %215 = vst [vmem:[%s49 + $0x290] sm:%s38] %v214
      %v216 = vld [vmem:[%s48 + $0x28c] sm:%s38]
      %217 = vst [vmem:[%s49 + $0x298] sm:%s38] %v216
      %v218 = vld [vmem:[%s48 + $0x290] sm:%s38]
      %219 = vst [vmem:[%s49 + $0x2a0] sm:%s38] %v218
      %v220 = vld [vmem:[%s48 + $0x2a8] sm:%s38]
      %221 = vst [vmem:[%s49 + $0x2a8] sm:%s38] %v220
      %v222 = vld [vmem:[%s48 + $0x2ac] sm:%s38]
      %223 = vst [vmem:[%s49 + $0x2b0] sm:%s38] %v222
      %v224 = vld [vmem:[%s48 + $0x2b0] sm:%s38]
      %225 = vst [vmem:[%s49 + $0x2b8] sm:%s38] %v224
      %v226 = vld [vmem:[%s48 + $0x2b4] sm:%s38]
      %227 = vst [vmem:[%s49 + $0x2c0] sm:%s38] %v226
      %v228 = vld [vmem:[%s48 + $0x2b8] sm:%s38]
      %229 = vst [vmem:[%s49 + $0x2c8] sm:%s38] %v228
      %v230 = vld [vmem:[%s48 + $0x2d0] sm:%s38]
      %231 = vst [vmem:[%s49 + $0x2d0] sm:%s38] %v230
      %v232 = vld [vmem:[%s48 + $0x2d4] sm:%s38]
      %233 = vst [vmem:[%s49 + $0x2d8] sm:%s38] %v232
      %v234 = vld [vmem:[%s48 + $0x2d8] sm:%s38]
      %235 = vst [vmem:[%s49 + $0x2e0] sm:%s38] %v234
      %v236 = vld [vmem:[%s48 + $0x2dc] sm:%s38]
      %237 = vst [vmem:[%s49 + $0x2e8] sm:%s38] %v236
      %v238 = vld [vmem:[%s48 + $0x2e0] sm:%s38]
      %239 = vst [vmem:[%s49 + $0x2f0] sm:%s38] %v238
      %v240 = vld [vmem:[%s48 + $0x2f8] sm:%s38]
      %241 = vst [vmem:[%s49 + $0x2f8] sm:%s38] %v240
      %v242 = vld [vmem:[%s48 + $0x2fc] sm:%s38]
      %243 = vst [vmem:[%s49 + $0x300] sm:%s38] %v242
      %v244 = vld [vmem:[%s48 + $0x300] sm:%s38]
      %245 = vst [vmem:[%s49 + $0x308] sm:%s38] %v244
      %v246 = vld [vmem:[%s48 + $0x304] sm:%s38]
      %247 = vst [vmem:[%s49 + $0x310] sm:%s38] %v246
      %v248 = vld [vmem:[%s48 + $0x308] sm:%s38]
      %249 = vst [vmem:[%s49 + $0x318] sm:%s38] %v248
      %v250 = vld [vmem:[%s48 + $0x320] sm:%s38]
      %251 = vst [vmem:[%s49 + $0x320] sm:%s38] %v250
      %v252 = vld [vmem:[%s48 + $0x324] sm:%s38]
      %253 = vst [vmem:[%s49 + $0x328] sm:%s38] %v252
      %v254 = vld [vmem:[%s48 + $0x328] sm:%s38]
      %255 = vst [vmem:[%s49 + $0x330] sm:%s38] %v254
      %v256 = vld [vmem:[%s48 + $0x32c] sm:%s38]
      %257 = vst [vmem:[%s49 + $0x338] sm:%s38] %v256
      %v258 = vld [vmem:[%s48 + $0x330] sm:%s38]
      %259 = vst [vmem:[%s49 + $0x340] sm:%s38] %v258
      %v260 = vld [vmem:[%s48 + $0x348] sm:%s38]
      %261 = vst [vmem:[%s49 + $0x348] sm:%s38] %v260
      %v262 = vld [vmem:[%s48 + $0x34c] sm:%s38]
      %263 = vst [vmem:[%s49 + $0x350] sm:%s38] %v262
      %v264 = vld [vmem:[%s48 + $0x350] sm:%s38]
      %265 = vst [vmem:[%s49 + $0x358] sm:%s38] %v264
      %v266 = vld [vmem:[%s48 + $0x354] sm:%s38]
      %267 = vst [vmem:[%s49 + $0x360] sm:%s38] %v266
      %v268 = vld [vmem:[%s48 + $0x358] sm:%s38]
      %269 = vst [vmem:[%s49 + $0x368] sm:%s38] %v268
      %v270 = vld [vmem:[%s48 + $0x370] sm:%s38]
      %271 = vst [vmem:[%s49 + $0x370] sm:%s38] %v270
      %v272 = vld [vmem:[%s48 + $0x374] sm:%s38]
      %273 = vst [vmem:[%s49 + $0x378] sm:%s38] %v272
      %v274 = vld [vmem:[%s48 + $0x378] sm:%s38]
      %275 = vst [vmem:[%s49 + $0x380] sm:%s38] %v274
      %v276 = vld [vmem:[%s48 + $0x37c] sm:%s38]
      %277 = vst [vmem:[%s49 + $0x388] sm:%s38] %v276
      %v278 = vld [vmem:[%s48 + $0x380] sm:%s38]
      %279 = vst [vmem:[%s49 + $0x390] sm:%s38] %v278
      %v280 = vld [vmem:[%s48 + $0x398] sm:%s38]
      %281 = vst [vmem:[%s49 + $0x398] sm:%s38] %v280
      %v282 = vld [vmem:[%s48 + $0x39c] sm:%s38]
      %283 = vst [vmem:[%s49 + $0x3a0] sm:%s38] %v282
      %v284 = vld [vmem:[%s48 + $0x3a0] sm:%s38]
      %285 = vst [vmem:[%s49 + $0x3a8] sm:%s38] %v284
      %v286 = vld [vmem:[%s48 + $0x3a4] sm:%s38]
      %287 = vst [vmem:[%s49 + $0x3b0] sm:%s38] %v286
      %v288 = vld [vmem:[%s48 + $0x3a8] sm:%s38]
      %289 = vst [vmem:[%s49 + $0x3b8] sm:%s38] %v288
      %v290 = vld [vmem:[%s48 + $0x3c0] sm:%s38]
      %291 = vst [vmem:[%s49 + $0x3c0] sm:%s38] %v290
      %v292 = vld [vmem:[%s48 + $0x3c4] sm:%s38]
      %293 = vst [vmem:[%s49 + $0x3c8] sm:%s38] %v292
      %v294 = vld [vmem:[%s48 + $0x3c8] sm:%s38]
      %295 = vst [vmem:[%s49 + $0x3d0] sm:%s38] %v294
      %v296 = vld [vmem:[%s48 + $0x3cc] sm:%s38]
      %297 = vst [vmem:[%s49 + $0x3d8] sm:%s38] %v296
      %v298 = vld [vmem:[%s48 + $0x3d0] sm:%s38]
      %299 = vst [vmem:[%s49 + $0x3e0] sm:%s38] %v298
      %v300 = vld [vmem:[%s48 + $0x3e8] sm:%s38]
      %301 = vst [vmem:[%s49 + $0x3e8] sm:%s38] %v300
      %v302 = vld [vmem:[%s48 + $0x3ec] sm:%s38]
      %303 = vst [vmem:[%s49 + $0x3f0] sm:%s38] %v302
      %v304 = vld [vmem:[%s48 + $0x3f0] sm:%s38]
      %305 = vst [vmem:[%s49 + $0x3f8] sm:%s38] %v304
      %v306 = vld [vmem:[%s48 + $0x3f4] sm:%s38]
      %307 = vst [vmem:[%s49 + $0x400] sm:%s38] %v306
      %v308 = vld [vmem:[%s48 + $0x3f8] sm:%s38]
      %309 = vst [vmem:[%s49 + $0x408] sm:%s38] %v308
      %v310 = vld [vmem:[%s48 + $0x410] sm:%s38]
      %311 = vst [vmem:[%s49 + $0x410] sm:%s38] %v310
      %v312 = vld [vmem:[%s48 + $0x414] sm:%s38]
      %313 = vst [vmem:[%s49 + $0x418] sm:%s38] %v312
      %v314 = vld [vmem:[%s48 + $0x418] sm:%s38]
      %315 = vst [vmem:[%s49 + $0x420] sm:%s38] %v314
      %v316 = vld [vmem:[%s48 + $0x41c] sm:%s38]
      %317 = vst [vmem:[%s49 + $0x428] sm:%s38] %v316
      %v318 = vld [vmem:[%s48 + $0x420] sm:%s38]
      %319 = vst [vmem:[%s49 + $0x430] sm:%s38] %v318
      %v320 = vld [vmem:[%s48 + $0x438] sm:%s38]
      %321 = vst [vmem:[%s49 + $0x438] sm:%s38] %v320
      %v322 = vld [vmem:[%s48 + $0x43c] sm:%s38]
      %323 = vst [vmem:[%s49 + $0x440] sm:%s38] %v322
      %v324 = vld [vmem:[%s48 + $0x440] sm:%s38]
      %325 = vst [vmem:[%s49 + $0x448] sm:%s38] %v324
      %v326 = vld [vmem:[%s48 + $0x444] sm:%s38]
      %327 = vst [vmem:[%s49 + $0x450] sm:%s38] %v326
      %v328 = vld [vmem:[%s48 + $0x448] sm:%s38]
      %329 = vst [vmem:[%s49 + $0x458] sm:%s38] %v328
      %v330 = vld [vmem:[%s48 + $0x460] sm:%s38]
      %331 = vst [vmem:[%s49 + $0x460] sm:%s38] %v330
      %v332 = vld [vmem:[%s48 + $0x464] sm:%s38]
      %333 = vst [vmem:[%s49 + $0x468] sm:%s38] %v332
      %v334 = vld [vmem:[%s48 + $0x468] sm:%s38]
      %335 = vst [vmem:[%s49 + $0x470] sm:%s38] %v334
      %v336 = vld [vmem:[%s48 + $0x46c] sm:%s38]
      %337 = vst [vmem:[%s49 + $0x478] sm:%s38] %v336
      %v338 = vld [vmem:[%s48 + $0x470] sm:%s38]
      %339 = vst [vmem:[%s49 + $0x480] sm:%s38] %v338
      %v340 = vld [vmem:[%s48 + $0x488] sm:%s38]
      %341 = vst [vmem:[%s49 + $0x488] sm:%s38] %v340
      %v342 = vld [vmem:[%s48 + $0x48c] sm:%s38]
      %343 = vst [vmem:[%s49 + $0x490] sm:%s38] %v342
      %v344 = vld [vmem:[%s48 + $0x490] sm:%s38]
      %345 = vst [vmem:[%s49 + $0x498] sm:%s38] %v344
      %v346 = vld [vmem:[%s48 + $0x494] sm:%s38]
      %347 = vst [vmem:[%s49 + $0x4a0] sm:%s38] %v346
      %v348 = vld [vmem:[%s48 + $0x498] sm:%s38]
      %349 = vst [vmem:[%s49 + $0x4a8] sm:%s38] %v348
      %v350 = vld [vmem:[%s48 + $0x4b0] sm:%s38]
      %351 = vst [vmem:[%s49 + $0x4b0] sm:%s38] %v350
      %v352 = vld [vmem:[%s48 + $0x4b4] sm:%s38]
      %353 = vst [vmem:[%s49 + $0x4b8] sm:%s38] %v352
      %v354 = vld [vmem:[%s48 + $0x4b8] sm:%s38]
      %355 = vst [vmem:[%s49 + $0x4c0] sm:%s38] %v354
      %v356 = vld [vmem:[%s48 + $0x4bc] sm:%s38]
      %357 = vst [vmem:[%s49 + $0x4c8] sm:%s38] %v356
      %v358 = vld [vmem:[%s48 + $0x4c0] sm:%s38]
      %359 = vst [vmem:[%s49 + $0x4d0] sm:%s38] %v358
      %v360 = vld [vmem:[%s48 + $0x4d8] sm:%s38]
      %361 = vst [vmem:[%s49 + $0x4d8] sm:%s38] %v360
      %v362 = vld [vmem:[%s48 + $0x4dc] sm:%s38]
      %363 = vst [vmem:[%s49 + $0x4e0] sm:%s38] %v362
      %v364 = vld [vmem:[%s48 + $0x4e0] sm:%s38]
      %365 = vst [vmem:[%s49 + $0x4e8] sm:%s38] %v364
      %v366 = vld [vmem:[%s48 + $0x4e4] sm:%s38]
      %367 = vst [vmem:[%s49 + $0x4f0] sm:%s38] %v366
      %v368 = vld [vmem:[%s48 + $0x4e8] sm:%s38]
      %369 = vst [vmem:[%s49 + $0x4f8] sm:%s38] %v368
      %v370 = vld [vmem:[%s48 + $0x500] sm:%s38]
      %371 = vst [vmem:[%s49 + $0x500] sm:%s38] %v370
      %v372 = vld [vmem:[%s48 + $0x504] sm:%s38]
      %373 = vst [vmem:[%s49 + $0x508] sm:%s38] %v372
      %v374 = vld [vmem:[%s48 + $0x508] sm:%s38]
      %375 = vst [vmem:[%s49 + $0x510] sm:%s38] %v374
      %v376 = vld [vmem:[%s48 + $0x50c] sm:%s38]
      %377 = vst [vmem:[%s49 + $0x518] sm:%s38] %v376
      %v378 = vld [vmem:[%s48 + $0x510] sm:%s38]
      %379 = vst [vmem:[%s49 + $0x520] sm:%s38] %v378
      %v380 = vld [vmem:[%s48 + $0x528] sm:%s38]
      %381 = vst [vmem:[%s49 + $0x528] sm:%s38] %v380
      %v382 = vld [vmem:[%s48 + $0x52c] sm:%s38]
      %383 = vst [vmem:[%s49 + $0x530] sm:%s38] %v382
      %v384 = vld [vmem:[%s48 + $0x530] sm:%s38]
      %385 = vst [vmem:[%s49 + $0x538] sm:%s38] %v384
      %v386 = vld [vmem:[%s48 + $0x534] sm:%s38]
      %387 = vst [vmem:[%s49 + $0x540] sm:%s38] %v386
      %v388 = vld [vmem:[%s48 + $0x538] sm:%s38]
      %389 = vst [vmem:[%s49 + $0x548] sm:%s38] %v388
      %v390 = vld [vmem:[%s48 + $0x550] sm:%s38]
      %391 = vst [vmem:[%s49 + $0x550] sm:%s38] %v390
      %v392 = vld [vmem:[%s48 + $0x554] sm:%s38]
      %393 = vst [vmem:[%s49 + $0x558] sm:%s38] %v392
      %v394 = vld [vmem:[%s48 + $0x558] sm:%s38]
      %395 = vst [vmem:[%s49 + $0x560] sm:%s38] %v394
      %v396 = vld [vmem:[%s48 + $0x55c] sm:%s38]
      %397 = vst [vmem:[%s49 + $0x568] sm:%s38] %v396
      %v398 = vld [vmem:[%s48 + $0x560] sm:%s38]
      %399 = vst [vmem:[%s49 + $0x570] sm:%s38] %v398
      %v400 = vld [vmem:[%s48 + $0x578] sm:%s38]
      %401 = vst [vmem:[%s49 + $0x578] sm:%s38] %v400
      %v402 = vld [vmem:[%s48 + $0x57c] sm:%s38]
      %403 = vst [vmem:[%s49 + $0x580] sm:%s38] %v402
      %v404 = vld [vmem:[%s48 + $0x580] sm:%s38]
      %405 = vst [vmem:[%s49 + $0x588] sm:%s38] %v404
      %v406 = vld [vmem:[%s48 + $0x584] sm:%s38]
      %407 = vst [vmem:[%s49 + $0x590] sm:%s38] %v406
      %v408 = vld [vmem:[%s48 + $0x588] sm:%s38]
      %409 = vst [vmem:[%s49 + $0x598] sm:%s38] %v408
      %v410 = vld [vmem:[%s48 + $0x5a0] sm:%s38]
      %411 = vst [vmem:[%s49 + $0x5a0] sm:%s38] %v410
      %v412 = vld [vmem:[%s48 + $0x5a4] sm:%s38]
      %413 = vst [vmem:[%s49 + $0x5a8] sm:%s38] %v412
      %v414 = vld [vmem:[%s48 + $0x5a8] sm:%s38]
      %415 = vst [vmem:[%s49 + $0x5b0] sm:%s38] %v414
      %v416 = vld [vmem:[%s48 + $0x5ac] sm:%s38]
      %417 = vst [vmem:[%s49 + $0x5b8] sm:%s38] %v416
      %v418 = vld [vmem:[%s48 + $0x5b0] sm:%s38]
      %419 = vst [vmem:[%s49 + $0x5c0] sm:%s38] %v418
      %v420 = vld [vmem:[%s48 + $0x5c8] sm:%s38]
      %421 = vst [vmem:[%s49 + $0x5c8] sm:%s38] %v420
      %v422 = vld [vmem:[%s48 + $0x5cc] sm:%s38]
      %423 = vst [vmem:[%s49 + $0x5d0] sm:%s38] %v422
      %v424 = vld [vmem:[%s48 + $0x5d0] sm:%s38]
      %425 = vst [vmem:[%s49 + $0x5d8] sm:%s38] %v424
      %v426 = vld [vmem:[%s48 + $0x5d4] sm:%s38]
      %427 = vst [vmem:[%s49 + $0x5e0] sm:%s38] %v426
      %v428 = vld [vmem:[%s48 + $0x5d8] sm:%s38]
      %429 = vst [vmem:[%s49 + $0x5e8] sm:%s38] %v428
      %v430 = vld [vmem:[%s48 + $0x5f0] sm:%s38]
      %431 = vst [vmem:[%s49 + $0x5f0] sm:%s38] %v430
      %v432 = vld [vmem:[%s48 + $0x5f4] sm:%s38]
      %433 = vst [vmem:[%s49 + $0x5f8] sm:%s38] %v432
      %v434 = vld [vmem:[%s48 + $0x5f8] sm:%s38]
      %435 = vst [vmem:[%s49 + $0x600] sm:%s38] %v434
      %v436 = vld [vmem:[%s48 + $0x5fc] sm:%s38]
      %437 = vst [vmem:[%s49 + $0x608] sm:%s38] %v436
      %v438 = vld [vmem:[%s48 + $0x600] sm:%s38]
      %439 = vst [vmem:[%s49 + $0x610] sm:%s38] %v438
      %v440 = vld [vmem:[%s48 + $0x618] sm:%s38]
      %441 = vst [vmem:[%s49 + $0x618] sm:%s38] %v440
      %v442 = vld [vmem:[%s48 + $0x61c] sm:%s38]
      %443 = vst [vmem:[%s49 + $0x620] sm:%s38] %v442
      %v444 = vld [vmem:[%s48 + $0x620] sm:%s38]
      %445 = vst [vmem:[%s49 + $0x628] sm:%s38] %v444
      %v446 = vld [vmem:[%s48 + $0x624] sm:%s38]
      %447 = vst [vmem:[%s49 + $0x630] sm:%s38] %v446
      %v448 = vld [vmem:[%s48 + $0x628] sm:%s38]
      %449 = vst [vmem:[%s49 + $0x638] sm:%s38] %v448
      %v450 = vld [vmem:[%s48 + $0x640] sm:%s38]
      %451 = vst [vmem:[%s49 + $0x640] sm:%s38] %v450
      %v452 = vld [vmem:[%s48 + $0x644] sm:%s38]
      %453 = vst [vmem:[%s49 + $0x648] sm:%s38] %v452
      %v454 = vld [vmem:[%s48 + $0x648] sm:%s38]
      %455 = vst [vmem:[%s49 + $0x650] sm:%s38] %v454
      %v456 = vld [vmem:[%s48 + $0x64c] sm:%s38]
      %457 = vst [vmem:[%s49 + $0x658] sm:%s38] %v456
      %v458 = vld [vmem:[%s48 + $0x650] sm:%s38]
      %459 = vst [vmem:[%s49 + $0x660] sm:%s38] %v458
      %v460 = vld [vmem:[%s48 + $0x668] sm:%s38]
      %461 = vst [vmem:[%s49 + $0x668] sm:%s38] %v460
      %v462 = vld [vmem:[%s48 + $0x66c] sm:%s38]
      %463 = vst [vmem:[%s49 + $0x670] sm:%s38] %v462
      %v464 = vld [vmem:[%s48 + $0x670] sm:%s38]
      %465 = vst [vmem:[%s49 + $0x678] sm:%s38] %v464
      %v466 = vld [vmem:[%s48 + $0x674] sm:%s38]
      %467 = vst [vmem:[%s49 + $0x680] sm:%s38] %v466
      %v468 = vld [vmem:[%s48 + $0x678] sm:%s38]
      %469 = vst [vmem:[%s49 + $0x688] sm:%s38] %v468
      %v470 = vld [vmem:[%s48 + $0x690] sm:%s38]
      %471 = vst [vmem:[%s49 + $0x690] sm:%s38] %v470
      %v472 = vld [vmem:[%s48 + $0x694] sm:%s38]
      %473 = vst [vmem:[%s49 + $0x698] sm:%s38] %v472
      %v474 = vld [vmem:[%s48 + $0x698] sm:%s38]
      %475 = vst [vmem:[%s49 + $0x6a0] sm:%s38] %v474
      %v476 = vld [vmem:[%s48 + $0x69c] sm:%s38]
      %477 = vst [vmem:[%s49 + $0x6a8] sm:%s38] %v476
      %v478 = vld [vmem:[%s48 + $0x6a0] sm:%s38]
      %479 = vst [vmem:[%s49 + $0x6b0] sm:%s38] %v478
      %v480 = vld [vmem:[%s48 + $0x6b8] sm:%s38]
      %481 = vst [vmem:[%s49 + $0x6b8] sm:%s38] %v480
      %v482 = vld [vmem:[%s48 + $0x6bc] sm:%s38]
      %483 = vst [vmem:[%s49 + $0x6c0] sm:%s38] %v482
      %v484 = vld [vmem:[%s48 + $0x6c0] sm:%s38]
      %485 = vst [vmem:[%s49 + $0x6c8] sm:%s38] %v484
      %v486 = vld [vmem:[%s48 + $0x6c4] sm:%s38]
      %487 = vst [vmem:[%s49 + $0x6d0] sm:%s38] %v486
      %v488 = vld [vmem:[%s48 + $0x6c8] sm:%s38]
      %489 = vst [vmem:[%s49 + $0x6d8] sm:%s38] %v488
      %v490 = vld [vmem:[%s48 + $0x6e0] sm:%s38]
      %491 = vst [vmem:[%s49 + $0x6e0] sm:%s38] %v490
      %v492 = vld [vmem:[%s48 + $0x6e4] sm:%s38]
      %493 = vst [vmem:[%s49 + $0x6e8] sm:%s38] %v492
      %v494 = vld [vmem:[%s48 + $0x6e8] sm:%s38]
      %495 = vst [vmem:[%s49 + $0x6f0] sm:%s38] %v494
      %v496 = vld [vmem:[%s48 + $0x6ec] sm:%s38]
      %497 = vst [vmem:[%s49 + $0x6f8] sm:%s38] %v496
      %v498 = vld [vmem:[%s48 + $0x6f0] sm:%s38]
      %499 = vst [vmem:[%s49 + $0x700] sm:%s38] %v498
      %v500 = vld [vmem:[%s48 + $0x708] sm:%s38]
      %501 = vst [vmem:[%s49 + $0x708] sm:%s38] %v500
      %v502 = vld [vmem:[%s48 + $0x70c] sm:%s38]
      %503 = vst [vmem:[%s49 + $0x710] sm:%s38] %v502
      %v504 = vld [vmem:[%s48 + $0x710] sm:%s38]
      %505 = vst [vmem:[%s49 + $0x718] sm:%s38] %v504
      %v506 = vld [vmem:[%s48 + $0x714] sm:%s38]
      %507 = vst [vmem:[%s49 + $0x720] sm:%s38] %v506
      %v508 = vld [vmem:[%s48 + $0x718] sm:%s38]
      %509 = vst [vmem:[%s49 + $0x728] sm:%s38] %v508
      %v510 = vld [vmem:[%s48 + $0x730] sm:%s38]
      %511 = vst [vmem:[%s49 + $0x730] sm:%s38] %v510
      %v512 = vld [vmem:[%s48 + $0x734] sm:%s38]
      %513 = vst [vmem:[%s49 + $0x738] sm:%s38] %v512
      %v514 = vld [vmem:[%s48 + $0x738] sm:%s38]
      %515 = vst [vmem:[%s49 + $0x740] sm:%s38] %v514
      %v516 = vld [vmem:[%s48 + $0x73c] sm:%s38]
      %517 = vst [vmem:[%s49 + $0x748] sm:%s38] %v516
      %v518 = vld [vmem:[%s48 + $0x740] sm:%s38]
      %519 = vst [vmem:[%s49 + $0x750] sm:%s38] %v518
      %v520 = vld [vmem:[%s48 + $0x758] sm:%s38]
      %521 = vst [vmem:[%s49 + $0x758] sm:%s38] %v520
      %v522 = vld [vmem:[%s48 + $0x75c] sm:%s38]
      %523 = vst [vmem:[%s49 + $0x760] sm:%s38] %v522
      %v524 = vld [vmem:[%s48 + $0x760] sm:%s38]
      %525 = vst [vmem:[%s49 + $0x768] sm:%s38] %v524
      %v526 = vld [vmem:[%s48 + $0x764] sm:%s38]
      %527 = vst [vmem:[%s49 + $0x770] sm:%s38] %v526
      %v528 = vld [vmem:[%s48 + $0x768] sm:%s38]
      %529 = vst [vmem:[%s49 + $0x778] sm:%s38] %v528
      %v530 = vld [vmem:[%s48 + $0x780] sm:%s38]
      %531 = vst [vmem:[%s49 + $0x780] sm:%s38] %v530
      %v532 = vld [vmem:[%s48 + $0x784] sm:%s38]
      %533 = vst [vmem:[%s49 + $0x788] sm:%s38] %v532
      %v534 = vld [vmem:[%s48 + $0x788] sm:%s38]
      %535 = vst [vmem:[%s49 + $0x790] sm:%s38] %v534
      %v536 = vld [vmem:[%s48 + $0x78c] sm:%s38]
      %537 = vst [vmem:[%s49 + $0x798] sm:%s38] %v536
      %v538 = vld [vmem:[%s48 + $0x790] sm:%s38]
      %539 = vst [vmem:[%s49 + $0x7a0] sm:%s38] %v538
      %v540 = vld [vmem:[%s48 + $0x7a8] sm:%s38]
      %541 = vst [vmem:[%s49 + $0x7a8] sm:%s38] %v540
      %v542 = vld [vmem:[%s48 + $0x7ac] sm:%s38]
      %543 = vst [vmem:[%s49 + $0x7b0] sm:%s38] %v542
      %v544 = vld [vmem:[%s48 + $0x7b0] sm:%s38]
      %545 = vst [vmem:[%s49 + $0x7b8] sm:%s38] %v544
      %v546 = vld [vmem:[%s48 + $0x7b4] sm:%s38]
      %547 = vst [vmem:[%s49 + $0x7c0] sm:%s38] %v546
      %v548 = vld [vmem:[%s48 + $0x7b8] sm:%s38]
      %549 = vst [vmem:[%s49 + $0x7c8] sm:%s38] %v548
      %v550 = vld [vmem:[%s48 + $0x7d0] sm:%s38]
      %551 = vst [vmem:[%s49 + $0x7d0] sm:%s38] %v550
      %v552 = vld [vmem:[%s48 + $0x7d4] sm:%s38]
      %553 = vst [vmem:[%s49 + $0x7d8] sm:%s38] %v552
      %v554 = vld [vmem:[%s48 + $0x7d8] sm:%s38]
      %555 = vst [vmem:[%s49 + $0x7e0] sm:%s38] %v554
      %v556 = vld [vmem:[%s48 + $0x7dc] sm:%s38]
      %557 = vst [vmem:[%s49 + $0x7e8] sm:%s38] %v556
      %v558 = vld [vmem:[%s48 + $0x7e0] sm:%s38]
      %559 = vst [vmem:[%s49 + $0x7f0] sm:%s38] %v558
      %v560 = vld [vmem:[%s48 + $0x7f8] sm:%s38]
      %561 = vst [vmem:[%s49 + $0x7f8] sm:%s38] %v560
      %v562 = vld [vmem:[%s48 + $0x7fc] sm:%s38]
      %563 = vst [vmem:[%s49 + $0x800] sm:%s38] %v562
      %v564 = vld [vmem:[%s48 + $0x800] sm:%s38]
      %565 = vst [vmem:[%s49 + $0x808] sm:%s38] %v564
      %v566 = vld [vmem:[%s48 + $0x804] sm:%s38]
      %567 = vst [vmem:[%s49 + $0x810] sm:%s38] %v566
      %v568 = vld [vmem:[%s48 + $0x808] sm:%s38]
      %569 = vst [vmem:[%s49 + $0x818] sm:%s38] %v568
      %v570 = vld [vmem:[%s48 + $0x820] sm:%s38]
      %571 = vst [vmem:[%s49 + $0x820] sm:%s38] %v570
      %v572 = vld [vmem:[%s48 + $0x824] sm:%s38]
      %573 = vst [vmem:[%s49 + $0x828] sm:%s38] %v572
      %v574 = vld [vmem:[%s48 + $0x828] sm:%s38]
      %575 = vst [vmem:[%s49 + $0x830] sm:%s38] %v574
      %v576 = vld [vmem:[%s48 + $0x82c] sm:%s38]
      %577 = vst [vmem:[%s49 + $0x838] sm:%s38] %v576
      %v578 = vld [vmem:[%s48 + $0x830] sm:%s38]
      %579 = vst [vmem:[%s49 + $0x840] sm:%s38] %v578
      %v580 = vld [vmem:[%s48 + $0x848] sm:%s38]
      %581 = vst [vmem:[%s49 + $0x848] sm:%s38] %v580
      %v582 = vld [vmem:[%s48 + $0x84c] sm:%s38]
      %583 = vst [vmem:[%s49 + $0x850] sm:%s38] %v582
      %v584 = vld [vmem:[%s48 + $0x850] sm:%s38]
      %585 = vst [vmem:[%s49 + $0x858] sm:%s38] %v584
      %v586 = vld [vmem:[%s48 + $0x854] sm:%s38]
      %587 = vst [vmem:[%s49 + $0x860] sm:%s38] %v586
      %v588 = vld [vmem:[%s48 + $0x858] sm:%s38]
      %589 = vst [vmem:[%s49 + $0x868] sm:%s38] %v588
      %v590 = vld [vmem:[%s48 + $0x870] sm:%s38]
      %591 = vst [vmem:[%s49 + $0x870] sm:%s38] %v590
      %v592 = vld [vmem:[%s48 + $0x874] sm:%s38]
      %593 = vst [vmem:[%s49 + $0x878] sm:%s38] %v592
      %v594 = vld [vmem:[%s48 + $0x878] sm:%s38]
      %595 = vst [vmem:[%s49 + $0x880] sm:%s38] %v594
      %v596 = vld [vmem:[%s48 + $0x87c] sm:%s38]
      %597 = vst [vmem:[%s49 + $0x888] sm:%s38] %v596
      %v598 = vld [vmem:[%s48 + $0x880] sm:%s38]
      %599 = vst [vmem:[%s49 + $0x890] sm:%s38] %v598
      %v600 = vld [vmem:[%s48 + $0x898] sm:%s38]
      %601 = vst [vmem:[%s49 + $0x898] sm:%s38] %v600
      %v602 = vld [vmem:[%s48 + $0x89c] sm:%s38]
      %603 = vst [vmem:[%s49 + $0x8a0] sm:%s38] %v602
      %v604 = vld [vmem:[%s48 + $0x8a0] sm:%s38]
      %605 = vst [vmem:[%s49 + $0x8a8] sm:%s38] %v604
      %v606 = vld [vmem:[%s48 + $0x8a4] sm:%s38]
      %607 = vst [vmem:[%s49 + $0x8b0] sm:%s38] %v606
      %v608 = vld [vmem:[%s48 + $0x8a8] sm:%s38]
      %609 = vst [vmem:[%s49 + $0x8b8] sm:%s38] %v608
      %v610 = vld [vmem:[%s48 + $0x8c0] sm:%s38]
      %611 = vst [vmem:[%s49 + $0x8c0] sm:%s38] %v610
      %v612 = vld [vmem:[%s48 + $0x8c4] sm:%s38]
      %613 = vst [vmem:[%s49 + $0x8c8] sm:%s38] %v612
      %v614 = vld [vmem:[%s48 + $0x8c8] sm:%s38]
      %615 = vst [vmem:[%s49 + $0x8d0] sm:%s38] %v614
      %v616 = vld [vmem:[%s48 + $0x8cc] sm:%s38]
      %617 = vst [vmem:[%s49 + $0x8d8] sm:%s38] %v616
      %v618 = vld [vmem:[%s48 + $0x8d0] sm:%s38]
      %619 = vst [vmem:[%s49 + $0x8e0] sm:%s38] %v618
      %v620 = vld [vmem:[%s48 + $0x8e8] sm:%s38]
      %621 = vst [vmem:[%s49 + $0x8e8] sm:%s38] %v620
      %v622 = vld [vmem:[%s48 + $0x8ec] sm:%s38]
      %623 = vst [vmem:[%s49 + $0x8f0] sm:%s38] %v622
      %v624 = vld [vmem:[%s48 + $0x8f0] sm:%s38]
      %625 = vst [vmem:[%s49 + $0x8f8] sm:%s38] %v624
      %v626 = vld [vmem:[%s48 + $0x8f4] sm:%s38]
      %627 = vst [vmem:[%s49 + $0x900] sm:%s38] %v626
      %v628 = vld [vmem:[%s48 + $0x8f8] sm:%s38]
      %629 = vst [vmem:[%s49 + $0x908] sm:%s38] %v628
      %v630 = vld [vmem:[%s48 + $0x910] sm:%s38]
      %631 = vst [vmem:[%s49 + $0x910] sm:%s38] %v630
      %v632 = vld [vmem:[%s48 + $0x914] sm:%s38]
      %633 = vst [vmem:[%s49 + $0x918] sm:%s38] %v632
      %v634 = vld [vmem:[%s48 + $0x918] sm:%s38]
      %635 = vst [vmem:[%s49 + $0x920] sm:%s38] %v634
      %v636 = vld [vmem:[%s48 + $0x91c] sm:%s38]
      %637 = vst [vmem:[%s49 + $0x928] sm:%s38] %v636
      %v638 = vld [vmem:[%s48 + $0x920] sm:%s38]
      %639 = vst [vmem:[%s49 + $0x930] sm:%s38] %v638
      %v640 = vld [vmem:[%s48 + $0x938] sm:%s38]
      %641 = vst [vmem:[%s49 + $0x938] sm:%s38] %v640
      %v642 = vld [vmem:[%s48 + $0x93c] sm:%s38]
      %643 = vst [vmem:[%s49 + $0x940] sm:%s38] %v642
      %v644 = vld [vmem:[%s48 + $0x940] sm:%s38]
      %645 = vst [vmem:[%s49 + $0x948] sm:%s38] %v644
      %v646 = vld [vmem:[%s48 + $0x944] sm:%s38]
      %647 = vst [vmem:[%s49 + $0x950] sm:%s38] %v646
      %v648 = vld [vmem:[%s48 + $0x948] sm:%s38]
      %649 = vst [vmem:[%s49 + $0x958] sm:%s38] %v648
      %v650 = vld [vmem:[%s48 + $0x960] sm:%s38]
      %651 = vst [vmem:[%s49 + $0x960] sm:%s38] %v650
      %v652 = vld [vmem:[%s48 + $0x964] sm:%s38]
      %653 = vst [vmem:[%s49 + $0x968] sm:%s38] %v652
      %v654 = vld [vmem:[%s48 + $0x968] sm:%s38]
      %655 = vst [vmem:[%s49 + $0x970] sm:%s38] %v654
      %v656 = vld [vmem:[%s48 + $0x96c] sm:%s38]
      %657 = vst [vmem:[%s49 + $0x978] sm:%s38] %v656
      %v658 = vld [vmem:[%s48 + $0x970] sm:%s38]
      %659 = vst [vmem:[%s49 + $0x980] sm:%s38] %v658
      %v660 = vld [vmem:[%s48 + $0x988] sm:%s38]
      %661 = vst [vmem:[%s49 + $0x988] sm:%s38] %v660
      %v662 = vld [vmem:[%s48 + $0x98c] sm:%s38]
      %663 = vst [vmem:[%s49 + $0x990] sm:%s38] %v662
      %v664 = vld [vmem:[%s48 + $0x990] sm:%s38]
      %665 = vst [vmem:[%s49 + $0x998] sm:%s38] %v664
      %v666 = vld [vmem:[%s48 + $0x994] sm:%s38]
      %667 = vst [vmem:[%s49 + $0x9a0] sm:%s38] %v666
      %v668 = vld [vmem:[%s48 + $0x998] sm:%s38]
      %669 = vst [vmem:[%s49 + $0x9a8] sm:%s38] %v668
      %v670 = vld [vmem:[%s48 + $0x9b0] sm:%s38]
      %671 = vst [vmem:[%s49 + $0x9b0] sm:%s38] %v670
      %v672 = vld [vmem:[%s48 + $0x9b4] sm:%s38]
      %673 = vst [vmem:[%s49 + $0x9b8] sm:%s38] %v672
      %v674 = vld [vmem:[%s48 + $0x9b8] sm:%s38]
      %675 = vst [vmem:[%s49 + $0x9c0] sm:%s38] %v674
      %v676 = vld [vmem:[%s48 + $0x9bc] sm:%s38]
      %677 = vst [vmem:[%s49 + $0x9c8] sm:%s38] %v676
      %v678 = vld [vmem:[%s48 + $0x9c0] sm:%s38]
      %679 = vst [vmem:[%s49 + $0x9d0] sm:%s38] %v678
      %v680 = vld [vmem:[%s48 + $0x9d8] sm:%s38]
      %681 = vst [vmem:[%s49 + $0x9d8] sm:%s38] %v680
      %v682 = vld [vmem:[%s48 + $0x9dc] sm:%s38]
      %683 = vst [vmem:[%s49 + $0x9e0] sm:%s38] %v682
      %v684 = vld [vmem:[%s48 + $0x9e0] sm:%s38]
      %685 = vst [vmem:[%s49 + $0x9e8] sm:%s38] %v684
      %v686 = vld [vmem:[%s48 + $0x9e4] sm:%s38]
      %687 = vst [vmem:[%s49 + $0x9f0] sm:%s38] %v686
      %v688 = vld [vmem:[%s48 + $0x9e8] sm:%s38]
      %689 = vst [vmem:[%s49 + $0x9f8] sm:%s38] %v688
      %v690 = vld [vmem:[%s48 + $0xa00] sm:%s38]
      %691 = vst [vmem:[%s49 + $0xa00] sm:%s38] %v690
      %v692 = vld [vmem:[%s48 + $0xa04] sm:%s38]
      %693 = vst [vmem:[%s49 + $0xa08] sm:%s38] %v692
      %v694 = vld [vmem:[%s48 + $0xa08] sm:%s38]
      %695 = vst [vmem:[%s49 + $0xa10] sm:%s38] %v694
      %v696 = vld [vmem:[%s48 + $0xa0c] sm:%s38]
      %697 = vst [vmem:[%s49 + $0xa18] sm:%s38] %v696
      %v698 = vld [vmem:[%s48 + $0xa10] sm:%s38]
      %699 = vst [vmem:[%s49 + $0xa20] sm:%s38] %v698
      %v700 = vld [vmem:[%s48 + $0xa28] sm:%s38]
      %701 = vst [vmem:[%s49 + $0xa28] sm:%s38] %v700
      %v702 = vld [vmem:[%s48 + $0xa2c] sm:%s38]
      %703 = vst [vmem:[%s49 + $0xa30] sm:%s38] %v702
      %v704 = vld [vmem:[%s48 + $0xa30] sm:%s38]
      %705 = vst [vmem:[%s49 + $0xa38] sm:%s38] %v704
      %v706 = vld [vmem:[%s48 + $0xa34] sm:%s38]
      %707 = vst [vmem:[%s49 + $0xa40] sm:%s38] %v706
      %v708 = vld [vmem:[%s48 + $0xa38] sm:%s38]
      %709 = vst [vmem:[%s49 + $0xa48] sm:%s38] %v708
      %v710 = vld [vmem:[%s48 + $0xa50] sm:%s38]
      %711 = vst [vmem:[%s49 + $0xa50] sm:%s38] %v710
      %v712 = vld [vmem:[%s48 + $0xa54] sm:%s38]
      %713 = vst [vmem:[%s49 + $0xa58] sm:%s38] %v712
      %v714 = vld [vmem:[%s48 + $0xa58] sm:%s38]
      %715 = vst [vmem:[%s49 + $0xa60] sm:%s38] %v714
      %v716 = vld [vmem:[%s48 + $0xa5c] sm:%s38]
      %717 = vst [vmem:[%s49 + $0xa68] sm:%s38] %v716
      %v718 = vld [vmem:[%s48 + $0xa60] sm:%s38]
      %719 = vst [vmem:[%s49 + $0xa70] sm:%s38] %v718
      %v720 = vld [vmem:[%s48 + $0xa78] sm:%s38]
      %721 = vst [vmem:[%s49 + $0xa78] sm:%s38] %v720
      %v722 = vld [vmem:[%s48 + $0xa7c] sm:%s38]
      %723 = vst [vmem:[%s49 + $0xa80] sm:%s38] %v722
      %v724 = vld [vmem:[%s48 + $0xa80] sm:%s38]
      %725 = vst [vmem:[%s49 + $0xa88] sm:%s38] %v724
      %v726 = vld [vmem:[%s48 + $0xa84] sm:%s38]
      %727 = vst [vmem:[%s49 + $0xa90] sm:%s38] %v726
      %v728 = vld [vmem:[%s48 + $0xa88] sm:%s38]
      %729 = vst [vmem:[%s49 + $0xa98] sm:%s38] %v728
      %v730 = vld [vmem:[%s48 + $0xaa0] sm:%s38]
      %731 = vst [vmem:[%s49 + $0xaa0] sm:%s38] %v730
      %v732 = vld [vmem:[%s48 + $0xaa4] sm:%s38]
      %733 = vst [vmem:[%s49 + $0xaa8] sm:%s38] %v732
      %v734 = vld [vmem:[%s48 + $0xaa8] sm:%s38]
      %735 = vst [vmem:[%s49 + $0xab0] sm:%s38] %v734
      %v736 = vld [vmem:[%s48 + $0xaac] sm:%s38]
      %737 = vst [vmem:[%s49 + $0xab8] sm:%s38] %v736
      %v738 = vld [vmem:[%s48 + $0xab0] sm:%s38]
      %739 = vst [vmem:[%s49 + $0xac0] sm:%s38] %v738
      %v740 = vld [vmem:[%s48 + $0xac8] sm:%s38]
      %741 = vst [vmem:[%s49 + $0xac8] sm:%s38] %v740
      %v742 = vld [vmem:[%s48 + $0xacc] sm:%s38]
      %743 = vst [vmem:[%s49 + $0xad0] sm:%s38] %v742
      %v744 = vld [vmem:[%s48 + $0xad0] sm:%s38]
      %745 = vst [vmem:[%s49 + $0xad8] sm:%s38] %v744
      %v746 = vld [vmem:[%s48 + $0xad4] sm:%s38]
      %747 = vst [vmem:[%s49 + $0xae0] sm:%s38] %v746
      %v748 = vld [vmem:[%s48 + $0xad8] sm:%s38]
      %749 = vst [vmem:[%s49 + $0xae8] sm:%s38] %v748
      %v750 = vld [vmem:[%s48 + $0xaf0] sm:%s38]
      %751 = vst [vmem:[%s49 + $0xaf0] sm:%s38] %v750
      %v752 = vld [vmem:[%s48 + $0xaf4] sm:%s38]
      %753 = vst [vmem:[%s49 + $0xaf8] sm:%s38] %v752
      %v754 = vld [vmem:[%s48 + $0xaf8] sm:%s38]
      %755 = vst [vmem:[%s49 + $0xb00] sm:%s38] %v754
      %v756 = vld [vmem:[%s48 + $0xafc] sm:%s38]
      %757 = vst [vmem:[%s49 + $0xb08] sm:%s38] %v756
      %v758 = vld [vmem:[%s48 + $0xb00] sm:%s38]
      %759 = vst [vmem:[%s49 + $0xb10] sm:%s38] %v758
      %v760 = vld [vmem:[%s48 + $0xb18] sm:%s38]
      %761 = vst [vmem:[%s49 + $0xb18] sm:%s38] %v760
      %v762 = vld [vmem:[%s48 + $0xb1c] sm:%s38]
      %763 = vst [vmem:[%s49 + $0xb20] sm:%s38] %v762
      %v764 = vld [vmem:[%s48 + $0xb20] sm:%s38]
      %765 = vst [vmem:[%s49 + $0xb28] sm:%s38] %v764
      %v766 = vld [vmem:[%s48 + $0xb24] sm:%s38]
      %767 = vst [vmem:[%s49 + $0xb30] sm:%s38] %v766
      %v768 = vld [vmem:[%s48 + $0xb28] sm:%s38]
      %769 = vst [vmem:[%s49 + $0xb38] sm:%s38] %v768
      %v770 = vld [vmem:[%s48 + $0xb40] sm:%s38]
      %771 = vst [vmem:[%s49 + $0xb40] sm:%s38] %v770
      %v772 = vld [vmem:[%s48 + $0xb44] sm:%s38]
      %773 = vst [vmem:[%s49 + $0xb48] sm:%s38] %v772
      %v774 = vld [vmem:[%s48 + $0xb48] sm:%s38]
      %775 = vst [vmem:[%s49 + $0xb50] sm:%s38] %v774
      %v776 = vld [vmem:[%s48 + $0xb4c] sm:%s38]
      %777 = vst [vmem:[%s49 + $0xb58] sm:%s38] %v776
      %v778 = vld [vmem:[%s48 + $0xb50] sm:%s38]
      %779 = vst [vmem:[%s49 + $0xb60] sm:%s38] %v778
      %v780 = vld [vmem:[%s48 + $0xb68] sm:%s38]
      %781 = vst [vmem:[%s49 + $0xb68] sm:%s38] %v780
      %v782 = vld [vmem:[%s48 + $0xb6c] sm:%s38]
      %783 = vst [vmem:[%s49 + $0xb70] sm:%s38] %v782
      %v784 = vld [vmem:[%s48 + $0xb70] sm:%s38]
      %785 = vst [vmem:[%s49 + $0xb78] sm:%s38] %v784
      %v786 = vld [vmem:[%s48 + $0xb74] sm:%s38]
      %787 = vst [vmem:[%s49 + $0xb80] sm:%s38] %v786
      %v788 = vld [vmem:[%s48 + $0xb78] sm:%s38]
      %789 = vst [vmem:[%s49 + $0xb88] sm:%s38] %v788
      %v790 = vld [vmem:[%s48 + $0xb90] sm:%s38]
      %791 = vst [vmem:[%s49 + $0xb90] sm:%s38] %v790
      %v792 = vld [vmem:[%s48 + $0xb94] sm:%s38]
      %793 = vst [vmem:[%s49 + $0xb98] sm:%s38] %v792
      %v794 = vld [vmem:[%s48 + $0xb98] sm:%s38]
      %795 = vst [vmem:[%s49 + $0xba0] sm:%s38] %v794
      %v796 = vld [vmem:[%s48 + $0xb9c] sm:%s38]
      %797 = vst [vmem:[%s49 + $0xba8] sm:%s38] %v796
      %v798 = vld [vmem:[%s48 + $0xba0] sm:%s38]
      %799 = vst [vmem:[%s49 + $0xbb0] sm:%s38] %v798
      %v800 = vld [vmem:[%s48 + $0xbb8] sm:%s38]
      %801 = vst [vmem:[%s49 + $0xbb8] sm:%s38] %v800
      %v802 = vld [vmem:[%s48 + $0xbbc] sm:%s38]
      %803 = vst [vmem:[%s49 + $0xbc0] sm:%s38] %v802
      %v804 = vld [vmem:[%s48 + $0xbc0] sm:%s38]
      %805 = vst [vmem:[%s49 + $0xbc8] sm:%s38] %v804
      %v806 = vld [vmem:[%s48 + $0xbc4] sm:%s38]
      %807 = vst [vmem:[%s49 + $0xbd0] sm:%s38] %v806
      %v808 = vld [vmem:[%s48 + $0xbc8] sm:%s38]
      %809 = vst [vmem:[%s49 + $0xbd8] sm:%s38] %v808
      %v810 = vld [vmem:[%s48 + $0xbe0] sm:%s38]
      %811 = vst [vmem:[%s49 + $0xbe0] sm:%s38] %v810
      %v812 = vld [vmem:[%s48 + $0xbe4] sm:%s38]
      %813 = vst [vmem:[%s49 + $0xbe8] sm:%s38] %v812
      %v814 = vld [vmem:[%s48 + $0xbe8] sm:%s38]
      %815 = vst [vmem:[%s49 + $0xbf0] sm:%s38] %v814
      %v816 = vld [vmem:[%s48 + $0xbec] sm:%s38]
      %817 = vst [vmem:[%s49 + $0xbf8] sm:%s38] %v816
      %v818 = vld [vmem:[%s48 + $0xbf0] sm:%s38]
      %819 = vst [vmem:[%s49 + $0xc00] sm:%s38] %v818
      %v820 = vld [vmem:[%s48 + $0xc08] sm:%s38]
      %821 = vst [vmem:[%s49 + $0xc08] sm:%s38] %v820
      %v822 = vld [vmem:[%s48 + $0xc0c] sm:%s38]
      %823 = vst [vmem:[%s49 + $0xc10] sm:%s38] %v822
      %v824 = vld [vmem:[%s48 + $0xc10] sm:%s38]
      %825 = vst [vmem:[%s49 + $0xc18] sm:%s38] %v824
      %v826 = vld [vmem:[%s48 + $0xc14] sm:%s38]
      %827 = vst [vmem:[%s49 + $0xc20] sm:%s38] %v826
      %v828 = vld [vmem:[%s48 + $0xc18] sm:%s38]
      %829 = vst [vmem:[%s49 + $0xc28] sm:%s38] %v828
      %v830 = vld [vmem:[%s48 + $0xc30] sm:%s38]
      %831 = vst [vmem:[%s49 + $0xc30] sm:%s38] %v830
      %v832 = vld [vmem:[%s48 + $0xc34] sm:%s38]
      %833 = vst [vmem:[%s49 + $0xc38] sm:%s38] %v832
      %v834 = vld [vmem:[%s48 + $0xc38] sm:%s38]
      %835 = vst [vmem:[%s49 + $0xc40] sm:%s38] %v834
      %v836 = vld [vmem:[%s48 + $0xc3c] sm:%s38]
      %837 = vst [vmem:[%s49 + $0xc48] sm:%s38] %v836
      %v838 = vld [vmem:[%s48 + $0xc40] sm:%s38]
      %839 = vst [vmem:[%s49 + $0xc50] sm:%s38] %v838
      %v840 = vld [vmem:[%s48 + $0xc58] sm:%s38]
      %841 = vst [vmem:[%s49 + $0xc58] sm:%s38] %v840
      %v842 = vld [vmem:[%s48 + $0xc5c] sm:%s38]
      %843 = vst [vmem:[%s49 + $0xc60] sm:%s38] %v842
      %v844 = vld [vmem:[%s48 + $0xc60] sm:%s38]
      %845 = vst [vmem:[%s49 + $0xc68] sm:%s38] %v844
      %v846 = vld [vmem:[%s48 + $0xc64] sm:%s38]
      %847 = vst [vmem:[%s49 + $0xc70] sm:%s38] %v846
      %v848 = vld [vmem:[%s48 + $0xc68] sm:%s38]
      %849 = vst [vmem:[%s49 + $0xc78] sm:%s38] %v848
      %v850 = vld [vmem:[%s48 + $0xc80] sm:%s38]
      %851 = vst [vmem:[%s49 + $0xc80] sm:%s38] %v850
      %v852 = vld [vmem:[%s48 + $0xc84] sm:%s38]
      %853 = vst [vmem:[%s49 + $0xc88] sm:%s38] %v852
      %v854 = vld [vmem:[%s48 + $0xc88] sm:%s38]
      %855 = vst [vmem:[%s49 + $0xc90] sm:%s38] %v854
      %v856 = vld [vmem:[%s48 + $0xc8c] sm:%s38]
      %857 = vst [vmem:[%s49 + $0xc98] sm:%s38] %v856
      %v858 = vld [vmem:[%s48 + $0xc90] sm:%s38]
      %859 = vst [vmem:[%s49 + $0xca0] sm:%s38] %v858
      %v860 = vld [vmem:[%s48 + $0xca8] sm:%s38]
      %861 = vst [vmem:[%s49 + $0xca8] sm:%s38] %v860
      %v862 = vld [vmem:[%s48 + $0xcac] sm:%s38]
      %863 = vst [vmem:[%s49 + $0xcb0] sm:%s38] %v862
      %v864 = vld [vmem:[%s48 + $0xcb0] sm:%s38]
      %865 = vst [vmem:[%s49 + $0xcb8] sm:%s38] %v864
      %v866 = vld [vmem:[%s48 + $0xcb4] sm:%s38]
      %867 = vst [vmem:[%s49 + $0xcc0] sm:%s38] %v866
      %v868 = vld [vmem:[%s48 + $0xcb8] sm:%s38]
      %869 = vst [vmem:[%s49 + $0xcc8] sm:%s38] %v868
      %v870 = vld [vmem:[%s48 + $0xcd0] sm:%s38]
      %871 = vst [vmem:[%s49 + $0xcd0] sm:%s38] %v870
      %v872 = vld [vmem:[%s48 + $0xcd4] sm:%s38]
      %873 = vst [vmem:[%s49 + $0xcd8] sm:%s38] %v872
      %v874 = vld [vmem:[%s48 + $0xcd8] sm:%s38]
      %875 = vst [vmem:[%s49 + $0xce0] sm:%s38] %v874
      %v876 = vld [vmem:[%s48 + $0xcdc] sm:%s38]
      %877 = vst [vmem:[%s49 + $0xce8] sm:%s38] %v876
      %v878 = vld [vmem:[%s48 + $0xce0] sm:%s38]
      %879 = vst [vmem:[%s49 + $0xcf0] sm:%s38] %v878
      %v880 = vld [vmem:[%s48 + $0xcf8] sm:%s38]
      %881 = vst [vmem:[%s49 + $0xcf8] sm:%s38] %v880
      %v882 = vld [vmem:[%s48 + $0xcfc] sm:%s38]
      %883 = vst [vmem:[%s49 + $0xd00] sm:%s38] %v882
      %v884 = vld [vmem:[%s48 + $0xd00] sm:%s38]
      %885 = vst [vmem:[%s49 + $0xd08] sm:%s38] %v884
      %v886 = vld [vmem:[%s48 + $0xd04] sm:%s38]
      %887 = vst [vmem:[%s49 + $0xd10] sm:%s38] %v886
      %v888 = vld [vmem:[%s48 + $0xd08] sm:%s38]
      %889 = vst [vmem:[%s49 + $0xd18] sm:%s38] %v888
      %v890 = vld [vmem:[%s48 + $0xd20] sm:%s38]
      %891 = vst [vmem:[%s49 + $0xd20] sm:%s38] %v890
      %v892 = vld [vmem:[%s48 + $0xd24] sm:%s38]
      %893 = vst [vmem:[%s49 + $0xd28] sm:%s38] %v892
      %v894 = vld [vmem:[%s48 + $0xd28] sm:%s38]
      %895 = vst [vmem:[%s49 + $0xd30] sm:%s38] %v894
      %v896 = vld [vmem:[%s48 + $0xd2c] sm:%s38]
      %897 = vst [vmem:[%s49 + $0xd38] sm:%s38] %v896
      %v898 = vld [vmem:[%s48 + $0xd30] sm:%s38]
      %899 = vst [vmem:[%s49 + $0xd40] sm:%s38] %v898
      %v900 = vld [vmem:[%s48 + $0xd48] sm:%s38]
      %901 = vst [vmem:[%s49 + $0xd48] sm:%s38] %v900
      %v902 = vld [vmem:[%s48 + $0xd4c] sm:%s38]
      %903 = vst [vmem:[%s49 + $0xd50] sm:%s38] %v902
      %v904 = vld [vmem:[%s48 + $0xd50] sm:%s38]
      %905 = vst [vmem:[%s49 + $0xd58] sm:%s38] %v904
      %v906 = vld [vmem:[%s48 + $0xd54] sm:%s38]
      %907 = vst [vmem:[%s49 + $0xd60] sm:%s38] %v906
      %v908 = vld [vmem:[%s48 + $0xd58] sm:%s38]
      %909 = vst [vmem:[%s49 + $0xd68] sm:%s38] %v908
      %v910 = vld [vmem:[%s48 + $0xd70] sm:%s38]
      %911 = vst [vmem:[%s49 + $0xd70] sm:%s38] %v910
      %v912 = vld [vmem:[%s48 + $0xd74] sm:%s38]
      %913 = vst [vmem:[%s49 + $0xd78] sm:%s38] %v912
      %v914 = vld [vmem:[%s48 + $0xd78] sm:%s38]
      %915 = vst [vmem:[%s49 + $0xd80] sm:%s38] %v914
      %v916 = vld [vmem:[%s48 + $0xd7c] sm:%s38]
      %917 = vst [vmem:[%s49 + $0xd88] sm:%s38] %v916
      %v918 = vld [vmem:[%s48 + $0xd80] sm:%s38]
      %919 = vst [vmem:[%s49 + $0xd90] sm:%s38] %v918
      %v920 = vld [vmem:[%s48 + $0xd98] sm:%s38]
      %921 = vst [vmem:[%s49 + $0xd98] sm:%s38] %v920
      %v922 = vld [vmem:[%s48 + $0xd9c] sm:%s38]
      %923 = vst [vmem:[%s49 + $0xda0] sm:%s38] %v922
      %v924 = vld [vmem:[%s48 + $0xda0] sm:%s38]
      %925 = vst [vmem:[%s49 + $0xda8] sm:%s38] %v924
      %v926 = vld [vmem:[%s48 + $0xda4] sm:%s38]
      %927 = vst [vmem:[%s49 + $0xdb0] sm:%s38] %v926
      %v928 = vld [vmem:[%s48 + $0xda8] sm:%s38]
      %929 = vst [vmem:[%s49 + $0xdb8] sm:%s38] %v928
      %v930 = vld [vmem:[%s48 + $0xdc0] sm:%s38]
      %931 = vst [vmem:[%s49 + $0xdc0] sm:%s38] %v930
      %v932 = vld [vmem:[%s48 + $0xdc4] sm:%s38]
      %933 = vst [vmem:[%s49 + $0xdc8] sm:%s38] %v932
      %v934 = vld [vmem:[%s48 + $0xdc8] sm:%s38]
      %935 = vst [vmem:[%s49 + $0xdd0] sm:%s38] %v934
      %v936 = vld [vmem:[%s48 + $0xdcc] sm:%s38]
      %937 = vst [vmem:[%s49 + $0xdd8] sm:%s38] %v936
      %v938 = vld [vmem:[%s48 + $0xdd0] sm:%s38]
      %939 = vst [vmem:[%s49 + $0xde0] sm:%s38] %v938
      %v940 = vld [vmem:[%s48 + $0xde8] sm:%s38]
      %941 = vst [vmem:[%s49 + $0xde8] sm:%s38] %v940
      %v942 = vld [vmem:[%s48 + $0xdec] sm:%s38]
      %943 = vst [vmem:[%s49 + $0xdf0] sm:%s38] %v942
      %v944 = vld [vmem:[%s48 + $0xdf0] sm:%s38]
      %945 = vst [vmem:[%s49 + $0xdf8] sm:%s38] %v944
      %v946 = vld [vmem:[%s48 + $0xdf4] sm:%s38]
      %947 = vst [vmem:[%s49 + $0xe00] sm:%s38] %v946
      %v948 = vld [vmem:[%s48 + $0xdf8] sm:%s38]
      %949 = vst [vmem:[%s49 + $0xe08] sm:%s38] %v948
      %v950 = vld [vmem:[%s48 + $0xe10] sm:%s38]
      %951 = vst [vmem:[%s49 + $0xe10] sm:%s38] %v950
      %v952 = vld [vmem:[%s48 + $0xe14] sm:%s38]
      %953 = vst [vmem:[%s49 + $0xe18] sm:%s38] %v952
      %v954 = vld [vmem:[%s48 + $0xe18] sm:%s38]
      %955 = vst [vmem:[%s49 + $0xe20] sm:%s38] %v954
      %v956 = vld [vmem:[%s48 + $0xe1c] sm:%s38]
      %957 = vst [vmem:[%s49 + $0xe28] sm:%s38] %v956
      %v958 = vld [vmem:[%s48 + $0xe20] sm:%s38]
      %959 = vst [vmem:[%s49 + $0xe30] sm:%s38] %v958
      %v960 = vld [vmem:[%s48 + $0xe38] sm:%s38]
      %961 = vst [vmem:[%s49 + $0xe38] sm:%s38] %v960
      %v962 = vld [vmem:[%s48 + $0xe3c] sm:%s38]
      %963 = vst [vmem:[%s49 + $0xe40] sm:%s38] %v962
      %v964 = vld [vmem:[%s48 + $0xe40] sm:%s38]
      %965 = vst [vmem:[%s49 + $0xe48] sm:%s38] %v964
      %v966 = vld [vmem:[%s48 + $0xe44] sm:%s38]
      %967 = vst [vmem:[%s49 + $0xe50] sm:%s38] %v966
      %v968 = vld [vmem:[%s48 + $0xe48] sm:%s38]
      %969 = vst [vmem:[%s49 + $0xe58] sm:%s38] %v968
      %v970 = vld [vmem:[%s48 + $0xe60] sm:%s38]
      %971 = vst [vmem:[%s49 + $0xe60] sm:%s38] %v970
      %v972 = vld [vmem:[%s48 + $0xe64] sm:%s38]
      %973 = vst [vmem:[%s49 + $0xe68] sm:%s38] %v972
      %v974 = vld [vmem:[%s48 + $0xe68] sm:%s38]
      %975 = vst [vmem:[%s49 + $0xe70] sm:%s38] %v974
      %v976 = vld [vmem:[%s48 + $0xe6c] sm:%s38]
      %977 = vst [vmem:[%s49 + $0xe78] sm:%s38] %v976
      %v978 = vld [vmem:[%s48 + $0xe70] sm:%s38]
      %979 = vst [vmem:[%s49 + $0xe80] sm:%s38] %v978
      %v980 = vld [vmem:[%s48 + $0xe88] sm:%s38]
      %981 = vst [vmem:[%s49 + $0xe88] sm:%s38] %v980
      %v982 = vld [vmem:[%s48 + $0xe8c] sm:%s38]
      %983 = vst [vmem:[%s49 + $0xe90] sm:%s38] %v982
      %v984 = vld [vmem:[%s48 + $0xe90] sm:%s38]
      %985 = vst [vmem:[%s49 + $0xe98] sm:%s38] %v984
      %v986 = vld [vmem:[%s48 + $0xe94] sm:%s38]
      %987 = vst [vmem:[%s49 + $0xea0] sm:%s38] %v986
      %v988 = vld [vmem:[%s48 + $0xe98] sm:%s38]
      %989 = vst [vmem:[%s49 + $0xea8] sm:%s38] %v988
      %v990 = vld [vmem:[%s48 + $0xeb0] sm:%s38]
      %991 = vst [vmem:[%s49 + $0xeb0] sm:%s38] %v990
      %v992 = vld [vmem:[%s48 + $0xeb4] sm:%s38]
      %993 = vst [vmem:[%s49 + $0xeb8] sm:%s38] %v992
      %v994 = vld [vmem:[%s48 + $0xeb8] sm:%s38]
      %995 = vst [vmem:[%s49 + $0xec0] sm:%s38] %v994
      %v996 = vld [vmem:[%s48 + $0xebc] sm:%s38]
      %997 = vst [vmem:[%s49 + $0xec8] sm:%s38] %v996
      %v998 = vld [vmem:[%s48 + $0xec0] sm:%s38]
      %999 = vst [vmem:[%s49 + $0xed0] sm:%s38] %v998
      %v1000 = vld [vmem:[%s48 + $0xed8] sm:%s38]
      %1001 = vst [vmem:[%s49 + $0xed8] sm:%s38] %v1000
      %v1002 = vld [vmem:[%s48 + $0xedc] sm:%s38]
      %1003 = vst [vmem:[%s49 + $0xee0] sm:%s38] %v1002
      %v1004 = vld [vmem:[%s48 + $0xee0] sm:%s38]
      %1005 = vst [vmem:[%s49 + $0xee8] sm:%s38] %v1004
      %v1006 = vld [vmem:[%s48 + $0xee4] sm:%s38]
      %1007 = vst [vmem:[%s49 + $0xef0] sm:%s38] %v1006
      %v1008 = vld [vmem:[%s48 + $0xee8] sm:%s38]
      %1009 = vst [vmem:[%s49 + $0xef8] sm:%s38] %v1008
      %v1010 = vld [vmem:[%s48 + $0xf00] sm:%s38]
      %1011 = vst [vmem:[%s49 + $0xf00] sm:%s38] %v1010
      %v1012 = vld [vmem:[%s48 + $0xf04] sm:%s38]
      %1013 = vst [vmem:[%s49 + $0xf08] sm:%s38] %v1012
      %v1014 = vld [vmem:[%s48 + $0xf08] sm:%s38]
      %1015 = vst [vmem:[%s49 + $0xf10] sm:%s38] %v1014
      %v1016 = vld [vmem:[%s48 + $0xf0c] sm:%s38]
      %1017 = vst [vmem:[%s49 + $0xf18] sm:%s38] %v1016
      %v1018 = vld [vmem:[%s48 + $0xf10] sm:%s38]
      %1019 = vst [vmem:[%s49 + $0xf20] sm:%s38] %v1018
      %v1020 = vld [vmem:[%s48 + $0xf28] sm:%s38]
      %1021 = vst [vmem:[%s49 + $0xf28] sm:%s38] %v1020
      %v1022 = vld [vmem:[%s48 + $0xf2c] sm:%s38]
      %1023 = vst [vmem:[%s49 + $0xf30] sm:%s38] %v1022
      %v1024 = vld [vmem:[%s48 + $0xf30] sm:%s38]
      %1025 = vst [vmem:[%s49 + $0xf38] sm:%s38] %v1024
      %v1026 = vld [vmem:[%s48 + $0xf34] sm:%s38]
      %1027 = vst [vmem:[%s49 + $0xf40] sm:%s38] %v1026
      %v1028 = vld [vmem:[%s48 + $0xf38] sm:%s38]
      %1029 = vst [vmem:[%s49 + $0xf48] sm:%s38] %v1028
      %v1030 = vld [vmem:[%s48 + $0xf50] sm:%s38]
      %1031 = vst [vmem:[%s49 + $0xf50] sm:%s38] %v1030
      %v1032 = vld [vmem:[%s48 + $0xf54] sm:%s38]
      %1033 = vst [vmem:[%s49 + $0xf58] sm:%s38] %v1032
      %v1034 = vld [vmem:[%s48 + $0xf58] sm:%s38]
      %1035 = vst [vmem:[%s49 + $0xf60] sm:%s38] %v1034
      %v1036 = vld [vmem:[%s48 + $0xf5c] sm:%s38]
      %1037 = vst [vmem:[%s49 + $0xf68] sm:%s38] %v1036
      %v1038 = vld [vmem:[%s48 + $0xf60] sm:%s38]
      %1039 = vst [vmem:[%s49 + $0xf70] sm:%s38] %v1038
      %v1040 = vld [vmem:[%s48 + $0xf78] sm:%s38]
      %1041 = vst [vmem:[%s49 + $0xf78] sm:%s38] %v1040
      %v1042 = vld [vmem:[%s48 + $0xf7c] sm:%s38]
      %1043 = vst [vmem:[%s49 + $0xf80] sm:%s38] %v1042
      %v1044 = vld [vmem:[%s48 + $0xf80] sm:%s38]
      %1045 = vst [vmem:[%s49 + $0xf88] sm:%s38] %v1044
      %v1046 = vld [vmem:[%s48 + $0xf84] sm:%s38]
      %1047 = vst [vmem:[%s49 + $0xf90] sm:%s38] %v1046
      %v1048 = vld [vmem:[%s48 + $0xf88] sm:%s38]
      %1049 = vst [vmem:[%s49 + $0xf98] sm:%s38] %v1048
      %v1050 = vld [vmem:[%s48 + $0xfa0] sm:%s38]
      %1051 = vst [vmem:[%s49 + $0xfa0] sm:%s38] %v1050
      %v1052 = vld [vmem:[%s48 + $0xfa4] sm:%s38]
      %1053 = vst [vmem:[%s49 + $0xfa8] sm:%s38] %v1052
      %v1054 = vld [vmem:[%s48 + $0xfa8] sm:%s38]
      %1055 = vst [vmem:[%s49 + $0xfb0] sm:%s38] %v1054
      %v1056 = vld [vmem:[%s48 + $0xfac] sm:%s38]
      %1057 = vst [vmem:[%s49 + $0xfb8] sm:%s38] %v1056
      %v1058 = vld [vmem:[%s48 + $0xfb0] sm:%s38]
      %1059 = vst [vmem:[%s49 + $0xfc0] sm:%s38] %v1058
      %v1060 = vld [vmem:[%s48 + $0xfc8] sm:%s38]
      %1061 = vst [vmem:[%s49 + $0xfc8] sm:%s38] %v1060
      %v1062 = vld [vmem:[%s48 + $0xfcc] sm:%s38]
      %1063 = vst [vmem:[%s49 + $0xfd0] sm:%s38] %v1062
      %v1064 = vld [vmem:[%s48 + $0xfd0] sm:%s38]
      %1065 = vst [vmem:[%s49 + $0xfd8] sm:%s38] %v1064
      %v1066 = vld [vmem:[%s48 + $0xfd4] sm:%s38]
      %1067 = vst [vmem:[%s49 + $0xfe0] sm:%s38] %v1066
      %v1068 = vld [vmem:[%s48 + $0xfd8] sm:%s38]
      %1069 = vst [vmem:[%s49 + $0xfe8] sm:%s38] %v1068
      %v1070 = vld [vmem:[%s48 + $0xff0] sm:%s38]
      %1071 = vst [vmem:[%s49 + $0xff0] sm:%s38] %v1070
      %v1072 = vld [vmem:[%s48 + $0xff4] sm:%s38]
      %1073 = vst [vmem:[%s49 + $0xff8] sm:%s38] %v1072
      %v1074 = vld [vmem:[%s48 + $0xff8] sm:%s38]
      %1075 = vst [vmem:[%s49 + $0x1000] sm:%s38] %v1074
      %v1076 = vld [vmem:[%s48 + $0xffc] sm:%s38]
      %1077 = vst [vmem:[%s49 + $0x1008] sm:%s38] %v1076
      %v1078 = vld [vmem:[%s48 + $0x1000] sm:%s38]
      %1079 = vst [vmem:[%s49 + $0x1010] sm:%s38] %v1078
      %v1080 = vld [vmem:[%s48 + $0x1018] sm:%s38]
      %1081 = vst [vmem:[%s49 + $0x1018] sm:%s38] %v1080
      %v1082 = vld [vmem:[%s48 + $0x101c] sm:%s38]
      %1083 = vst [vmem:[%s49 + $0x1020] sm:%s38] %v1082
      %v1084 = vld [vmem:[%s48 + $0x1020] sm:%s38]
      %1085 = vst [vmem:[%s49 + $0x1028] sm:%s38] %v1084
      %v1086 = vld [vmem:[%s48 + $0x1024] sm:%s38]
      %1087 = vst [vmem:[%s49 + $0x1030] sm:%s38] %v1086
      %v1088 = vld [vmem:[%s48 + $0x1028] sm:%s38]
      %1089 = vst [vmem:[%s49 + $0x1038] sm:%s38] %v1088
      %v1090 = vld [vmem:[%s48 + $0x1040] sm:%s38]
      %1091 = vst [vmem:[%s49 + $0x1040] sm:%s38] %v1090
      %v1092 = vld [vmem:[%s48 + $0x1044] sm:%s38]
      %1093 = vst [vmem:[%s49 + $0x1048] sm:%s38] %v1092
      %v1094 = vld [vmem:[%s48 + $0x1048] sm:%s38]
      %1095 = vst [vmem:[%s49 + $0x1050] sm:%s38] %v1094
      %v1096 = vld [vmem:[%s48 + $0x104c] sm:%s38]
      %1097 = vst [vmem:[%s49 + $0x1058] sm:%s38] %v1096
      %v1098 = vld [vmem:[%s48 + $0x1050] sm:%s38]
      %1099 = vst [vmem:[%s49 + $0x1060] sm:%s38] %v1098
      %v1100 = vld [vmem:[%s48 + $0x1068] sm:%s38]
      %1101 = vst [vmem:[%s49 + $0x1068] sm:%s38] %v1100
      %v1102 = vld [vmem:[%s48 + $0x106c] sm:%s38]
      %1103 = vst [vmem:[%s49 + $0x1070] sm:%s38] %v1102
      %v1104 = vld [vmem:[%s48 + $0x1070] sm:%s38]
      %1105 = vst [vmem:[%s49 + $0x1078] sm:%s38] %v1104
      %v1106 = vld [vmem:[%s48 + $0x1074] sm:%s38]
      %1107 = vst [vmem:[%s49 + $0x1080] sm:%s38] %v1106
      %v1108 = vld [vmem:[%s48 + $0x1078] sm:%s38]
      %1109 = vst [vmem:[%s49 + $0x1088] sm:%s38] %v1108
      %v1110 = vld [vmem:[%s48 + $0x1090] sm:%s38]
      %1111 = vst [vmem:[%s49 + $0x1090] sm:%s38] %v1110
      %v1112 = vld [vmem:[%s48 + $0x1094] sm:%s38]
      %1113 = vst [vmem:[%s49 + $0x1098] sm:%s38] %v1112
      %v1114 = vld [vmem:[%s48 + $0x1098] sm:%s38]
      %1115 = vst [vmem:[%s49 + $0x10a0] sm:%s38] %v1114
      %v1116 = vld [vmem:[%s48 + $0x109c] sm:%s38]
      %1117 = vst [vmem:[%s49 + $0x10a8] sm:%s38] %v1116
      %v1118 = vld [vmem:[%s48 + $0x10a0] sm:%s38]
      %1119 = vst [vmem:[%s49 + $0x10b0] sm:%s38] %v1118
      %v1120 = vld [vmem:[%s48 + $0x10b8] sm:%s38]
      %1121 = vst [vmem:[%s49 + $0x10b8] sm:%s38] %v1120
      %v1122 = vld [vmem:[%s48 + $0x10bc] sm:%s38]
      %1123 = vst [vmem:[%s49 + $0x10c0] sm:%s38] %v1122
      %v1124 = vld [vmem:[%s48 + $0x10c0] sm:%s38]
      %1125 = vst [vmem:[%s49 + $0x10c8] sm:%s38] %v1124
      %v1126 = vld [vmem:[%s48 + $0x10c4] sm:%s38]
      %1127 = vst [vmem:[%s49 + $0x10d0] sm:%s38] %v1126
      %v1128 = vld [vmem:[%s48 + $0x10c8] sm:%s38]
      %1129 = vst [vmem:[%s49 + $0x10d8] sm:%s38] %v1128
      %v1130 = vld [vmem:[%s48 + $0x10e0] sm:%s38]
      %1131 = vst [vmem:[%s49 + $0x10e0] sm:%s38] %v1130
      %v1132 = vld [vmem:[%s48 + $0x10e4] sm:%s38]
      %1133 = vst [vmem:[%s49 + $0x10e8] sm:%s38] %v1132
      %v1134 = vld [vmem:[%s48 + $0x10e8] sm:%s38]
      %1135 = vst [vmem:[%s49 + $0x10f0] sm:%s38] %v1134
      %v1136 = vld [vmem:[%s48 + $0x10ec] sm:%s38]
      %1137 = vst [vmem:[%s49 + $0x10f8] sm:%s38] %v1136
      %v1138 = vld [vmem:[%s48 + $0x10f0] sm:%s38]
      %1139 = vst [vmem:[%s49 + $0x1100] sm:%s38] %v1138
      %v1140 = vld [vmem:[%s48 + $0x1108] sm:%s38]
      %1141 = vst [vmem:[%s49 + $0x1108] sm:%s38] %v1140
      %v1142 = vld [vmem:[%s48 + $0x110c] sm:%s38]
      %1143 = vst [vmem:[%s49 + $0x1110] sm:%s38] %v1142
      %v1144 = vld [vmem:[%s48 + $0x1110] sm:%s38]
      %1145 = vst [vmem:[%s49 + $0x1118] sm:%s38] %v1144
      %v1146 = vld [vmem:[%s48 + $0x1114] sm:%s38]
      %1147 = vst [vmem:[%s49 + $0x1120] sm:%s38] %v1146
      %v1148 = vld [vmem:[%s48 + $0x1118] sm:%s38]
      %1149 = vst [vmem:[%s49 + $0x1128] sm:%s38] %v1148
      %v1150 = vld [vmem:[%s48 + $0x1130] sm:%s38]
      %1151 = vst [vmem:[%s49 + $0x1130] sm:%s38] %v1150
      %v1152 = vld [vmem:[%s48 + $0x1134] sm:%s38]
      %1153 = vst [vmem:[%s49 + $0x1138] sm:%s38] %v1152
      %v1154 = vld [vmem:[%s48 + $0x1138] sm:%s38]
      %1155 = vst [vmem:[%s49 + $0x1140] sm:%s38] %v1154
      %v1156 = vld [vmem:[%s48 + $0x113c] sm:%s38]
      %1157 = vst [vmem:[%s49 + $0x1148] sm:%s38] %v1156
      %v1158 = vld [vmem:[%s48 + $0x1140] sm:%s38]
      %1159 = vst [vmem:[%s49 + $0x1150] sm:%s38] %v1158
      %v1160 = vld [vmem:[%s48 + $0x1158] sm:%s38]
      %1161 = vst [vmem:[%s49 + $0x1158] sm:%s38] %v1160
      %v1162 = vld [vmem:[%s48 + $0x115c] sm:%s38]
      %1163 = vst [vmem:[%s49 + $0x1160] sm:%s38] %v1162
      %v1164 = vld [vmem:[%s48 + $0x1160] sm:%s38]
      %1165 = vst [vmem:[%s49 + $0x1168] sm:%s38] %v1164
      %v1166 = vld [vmem:[%s48 + $0x1164] sm:%s38]
      %1167 = vst [vmem:[%s49 + $0x1170] sm:%s38] %v1166
      %v1168 = vld [vmem:[%s48 + $0x1168] sm:%s38]
      %1169 = vst [vmem:[%s49 + $0x1178] sm:%s38] %v1168
      %v1170 = vld [vmem:[%s48 + $0x1180] sm:%s38]
      %1171 = vst [vmem:[%s49 + $0x1180] sm:%s38] %v1170
      %v1172 = vld [vmem:[%s48 + $0x1184] sm:%s38]
      %1173 = vst [vmem:[%s49 + $0x1188] sm:%s38] %v1172
      %v1174 = vld [vmem:[%s48 + $0x1188] sm:%s38]
      %1175 = vst [vmem:[%s49 + $0x1190] sm:%s38] %v1174
      %v1176 = vld [vmem:[%s48 + $0x118c] sm:%s38]
      %1177 = vst [vmem:[%s49 + $0x1198] sm:%s38] %v1176
      %v1178 = vld [vmem:[%s48 + $0x1190] sm:%s38]
      %1179 = vst [vmem:[%s49 + $0x11a0] sm:%s38] %v1178
      %v1180 = vld [vmem:[%s48 + $0x11a8] sm:%s38]
      %1181 = vst [vmem:[%s49 + $0x11a8] sm:%s38] %v1180
      %v1182 = vld [vmem:[%s48 + $0x11ac] sm:%s38]
      %1183 = vst [vmem:[%s49 + $0x11b0] sm:%s38] %v1182
      %v1184 = vld [vmem:[%s48 + $0x11b0] sm:%s38]
      %1185 = vst [vmem:[%s49 + $0x11b8] sm:%s38] %v1184
      %v1186 = vld [vmem:[%s48 + $0x11b4] sm:%s38]
      %1187 = vst [vmem:[%s49 + $0x11c0] sm:%s38] %v1186
      %v1188 = vld [vmem:[%s48 + $0x11b8] sm:%s38]
      %1189 = vst [vmem:[%s49 + $0x11c8] sm:%s38] %v1188
      %v1190 = vld [vmem:[%s48 + $0x11d0] sm:%s38]
      %1191 = vst [vmem:[%s49 + $0x11d0] sm:%s38] %v1190
      %v1192 = vld [vmem:[%s48 + $0x11d4] sm:%s38]
      %1193 = vst [vmem:[%s49 + $0x11d8] sm:%s38] %v1192
      %v1194 = vld [vmem:[%s48 + $0x11d8] sm:%s38]
      %1195 = vst [vmem:[%s49 + $0x11e0] sm:%s38] %v1194
      %v1196 = vld [vmem:[%s48 + $0x11dc] sm:%s38]
      %1197 = vst [vmem:[%s49 + $0x11e8] sm:%s38] %v1196
      %v1198 = vld [vmem:[%s48 + $0x11e0] sm:%s38]
      %1199 = vst [vmem:[%s49 + $0x11f0] sm:%s38] %v1198
      %v1200 = vld [vmem:[%s48 + $0x11f8] sm:%s38]
      %1201 = vst [vmem:[%s49 + $0x11f8] sm:%s38] %v1200
      %v1202 = vld [vmem:[%s48 + $0x11fc] sm:%s38]
      %1203 = vst [vmem:[%s49 + $0x1200] sm:%s38] %v1202
      %v1204 = vld [vmem:[%s48 + $0x1200] sm:%s38]
      %1205 = vst [vmem:[%s49 + $0x1208] sm:%s38] %v1204
      %v1206 = vld [vmem:[%s48 + $0x1204] sm:%s38]
      %1207 = vst [vmem:[%s49 + $0x1210] sm:%s38] %v1206
      %v1208 = vld [vmem:[%s48 + $0x1208] sm:%s38]
      %1209 = vst [vmem:[%s49 + $0x1218] sm:%s38] %v1208
      %v1210 = vld [vmem:[%s48 + $0x1220] sm:%s38]
      %1211 = vst [vmem:[%s49 + $0x1220] sm:%s38] %v1210
      %v1212 = vld [vmem:[%s48 + $0x1224] sm:%s38]
      %1213 = vst [vmem:[%s49 + $0x1228] sm:%s38] %v1212
      %v1214 = vld [vmem:[%s48 + $0x1228] sm:%s38]
      %1215 = vst [vmem:[%s49 + $0x1230] sm:%s38] %v1214
      %v1216 = vld [vmem:[%s48 + $0x122c] sm:%s38]
      %1217 = vst [vmem:[%s49 + $0x1238] sm:%s38] %v1216
      %v1218 = vld [vmem:[%s48 + $0x1230] sm:%s38]
      %1219 = vst [vmem:[%s49 + $0x1240] sm:%s38] %v1218
      %v1220 = vld [vmem:[%s48 + $0x1248] sm:%s38]
      %1221 = vst [vmem:[%s49 + $0x1248] sm:%s38] %v1220
      %v1222 = vld [vmem:[%s48 + $0x124c] sm:%s38]
      %1223 = vst [vmem:[%s49 + $0x1250] sm:%s38] %v1222
      %v1224 = vld [vmem:[%s48 + $0x1250] sm:%s38]
      %1225 = vst [vmem:[%s49 + $0x1258] sm:%s38] %v1224
      %v1226 = vld [vmem:[%s48 + $0x1254] sm:%s38]
      %1227 = vst [vmem:[%s49 + $0x1260] sm:%s38] %v1226
      %v1228 = vld [vmem:[%s48 + $0x1258] sm:%s38]
      %1229 = vst [vmem:[%s49 + $0x1268] sm:%s38] %v1228
      %v1230 = vld [vmem:[%s48 + $0x1270] sm:%s38]
      %1231 = vst [vmem:[%s49 + $0x1270] sm:%s38] %v1230
      %v1232 = vld [vmem:[%s48 + $0x1274] sm:%s38]
      %1233 = vst [vmem:[%s49 + $0x1278] sm:%s38] %v1232
      %v1234 = vld [vmem:[%s48 + $0x1278] sm:%s38]
      %1235 = vst [vmem:[%s49 + $0x1280] sm:%s38] %v1234
      %v1236 = vld [vmem:[%s48 + $0x127c] sm:%s38]
      %1237 = vst [vmem:[%s49 + $0x1288] sm:%s38] %v1236
      %v1238 = vld [vmem:[%s48 + $0x1280] sm:%s38]
      %1239 = vst [vmem:[%s49 + $0x1290] sm:%s38] %v1238
      %v1240 = vld [vmem:[%s48 + $0x1298] sm:%s38]
      %1241 = vst [vmem:[%s49 + $0x1298] sm:%s38] %v1240
      %v1242 = vld [vmem:[%s48 + $0x129c] sm:%s38]
      %1243 = vst [vmem:[%s49 + $0x12a0] sm:%s38] %v1242
      %v1244 = vld [vmem:[%s48 + $0x12a0] sm:%s38]
      %1245 = vst [vmem:[%s49 + $0x12a8] sm:%s38] %v1244
      %v1246 = vld [vmem:[%s48 + $0x12a4] sm:%s38]
      %1247 = vst [vmem:[%s49 + $0x12b0] sm:%s38] %v1246
      %v1248 = vld [vmem:[%s48 + $0x12a8] sm:%s38]
      %1249 = vst [vmem:[%s49 + $0x12b8] sm:%s38] %v1248
      %v1250 = vld [vmem:[%s48 + $0x12c0] sm:%s38]
      %1251 = vst [vmem:[%s49 + $0x12c0] sm:%s38] %v1250
      %v1252 = vld [vmem:[%s48 + $0x12c4] sm:%s38]
      %1253 = vst [vmem:[%s49 + $0x12c8] sm:%s38] %v1252
      %v1254 = vld [vmem:[%s48 + $0x12c8] sm:%s38]
      %1255 = vst [vmem:[%s49 + $0x12d0] sm:%s38] %v1254
      %v1256 = vld [vmem:[%s48 + $0x12cc] sm:%s38]
      %1257 = vst [vmem:[%s49 + $0x12d8] sm:%s38] %v1256
      %v1258 = vld [vmem:[%s48 + $0x12d0] sm:%s38]
      %1259 = vst [vmem:[%s49 + $0x12e0] sm:%s38] %v1258
      %v1260 = vld [vmem:[%s48 + $0x12e8] sm:%s38]
      %1261 = vst [vmem:[%s49 + $0x12e8] sm:%s38] %v1260
      %v1262 = vld [vmem:[%s48 + $0x12ec] sm:%s38]
      %1263 = vst [vmem:[%s49 + $0x12f0] sm:%s38] %v1262
      %v1264 = vld [vmem:[%s48 + $0x12f0] sm:%s38]
      %1265 = vst [vmem:[%s49 + $0x12f8] sm:%s38] %v1264
      %v1266 = vld [vmem:[%s48 + $0x12f4] sm:%s38]
      %1267 = vst [vmem:[%s49 + $0x1300] sm:%s38] %v1266
      %v1268 = vld [vmem:[%s48 + $0x12f8] sm:%s38]
      %1269 = vst [vmem:[%s49 + $0x1308] sm:%s38] %v1268
      %v1270 = vld [vmem:[%s48 + $0x1310] sm:%s38]
      %1271 = vst [vmem:[%s49 + $0x1310] sm:%s38] %v1270
      %v1272 = vld [vmem:[%s48 + $0x1314] sm:%s38]
      %1273 = vst [vmem:[%s49 + $0x1318] sm:%s38] %v1272
      %v1274 = vld [vmem:[%s48 + $0x1318] sm:%s38]
      %1275 = vst [vmem:[%s49 + $0x1320] sm:%s38] %v1274
      %v1276 = vld [vmem:[%s48 + $0x131c] sm:%s38]
      %1277 = vst [vmem:[%s49 + $0x1328] sm:%s38] %v1276
      %v1278 = vld [vmem:[%s48 + $0x1320] sm:%s38]
      %1279 = vst [vmem:[%s49 + $0x1330] sm:%s38] %v1278
      %s1280 = sadd.s32 1, %s47
      %p1281 = scmp.ge.s32.totalorder %s1280, 2
      %s1282 = scalar_select %p1281, 0, %s1280
      %s1283 = smul.u32 %s1282, 20
      %s1284 = smul.u32 %s1282, 4
      %s1285 = scalar_lea.vmem %s4, %s1283
      %s1286 = scalar_lea.vmem [#allocation2], %s1284
    $region42: #{discriminator_forward.1} parent=36 // loop_footer
      %s46 = sadd.s32 1, %s42
    $region43: #{discriminator_forward.1} parent=36 // loop_footer_branch
      %41 = sbr.rel target = $region39
    $region44: #{discriminator_forward.1} parent=36 // loop_exit
      _
  $region37: #{discriminator_forward.1} parent=0 // pred_fallthru
    _
  // Predicated region
  $region74: #{discriminator_forward.1} parent=0 // pred_check
    _
  $region75: #{discriminator_forward.1} parent=0 // pred_check_branch
    %5073 = sbr.rel (0) target = $region77
  $region76: #{discriminator_forward.1} parent=0 // pred_region
    %5074 = vsyncadd [#allocation4], 78720
  $region77: #{discriminator_forward.1} parent=0 // pred_fallthru
    _
  %v5075 = vld [vmem:[%s2] sm:$0xff]
  %v5076 = vld [vmem:[%s2 + $0x8] sm:$0xff]
  %v5077 = vld [vmem:[%s0] sm:$0xff]
  %v5078 = vld [vmem:[%s0 + $0x8] sm:$0xff]
  %v5079 = vld [vmem:[%s0 + $0x10] sm:$0xff]
  %v5080 = vld [vmem:[%s0 + $0x18] sm:$0xff]
  %v5081 = vld [vmem:[%s0 + $0x20] sm:$0xff]
  %v5082 = vld [vmem:[%s0 + $0x28] sm:$0xff]
  %v5083 = vld [vmem:[%s0 + $0x30] sm:$0xff]
  %v5084 = vld [vmem:[%s0 + $0x38] sm:$0xff]
  %v5085 = vld [vmem:[%s0 + $0x40] sm:$0xff]
  %v5086 = vld [vmem:[%s0 + $0x48] sm:$0xff]
  %v5087 = vld [vmem:[%s0 + $0x50] sm:$0xff]
  %v5088 = vld [vmem:[%s0 + $0x58] sm:$0xff]
  %v5089 = vld [vmem:[%s0 + $0x60] sm:$0xff]
  %v5090 = vld [vmem:[%s0 + $0x68] sm:$0xff]
  %v5091 = vld [vmem:[%s0 + $0x70] sm:$0xff]
  %v5092 = vld [vmem:[%s0 + $0x78] sm:$0xff]
  %v5093 = vld [vmem:[%s0 + $0x80] sm:$0xff]
  %v5094 = vld [vmem:[%s0 + $0x88] sm:$0xff]
  %v5095 = vld [vmem:[%s0 + $0x90] sm:$0xff]
  %v5096 = vld [vmem:[%s0 + $0x98] sm:$0xff]
  %vm5097 = vcmask 654336
  %v5099 = vsel %vm5097, %v5075, 0
  %v5102 = vsel %vm5097, %v5076, 0
  %5104 = vmatprep.subr.mxu0 %v5078
  %5105 = vmatpush1.msra.mxu0 %v5077
  %5106 = vmatprep.subr.mxu0 %v5080
  %5107 = vmatpush1.msra.mxu0 %v5079
  %5108 = vmatprep.subr.mxu0 %v5082
  %5109 = vmatpush1.msra.mxu0 %v5081
  %5110 = vmatprep.subr.mxu0 %v5084
  %5111 = vmatpush1.msra.mxu0 %v5083
  %5112 = vmatprep.subr.mxu0 %v5086
  %5113 = vmatpush1.msra.mxu0 %v5085
  %5114 = vmatprep.subr.mxu0 %v5088
  %5115 = vmatpush1.msra.mxu0 %v5087
  %5116 = vmatprep.subr.mxu0 %v5090
  %5117 = vmatpush1.msra.mxu0 %v5089
  %5118 = vmatprep.subr.mxu0 %v5092
  %5119 = vmatpush1.msra.mxu0 %v5091
  %5120 = vmatprep.subr.mxu0 %v5094
  %5121 = vmatpush1.msra.mxu0 %v5093
  %5122 = vmatprep.subr.mxu0 %v5096
  %5123 = vmatpush1.msra.mxu0 %v5095
  %5124 = vmatprep.subr.mxu0 0.0
  %5125 = vmatpush1.msra.mxu0 0.0
  %5126 = vmatprep.subr.mxu0 0.0
  %5127 = vmatpush1.msra.mxu0 0.0
  %5128 = vmatprep.subr.mxu0 0.0
  %5129 = vmatpush1.msra.mxu0 0.0
  %5130 = vmatprep.subr.mxu0 0.0
  %5131 = vmatpush1.msra.mxu0 0.0
  %5132 = vmatprep.subr.mxu0 0.0
  %5133 = vmatpush1.msra.mxu0 0.0
  %5134 = vmatprep.subr.mxu0 0.0
  %5135 = vmatpush1.msra.mxu0 0.0
  %5136 = vmatprep.subr.mxu0 0.0
  %5137 = vmatpush1.msra.mxu0 0.0
  %5138 = vmatprep.subr.mxu0 0.0
  %5139 = vmatpush1.msra.mxu0 0.0
  %5140 = vmatprep.subr.mxu0 0.0
  %5141 = vmatpush1.msra.mxu0 0.0
  %5142 = vmatprep.subr.mxu0 0.0
  %5143 = vmatpush1.msra.mxu0 0.0
  %5144 = vmatprep.subr.mxu0 0.0
  %5145 = vmatpush1.msra.mxu0 0.0
  %5146 = vmatprep.subr.mxu0 0.0
  %5147 = vmatpush1.msra.mxu0 0.0
  %5148 = vmatprep.subr.mxu0 0.0
  %5149 = vmatpush1.msra.mxu0 0.0
  %5150 = vmatprep.subr.mxu0 0.0
  %5151 = vmatpush1.msra.mxu0 0.0
  %5152 = vmatprep.subr.mxu0 0.0
  %5153 = vmatpush1.msra.mxu0 0.0
  %5154 = vmatprep.subr.mxu0 0.0
  %5155 = vmatpush1.msra.mxu0 0.0
  %5156 = vmatprep.subr.mxu0 0.0
  %5157 = vmatpush1.msra.mxu0 0.0
  %5158 = vmatprep.subr.mxu0 0.0
  %5159 = vmatpush1.msra.mxu0 0.0
  %5160 = vmatprep.subr.mxu0 0.0
  %5161 = vmatpush1.msra.mxu0 0.0
  %5162 = vmatprep.subr.mxu0 0.0
  %5163 = vmatpush1.msra.mxu0 0.0
  %5164 = vmatprep.subr.mxu0 0.0
  %5165 = vmatpush1.msra.mxu0 0.0
  %5166 = vmatprep.subr.mxu0 0.0
  %5167 = vmatpush1.msra.mxu0 0.0
  %5168 = vmatprep.mubr.f32.mxu0 0.0
  %5169 = vmatmul.mubr.f32.gmra.mrb[0].mxu0 %v5099
  %v5170 = vpop.f32.mrb[0].mxu0
  %v5171 = vadd.f32 0.0, %v5170
  %v5172 = vpop.f32.mrb[0].mxu0
  %v5173 = vadd.f32 0.0, %v5172
  %5174 = vmatprep.mubr.f32.mxu0 0.0
  %5175 = vmatmul.mubr.f32.gmra.mrb[0].mxu0 %v5102
  %v5176 = vpop.f32.mrb[0].mxu0
  %v5177 = vadd.f32 0.0, %v5176
  %v5178 = vpop.f32.mrb[0].mxu0
  %v5179 = vadd.f32 0.0, %v5178
  %5180 = vdwg.mxu0
  %v5181 = vld [vmem:[%s1] sm:$0xff]
  %v5182 = vld [vmem:[%s1 + $0x8] sm:$0xff]
  %v5183 = vld [vmem:[%s1 + $0x10] sm:$0xff]
  %v5184 = vld [vmem:[%s1 + $0x18] sm:$0xff]
  %v5185 = vld [vmem:[%s1 + $0x20] sm:$0xff]
  %v5186 = vld [vmem:[%s1 + $0x28] sm:$0xff]
  %v5187 = vld [vmem:[%s1 + $0x30] sm:$0xff]
  %v5188 = vld [vmem:[%s1 + $0x38] sm:$0xff]
  %v5189 = vld [vmem:[%s1 + $0x40] sm:$0xff]
  %v5190 = vld [vmem:[%s1 + $0x48] sm:$0xff]
  %v5191 = vld [vmem:[%s1 + $0x50] sm:$0xff]
  %v5192 = vld [vmem:[%s1 + $0x58] sm:$0xff]
  %v5193 = vld [vmem:[%s1 + $0x60] sm:$0xff]
  %v5194 = vld [vmem:[%s1 + $0x68] sm:$0xff]
  %v5195 = vld [vmem:[%s1 + $0x70] sm:$0xff]
  %v5196 = vld [vmem:[%s1 + $0x78] sm:$0xff]
  %v5197 = vld [vmem:[%s1 + $0x80] sm:$0xff]
  %v5198 = vld [vmem:[%s1 + $0x88] sm:$0xff]
  %v5199 = vld [vmem:[%s1 + $0x90] sm:$0xff]
  %v5200 = vld [vmem:[%s1 + $0x98] sm:$0xff]
  %5201 = vmatprep.subr.mxu0 %v5182
  %5202 = vmatpush1.msra.mxu0 %v5181
  %5203 = vmatprep.subr.mxu0 %v5184
  %5204 = vmatpush1.msra.mxu0 %v5183
  %5205 = vmatprep.subr.mxu0 %v5186
  %5206 = vmatpush1.msra.mxu0 %v5185
  %5207 = vmatprep.subr.mxu0 %v5188
  %5208 = vmatpush1.msra.mxu0 %v5187
  %5209 = vmatprep.subr.mxu0 %v5190
  %5210 = vmatpush1.msra.mxu0 %v5189
  %5211 = vmatprep.subr.mxu0 %v5192
  %5212 = vmatpush1.msra.mxu0 %v5191
  %5213 = vmatprep.subr.mxu0 %v5194
  %5214 = vmatpush1.msra.mxu0 %v5193
  %5215 = vmatprep.subr.mxu0 %v5196
  %5216 = vmatpush1.msra.mxu0 %v5195
  %5217 = vmatprep.subr.mxu0 %v5198
  %5218 = vmatpush1.msra.mxu0 %v5197
  %5219 = vmatprep.subr.mxu0 %v5200
  %5220 = vmatpush1.msra.mxu0 %v5199
  %5221 = vmatprep.subr.mxu0 0.0
  %5222 = vmatpush1.msra.mxu0 0.0
  %5223 = vmatprep.subr.mxu0 0.0
  %5224 = vmatpush1.msra.mxu0 0.0
  %5225 = vmatprep.subr.mxu0 0.0
  %5226 = vmatpush1.msra.mxu0 0.0
  %5227 = vmatprep.subr.mxu0 0.0
  %5228 = vmatpush1.msra.mxu0 0.0
  %5229 = vmatprep.subr.mxu0 0.0
  %5230 = vmatpush1.msra.mxu0 0.0
  %5231 = vmatprep.subr.mxu0 0.0
  %5232 = vmatpush1.msra.mxu0 0.0
  %5233 = vmatprep.subr.mxu0 0.0
  %5234 = vmatpush1.msra.mxu0 0.0
  %5235 = vmatprep.subr.mxu0 0.0
  %5236 = vmatpush1.msra.mxu0 0.0
  %5237 = vmatprep.subr.mxu0 0.0
  %5238 = vmatpush1.msra.mxu0 0.0
  %5239 = vmatprep.subr.mxu0 0.0
  %5240 = vmatpush1.msra.mxu0 0.0
  %5241 = vmatprep.subr.mxu0 0.0
  %5242 = vmatpush1.msra.mxu0 0.0
  %5243 = vmatprep.subr.mxu0 0.0
  %5244 = vmatpush1.msra.mxu0 0.0
  %5245 = vmatprep.subr.mxu0 0.0
  %5246 = vmatpush1.msra.mxu0 0.0
  %5247 = vmatprep.subr.mxu0 0.0
  %5248 = vmatpush1.msra.mxu0 0.0
  %5249 = vmatprep.subr.mxu0 0.0
  %5250 = vmatpush1.msra.mxu0 0.0
  %5251 = vmatprep.subr.mxu0 0.0
  %5252 = vmatpush1.msra.mxu0 0.0
  %5253 = vmatprep.subr.mxu0 0.0
  %5254 = vmatpush1.msra.mxu0 0.0
  %5255 = vmatprep.subr.mxu0 0.0
  %5256 = vmatpush1.msra.mxu0 0.0
  %5257 = vmatprep.subr.mxu0 0.0
  %5258 = vmatpush1.msra.mxu0 0.0
  %5259 = vmatprep.subr.mxu0 0.0
  %5260 = vmatpush1.msra.mxu0 0.0
  %5261 = vmatprep.subr.mxu0 0.0
  %5262 = vmatpush1.msra.mxu0 0.0
  %5263 = vmatprep.subr.mxu0 0.0
  %5264 = vmatpush1.msra.mxu0 0.0
  %5265 = vmatprep.mubr.f32.mxu0 0.0
  %5266 = vmatmul.mubr.f32.gmra.mrb[0].mxu0 %v5099
  %v5267 = vpop.f32.mrb[0].mxu0
  %v5268 = vadd.f32 0.0, %v5267
  %v5269 = vpop.f32.mrb[0].mxu0
  %v5270 = vadd.f32 0.0, %v5269
  %5271 = vmatprep.mubr.f32.mxu0 0.0
  %5272 = vmatmul.mubr.f32.gmra.mrb[0].mxu0 %v5102
  %v5273 = vpop.f32.mrb[0].mxu0
  %v5274 = vadd.f32 0.0, %v5273
  %v5275 = vpop.f32.mrb[0].mxu0
  %v5276 = vadd.f32 0.0, %v5275
  %5277 = vdwg.mxu0
  %v5278 = vmax.f32 %v5171, %v5268
  %v5279 = vmax.f32 %v5173, %v5270
  %v5280 = vmax.f32 %v5177, %v5274
  %v5281 = vmax.f32 %v5179, %v5276
  %v5282 = vld [vmem:[%s3] sm:$0xff]
  %v5283 = vld [vmem:[%s3 + $0x8] sm:$0xff]
  %5285 = vset.pattern.permute.xlu0 0
  %5286 = vperm.xlu0 %5285, %v5282
  %v5287 = vpop.permute.xlu0 %5286
  %5290 = vset.pattern.permute.xlu0 0
  %5291 = vperm.xlu0 %5290, %v5283
  %v5292 = vpop.permute.xlu0 %5291
  %v5294 = vadd.f32 %v5278, %v5287
  %v5295 = vadd.f32 %v5279, %v5287
  %v5296 = vadd.f32 %v5280, %v5292
  %v5297 = vadd.f32 %v5281, %v5292
  %v5298 = vmul.f32 %v5294, 0.2
  %v5299 = vmul.f32 %v5295, 0.2
  %v5300 = vmul.f32 %v5296, 0.2
  %v5301 = vmul.f32 %v5297, 0.2
  %v5302 = vmax.f32 %v5294, %v5298
  %v5303 = vmax.f32 %v5295, %v5299
  %v5304 = vmax.f32 %v5296, %v5300
  %v5305 = vmax.f32 %v5297, %v5301
  %v5307 = vrot.slane %v5302, 1
  %5308 = vrot.lane.b32.xlu0 %v5307, 123
  %v5309 = vpop.permute.xlu0 %5308
  %v5311 = vrot.slane %v5302, 2
  %5312 = vrot.lane.b32.xlu0 %v5311, 118
  %v5313 = vpop.permute.xlu0 %5312
  %v5315 = vrot.slane %v5302, 3
  %5316 = vrot.lane.b32.xlu0 %v5315, 113
  %v5317 = vpop.permute.xlu0 %5316
  %v5319 = vrot.slane %v5302, 4
  %5320 = vrot.lane.b32.xlu0 %v5319, 108
  %v5321 = vpop.permute.xlu0 %5320
  %v5323 = vrot.slane %v5302, 5
  %5324 = vrot.lane.b32.xlu0 %v5323, 103
  %v5325 = vpop.permute.xlu0 %5324
  %v5327 = vrot.slane %v5302, 6
  %5328 = vrot.lane.b32.xlu0 %v5327, 98
  %v5329 = vpop.permute.xlu0 %5328
  %v5331 = vrot.slane %v5302, 7
  %5332 = vrot.lane.b32.xlu0 %v5331, 93
  %v5333 = vpop.permute.xlu0 %5332
  %5336 = vrot.lane.b32.xlu0 %v5304, 88
  %v5337 = vpop.permute.xlu0 %5336
  %v5339 = vrot.slane %v5304, 1
  %5340 = vrot.lane.b32.xlu0 %v5339, 83
  %v5341 = vpop.permute.xlu0 %5340
  %v5343 = vrot.slane %v5304, 2
  %5344 = vrot.lane.b32.xlu0 %v5343, 78
  %v5345 = vpop.permute.xlu0 %5344
  %v5347 = vrot.slane %v5304, 3
  %5348 = vrot.lane.b32.xlu0 %v5347, 73
  %v5349 = vpop.permute.xlu0 %5348
  %v5351 = vrot.slane %v5304, 4
  %5352 = vrot.lane.b32.xlu0 %v5351, 68
  %v5353 = vpop.permute.xlu0 %5352
  %v5355 = vrot.slane %v5304, 5
  %5356 = vrot.lane.b32.xlu0 %v5355, 63
  %v5357 = vpop.permute.xlu0 %5356
  %v5359 = vrot.slane %v5304, 6
  %5360 = vrot.lane.b32.xlu0 %v5359, 58
  %v5361 = vpop.permute.xlu0 %5360
  %v5363 = vrot.slane %v5304, 7
  %5364 = vrot.lane.b32.xlu0 %v5363, 53
  %v5365 = vpop.permute.xlu0 %5364
  %vm5367 = vcmask 1006592
  %v5368 = vsel %vm5367, %v5302, %v5309
  %vm5369 = vcmask 965632
  %v5370 = vsel %vm5369, %v5309, %v5313
  %vm5371 = vcmask 924672
  %v5372 = vsel %vm5371, %v5313, %v5317
  %vm5373 = vcmask 883712
  %v5374 = vsel %vm5373, %v5317, %v5321
  %vm5375 = vcmask 842752
  %v5376 = vsel %vm5375, %v5321, %v5325
  %vm5377 = vcmask 801792
  %v5378 = vsel %vm5377, %v5325, %v5329
  %vm5379 = vcmask 760832
  %v5380 = vsel %vm5379, %v5329, %v5333
  %vm5381 = vcmask 719872
  %v5382 = vsel %vm5381, %v5333, %v5337
  %vm5383 = vcmask 678912
  %v5384 = vsel %vm5383, %v5337, %v5341
  %vm5385 = vcmask 637952
  %v5386 = vsel %vm5385, %v5341, %v5345
  %vm5387 = vcmask 596992
  %v5388 = vsel %vm5387, %v5345, %v5349
  %vm5389 = vcmask 556032
  %v5390 = vsel %vm5389, %v5349, %v5353
  %vm5391 = vcmask 515072
  %v5392 = vsel %vm5391, %v5353, %v5357
  %vm5393 = vcmask 474112
  %v5394 = vsel %vm5393, %v5357, %v5361
  %vm5395 = vcmask 433152
  %v5396 = vsel %vm5395, %v5361, %v5365
  %v5412 = vcombine.low %v5368, %v5370
  %v5413 = vcombine.low %v5372, %v5374
  %v5414 = vcombine.low %v5376, %v5378
  %v5415 = vcombine.low %v5380, %v5382
  %v5417 = vunpack.c.l.s4 1966171168
  %v5418 = vunpack.c.0.s8 %v5417
  %v5419 = vlaneseq
  %v5420 = vshrl.u32 %v5419, 7
  %v5421 = vsub.s32 %v5418, %v5420
  %v5422 = vrot.slane %v5412, %v5421
  %v5424 = vunpack.c.l.s4 1966171168
  %v5425 = vunpack.c.0.s8 %v5424
  %v5426 = vlaneseq
  %v5427 = vshrl.u32 %v5426, 7
  %v5428 = vsub.s32 %v5425, %v5427
  %v5429 = vrot.slane %v5413, %v5428
  %v5431 = vunpack.c.l.s4 1966171168
  %v5432 = vunpack.c.0.s8 %v5431
  %v5433 = vlaneseq
  %v5434 = vshrl.u32 %v5433, 7
  %v5435 = vsub.s32 %v5432, %v5434
  %v5436 = vrot.slane %v5414, %v5435
  %v5438 = vunpack.c.l.s4 1966171168
  %v5439 = vunpack.c.0.s8 %v5438
  %v5440 = vlaneseq
  %v5441 = vshrl.u32 %v5440, 7
  %v5442 = vsub.s32 %v5439, %v5441
  %v5443 = vrot.slane %v5415, %v5442
  %v5444 = vcombine.low %v5422, %v5429
  %v5445 = vcombine.low %v5436, %v5443
  %v5447 = vunpack.c.l.s4 1966171168
  %v5448 = vunpack.c.0.s8 %v5447
  %v5449 = vlaneseq
  %v5450 = vshrl.u32 %v5449, 7
  %v5451 = vsub.s32 %v5448, %v5450
  %v5452 = vrot.slane %v5444, %v5451
  %v5454 = vunpack.c.l.s4 1966171168
  %v5455 = vunpack.c.0.s8 %v5454
  %v5456 = vlaneseq
  %v5457 = vshrl.u32 %v5456, 7
  %v5458 = vsub.s32 %v5455, %v5457
  %v5459 = vrot.slane %v5445, %v5458
  %v5460 = vcombine.low %v5452, %v5459
  %v5461 = vcombine.low %v5384, %v5386
  %v5462 = vcombine.low %v5388, %v5390
  %v5463 = vcombine.low %v5392, %v5394
  %v5464 = vcombine.low %v5396, %v5365
  %v5466 = vunpack.c.l.s4 1966171168
  %v5467 = vunpack.c.0.s8 %v5466
  %v5468 = vlaneseq
  %v5469 = vshrl.u32 %v5468, 7
  %v5470 = vsub.s32 %v5467, %v5469
  %v5471 = vrot.slane %v5461, %v5470
  %v5473 = vunpack.c.l.s4 1966171168
  %v5474 = vunpack.c.0.s8 %v5473
  %v5475 = vlaneseq
  %v5476 = vshrl.u32 %v5475, 7
  %v5477 = vsub.s32 %v5474, %v5476
  %v5478 = vrot.slane %v5462, %v5477
  %v5480 = vunpack.c.l.s4 1966171168
  %v5481 = vunpack.c.0.s8 %v5480
  %v5482 = vlaneseq
  %v5483 = vshrl.u32 %v5482, 7
  %v5484 = vsub.s32 %v5481, %v5483
  %v5485 = vrot.slane %v5463, %v5484
  %v5487 = vunpack.c.l.s4 1966171168
  %v5488 = vunpack.c.0.s8 %v5487
  %v5489 = vlaneseq
  %v5490 = vshrl.u32 %v5489, 7
  %v5491 = vsub.s32 %v5488, %v5490
  %v5492 = vrot.slane %v5464, %v5491
  %v5493 = vcombine.low %v5471, %v5478
  %v5494 = vcombine.low %v5485, %v5492
  %v5496 = vunpack.c.l.s4 1966171168
  %v5497 = vunpack.c.0.s8 %v5496
  %v5498 = vlaneseq
  %v5499 = vshrl.u32 %v5498, 7
  %v5500 = vsub.s32 %v5497, %v5499
  %v5501 = vrot.slane %v5493, %v5500
  %v5503 = vunpack.c.l.s4 1966171168
  %v5504 = vunpack.c.0.s8 %v5503
  %v5505 = vlaneseq
  %v5506 = vshrl.u32 %v5505, 7
  %v5507 = vsub.s32 %v5504, %v5506
  %v5508 = vrot.slane %v5494, %v5507
  %v5509 = vcombine.low %v5501, %v5508
  %5512 = vst [vmem:[#allocation3] ss:$2 sm:$0xff] %v5460
  %v5513 = vlaneseq
  %vm5514 = vcmp.ge.s32.totalorder %v5513, 0
  %vm5515 = vcmp.lt.s32.totalorder %v5513, 944
  %vm5516 = vmand %vm5514, %vm5515
  %s5517 = scalar_lea.vmem [#allocation3], 16
  %5518 = vst.msk [vmem:[%s5517] ss:$2 sm:$0xff] %vm5516, %v5509
  %5520 = vrot.lane.b32.xlu0 %v5302, 5
  %v5521 = vpop.permute.xlu0 %5520
  %5522 = vrot.lane.b32.xlu0 %v5303, 5
  %v5523 = vpop.permute.xlu0 %5522
  %vm5524 = vcmask 39936
  %v5525 = vsel %vm5524, %v5521, %v5523
  %v5527 = vrot.slane %v5303, 1
  %v5530 = vrot.slane %v5303, 2
  %5531 = vrot.lane.b32.xlu0 %v5311, 123
  %v5532 = vpop.permute.xlu0 %5531
  %5533 = vrot.lane.b32.xlu0 %v5530, 123
  %v5534 = vpop.permute.xlu0 %5533
  %v5535 = vsel %vm5367, %v5532, %v5534
  %v5538 = vrot.slane %v5303, 3
  %5539 = vrot.lane.b32.xlu0 %v5315, 118
  %v5540 = vpop.permute.xlu0 %5539
  %5541 = vrot.lane.b32.xlu0 %v5538, 118
  %v5542 = vpop.permute.xlu0 %5541
  %v5543 = vsel %vm5369, %v5540, %v5542
  %v5546 = vrot.slane %v5303, 4
  %5547 = vrot.lane.b32.xlu0 %v5319, 113
  %v5548 = vpop.permute.xlu0 %5547
  %5549 = vrot.lane.b32.xlu0 %v5546, 113
  %v5550 = vpop.permute.xlu0 %5549
  %v5551 = vsel %vm5371, %v5548, %v5550
  %v5554 = vrot.slane %v5303, 5
  %5555 = vrot.lane.b32.xlu0 %v5323, 108
  %v5556 = vpop.permute.xlu0 %5555
  %5557 = vrot.lane.b32.xlu0 %v5554, 108
  %v5558 = vpop.permute.xlu0 %5557
  %v5559 = vsel %vm5373, %v5556, %v5558
  %v5562 = vrot.slane %v5303, 6
  %5563 = vrot.lane.b32.xlu0 %v5327, 103
  %v5564 = vpop.permute.xlu0 %5563
  %5565 = vrot.lane.b32.xlu0 %v5562, 103
  %v5566 = vpop.permute.xlu0 %5565
  %v5567 = vsel %vm5375, %v5564, %v5566
  %v5570 = vrot.slane %v5303, 7
  %5571 = vrot.lane.b32.xlu0 %v5331, 98
  %v5572 = vpop.permute.xlu0 %5571
  %5573 = vrot.lane.b32.xlu0 %v5570, 98
  %v5574 = vpop.permute.xlu0 %5573
  %v5575 = vsel %vm5377, %v5572, %v5574
  %5579 = vrot.lane.b32.xlu0 %v5304, 93
  %v5580 = vpop.permute.xlu0 %5579
  %5581 = vrot.lane.b32.xlu0 %v5305, 93
  %v5582 = vpop.permute.xlu0 %5581
  %v5583 = vsel %vm5379, %v5580, %v5582
  %v5586 = vrot.slane %v5305, 1
  %5587 = vrot.lane.b32.xlu0 %v5339, 88
  %v5588 = vpop.permute.xlu0 %5587
  %5589 = vrot.lane.b32.xlu0 %v5586, 88
  %v5590 = vpop.permute.xlu0 %5589
  %v5591 = vsel %vm5381, %v5588, %v5590
  %v5594 = vrot.slane %v5305, 2
  %5595 = vrot.lane.b32.xlu0 %v5343, 83
  %v5596 = vpop.permute.xlu0 %5595
  %5597 = vrot.lane.b32.xlu0 %v5594, 83
  %v5598 = vpop.permute.xlu0 %5597
  %v5599 = vsel %vm5383, %v5596, %v5598
  %v5602 = vrot.slane %v5305, 3
  %5603 = vrot.lane.b32.xlu0 %v5347, 78
  %v5604 = vpop.permute.xlu0 %5603
  %5605 = vrot.lane.b32.xlu0 %v5602, 78
  %v5606 = vpop.permute.xlu0 %5605
  %v5607 = vsel %vm5385, %v5604, %v5606
  %v5610 = vrot.slane %v5305, 4
  %5611 = vrot.lane.b32.xlu0 %v5351, 73
  %v5612 = vpop.permute.xlu0 %5611
  %5613 = vrot.lane.b32.xlu0 %v5610, 73
  %v5614 = vpop.permute.xlu0 %5613
  %v5615 = vsel %vm5387, %v5612, %v5614
  %v5618 = vrot.slane %v5305, 5
  %5619 = vrot.lane.b32.xlu0 %v5355, 68
  %v5620 = vpop.permute.xlu0 %5619
  %5621 = vrot.lane.b32.xlu0 %v5618, 68
  %v5622 = vpop.permute.xlu0 %5621
  %v5623 = vsel %vm5389, %v5620, %v5622
  %v5626 = vrot.slane %v5305, 6
  %5627 = vrot.lane.b32.xlu0 %v5359, 63
  %v5628 = vpop.permute.xlu0 %5627
  %5629 = vrot.lane.b32.xlu0 %v5626, 63
  %v5630 = vpop.permute.xlu0 %5629
  %v5631 = vsel %vm5391, %v5628, %v5630
  %v5634 = vrot.slane %v5305, 7
  %5635 = vrot.lane.b32.xlu0 %v5363, 58
  %v5636 = vpop.permute.xlu0 %5635
  %5637 = vrot.lane.b32.xlu0 %v5634, 58
  %v5638 = vpop.permute.xlu0 %5637
  %v5639 = vsel %vm5393, %v5636, %v5638
  %v5641 = vsel %vm5367, %v5525, %v5307
  %v5642 = vsel %vm5369, %v5527, %v5535
  %v5643 = vsel %vm5371, %v5534, %v5543
  %v5644 = vsel %vm5373, %v5542, %v5551
  %v5645 = vsel %vm5375, %v5550, %v5559
  %v5646 = vsel %vm5377, %v5558, %v5567
  %v5647 = vsel %vm5379, %v5566, %v5575
  %v5648 = vsel %vm5381, %v5574, %v5583
  %v5649 = vsel %vm5383, %v5582, %v5591
  %v5650 = vsel %vm5385, %v5590, %v5599
  %v5651 = vsel %vm5387, %v5598, %v5607
  %v5652 = vsel %vm5389, %v5606, %v5615
  %v5653 = vsel %vm5391, %v5614, %v5623
  %v5654 = vsel %vm5393, %v5622, %v5631
  %v5655 = vsel %vm5395, %v5630, %v5639
  %v5671 = vcombine.low %v5641, %v5642
  %v5672 = vcombine.low %v5643, %v5644
  %v5673 = vcombine.low %v5645, %v5646
  %v5674 = vcombine.low %v5647, %v5648
  %v5676 = vunpack.c.l.s4 1966171168
  %v5677 = vunpack.c.0.s8 %v5676
  %v5678 = vlaneseq
  %v5679 = vshrl.u32 %v5678, 7
  %v5680 = vsub.s32 %v5677, %v5679
  %v5681 = vrot.slane %v5671, %v5680
  %v5683 = vunpack.c.l.s4 1966171168
  %v5684 = vunpack.c.0.s8 %v5683
  %v5685 = vlaneseq
  %v5686 = vshrl.u32 %v5685, 7
  %v5687 = vsub.s32 %v5684, %v5686
  %v5688 = vrot.slane %v5672, %v5687
  %v5690 = vunpack.c.l.s4 1966171168
  %v5691 = vunpack.c.0.s8 %v5690
  %v5692 = vlaneseq
  %v5693 = vshrl.u32 %v5692, 7
  %v5694 = vsub.s32 %v5691, %v5693
  %v5695 = vrot.slane %v5673, %v5694
  %v5697 = vunpack.c.l.s4 1966171168
  %v5698 = vunpack.c.0.s8 %v5697
  %v5699 = vlaneseq
  %v5700 = vshrl.u32 %v5699, 7
  %v5701 = vsub.s32 %v5698, %v5700
  %v5702 = vrot.slane %v5674, %v5701
  %v5703 = vcombine.low %v5681, %v5688
  %v5704 = vcombine.low %v5695, %v5702
  %v5706 = vunpack.c.l.s4 1966171168
  %v5707 = vunpack.c.0.s8 %v5706
  %v5708 = vlaneseq
  %v5709 = vshrl.u32 %v5708, 7
  %v5710 = vsub.s32 %v5707, %v5709
  %v5711 = vrot.slane %v5703, %v5710
  %v5713 = vunpack.c.l.s4 1966171168
  %v5714 = vunpack.c.0.s8 %v5713
  %v5715 = vlaneseq
  %v5716 = vshrl.u32 %v5715, 7
  %v5717 = vsub.s32 %v5714, %v5716
  %v5718 = vrot.slane %v5704, %v5717
  %v5719 = vcombine.low %v5711, %v5718
  %v5720 = vcombine.low %v5649, %v5650
  %v5721 = vcombine.low %v5651, %v5652
  %v5722 = vcombine.low %v5653, %v5654
  %v5723 = vcombine.low %v5655, %v5638
  %v5725 = vunpack.c.l.s4 1966171168
  %v5726 = vunpack.c.0.s8 %v5725
  %v5727 = vlaneseq
  %v5728 = vshrl.u32 %v5727, 7
  %v5729 = vsub.s32 %v5726, %v5728
  %v5730 = vrot.slane %v5720, %v5729
  %v5732 = vunpack.c.l.s4 1966171168
  %v5733 = vunpack.c.0.s8 %v5732
  %v5734 = vlaneseq
  %v5735 = vshrl.u32 %v5734, 7
  %v5736 = vsub.s32 %v5733, %v5735
  %v5737 = vrot.slane %v5721, %v5736
  %v5739 = vunpack.c.l.s4 1966171168
  %v5740 = vunpack.c.0.s8 %v5739
  %v5741 = vlaneseq
  %v5742 = vshrl.u32 %v5741, 7
  %v5743 = vsub.s32 %v5740, %v5742
  %v5744 = vrot.slane %v5722, %v5743
  %v5746 = vunpack.c.l.s4 1966171168
  %v5747 = vunpack.c.0.s8 %v5746
  %v5748 = vlaneseq
  %v5749 = vshrl.u32 %v5748, 7
  %v5750 = vsub.s32 %v5747, %v5749
  %v5751 = vrot.slane %v5723, %v5750
  %v5752 = vcombine.low %v5730, %v5737
  %v5753 = vcombine.low %v5744, %v5751
  %v5755 = vunpack.c.l.s4 1966171168
  %v5756 = vunpack.c.0.s8 %v5755
  %v5757 = vlaneseq
  %v5758 = vshrl.u32 %v5757, 7
  %v5759 = vsub.s32 %v5756, %v5758
  %v5760 = vrot.slane %v5752, %v5759
  %v5762 = vunpack.c.l.s4 1966171168
  %v5763 = vunpack.c.0.s8 %v5762
  %v5764 = vlaneseq
  %v5765 = vshrl.u32 %v5764, 7
  %v5766 = vsub.s32 %v5763, %v5765
  %v5767 = vrot.slane %v5753, %v5766
  %v5768 = vcombine.low %v5760, %v5767
  %s5771 = scalar_lea.vmem [#allocation3], 1
  %5772 = vst [vmem:[%s5771] ss:$2 sm:$0xff] %v5719
  %s5773 = scalar_lea.vmem [#allocation3], 17
  %5774 = vst.msk [vmem:[%s5773] ss:$2 sm:$0xff] %vm5516, %v5768
  %s5775 = smul.u32 4, 246
  %s5776 = smul.u32 %s5775, 5
  %s5777 = sshll.u32 %s5776, 4
  %5778 = dma.done [#allocation4], %s5777
  %v5779 = vld [vmem:[#allocation3] sm:$0xff]
  %v5780 = vld [vmem:[#allocation3 + $0x8] sm:$0xff]
  %v5781 = vld [vmem:[#allocation3 + $0x10] sm:$0xff]
  %v5782 = vld [vmem:[#allocation3 + $0x18] sm:$0xff]
  %v5787 = vcombine.high %v5779, %v5779
  %v5789 = vunpack.c.l.s4 1983009808
  %v5790 = vunpack.c.0.s8 %v5789
  %v5791 = vlaneseq
  %v5792 = vshrl.u32 %v5791, 7
  %v5793 = vsub.s32 %v5790, %v5792
  %v5794 = vrot.slane %v5779, %v5793
  %v5796 = vunpack.c.l.s4 1983009808
  %v5797 = vunpack.c.0.s8 %v5796
  %v5798 = vlaneseq
  %v5799 = vshrl.u32 %v5798, 7
  %v5800 = vsub.s32 %v5797, %v5799
  %v5801 = vrot.slane %v5787, %v5800
  %v5802 = vcombine.high %v5794, %v5794
  %v5803 = vcombine.high %v5801, %v5801
  %v5804 = vcombine.high %v5780, %v5780
  %v5806 = vunpack.c.l.s4 1983009808
  %v5807 = vunpack.c.0.s8 %v5806
  %v5808 = vlaneseq
  %v5809 = vshrl.u32 %v5808, 7
  %v5810 = vsub.s32 %v5807, %v5809
  %v5811 = vrot.slane %v5780, %v5810
  %v5813 = vunpack.c.l.s4 1983009808
  %v5814 = vunpack.c.0.s8 %v5813
  %v5815 = vlaneseq
  %v5816 = vshrl.u32 %v5815, 7
  %v5817 = vsub.s32 %v5814, %v5816
  %v5818 = vrot.slane %v5804, %v5817
  %v5819 = vcombine.high %v5811, %v5811
  %v5820 = vcombine.high %v5818, %v5818
  %v5821 = vcombine.high %v5781, %v5781
  %v5823 = vunpack.c.l.s4 1983009808
  %v5824 = vunpack.c.0.s8 %v5823
  %v5825 = vlaneseq
  %v5826 = vshrl.u32 %v5825, 7
  %v5827 = vsub.s32 %v5824, %v5826
  %v5828 = vrot.slane %v5781, %v5827
  %v5830 = vunpack.c.l.s4 1983009808
  %v5831 = vunpack.c.0.s8 %v5830
  %v5832 = vlaneseq
  %v5833 = vshrl.u32 %v5832, 7
  %v5834 = vsub.s32 %v5831, %v5833
  %v5835 = vrot.slane %v5821, %v5834
  %v5836 = vcombine.high %v5828, %v5828
  %v5837 = vcombine.high %v5835, %v5835
  %v5838 = vcombine.high %v5782, %v5782
  %v5840 = vunpack.c.l.s4 1983009808
  %v5841 = vunpack.c.0.s8 %v5840
  %v5842 = vlaneseq
  %v5843 = vshrl.u32 %v5842, 7
  %v5844 = vsub.s32 %v5841, %v5843
  %v5845 = vrot.slane %v5782, %v5844
  %v5847 = vunpack.c.l.s4 1983009808
  %v5848 = vunpack.c.0.s8 %v5847
  %v5849 = vlaneseq
  %v5850 = vshrl.u32 %v5849, 7
  %v5851 = vsub.s32 %v5848, %v5850
  %v5852 = vrot.slane %v5838, %v5851
  %v5853 = vcombine.high %v5845, %v5845
  %v5854 = vcombine.high %v5852, %v5852
  %v5871 = vpack.c.bf16 %v5794, %v5794
  %v5872 = vpack.c.bf16 %v5802, %v5802
  %v5873 = vpack.c.bf16 %v5801, %v5801
  %v5874 = vpack.c.bf16 %v5803, %v5803
  %v5875 = vpack.c.bf16 %v5811, %v5811
  %v5876 = vpack.c.bf16 %v5819, %v5819
  %v5877 = vpack.c.bf16 %v5818, %v5818
  %v5878 = vpack.c.bf16 %v5820, %v5820
  %v5879 = vpack.c.bf16 %v5828, %v5828
  %v5880 = vpack.c.bf16 %v5836, %v5836
  %v5881 = vpack.c.bf16 %v5835, %v5835
  %v5882 = vpack.c.bf16 %v5837, %v5837
  %v5883 = vpack.c.bf16 %v5845, %v5845
  %v5884 = vpack.c.bf16 %v5853, %v5853
  %v5885 = vpack.c.bf16 %v5852, %v5852
  %v5886 = vpack.c.bf16 %v5854, %v5854
  %v5887 = vld [vmem:[#allocation2] sm:$0xff]
  %v5888 = vld [vmem:[#allocation2 + $0x8] sm:$0xff]
  %v5889 = vld [vmem:[#allocation2 + $0x10] sm:$0xff]
  %v5890 = vld [vmem:[#allocation2 + $0x18] sm:$0xff]
  %v5891 = vld [vmem:[#allocation2 + $0x20] sm:$0xff]
  %v5892 = vld [vmem:[#allocation2 + $0x28] sm:$0xff]
  %v5893 = vld [vmem:[#allocation2 + $0x30] sm:$0xff]
  %v5894 = vld [vmem:[#allocation2 + $0x38] sm:$0xff]
  %v5895 = vld [vmem:[#allocation2 + $0x40] sm:$0xff]
  %v5896 = vld [vmem:[#allocation2 + $0x48] sm:$0xff]
  %v5897 = vld [vmem:[#allocation2 + $0x50] sm:$0xff]
  %v5898 = vld [vmem:[#allocation2 + $0x58] sm:$0xff]
  %v5899 = vld [vmem:[#allocation2 + $0x60] sm:$0xff]
  %v5900 = vld [vmem:[#allocation2 + $0x68] sm:$0xff]
  %v5901 = vld [vmem:[#allocation2 + $0x70] sm:$0xff]
  %v5902 = vld [vmem:[#allocation2 + $0x78] sm:$0xff]
  %v5903 = vld [vmem:[#allocation2 + $0x80] sm:$0xff]
  %v5904 = vld [vmem:[#allocation2 + $0x88] sm:$0xff]
  %v5905 = vld [vmem:[#allocation2 + $0x90] sm:$0xff]
  %v5906 = vld [vmem:[#allocation2 + $0x98] sm:$0xff]
  %v5907 = vld [vmem:[#allocation2 + $0xa0] sm:$0xff]
  %v5908 = vld [vmem:[#allocation2 + $0xa8] sm:$0xff]
  %v5909 = vld [vmem:[#allocation2 + $0xb0] sm:$0xff]
  %v5910 = vld [vmem:[#allocation2 + $0xb8] sm:$0xff]
  %v5911 = vld [vmem:[#allocation2 + $0xc0] sm:$0xff]
  %v5912 = vld [vmem:[#allocation2 + $0xc8] sm:$0xff]
  %v5913 = vld [vmem:[#allocation2 + $0xd0] sm:$0xff]
  %v5914 = vld [vmem:[#allocation2 + $0xd8] sm:$0xff]
  %v5915 = vld [vmem:[#allocation2 + $0xe0] sm:$0xff]
  %v5916 = vld [vmem:[#allocation2 + $0xe8] sm:$0xff]
  %v5917 = vld [vmem:[#allocation2 + $0xf0] sm:$0xff]
  %v5918 = vld [vmem:[#allocation2 + $0xf8] sm:$0xff]
  %v5919 = vld [vmem:[#allocation2 + $0x100] sm:$0xff]
  %v5920 = vld [vmem:[#allocation2 + $0x108] sm:$0xff]
  %v5921 = vld [vmem:[#allocation2 + $0x110] sm:$0xff]
  %v5922 = vld [vmem:[#allocation2 + $0x118] sm:$0xff]
  %v5923 = vld [vmem:[#allocation2 + $0x120] sm:$0xff]
  %v5924 = vld [vmem:[#allocation2 + $0x128] sm:$0xff]
  %v5925 = vld [vmem:[#allocation2 + $0x130] sm:$0xff]
  %v5926 = vld [vmem:[#allocation2 + $0x138] sm:$0xff]
  %v5927 = vld [vmem:[#allocation2 + $0x140] sm:$0xff]
  %v5928 = vld [vmem:[#allocation2 + $0x148] sm:$0xff]
  %v5929 = vld [vmem:[#allocation2 + $0x150] sm:$0xff]
  %v5930 = vld [vmem:[#allocation2 + $0x158] sm:$0xff]
  %v5931 = vld [vmem:[#allocation2 + $0x160] sm:$0xff]
  %v5932 = vld [vmem:[#allocation2 + $0x168] sm:$0xff]
  %v5933 = vld [vmem:[#allocation2 + $0x170] sm:$0xff]
  %v5934 = vld [vmem:[#allocation2 + $0x178] sm:$0xff]
  %v5935 = vld [vmem:[#allocation2 + $0x180] sm:$0xff]
  %v5936 = vld [vmem:[#allocation2 + $0x188] sm:$0xff]
  %v5937 = vld [vmem:[#allocation2 + $0x190] sm:$0xff]
  %v5938 = vld [vmem:[#allocation2 + $0x198] sm:$0xff]
  %v5939 = vld [vmem:[#allocation2 + $0x1a0] sm:$0xff]
  %v5940 = vld [vmem:[#allocation2 + $0x1a8] sm:$0xff]
  %v5941 = vld [vmem:[#allocation2 + $0x1b0] sm:$0xff]
  %v5942 = vld [vmem:[#allocation2 + $0x1b8] sm:$0xff]
  %v5943 = vld [vmem:[#allocation2 + $0x1c0] sm:$0xff]
  %v5944 = vld [vmem:[#allocation2 + $0x1c8] sm:$0xff]
  %v5945 = vld [vmem:[#allocation2 + $0x1d0] sm:$0xff]
  %v5946 = vld [vmem:[#allocation2 + $0x1d8] sm:$0xff]
  %v5947 = vld [vmem:[#allocation2 + $0x1e0] sm:$0xff]
  %v5948 = vld [vmem:[#allocation2 + $0x1e8] sm:$0xff]
  %v5949 = vld [vmem:[#allocation2 + $0x1f0] sm:$0xff]
  %v5950 = vld [vmem:[#allocation2 + $0x1f8] sm:$0xff]
  %v5951 = vld [vmem:[#allocation2 + $0x200] sm:$0xff]
  %v5952 = vld [vmem:[#allocation2 + $0x208] sm:$0xff]
  %v5953 = vld [vmem:[#allocation2 + $0x210] sm:$0xff]
  %v5954 = vld [vmem:[#allocation2 + $0x218] sm:$0xff]
  %v5955 = vld [vmem:[#allocation2 + $0x220] sm:$0xff]
  %v5956 = vld [vmem:[#allocation2 + $0x228] sm:$0xff]
  %v5957 = vld [vmem:[#allocation2 + $0x230] sm:$0xff]
  %v5958 = vld [vmem:[#allocation2 + $0x238] sm:$0xff]
  %v5959 = vld [vmem:[#allocation2 + $0x240] sm:$0xff]
  %v5960 = vld [vmem:[#allocation2 + $0x248] sm:$0xff]
  %v5961 = vld [vmem:[#allocation2 + $0x250] sm:$0xff]
  %v5962 = vld [vmem:[#allocation2 + $0x258] sm:$0xff]
  %v5963 = vld [vmem:[#allocation2 + $0x260] sm:$0xff]
  %v5964 = vld [vmem:[#allocation2 + $0x268] sm:$0xff]
  %v5965 = vld [vmem:[#allocation2 + $0x270] sm:$0xff]
  %v5966 = vld [vmem:[#allocation2 + $0x278] sm:$0xff]
  %v5967 = vld [vmem:[#allocation2 + $0x280] sm:$0xff]
  %v5968 = vld [vmem:[#allocation2 + $0x288] sm:$0xff]
  %v5969 = vld [vmem:[#allocation2 + $0x290] sm:$0xff]
  %v5970 = vld [vmem:[#allocation2 + $0x298] sm:$0xff]
  %v5971 = vld [vmem:[#allocation2 + $0x2a0] sm:$0xff]
  %v5972 = vld [vmem:[#allocation2 + $0x2a8] sm:$0xff]
  %v5973 = vld [vmem:[#allocation2 + $0x2b0] sm:$0xff]
  %v5974 = vld [vmem:[#allocation2 + $0x2b8] sm:$0xff]
  %v5975 = vld [vmem:[#allocation2 + $0x2c0] sm:$0xff]
  %v5976 = vld [vmem:[#allocation2 + $0x2c8] sm:$0xff]
  %v5977 = vld [vmem:[#allocation2 + $0x2d0] sm:$0xff]
  %v5978 = vld [vmem:[#allocation2 + $0x2d8] sm:$0xff]
  %v5979 = vld [vmem:[#allocation2 + $0x2e0] sm:$0xff]
  %v5980 = vld [vmem:[#allocation2 + $0x2e8] sm:$0xff]
  %v5981 = vld [vmem:[#allocation2 + $0x2f0] sm:$0xff]
  %v5982 = vld [vmem:[#allocation2 + $0x2f8] sm:$0xff]
  %v5983 = vld [vmem:[#allocation2 + $0x300] sm:$0xff]
  %v5984 = vld [vmem:[#allocation2 + $0x308] sm:$0xff]
  %v5985 = vld [vmem:[#allocation2 + $0x310] sm:$0xff]
  %v5986 = vld [vmem:[#allocation2 + $0x318] sm:$0xff]
  %v5987 = vld [vmem:[#allocation2 + $0x320] sm:$0xff]
  %v5988 = vld [vmem:[#allocation2 + $0x328] sm:$0xff]
  %v5989 = vld [vmem:[#allocation2 + $0x330] sm:$0xff]
  %v5990 = vld [vmem:[#allocation2 + $0x338] sm:$0xff]
  %v5991 = vld [vmem:[#allocation2 + $0x340] sm:$0xff]
  %v5992 = vld [vmem:[#allocation2 + $0x348] sm:$0xff]
  %v5993 = vld [vmem:[#allocation2 + $0x350] sm:$0xff]
  %v5994 = vld [vmem:[#allocation2 + $0x358] sm:$0xff]
  %v5995 = vld [vmem:[#allocation2 + $0x360] sm:$0xff]
  %v5996 = vld [vmem:[#allocation2 + $0x368] sm:$0xff]
  %v5997 = vld [vmem:[#allocation2 + $0x370] sm:$0xff]
  %v5998 = vld [vmem:[#allocation2 + $0x378] sm:$0xff]
  %v5999 = vld [vmem:[#allocation2 + $0x380] sm:$0xff]
  %v6000 = vld [vmem:[#allocation2 + $0x388] sm:$0xff]
  %v6001 = vld [vmem:[#allocation2 + $0x390] sm:$0xff]
  %v6002 = vld [vmem:[#allocation2 + $0x398] sm:$0xff]
  %v6003 = vld [vmem:[#allocation2 + $0x3a0] sm:$0xff]
  %v6004 = vld [vmem:[#allocation2 + $0x3a8] sm:$0xff]
  %v6005 = vld [vmem:[#allocation2 + $0x3b0] sm:$0xff]
  %v6006 = vld [vmem:[#allocation2 + $0x3b8] sm:$0xff]
  %v6007 = vld [vmem:[#allocation2 + $0x3c0] sm:$0xff]
  %v6008 = vld [vmem:[#allocation2 + $0x3c8] sm:$0xff]
  %v6009 = vld [vmem:[#allocation2 + $0x3d0] sm:$0xff]
  %v6010 = vld [vmem:[#allocation2 + $0x3d8] sm:$0xff]
  %v6011 = vld [vmem:[#allocation2 + $0x3e0] sm:$0xff]
  %v6012 = vld [vmem:[#allocation2 + $0x3e8] sm:$0xff]
  %v6013 = vld [vmem:[#allocation2 + $0x3f0] sm:$0xff]
  %v6014 = vld [vmem:[#allocation2 + $0x3f8] sm:$0xff]
  %v6015 = vld [vmem:[#allocation2 + $0x400] sm:$0xff]
  %v6016 = vld [vmem:[#allocation2 + $0x408] sm:$0xff]
  %v6017 = vld [vmem:[#allocation2 + $0x410] sm:$0xff]
  %v6018 = vld [vmem:[#allocation2 + $0x418] sm:$0xff]
  %v6019 = vld [vmem:[#allocation2 + $0x420] sm:$0xff]
  %v6020 = vld [vmem:[#allocation2 + $0x428] sm:$0xff]
  %v6021 = vld [vmem:[#allocation2 + $0x430] sm:$0xff]
  %v6022 = vld [vmem:[#allocation2 + $0x438] sm:$0xff]
  %v6023 = vld [vmem:[#allocation2 + $0x440] sm:$0xff]
  %v6024 = vld [vmem:[#allocation2 + $0x448] sm:$0xff]
  %v6025 = vld [vmem:[#allocation2 + $0x450] sm:$0xff]
  %v6026 = vld [vmem:[#allocation2 + $0x458] sm:$0xff]
  %v6027 = vld [vmem:[#allocation2 + $0x460] sm:$0xff]
  %v6028 = vld [vmem:[#allocation2 + $0x468] sm:$0xff]
  %v6029 = vld [vmem:[#allocation2 + $0x470] sm:$0xff]
  %v6030 = vld [vmem:[#allocation2 + $0x478] sm:$0xff]
  %v6031 = vld [vmem:[#allocation2 + $0x480] sm:$0xff]
  %v6032 = vld [vmem:[#allocation2 + $0x488] sm:$0xff]
  %v6033 = vld [vmem:[#allocation2 + $0x490] sm:$0xff]
  %v6034 = vld [vmem:[#allocation2 + $0x498] sm:$0xff]
  %v6035 = vld [vmem:[#allocation2 + $0x4a0] sm:$0xff]
  %v6036 = vld [vmem:[#allocation2 + $0x4a8] sm:$0xff]
  %v6037 = vld [vmem:[#allocation2 + $0x4b0] sm:$0xff]
  %v6038 = vld [vmem:[#allocation2 + $0x4b8] sm:$0xff]
  %v6039 = vld [vmem:[#allocation2 + $0x4c0] sm:$0xff]
  %v6040 = vld [vmem:[#allocation2 + $0x4c8] sm:$0xff]
  %v6041 = vld [vmem:[#allocation2 + $0x4d0] sm:$0xff]
  %v6042 = vld [vmem:[#allocation2 + $0x4d8] sm:$0xff]
  %v6043 = vld [vmem:[#allocation2 + $0x4e0] sm:$0xff]
  %v6044 = vld [vmem:[#allocation2 + $0x4e8] sm:$0xff]
  %v6045 = vld [vmem:[#allocation2 + $0x4f0] sm:$0xff]
  %v6046 = vld [vmem:[#allocation2 + $0x4f8] sm:$0xff]
  %v6047 = vld [vmem:[#allocation2 + $0x500] sm:$0xff]
  %v6048 = vld [vmem:[#allocation2 + $0x508] sm:$0xff]
  %v6049 = vld [vmem:[#allocation2 + $0x510] sm:$0xff]
  %v6050 = vld [vmem:[#allocation2 + $0x518] sm:$0xff]
  %v6051 = vld [vmem:[#allocation2 + $0x520] sm:$0xff]
  %v6052 = vld [vmem:[#allocation2 + $0x528] sm:$0xff]
  %v6053 = vld [vmem:[#allocation2 + $0x530] sm:$0xff]
  %v6054 = vld [vmem:[#allocation2 + $0x538] sm:$0xff]
  %v6055 = vld [vmem:[#allocation2 + $0x540] sm:$0xff]
  %v6056 = vld [vmem:[#allocation2 + $0x548] sm:$0xff]
  %v6057 = vld [vmem:[#allocation2 + $0x550] sm:$0xff]
  %v6058 = vld [vmem:[#allocation2 + $0x558] sm:$0xff]
  %v6059 = vld [vmem:[#allocation2 + $0x560] sm:$0xff]
  %v6060 = vld [vmem:[#allocation2 + $0x568] sm:$0xff]
  %v6061 = vld [vmem:[#allocation2 + $0x570] sm:$0xff]
  %v6062 = vld [vmem:[#allocation2 + $0x578] sm:$0xff]
  %v6063 = vld [vmem:[#allocation2 + $0x580] sm:$0xff]
  %v6064 = vld [vmem:[#allocation2 + $0x588] sm:$0xff]
  %v6065 = vld [vmem:[#allocation2 + $0x590] sm:$0xff]
  %v6066 = vld [vmem:[#allocation2 + $0x598] sm:$0xff]
  %v6067 = vld [vmem:[#allocation2 + $0x5a0] sm:$0xff]
  %v6068 = vld [vmem:[#allocation2 + $0x5a8] sm:$0xff]
  %v6069 = vld [vmem:[#allocation2 + $0x5b0] sm:$0xff]
  %v6070 = vld [vmem:[#allocation2 + $0x5b8] sm:$0xff]
  %v6071 = vld [vmem:[#allocation2 + $0x5c0] sm:$0xff]
  %v6072 = vld [vmem:[#allocation2 + $0x5c8] sm:$0xff]
  %v6073 = vld [vmem:[#allocation2 + $0x5d0] sm:$0xff]
  %v6074 = vld [vmem:[#allocation2 + $0x5d8] sm:$0xff]
  %v6075 = vld [vmem:[#allocation2 + $0x5e0] sm:$0xff]
  %v6076 = vld [vmem:[#allocation2 + $0x5e8] sm:$0xff]
  %v6077 = vld [vmem:[#allocation2 + $0x5f0] sm:$0xff]
  %v6078 = vld [vmem:[#allocation2 + $0x5f8] sm:$0xff]
  %v6079 = vld [vmem:[#allocation2 + $0x600] sm:$0xff]
  %v6080 = vld [vmem:[#allocation2 + $0x608] sm:$0xff]
  %v6081 = vld [vmem:[#allocation2 + $0x610] sm:$0xff]
  %v6082 = vld [vmem:[#allocation2 + $0x618] sm:$0xff]
  %v6083 = vld [vmem:[#allocation2 + $0x620] sm:$0xff]
  %v6084 = vld [vmem:[#allocation2 + $0x628] sm:$0xff]
  %v6085 = vld [vmem:[#allocation2 + $0x630] sm:$0xff]
  %v6086 = vld [vmem:[#allocation2 + $0x638] sm:$0xff]
  %v6087 = vld [vmem:[#allocation2 + $0x640] sm:$0xff]
  %v6088 = vld [vmem:[#allocation2 + $0x648] sm:$0xff]
  %v6089 = vld [vmem:[#allocation2 + $0x650] sm:$0xff]
  %v6090 = vld [vmem:[#allocation2 + $0x658] sm:$0xff]
  %v6091 = vld [vmem:[#allocation2 + $0x660] sm:$0xff]
  %v6092 = vld [vmem:[#allocation2 + $0x668] sm:$0xff]
  %v6093 = vld [vmem:[#allocation2 + $0x670] sm:$0xff]
  %v6094 = vld [vmem:[#allocation2 + $0x678] sm:$0xff]
  %v6095 = vld [vmem:[#allocation2 + $0x680] sm:$0xff]
  %v6096 = vld [vmem:[#allocation2 + $0x688] sm:$0xff]
  %v6097 = vld [vmem:[#allocation2 + $0x690] sm:$0xff]
  %v6098 = vld [vmem:[#allocation2 + $0x698] sm:$0xff]
  %v6099 = vld [vmem:[#allocation2 + $0x6a0] sm:$0xff]
  %v6100 = vld [vmem:[#allocation2 + $0x6a8] sm:$0xff]
  %v6101 = vld [vmem:[#allocation2 + $0x6b0] sm:$0xff]
  %v6102 = vld [vmem:[#allocation2 + $0x6b8] sm:$0xff]
  %v6103 = vld [vmem:[#allocation2 + $0x6c0] sm:$0xff]
  %v6104 = vld [vmem:[#allocation2 + $0x6c8] sm:$0xff]
  %v6105 = vld [vmem:[#allocation2 + $0x6d0] sm:$0xff]
  %v6106 = vld [vmem:[#allocation2 + $0x6d8] sm:$0xff]
  %v6107 = vld [vmem:[#allocation2 + $0x6e0] sm:$0xff]
  %v6108 = vld [vmem:[#allocation2 + $0x6e8] sm:$0xff]
  %v6109 = vld [vmem:[#allocation2 + $0x6f0] sm:$0xff]
  %v6110 = vld [vmem:[#allocation2 + $0x6f8] sm:$0xff]
  %v6111 = vld [vmem:[#allocation2 + $0x700] sm:$0xff]
  %v6112 = vld [vmem:[#allocation2 + $0x708] sm:$0xff]
  %v6113 = vld [vmem:[#allocation2 + $0x710] sm:$0xff]
  %v6114 = vld [vmem:[#allocation2 + $0x718] sm:$0xff]
  %v6115 = vld [vmem:[#allocation2 + $0x720] sm:$0xff]
  %v6116 = vld [vmem:[#allocation2 + $0x728] sm:$0xff]
  %v6117 = vld [vmem:[#allocation2 + $0x730] sm:$0xff]
  %v6118 = vld [vmem:[#allocation2 + $0x738] sm:$0xff]
  %v6119 = vld [vmem:[#allocation2 + $0x740] sm:$0xff]
  %v6120 = vld [vmem:[#allocation2 + $0x748] sm:$0xff]
  %v6121 = vld [vmem:[#allocation2 + $0x750] sm:$0xff]
  %v6122 = vld [vmem:[#allocation2 + $0x758] sm:$0xff]
  %v6123 = vld [vmem:[#allocation2 + $0x760] sm:$0xff]
  %v6124 = vld [vmem:[#allocation2 + $0x768] sm:$0xff]
  %v6125 = vld [vmem:[#allocation2 + $0x770] sm:$0xff]
  %v6126 = vld [vmem:[#allocation2 + $0x778] sm:$0xff]
  %v6127 = vld [vmem:[#allocation2 + $0x780] sm:$0xff]
  %v6128 = vld [vmem:[#allocation2 + $0x788] sm:$0xff]
  %v6129 = vld [vmem:[#allocation2 + $0x790] sm:$0xff]
  %v6130 = vld [vmem:[#allocation2 + $0x798] sm:$0xff]
  %v6131 = vld [vmem:[#allocation2 + $0x7a0] sm:$0xff]
  %v6132 = vld [vmem:[#allocation2 + $0x7a8] sm:$0xff]
  %v6133 = vld [vmem:[#allocation2 + $0x7b0] sm:$0xff]
  %v6134 = vld [vmem:[#allocation2 + $0x7b8] sm:$0xff]
  %v6135 = vld [vmem:[#allocation2 + $0x7c0] sm:$0xff]
  %v6136 = vld [vmem:[#allocation2 + $0x7c8] sm:$0xff]
  %v6137 = vld [vmem:[#allocation2 + $0x7d0] sm:$0xff]
  %v6138 = vld [vmem:[#allocation2 + $0x7d8] sm:$0xff]
  %v6139 = vld [vmem:[#allocation2 + $0x7e0] sm:$0xff]
  %v6140 = vld [vmem:[#allocation2 + $0x7e8] sm:$0xff]
  %v6141 = vld [vmem:[#allocation2 + $0x7f0] sm:$0xff]
  %v6142 = vld [vmem:[#allocation2 + $0x7f8] sm:$0xff]
  %v6143 = vld [vmem:[#allocation2 + $0x800] sm:$0xff]
  %v6144 = vld [vmem:[#allocation2 + $0x808] sm:$0xff]
  %v6145 = vld [vmem:[#allocation2 + $0x810] sm:$0xff]
  %v6146 = vld [vmem:[#allocation2 + $0x818] sm:$0xff]
  %v6147 = vld [vmem:[#allocation2 + $0x820] sm:$0xff]
  %v6148 = vld [vmem:[#allocation2 + $0x828] sm:$0xff]
  %v6149 = vld [vmem:[#allocation2 + $0x830] sm:$0xff]
  %v6150 = vld [vmem:[#allocation2 + $0x838] sm:$0xff]
  %v6151 = vld [vmem:[#allocation2 + $0x840] sm:$0xff]
  %v6152 = vld [vmem:[#allocation2 + $0x848] sm:$0xff]
  %v6153 = vld [vmem:[#allocation2 + $0x850] sm:$0xff]
  %v6154 = vld [vmem:[#allocation2 + $0x858] sm:$0xff]
  %v6155 = vld [vmem:[#allocation2 + $0x860] sm:$0xff]
  %v6156 = vld [vmem:[#allocation2 + $0x868] sm:$0xff]
  %v6157 = vld [vmem:[#allocation2 + $0x870] sm:$0xff]
  %v6158 = vld [vmem:[#allocation2 + $0x878] sm:$0xff]
  %v6159 = vld [vmem:[#allocation2 + $0x880] sm:$0xff]
  %v6160 = vld [vmem:[#allocation2 + $0x888] sm:$0xff]
  %v6161 = vld [vmem:[#allocation2 + $0x890] sm:$0xff]
  %v6162 = vld [vmem:[#allocation2 + $0x898] sm:$0xff]
  %v6163 = vld [vmem:[#allocation2 + $0x8a0] sm:$0xff]
  %v6164 = vld [vmem:[#allocation2 + $0x8a8] sm:$0xff]
  %v6165 = vld [vmem:[#allocation2 + $0x8b0] sm:$0xff]
  %v6166 = vld [vmem:[#allocation2 + $0x8b8] sm:$0xff]
  %v6167 = vld [vmem:[#allocation2 + $0x8c0] sm:$0xff]
  %v6168 = vld [vmem:[#allocation2 + $0x8c8] sm:$0xff]
  %v6169 = vld [vmem:[#allocation2 + $0x8d0] sm:$0xff]
  %v6170 = vld [vmem:[#allocation2 + $0x8d8] sm:$0xff]
  %v6171 = vld [vmem:[#allocation2 + $0x8e0] sm:$0xff]
  %v6172 = vld [vmem:[#allocation2 + $0x8e8] sm:$0xff]
  %v6173 = vld [vmem:[#allocation2 + $0x8f0] sm:$0xff]
  %v6174 = vld [vmem:[#allocation2 + $0x8f8] sm:$0xff]
  %v6175 = vld [vmem:[#allocation2 + $0x900] sm:$0xff]
  %v6176 = vld [vmem:[#allocation2 + $0x908] sm:$0xff]
  %v6177 = vld [vmem:[#allocation2 + $0x910] sm:$0xff]
  %v6178 = vld [vmem:[#allocation2 + $0x918] sm:$0xff]
  %v6179 = vld [vmem:[#allocation2 + $0x920] sm:$0xff]
  %v6180 = vld [vmem:[#allocation2 + $0x928] sm:$0xff]
  %v6181 = vld [vmem:[#allocation2 + $0x930] sm:$0xff]
  %v6182 = vld [vmem:[#allocation2 + $0x938] sm:$0xff]
  %v6183 = vld [vmem:[#allocation2 + $0x940] sm:$0xff]
  %v6184 = vld [vmem:[#allocation2 + $0x948] sm:$0xff]
  %v6185 = vld [vmem:[#allocation2 + $0x950] sm:$0xff]
  %v6186 = vld [vmem:[#allocation2 + $0x958] sm:$0xff]
  %v6187 = vld [vmem:[#allocation2 + $0x960] sm:$0xff]
  %v6188 = vld [vmem:[#allocation2 + $0x968] sm:$0xff]
  %v6189 = vld [vmem:[#allocation2 + $0x970] sm:$0xff]
  %v6190 = vld [vmem:[#allocation2 + $0x978] sm:$0xff]
  %v6191 = vld [vmem:[#allocation2 + $0x980] sm:$0xff]
  %v6192 = vld [vmem:[#allocation2 + $0x988] sm:$0xff]
  %v6193 = vld [vmem:[#allocation2 + $0x990] sm:$0xff]
  %v6194 = vld [vmem:[#allocation2 + $0x998] sm:$0xff]
  %v6195 = vld [vmem:[#allocation2 + $0x9a0] sm:$0xff]
  %v6196 = vld [vmem:[#allocation2 + $0x9a8] sm:$0xff]
  %v6197 = vld [vmem:[#allocation2 + $0x9b0] sm:$0xff]
  %v6198 = vld [vmem:[#allocation2 + $0x9b8] sm:$0xff]
  %v6199 = vld [vmem:[#allocation2 + $0x9c0] sm:$0xff]
  %v6200 = vld [vmem:[#allocation2 + $0x9c8] sm:$0xff]
  %v6201 = vld [vmem:[#allocation2 + $0x9d0] sm:$0xff]
  %v6202 = vld [vmem:[#allocation2 + $0x9d8] sm:$0xff]
  %v6203 = vld [vmem:[#allocation2 + $0x9e0] sm:$0xff]
  %v6204 = vld [vmem:[#allocation2 + $0x9e8] sm:$0xff]
  %v6205 = vld [vmem:[#allocation2 + $0x9f0] sm:$0xff]
  %v6206 = vld [vmem:[#allocation2 + $0x9f8] sm:$0xff]
  %v6207 = vld [vmem:[#allocation2 + $0xa00] sm:$0xff]
  %v6208 = vld [vmem:[#allocation2 + $0xa08] sm:$0xff]
  %v6209 = vld [vmem:[#allocation2 + $0xa10] sm:$0xff]
  %v6210 = vld [vmem:[#allocation2 + $0xa18] sm:$0xff]
  %v6211 = vld [vmem:[#allocation2 + $0xa20] sm:$0xff]
  %v6212 = vld [vmem:[#allocation2 + $0xa28] sm:$0xff]
  %v6213 = vld [vmem:[#allocation2 + $0xa30] sm:$0xff]
  %v6214 = vld [vmem:[#allocation2 + $0xa38] sm:$0xff]
  %v6215 = vld [vmem:[#allocation2 + $0xa40] sm:$0xff]
  %v6216 = vld [vmem:[#allocation2 + $0xa48] sm:$0xff]
  %v6217 = vld [vmem:[#allocation2 + $0xa50] sm:$0xff]
  %v6218 = vld [vmem:[#allocation2 + $0xa58] sm:$0xff]
  %v6219 = vld [vmem:[#allocation2 + $0xa60] sm:$0xff]
  %v6220 = vld [vmem:[#allocation2 + $0xa68] sm:$0xff]
  %v6221 = vld [vmem:[#allocation2 + $0xa70] sm:$0xff]
  %v6222 = vld [vmem:[#allocation2 + $0xa78] sm:$0xff]
  %v6223 = vld [vmem:[#allocation2 + $0xa80] sm:$0xff]
  %v6224 = vld [vmem:[#allocation2 + $0xa88] sm:$0xff]
  %v6225 = vld [vmem:[#allocation2 + $0xa90] sm:$0xff]
  %v6226 = vld [vmem:[#allocation2 + $0xa98] sm:$0xff]
  %v6227 = vld [vmem:[#allocation2 + $0xaa0] sm:$0xff]
  %v6228 = vld [vmem:[#allocation2 + $0xaa8] sm:$0xff]
  %v6229 = vld [vmem:[#allocation2 + $0xab0] sm:$0xff]
  %v6230 = vld [vmem:[#allocation2 + $0xab8] sm:$0xff]
  %v6231 = vld [vmem:[#allocation2 + $0xac0] sm:$0xff]
  %v6232 = vld [vmem:[#allocation2 + $0xac8] sm:$0xff]
  %v6233 = vld [vmem:[#allocation2 + $0xad0] sm:$0xff]
  %v6234 = vld [vmem:[#allocation2 + $0xad8] sm:$0xff]
  %v6235 = vld [vmem:[#allocation2 + $0xae0] sm:$0xff]
  %v6236 = vld [vmem:[#allocation2 + $0xae8] sm:$0xff]
  %v6237 = vld [vmem:[#allocation2 + $0xaf0] sm:$0xff]
  %v6238 = vld [vmem:[#allocation2 + $0xaf8] sm:$0xff]
  %v6239 = vld [vmem:[#allocation2 + $0xb00] sm:$0xff]
  %v6240 = vld [vmem:[#allocation2 + $0xb08] sm:$0xff]
  %v6241 = vld [vmem:[#allocation2 + $0xb10] sm:$0xff]
  %v6242 = vld [vmem:[#allocation2 + $0xb18] sm:$0xff]
  %v6243 = vld [vmem:[#allocation2 + $0xb20] sm:$0xff]
  %v6244 = vld [vmem:[#allocation2 + $0xb28] sm:$0xff]
  %v6245 = vld [vmem:[#allocation2 + $0xb30] sm:$0xff]
  %v6246 = vld [vmem:[#allocation2 + $0xb38] sm:$0xff]
  %v6247 = vld [vmem:[#allocation2 + $0xb40] sm:$0xff]
  %v6248 = vld [vmem:[#allocation2 + $0xb48] sm:$0xff]
  %v6249 = vld [vmem:[#allocation2 + $0xb50] sm:$0xff]
  %v6250 = vld [vmem:[#allocation2 + $0xb58] sm:$0xff]
  %v6251 = vld [vmem:[#allocation2 + $0xb60] sm:$0xff]
  %v6252 = vld [vmem:[#allocation2 + $0xb68] sm:$0xff]
  %v6253 = vld [vmem:[#allocation2 + $0xb70] sm:$0xff]
  %v6254 = vld [vmem:[#allocation2 + $0xb78] sm:$0xff]
  %v6255 = vld [vmem:[#allocation2 + $0xb80] sm:$0xff]
  %v6256 = vld [vmem:[#allocation2 + $0xb88] sm:$0xff]
  %v6257 = vld [vmem:[#allocation2 + $0xb90] sm:$0xff]
  %v6258 = vld [vmem:[#allocation2 + $0xb98] sm:$0xff]
  %v6259 = vld [vmem:[#allocation2 + $0xba0] sm:$0xff]
  %v6260 = vld [vmem:[#allocation2 + $0xba8] sm:$0xff]
  %v6261 = vld [vmem:[#allocation2 + $0xbb0] sm:$0xff]
  %v6262 = vld [vmem:[#allocation2 + $0xbb8] sm:$0xff]
  %v6263 = vld [vmem:[#allocation2 + $0xbc0] sm:$0xff]
  %v6264 = vld [vmem:[#allocation2 + $0xbc8] sm:$0xff]
  %v6265 = vld [vmem:[#allocation2 + $0xbd0] sm:$0xff]
  %v6266 = vld [vmem:[#allocation2 + $0xbd8] sm:$0xff]
  %v6267 = vld [vmem:[#allocation2 + $0xbe0] sm:$0xff]
  %v6268 = vld [vmem:[#allocation2 + $0xbe8] sm:$0xff]
  %v6269 = vld [vmem:[#allocation2 + $0xbf0] sm:$0xff]
  %v6270 = vld [vmem:[#allocation2 + $0xbf8] sm:$0xff]
  %v6271 = vld [vmem:[#allocation2 + $0xc00] sm:$0xff]
  %v6272 = vld [vmem:[#allocation2 + $0xc08] sm:$0xff]
  %v6273 = vld [vmem:[#allocation2 + $0xc10] sm:$0xff]
  %v6274 = vld [vmem:[#allocation2 + $0xc18] sm:$0xff]
  %v6275 = vld [vmem:[#allocation2 + $0xc20] sm:$0xff]
  %v6276 = vld [vmem:[#allocation2 + $0xc28] sm:$0xff]
  %v6277 = vld [vmem:[#allocation2 + $0xc30] sm:$0xff]
  %v6278 = vld [vmem:[#allocation2 + $0xc38] sm:$0xff]
  %v6279 = vld [vmem:[#allocation2 + $0xc40] sm:$0xff]
  %v6280 = vld [vmem:[#allocation2 + $0xc48] sm:$0xff]
  %v6281 = vld [vmem:[#allocation2 + $0xc50] sm:$0xff]
  %v6282 = vld [vmem:[#allocation2 + $0xc58] sm:$0xff]
  %v6283 = vld [vmem:[#allocation2 + $0xc60] sm:$0xff]
  %v6284 = vld [vmem:[#allocation2 + $0xc68] sm:$0xff]
  %v6285 = vld [vmem:[#allocation2 + $0xc70] sm:$0xff]
  %v6286 = vld [vmem:[#allocation2 + $0xc78] sm:$0xff]
  %v6287 = vld [vmem:[#allocation2 + $0xc80] sm:$0xff]
  %v6288 = vld [vmem:[#allocation2 + $0xc88] sm:$0xff]
  %v6289 = vld [vmem:[#allocation2 + $0xc90] sm:$0xff]
  %v6290 = vld [vmem:[#allocation2 + $0xc98] sm:$0xff]
  %v6291 = vld [vmem:[#allocation2 + $0xca0] sm:$0xff]
  %v6292 = vld [vmem:[#allocation2 + $0xca8] sm:$0xff]
  %v6293 = vld [vmem:[#allocation2 + $0xcb0] sm:$0xff]
  %v6294 = vld [vmem:[#allocation2 + $0xcb8] sm:$0xff]
  %v6295 = vld [vmem:[#allocation2 + $0xcc0] sm:$0xff]
  %v6296 = vld [vmem:[#allocation2 + $0xcc8] sm:$0xff]
  %v6297 = vld [vmem:[#allocation2 + $0xcd0] sm:$0xff]
  %v6298 = vld [vmem:[#allocation2 + $0xcd8] sm:$0xff]
  %v6299 = vld [vmem:[#allocation2 + $0xce0] sm:$0xff]
  %v6300 = vld [vmem:[#allocation2 + $0xce8] sm:$0xff]
  %v6301 = vld [vmem:[#allocation2 + $0xcf0] sm:$0xff]
  %v6302 = vld [vmem:[#allocation2 + $0xcf8] sm:$0xff]
  %v6303 = vld [vmem:[#allocation2 + $0xd00] sm:$0xff]
  %v6304 = vld [vmem:[#allocation2 + $0xd08] sm:$0xff]
  %v6305 = vld [vmem:[#allocation2 + $0xd10] sm:$0xff]
  %v6306 = vld [vmem:[#allocation2 + $0xd18] sm:$0xff]
  %v6307 = vld [vmem:[#allocation2 + $0xd20] sm:$0xff]
  %v6308 = vld [vmem:[#allocation2 + $0xd28] sm:$0xff]
  %v6309 = vld [vmem:[#allocation2 + $0xd30] sm:$0xff]
  %v6310 = vld [vmem:[#allocation2 + $0xd38] sm:$0xff]
  %v6311 = vld [vmem:[#allocation2 + $0xd40] sm:$0xff]
  %v6312 = vld [vmem:[#allocation2 + $0xd48] sm:$0xff]
  %v6313 = vld [vmem:[#allocation2 + $0xd50] sm:$0xff]
  %v6314 = vld [vmem:[#allocation2 + $0xd58] sm:$0xff]
  %v6315 = vld [vmem:[#allocation2 + $0xd60] sm:$0xff]
  %v6316 = vld [vmem:[#allocation2 + $0xd68] sm:$0xff]
  %v6317 = vld [vmem:[#allocation2 + $0xd70] sm:$0xff]
  %v6318 = vld [vmem:[#allocation2 + $0xd78] sm:$0xff]
  %v6319 = vld [vmem:[#allocation2 + $0xd80] sm:$0xff]
  %v6320 = vld [vmem:[#allocation2 + $0xd88] sm:$0xff]
  %v6321 = vld [vmem:[#allocation2 + $0xd90] sm:$0xff]
  %v6322 = vld [vmem:[#allocation2 + $0xd98] sm:$0xff]
  %v6323 = vld [vmem:[#allocation2 + $0xda0] sm:$0xff]
  %v6324 = vld [vmem:[#allocation2 + $0xda8] sm:$0xff]
  %v6325 = vld [vmem:[#allocation2 + $0xdb0] sm:$0xff]
  %v6326 = vld [vmem:[#allocation2 + $0xdb8] sm:$0xff]
  %v6327 = vld [vmem:[#allocation2 + $0xdc0] sm:$0xff]
  %v6328 = vld [vmem:[#allocation2 + $0xdc8] sm:$0xff]
  %v6329 = vld [vmem:[#allocation2 + $0xdd0] sm:$0xff]
  %v6330 = vld [vmem:[#allocation2 + $0xdd8] sm:$0xff]
  %v6331 = vld [vmem:[#allocation2 + $0xde0] sm:$0xff]
  %v6332 = vld [vmem:[#allocation2 + $0xde8] sm:$0xff]
  %v6333 = vld [vmem:[#allocation2 + $0xdf0] sm:$0xff]
  %v6334 = vld [vmem:[#allocation2 + $0xdf8] sm:$0xff]
  %v6335 = vld [vmem:[#allocation2 + $0xe00] sm:$0xff]
  %v6336 = vld [vmem:[#allocation2 + $0xe08] sm:$0xff]
  %v6337 = vld [vmem:[#allocation2 + $0xe10] sm:$0xff]
  %v6338 = vld [vmem:[#allocation2 + $0xe18] sm:$0xff]
  %v6339 = vld [vmem:[#allocation2 + $0xe20] sm:$0xff]
  %v6340 = vld [vmem:[#allocation2 + $0xe28] sm:$0xff]
  %v6341 = vld [vmem:[#allocation2 + $0xe30] sm:$0xff]
  %v6342 = vld [vmem:[#allocation2 + $0xe38] sm:$0xff]
  %v6343 = vld [vmem:[#allocation2 + $0xe40] sm:$0xff]
  %v6344 = vld [vmem:[#allocation2 + $0xe48] sm:$0xff]
  %v6345 = vld [vmem:[#allocation2 + $0xe50] sm:$0xff]
  %v6346 = vld [vmem:[#allocation2 + $0xe58] sm:$0xff]
  %v6347 = vld [vmem:[#allocation2 + $0xe60] sm:$0xff]
  %v6348 = vld [vmem:[#allocation2 + $0xe68] sm:$0xff]
  %v6349 = vld [vmem:[#allocation2 + $0xe70] sm:$0xff]
  %v6350 = vld [vmem:[#allocation2 + $0xe78] sm:$0xff]
  %v6351 = vld [vmem:[#allocation2 + $0xe80] sm:$0xff]
  %v6352 = vld [vmem:[#allocation2 + $0xe88] sm:$0xff]
  %v6353 = vld [vmem:[#allocation2 + $0xe90] sm:$0xff]
  %v6354 = vld [vmem:[#allocation2 + $0xe98] sm:$0xff]
  %v6355 = vld [vmem:[#allocation2 + $0xea0] sm:$0xff]
  %v6356 = vld [vmem:[#allocation2 + $0xea8] sm:$0xff]
  %v6357 = vld [vmem:[#allocation2 + $0xeb0] sm:$0xff]
  %v6358 = vld [vmem:[#allocation2 + $0xeb8] sm:$0xff]
  %v6359 = vld [vmem:[#allocation2 + $0xec0] sm:$0xff]
  %v6360 = vld [vmem:[#allocation2 + $0xec8] sm:$0xff]
  %v6361 = vld [vmem:[#allocation2 + $0xed0] sm:$0xff]
  %v6362 = vld [vmem:[#allocation2 + $0xed8] sm:$0xff]
  %v6363 = vld [vmem:[#allocation2 + $0xee0] sm:$0xff]
  %v6364 = vld [vmem:[#allocation2 + $0xee8] sm:$0xff]
  %v6365 = vld [vmem:[#allocation2 + $0xef0] sm:$0xff]
  %v6366 = vld [vmem:[#allocation2 + $0xef8] sm:$0xff]
  %v6367 = vld [vmem:[#allocation2 + $0xf00] sm:$0xff]
  %v6368 = vld [vmem:[#allocation2 + $0xf08] sm:$0xff]
  %v6369 = vld [vmem:[#allocation2 + $0xf10] sm:$0xff]
  %v6370 = vld [vmem:[#allocation2 + $0xf18] sm:$0xff]
  %v6371 = vld [vmem:[#allocation2 + $0xf20] sm:$0xff]
  %v6372 = vld [vmem:[#allocation2 + $0xf28] sm:$0xff]
  %v6373 = vld [vmem:[#allocation2 + $0xf30] sm:$0xff]
  %v6374 = vld [vmem:[#allocation2 + $0xf38] sm:$0xff]
  %v6375 = vld [vmem:[#allocation2 + $0xf40] sm:$0xff]
  %v6376 = vld [vmem:[#allocation2 + $0xf48] sm:$0xff]
  %v6377 = vld [vmem:[#allocation2 + $0xf50] sm:$0xff]
  %v6378 = vld [vmem:[#allocation2 + $0xf58] sm:$0xff]
  %v6379 = vld [vmem:[#allocation2 + $0xf60] sm:$0xff]
  %v6380 = vld [vmem:[#allocation2 + $0xf68] sm:$0xff]
  %v6381 = vld [vmem:[#allocation2 + $0xf70] sm:$0xff]
  %v6382 = vld [vmem:[#allocation2 + $0xf78] sm:$0xff]
  %v6383 = vld [vmem:[#allocation2 + $0xf80] sm:$0xff]
  %v6384 = vld [vmem:[#allocation2 + $0xf88] sm:$0xff]
  %v6385 = vld [vmem:[#allocation2 + $0xf90] sm:$0xff]
  %v6386 = vld [vmem:[#allocation2 + $0xf98] sm:$0xff]
  %v6387 = vld [vmem:[#allocation2 + $0xfa0] sm:$0xff]
  %v6388 = vld [vmem:[#allocation2 + $0xfa8] sm:$0xff]
  %v6389 = vld [vmem:[#allocation2 + $0xfb0] sm:$0xff]
  %v6390 = vld [vmem:[#allocation2 + $0xfb8] sm:$0xff]
  %v6391 = vld [vmem:[#allocation2 + $0xfc0] sm:$0xff]
  %v6392 = vld [vmem:[#allocation2 + $0xfc8] sm:$0xff]
  %v6393 = vld [vmem:[#allocation2 + $0xfd0] sm:$0xff]
  %v6394 = vld [vmem:[#allocation2 + $0xfd8] sm:$0xff]
  %v6395 = vld [vmem:[#allocation2 + $0xfe0] sm:$0xff]
  %v6396 = vld [vmem:[#allocation2 + $0xfe8] sm:$0xff]
  %v6397 = vld [vmem:[#allocation2 + $0xff0] sm:$0xff]
  %v6398 = vld [vmem:[#allocation2 + $0xff8] sm:$0xff]
  %v6399 = vld [vmem:[#allocation2 + $0x1000] sm:$0xff]
  %v6400 = vld [vmem:[#allocation2 + $0x1008] sm:$0xff]
  %v6401 = vld [vmem:[#allocation2 + $0x1010] sm:$0xff]
  %v6402 = vld [vmem:[#allocation2 + $0x1018] sm:$0xff]
  %v6403 = vld [vmem:[#allocation2 + $0x1020] sm:$0xff]
  %v6404 = vld [vmem:[#allocation2 + $0x1028] sm:$0xff]
  %v6405 = vld [vmem:[#allocation2 + $0x1030] sm:$0xff]
  %v6406 = vld [vmem:[#allocation2 + $0x1038] sm:$0xff]
  %v6407 = vld [vmem:[#allocation2 + $0x1040] sm:$0xff]
  %v6408 = vld [vmem:[#allocation2 + $0x1048] sm:$0xff]
  %v6409 = vld [vmem:[#allocation2 + $0x1050] sm:$0xff]
  %v6410 = vld [vmem:[#allocation2 + $0x1058] sm:$0xff]
  %v6411 = vld [vmem:[#allocation2 + $0x1060] sm:$0xff]
  %v6412 = vld [vmem:[#allocation2 + $0x1068] sm:$0xff]
  %v6413 = vld [vmem:[#allocation2 + $0x1070] sm:$0xff]
  %v6414 = vld [vmem:[#allocation2 + $0x1078] sm:$0xff]
  %v6415 = vld [vmem:[#allocation2 + $0x1080] sm:$0xff]
  %v6416 = vld [vmem:[#allocation2 + $0x1088] sm:$0xff]
  %v6417 = vld [vmem:[#allocation2 + $0x1090] sm:$0xff]
  %v6418 = vld [vmem:[#allocation2 + $0x1098] sm:$0xff]
  %v6419 = vld [vmem:[#allocation2 + $0x10a0] sm:$0xff]
  %v6420 = vld [vmem:[#allocation2 + $0x10a8] sm:$0xff]
  %v6421 = vld [vmem:[#allocation2 + $0x10b0] sm:$0xff]
  %v6422 = vld [vmem:[#allocation2 + $0x10b8] sm:$0xff]
  %v6423 = vld [vmem:[#allocation2 + $0x10c0] sm:$0xff]
  %v6424 = vld [vmem:[#allocation2 + $0x10c8] sm:$0xff]
  %v6425 = vld [vmem:[#allocation2 + $0x10d0] sm:$0xff]
  %v6426 = vld [vmem:[#allocation2 + $0x10d8] sm:$0xff]
  %v6427 = vld [vmem:[#allocation2 + $0x10e0] sm:$0xff]
  %v6428 = vld [vmem:[#allocation2 + $0x10e8] sm:$0xff]
  %v6429 = vld [vmem:[#allocation2 + $0x10f0] sm:$0xff]
  %v6430 = vld [vmem:[#allocation2 + $0x10f8] sm:$0xff]
  %v6431 = vld [vmem:[#allocation2 + $0x1100] sm:$0xff]
  %v6432 = vld [vmem:[#allocation2 + $0x1108] sm:$0xff]
  %v6433 = vld [vmem:[#allocation2 + $0x1110] sm:$0xff]
  %v6434 = vld [vmem:[#allocation2 + $0x1118] sm:$0xff]
  %v6435 = vld [vmem:[#allocation2 + $0x1120] sm:$0xff]
  %v6436 = vld [vmem:[#allocation2 + $0x1128] sm:$0xff]
  %v6437 = vld [vmem:[#allocation2 + $0x1130] sm:$0xff]
  %v6438 = vld [vmem:[#allocation2 + $0x1138] sm:$0xff]
  %v6439 = vld [vmem:[#allocation2 + $0x1140] sm:$0xff]
  %v6440 = vld [vmem:[#allocation2 + $0x1148] sm:$0xff]
  %v6441 = vld [vmem:[#allocation2 + $0x1150] sm:$0xff]
  %v6442 = vld [vmem:[#allocation2 + $0x1158] sm:$0xff]
  %v6443 = vld [vmem:[#allocation2 + $0x1160] sm:$0xff]
  %v6444 = vld [vmem:[#allocation2 + $0x1168] sm:$0xff]
  %v6445 = vld [vmem:[#allocation2 + $0x1170] sm:$0xff]
  %v6446 = vld [vmem:[#allocation2 + $0x1178] sm:$0xff]
  %v6447 = vld [vmem:[#allocation2 + $0x1180] sm:$0xff]
  %v6448 = vld [vmem:[#allocation2 + $0x1188] sm:$0xff]
  %v6449 = vld [vmem:[#allocation2 + $0x1190] sm:$0xff]
  %v6450 = vld [vmem:[#allocation2 + $0x1198] sm:$0xff]
  %v6451 = vld [vmem:[#allocation2 + $0x11a0] sm:$0xff]
  %v6452 = vld [vmem:[#allocation2 + $0x11a8] sm:$0xff]
  %v6453 = vld [vmem:[#allocation2 + $0x11b0] sm:$0xff]
  %v6454 = vld [vmem:[#allocation2 + $0x11b8] sm:$0xff]
  %v6455 = vld [vmem:[#allocation2 + $0x11c0] sm:$0xff]
  %v6456 = vld [vmem:[#allocation2 + $0x11c8] sm:$0xff]
  %v6457 = vld [vmem:[#allocation2 + $0x11d0] sm:$0xff]
  %v6458 = vld [vmem:[#allocation2 + $0x11d8] sm:$0xff]
  %v6459 = vld [vmem:[#allocation2 + $0x11e0] sm:$0xff]
  %v6460 = vld [vmem:[#allocation2 + $0x11e8] sm:$0xff]
  %v6461 = vld [vmem:[#allocation2 + $0x11f0] sm:$0xff]
  %v6462 = vld [vmem:[#allocation2 + $0x11f8] sm:$0xff]
  %v6463 = vld [vmem:[#allocation2 + $0x1200] sm:$0xff]
  %v6464 = vld [vmem:[#allocation2 + $0x1208] sm:$0xff]
  %v6465 = vld [vmem:[#allocation2 + $0x1210] sm:$0xff]
  %v6466 = vld [vmem:[#allocation2 + $0x1218] sm:$0xff]
  %v6467 = vld [vmem:[#allocation2 + $0x1220] sm:$0xff]
  %v6468 = vld [vmem:[#allocation2 + $0x1228] sm:$0xff]
  %v6469 = vld [vmem:[#allocation2 + $0x1230] sm:$0xff]
  %v6470 = vld [vmem:[#allocation2 + $0x1238] sm:$0xff]
  %v6471 = vld [vmem:[#allocation2 + $0x1240] sm:$0xff]
  %v6472 = vld [vmem:[#allocation2 + $0x1248] sm:$0xff]
  %v6473 = vld [vmem:[#allocation2 + $0x1250] sm:$0xff]
  %v6474 = vld [vmem:[#allocation2 + $0x1258] sm:$0xff]
  %v6475 = vld [vmem:[#allocation2 + $0x1260] sm:$0xff]
  %v6476 = vld [vmem:[#allocation2 + $0x1268] sm:$0xff]
  %v6477 = vld [vmem:[#allocation2 + $0x1270] sm:$0xff]
  %v6478 = vld [vmem:[#allocation2 + $0x1278] sm:$0xff]
  %v6479 = vld [vmem:[#allocation2 + $0x1280] sm:$0xff]
  %v6480 = vld [vmem:[#allocation2 + $0x1288] sm:$0xff]
  %v6481 = vld [vmem:[#allocation2 + $0x1290] sm:$0xff]
  %v6482 = vld [vmem:[#allocation2 + $0x1298] sm:$0xff]
  %v6483 = vld [vmem:[#allocation2 + $0x12a0] sm:$0xff]
  %v6484 = vld [vmem:[#allocation2 + $0x12a8] sm:$0xff]
  %v6485 = vld [vmem:[#allocation2 + $0x12b0] sm:$0xff]
  %v6486 = vld [vmem:[#allocation2 + $0x12b8] sm:$0xff]
  %v6487 = vld [vmem:[#allocation2 + $0x12c0] sm:$0xff]
  %v6488 = vld [vmem:[#allocation2 + $0x12c8] sm:$0xff]
  %v6489 = vld [vmem:[#allocation2 + $0x12d0] sm:$0xff]
  %v6490 = vld [vmem:[#allocation2 + $0x12d8] sm:$0xff]
  %v6491 = vld [vmem:[#allocation2 + $0x12e0] sm:$0xff]
  %v6492 = vld [vmem:[#allocation2 + $0x12e8] sm:$0xff]
  %v6493 = vld [vmem:[#allocation2 + $0x12f0] sm:$0xff]
  %v6494 = vld [vmem:[#allocation2 + $0x12f8] sm:$0xff]
  %v6495 = vld [vmem:[#allocation2 + $0x1300] sm:$0xff]
  %v6496 = vld [vmem:[#allocation2 + $0x1308] sm:$0xff]
  %v6497 = vld [vmem:[#allocation2 + $0x1310] sm:$0xff]
  %v6498 = vld [vmem:[#allocation2 + $0x1318] sm:$0xff]
  %v6499 = vld [vmem:[#allocation2 + $0x1320] sm:$0xff]
  %v6500 = vld [vmem:[#allocation2 + $0x1328] sm:$0xff]
  %v6501 = vld [vmem:[#allocation2 + $0x1330] sm:$0xff]
  %v6502 = vld [vmem:[%s5] sm:$0x1f]
  %v6504 = vlaneseq
  %v6505 = vshrl.u32 %v6504, 7
  %v6506 = vsub.s32 0, %v6505
  %v6507 = vrot.slane %v6502, %v6506
  %v6508 = vlaneseq
  %v6509 = vshrl.u32 %v6508, 7
  %v6510 = vsub.s32 1, %v6509
  %v6511 = vrot.slane %v6502, %v6510
  %v6512 = vlaneseq
  %v6513 = vshrl.u32 %v6512, 7
  %v6514 = vsub.s32 2, %v6513
  %v6515 = vrot.slane %v6502, %v6514
  %v6516 = vlaneseq
  %v6517 = vshrl.u32 %v6516, 7
  %v6518 = vsub.s32 3, %v6517
  %v6519 = vrot.slane %v6502, %v6518
  %v6520 = vlaneseq
  %v6521 = vshrl.u32 %v6520, 7
  %v6522 = vsub.s32 4, %v6521
  %v6523 = vrot.slane %v6502, %v6522
  %vm6529 = vcmask 392192
  %v6531 = vsel %vm6529, %v5886, 0
  %6533 = vmatprep.subr.bf16.mxu0 %v5888
  %6534 = vmatpush1.bf16.msra.mxu0 %v5887
  %6535 = vmatprep.subr.bf16.mxu0 %v5893
  %6536 = vmatpush1.bf16.msra.mxu0 %v5892
  %6537 = vmatprep.subr.bf16.mxu0 %v5898
  %6538 = vmatpush1.bf16.msra.mxu0 %v5897
  %6539 = vmatprep.subr.bf16.mxu0 %v5903
  %6540 = vmatpush1.bf16.msra.mxu0 %v5902
  %6541 = vmatprep.subr.bf16.mxu0 %v5908
  %6542 = vmatpush1.bf16.msra.mxu0 %v5907
  %6543 = vmatprep.subr.bf16.mxu0 %v5913
  %6544 = vmatpush1.bf16.msra.mxu0 %v5912
  %6545 = vmatprep.subr.bf16.mxu0 %v5918
  %6546 = vmatpush1.bf16.msra.mxu0 %v5917
  %6547 = vmatprep.subr.bf16.mxu0 %v5923
  %6548 = vmatpush1.bf16.msra.mxu0 %v5922
  %6549 = vmatprep.subr.bf16.mxu0 %v5928
  %6550 = vmatpush1.bf16.msra.mxu0 %v5927
  %6551 = vmatprep.subr.bf16.mxu0 %v5933
  %6552 = vmatpush1.bf16.msra.mxu0 %v5932
  %6553 = vmatprep.subr.bf16.mxu0 %v5938
  %6554 = vmatpush1.bf16.msra.mxu0 %v5937
  %6555 = vmatprep.subr.bf16.mxu0 %v5943
  %6556 = vmatpush1.bf16.msra.mxu0 %v5942
  %6557 = vmatprep.subr.bf16.mxu0 %v5948
  %6558 = vmatpush1.bf16.msra.mxu0 %v5947
  %6559 = vmatprep.subr.bf16.mxu0 %v5953
  %6560 = vmatpush1.bf16.msra.mxu0 %v5952
  %6561 = vmatprep.subr.bf16.mxu0 %v5958
  %6562 = vmatpush1.bf16.msra.mxu0 %v5957
  %6563 = vmatprep.subr.bf16.mxu0 %v5963
  %6564 = vmatpush1.bf16.msra.mxu0 %v5962
  %6565 = vmatprep.mubr.bf16.mxu0 %v5872
  %6566 = vmatmul.mubr.bf16.gmra.mrb[0].mxu0 %v5871
  %v6567 = vpop.f32.mrb[0].mxu0
  %v6568 = vadd.f32 %v6507, %v6567
  %v6569 = vpop.f32.mrb[0].mxu0
  %v6570 = vadd.f32 %v6511, %v6569
  %v6571 = vpop.f32.mrb[0].mxu0
  %v6572 = vpop.f32.mrb[0].mxu0
  %6573 = vdwg.mxu0
  %6574 = vmatprep.subr.bf16.mxu0 %v5968
  %6575 = vmatpush1.bf16.msra.mxu0 %v5967
  %6576 = vmatprep.subr.bf16.mxu0 %v5973
  %6577 = vmatpush1.bf16.msra.mxu0 %v5972
  %6578 = vmatprep.subr.bf16.mxu0 %v5978
  %6579 = vmatpush1.bf16.msra.mxu0 %v5977
  %6580 = vmatprep.subr.bf16.mxu0 %v5983
  %6581 = vmatpush1.bf16.msra.mxu0 %v5982
  %6582 = vmatprep.subr.bf16.mxu0 %v5988
  %6583 = vmatpush1.bf16.msra.mxu0 %v5987
  %6584 = vmatprep.subr.bf16.mxu0 %v5993
  %6585 = vmatpush1.bf16.msra.mxu0 %v5992
  %6586 = vmatprep.subr.bf16.mxu0 %v5998
  %6587 = vmatpush1.bf16.msra.mxu0 %v5997
  %6588 = vmatprep.subr.bf16.mxu0 %v6003
  %6589 = vmatpush1.bf16.msra.mxu0 %v6002
  %6590 = vmatprep.subr.bf16.mxu0 %v6008
  %6591 = vmatpush1.bf16.msra.mxu0 %v6007
  %6592 = vmatprep.subr.bf16.mxu0 %v6013
  %6593 = vmatpush1.bf16.msra.mxu0 %v6012
  %6594 = vmatprep.subr.bf16.mxu0 %v6018
  %6595 = vmatpush1.bf16.msra.mxu0 %v6017
  %6596 = vmatprep.subr.bf16.mxu0 %v6023
  %6597 = vmatpush1.bf16.msra.mxu0 %v6022
  %6598 = vmatprep.subr.bf16.mxu0 %v6028
  %6599 = vmatpush1.bf16.msra.mxu0 %v6027
  %6600 = vmatprep.subr.bf16.mxu0 %v6033
  %6601 = vmatpush1.bf16.msra.mxu0 %v6032
  %6602 = vmatprep.subr.bf16.mxu0 %v6038
  %6603 = vmatpush1.bf16.msra.mxu0 %v6037
  %6604 = vmatprep.subr.bf16.mxu0 %v6043
  %6605 = vmatpush1.bf16.msra.mxu0 %v6042
  %6606 = vmatprep.mubr.bf16.mxu0 %v5874
  %6607 = vmatmul.mubr.bf16.gmra.mrb[0].mxu0 %v5873
  %v6608 = vpop.f32.mrb[0].mxu0
  %v6609 = vadd.f32 %v6568, %v6608
  %v6610 = vpop.f32.mrb[0].mxu0
  %v6611 = vadd.f32 %v6570, %v6610
  %v6612 = vpop.f32.mrb[0].mxu0
  %v6613 = vpop.f32.mrb[0].mxu0
  %6614 = vdwg.mxu0
  %6615 = vmatprep.subr.bf16.mxu0 %v6048
  %6616 = vmatpush1.bf16.msra.mxu0 %v6047
  %6617 = vmatprep.subr.bf16.mxu0 %v6053
  %6618 = vmatpush1.bf16.msra.mxu0 %v6052
  %6619 = vmatprep.subr.bf16.mxu0 %v6058
  %6620 = vmatpush1.bf16.msra.mxu0 %v6057
  %6621 = vmatprep.subr.bf16.mxu0 %v6063
  %6622 = vmatpush1.bf16.msra.mxu0 %v6062
  %6623 = vmatprep.subr.bf16.mxu0 %v6068
  %6624 = vmatpush1.bf16.msra.mxu0 %v6067
  %6625 = vmatprep.subr.bf16.mxu0 %v6073
  %6626 = vmatpush1.bf16.msra.mxu0 %v6072
  %6627 = vmatprep.subr.bf16.mxu0 %v6078
  %6628 = vmatpush1.bf16.msra.mxu0 %v6077
  %6629 = vmatprep.subr.bf16.mxu0 %v6083
  %6630 = vmatpush1.bf16.msra.mxu0 %v6082
  %6631 = vmatprep.subr.bf16.mxu0 %v6088
  %6632 = vmatpush1.bf16.msra.mxu0 %v6087
  %6633 = vmatprep.subr.bf16.mxu0 %v6093
  %6634 = vmatpush1.bf16.msra.mxu0 %v6092
  %6635 = vmatprep.subr.bf16.mxu0 %v6098
  %6636 = vmatpush1.bf16.msra.mxu0 %v6097
  %6637 = vmatprep.subr.bf16.mxu0 %v6103
  %6638 = vmatpush1.bf16.msra.mxu0 %v6102
  %6639 = vmatprep.subr.bf16.mxu0 %v6108
  %6640 = vmatpush1.bf16.msra.mxu0 %v6107
  %6641 = vmatprep.subr.bf16.mxu0 %v6113
  %6642 = vmatpush1.bf16.msra.mxu0 %v6112
  %6643 = vmatprep.subr.bf16.mxu0 %v6118
  %6644 = vmatpush1.bf16.msra.mxu0 %v6117
  %6645 = vmatprep.subr.bf16.mxu0 %v6123
  %6646 = vmatpush1.bf16.msra.mxu0 %v6122
  %6647 = vmatprep.mubr.bf16.mxu0 %v5876
  %6648 = vmatmul.mubr.bf16.gmra.mrb[0].mxu0 %v5875
  %v6649 = vpop.f32.mrb[0].mxu0
  %v6650 = vadd.f32 %v6609, %v6649
  %v6651 = vpop.f32.mrb[0].mxu0
  %v6652 = vadd.f32 %v6611, %v6651
  %v6653 = vpop.f32.mrb[0].mxu0
  %v6654 = vpop.f32.mrb[0].mxu0
  %6655 = vdwg.mxu0
  %6656 = vmatprep.subr.bf16.mxu0 %v6128
  %6657 = vmatpush1.bf16.msra.mxu0 %v6127
  %6658 = vmatprep.subr.bf16.mxu0 %v6133
  %6659 = vmatpush1.bf16.msra.mxu0 %v6132
  %6660 = vmatprep.subr.bf16.mxu0 %v6138
  %6661 = vmatpush1.bf16.msra.mxu0 %v6137
  %6662 = vmatprep.subr.bf16.mxu0 %v6143
  %6663 = vmatpush1.bf16.msra.mxu0 %v6142
  %6664 = vmatprep.subr.bf16.mxu0 %v6148
  %6665 = vmatpush1.bf16.msra.mxu0 %v6147
  %6666 = vmatprep.subr.bf16.mxu0 %v6153
  %6667 = vmatpush1.bf16.msra.mxu0 %v6152
  %6668 = vmatprep.subr.bf16.mxu0 %v6158
  %6669 = vmatpush1.bf16.msra.mxu0 %v6157
  %6670 = vmatprep.subr.bf16.mxu0 %v6163
  %6671 = vmatpush1.bf16.msra.mxu0 %v6162
  %6672 = vmatprep.subr.bf16.mxu0 %v6168
  %6673 = vmatpush1.bf16.msra.mxu0 %v6167
  %6674 = vmatprep.subr.bf16.mxu0 %v6173
  %6675 = vmatpush1.bf16.msra.mxu0 %v6172
  %6676 = vmatprep.subr.bf16.mxu0 %v6178
  %6677 = vmatpush1.bf16.msra.mxu0 %v6177
  %6678 = vmatprep.subr.bf16.mxu0 %v6183
  %6679 = vmatpush1.bf16.msra.mxu0 %v6182
  %6680 = vmatprep.subr.bf16.mxu0 %v6188
  %6681 = vmatpush1.bf16.msra.mxu0 %v6187
  %6682 = vmatprep.subr.bf16.mxu0 %v6193
  %6683 = vmatpush1.bf16.msra.mxu0 %v6192
  %6684 = vmatprep.subr.bf16.mxu0 %v6198
  %6685 = vmatpush1.bf16.msra.mxu0 %v6197
  %6686 = vmatprep.subr.bf16.mxu0 %v6203
  %6687 = vmatpush1.bf16.msra.mxu0 %v6202
  %6688 = vmatprep.mubr.bf16.mxu0 %v5878
  %6689 = vmatmul.mubr.bf16.gmra.mrb[0].mxu0 %v5877
  %v6690 = vpop.f32.mrb[0].mxu0
  %v6691 = vadd.f32 %v6650, %v6690
  %v6692 = vpop.f32.mrb[0].mxu0
  %v6693 = vadd.f32 %v6652, %v6692
  %v6694 = vpop.f32.mrb[0].mxu0
  %v6695 = vpop.f32.mrb[0].mxu0
  %6696 = vdwg.mxu0
  %6697 = vmatprep.subr.bf16.mxu0 %v6208
  %6698 = vmatpush1.bf16.msra.mxu0 %v6207
  %6699 = vmatprep.subr.bf16.mxu0 %v6213
  %6700 = vmatpush1.bf16.msra.mxu0 %v6212
  %6701 = vmatprep.subr.bf16.mxu0 %v6218
  %6702 = vmatpush1.bf16.msra.mxu0 %v6217
  %6703 = vmatprep.subr.bf16.mxu0 %v6223
  %6704 = vmatpush1.bf16.msra.mxu0 %v6222
  %6705 = vmatprep.subr.bf16.mxu0 %v6228
  %6706 = vmatpush1.bf16.msra.mxu0 %v6227
  %6707 = vmatprep.subr.bf16.mxu0 %v6233
  %6708 = vmatpush1.bf16.msra.mxu0 %v6232
  %6709 = vmatprep.subr.bf16.mxu0 %v6238
  %6710 = vmatpush1.bf16.msra.mxu0 %v6237
  %6711 = vmatprep.subr.bf16.mxu0 %v6243
  %6712 = vmatpush1.bf16.msra.mxu0 %v6242
  %6713 = vmatprep.subr.bf16.mxu0 %v6248
  %6714 = vmatpush1.bf16.msra.mxu0 %v6247
  %6715 = vmatprep.subr.bf16.mxu0 %v6253
  %6716 = vmatpush1.bf16.msra.mxu0 %v6252
  %6717 = vmatprep.subr.bf16.mxu0 %v6258
  %6718 = vmatpush1.bf16.msra.mxu0 %v6257
  %6719 = vmatprep.subr.bf16.mxu0 %v6263
  %6720 = vmatpush1.bf16.msra.mxu0 %v6262
  %6721 = vmatprep.subr.bf16.mxu0 %v6268
  %6722 = vmatpush1.bf16.msra.mxu0 %v6267
  %6723 = vmatprep.subr.bf16.mxu0 %v6273
  %6724 = vmatpush1.bf16.msra.mxu0 %v6272
  %6725 = vmatprep.subr.bf16.mxu0 %v6278
  %6726 = vmatpush1.bf16.msra.mxu0 %v6277
  %6727 = vmatprep.subr.bf16.mxu0 %v6283
  %6728 = vmatpush1.bf16.msra.mxu0 %v6282
  %6729 = vmatprep.mubr.bf16.mxu0 %v5880
  %6730 = vmatmul.mubr.bf16.gmra.mrb[0].mxu0 %v5879
  %v6731 = vpop.f32.mrb[0].mxu0
  %v6732 = vadd.f32 %v6691, %v6731
  %v6733 = vpop.f32.mrb[0].mxu0
  %v6734 = vadd.f32 %v6693, %v6733
  %v6735 = vpop.f32.mrb[0].mxu0
  %v6736 = vpop.f32.mrb[0].mxu0
  %6737 = vdwg.mxu0
  %6738 = vmatprep.subr.bf16.mxu0 %v6288
  %6739 = vmatpush1.bf16.msra.mxu0 %v6287
  %6740 = vmatprep.subr.bf16.mxu0 %v6293
  %6741 = vmatpush1.bf16.msra.mxu0 %v6292
  %6742 = vmatprep.subr.bf16.mxu0 %v6298
  %6743 = vmatpush1.bf16.msra.mxu0 %v6297
  %6744 = vmatprep.subr.bf16.mxu0 %v6303
  %6745 = vmatpush1.bf16.msra.mxu0 %v6302
  %6746 = vmatprep.subr.bf16.mxu0 %v6308
  %6747 = vmatpush1.bf16.msra.mxu0 %v6307
  %6748 = vmatprep.subr.bf16.mxu0 %v6313
  %6749 = vmatpush1.bf16.msra.mxu0 %v6312
  %6750 = vmatprep.subr.bf16.mxu0 %v6318
  %6751 = vmatpush1.bf16.msra.mxu0 %v6317
  %6752 = vmatprep.subr.bf16.mxu0 %v6323
  %6753 = vmatpush1.bf16.msra.mxu0 %v6322
  %6754 = vmatprep.subr.bf16.mxu0 %v6328
  %6755 = vmatpush1.bf16.msra.mxu0 %v6327
  %6756 = vmatprep.subr.bf16.mxu0 %v6333
  %6757 = vmatpush1.bf16.msra.mxu0 %v6332
  %6758 = vmatprep.subr.bf16.mxu0 %v6338
  %6759 = vmatpush1.bf16.msra.mxu0 %v6337
  %6760 = vmatprep.subr.bf16.mxu0 %v6343
  %6761 = vmatpush1.bf16.msra.mxu0 %v6342
  %6762 = vmatprep.subr.bf16.mxu0 %v6348
  %6763 = vmatpush1.bf16.msra.mxu0 %v6347
  %6764 = vmatprep.subr.bf16.mxu0 %v6353
  %6765 = vmatpush1.bf16.msra.mxu0 %v6352
  %6766 = vmatprep.subr.bf16.mxu0 %v6358
  %6767 = vmatpush1.bf16.msra.mxu0 %v6357
  %6768 = vmatprep.subr.bf16.mxu0 %v6363
  %6769 = vmatpush1.bf16.msra.mxu0 %v6362
  %6770 = vmatprep.mubr.bf16.mxu0 %v5882
  %6771 = vmatmul.mubr.bf16.gmra.mrb[0].mxu0 %v5881
  %v6772 = vpop.f32.mrb[0].mxu0
  %v6773 = vadd.f32 %v6732, %v6772
  %v6774 = vpop.f32.mrb[0].mxu0
  %v6775 = vadd.f32 %v6734, %v6774
  %v6776 = vpop.f32.mrb[0].mxu0
  %v6777 = vpop.f32.mrb[0].mxu0
  %6778 = vdwg.mxu0
  %6779 = vmatprep.subr.bf16.mxu0 %v6368
  %6780 = vmatpush1.bf16.msra.mxu0 %v6367
  %6781 = vmatprep.subr.bf16.mxu0 %v6373
  %6782 = vmatpush1.bf16.msra.mxu0 %v6372
  %6783 = vmatprep.subr.bf16.mxu0 %v6378
  %6784 = vmatpush1.bf16.msra.mxu0 %v6377
  %6785 = vmatprep.subr.bf16.mxu0 %v6383
  %6786 = vmatpush1.bf16.msra.mxu0 %v6382
  %6787 = vmatprep.subr.bf16.mxu0 %v6388
  %6788 = vmatpush1.bf16.msra.mxu0 %v6387
  %6789 = vmatprep.subr.bf16.mxu0 %v6393
  %6790 = vmatpush1.bf16.msra.mxu0 %v6392
  %6791 = vmatprep.subr.bf16.mxu0 %v6398
  %6792 = vmatpush1.bf16.msra.mxu0 %v6397
  %6793 = vmatprep.subr.bf16.mxu0 %v6403
  %6794 = vmatpush1.bf16.msra.mxu0 %v6402
  %6795 = vmatprep.subr.bf16.mxu0 %v6408
  %6796 = vmatpush1.bf16.msra.mxu0 %v6407
  %6797 = vmatprep.subr.bf16.mxu0 %v6413
  %6798 = vmatpush1.bf16.msra.mxu0 %v6412
  %6799 = vmatprep.subr.bf16.mxu0 %v6418
  %6800 = vmatpush1.bf16.msra.mxu0 %v6417
  %6801 = vmatprep.subr.bf16.mxu0 %v6423
  %6802 = vmatpush1.bf16.msra.mxu0 %v6422
  %6803 = vmatprep.subr.bf16.mxu0 %v6428
  %6804 = vmatpush1.bf16.msra.mxu0 %v6427
  %6805 = vmatprep.subr.bf16.mxu0 %v6433
  %6806 = vmatpush1.bf16.msra.mxu0 %v6432
  %6807 = vmatprep.subr.bf16.mxu0 %v6438
  %6808 = vmatpush1.bf16.msra.mxu0 %v6437
  %6809 = vmatprep.subr.bf16.mxu0 %v6443
  %6810 = vmatpush1.bf16.msra.mxu0 %v6442
  %6811 = vmatprep.mubr.bf16.mxu0 %v5884
  %6812 = vmatmul.mubr.bf16.gmra.mrb[0].mxu0 %v5883
  %v6813 = vpop.f32.mrb[0].mxu0
  %v6814 = vadd.f32 %v6773, %v6813
  %v6815 = vpop.f32.mrb[0].mxu0
  %v6816 = vadd.f32 %v6775, %v6815
  %v6817 = vpop.f32.mrb[0].mxu0
  %v6818 = vpop.f32.mrb[0].mxu0
  %6819 = vdwg.mxu0
  %6820 = vmatprep.subr.bf16.mxu0 %v6448
  %6821 = vmatpush1.bf16.msra.mxu0 %v6447
  %6822 = vmatprep.subr.bf16.mxu0 %v6453
  %6823 = vmatpush1.bf16.msra.mxu0 %v6452
  %6824 = vmatprep.subr.bf16.mxu0 %v6458
  %6825 = vmatpush1.bf16.msra.mxu0 %v6457
  %6826 = vmatprep.subr.bf16.mxu0 %v6463
  %6827 = vmatpush1.bf16.msra.mxu0 %v6462
  %6828 = vmatprep.subr.bf16.mxu0 %v6468
  %6829 = vmatpush1.bf16.msra.mxu0 %v6467
  %6830 = vmatprep.subr.bf16.mxu0 %v6473
  %6831 = vmatpush1.bf16.msra.mxu0 %v6472
  %6832 = vmatprep.subr.bf16.mxu0 %v6478
  %6833 = vmatpush1.bf16.msra.mxu0 %v6477
  %6834 = vmatprep.subr.bf16.mxu0 %v6483
  %6835 = vmatpush1.bf16.msra.mxu0 %v6482
  %6836 = vmatprep.subr.bf16.mxu0 %v6488
  %6837 = vmatpush1.bf16.msra.mxu0 %v6487
  %6838 = vmatprep.subr.bf16.mxu0 %v6493
  %6839 = vmatpush1.bf16.msra.mxu0 %v6492
  %6840 = vmatprep.subr.bf16.mxu0 %v6498
  %6841 = vmatpush1.bf16.msra.mxu0 %v6497
  %6842 = vmatprep.subr.bf16.mxu0 0
  %6843 = vmatpush1.bf16.msra.mxu0 0
  %6844 = vmatprep.subr.bf16.mxu0 0
  %6845 = vmatpush1.bf16.msra.mxu0 0
  %6846 = vmatprep.subr.bf16.mxu0 0
  %6847 = vmatpush1.bf16.msra.mxu0 0
  %6848 = vmatprep.subr.bf16.mxu0 0
  %6849 = vmatpush1.bf16.msra.mxu0 0
  %6850 = vmatprep.subr.bf16.mxu0 0
  %6851 = vmatpush1.bf16.msra.mxu0 0
  %6852 = vmatprep.mubr.bf16.mxu0 %v6531
  %6853 = vmatmul.mubr.bf16.gmra.mrb[0].mxu0 %v5885
  %v6854 = vpop.f32.mrb[0].mxu0
  %v6855 = vadd.f32 %v6814, %v6854
  %v6856 = vpop.f32.mrb[0].mxu0
  %v6857 = vadd.f32 %v6816, %v6856
  %v6858 = vpop.f32.mrb[0].mxu0
  %v6859 = vpop.f32.mrb[0].mxu0
  %6860 = vdwg.mxu0
  %6861 = vmatprep.subr.bf16.mxu0 %v5890
  %6862 = vmatpush1.bf16.msra.mxu0 %v5889
  %6863 = vmatprep.subr.bf16.mxu0 %v5895
  %6864 = vmatpush1.bf16.msra.mxu0 %v5894
  %6865 = vmatprep.subr.bf16.mxu0 %v5900
  %6866 = vmatpush1.bf16.msra.mxu0 %v5899
  %6867 = vmatprep.subr.bf16.mxu0 %v5905
  %6868 = vmatpush1.bf16.msra.mxu0 %v5904
  %6869 = vmatprep.subr.bf16.mxu0 %v5910
  %6870 = vmatpush1.bf16.msra.mxu0 %v5909
  %6871 = vmatprep.subr.bf16.mxu0 %v5915
  %6872 = vmatpush1.bf16.msra.mxu0 %v5914
  %6873 = vmatprep.subr.bf16.mxu0 %v5920
  %6874 = vmatpush1.bf16.msra.mxu0 %v5919
  %6875 = vmatprep.subr.bf16.mxu0 %v5925
  %6876 = vmatpush1.bf16.msra.mxu0 %v5924
  %6877 = vmatprep.subr.bf16.mxu0 %v5930
  %6878 = vmatpush1.bf16.msra.mxu0 %v5929
  %6879 = vmatprep.subr.bf16.mxu0 %v5935
  %6880 = vmatpush1.bf16.msra.mxu0 %v5934
  %6881 = vmatprep.subr.bf16.mxu0 %v5940
  %6882 = vmatpush1.bf16.msra.mxu0 %v5939
  %6883 = vmatprep.subr.bf16.mxu0 %v5945
  %6884 = vmatpush1.bf16.msra.mxu0 %v5944
  %6885 = vmatprep.subr.bf16.mxu0 %v5950
  %6886 = vmatpush1.bf16.msra.mxu0 %v5949
  %6887 = vmatprep.subr.bf16.mxu0 %v5955
  %6888 = vmatpush1.bf16.msra.mxu0 %v5954
  %6889 = vmatprep.subr.bf16.mxu0 %v5960
  %6890 = vmatpush1.bf16.msra.mxu0 %v5959
  %6891 = vmatprep.subr.bf16.mxu0 %v5965
  %6892 = vmatpush1.bf16.msra.mxu0 %v5964
  %6893 = vmatprep.mubr.bf16.mxu0 %v5872
  %6894 = vmatmul.mubr.bf16.gmra.mrb[0].mxu0 %v5871
  %v6895 = vpop.f32.mrb[0].mxu0
  %v6896 = vadd.f32 %v6515, %v6895
  %v6897 = vpop.f32.mrb[0].mxu0
  %v6898 = vadd.f32 %v6519, %v6897
  %v6899 = vpop.f32.mrb[0].mxu0
  %v6900 = vpop.f32.mrb[0].mxu0
  %6901 = vdwg.mxu0
  %6902 = vmatprep.subr.bf16.mxu0 %v5970
  %6903 = vmatpush1.bf16.msra.mxu0 %v5969
  %6904 = vmatprep.subr.bf16.mxu0 %v5975
  %6905 = vmatpush1.bf16.msra.mxu0 %v5974
  %6906 = vmatprep.subr.bf16.mxu0 %v5980
  %6907 = vmatpush1.bf16.msra.mxu0 %v5979
  %6908 = vmatprep.subr.bf16.mxu0 %v5985
  %6909 = vmatpush1.bf16.msra.mxu0 %v5984
  %6910 = vmatprep.subr.bf16.mxu0 %v5990
  %6911 = vmatpush1.bf16.msra.mxu0 %v5989
  %6912 = vmatprep.subr.bf16.mxu0 %v5995
  %6913 = vmatpush1.bf16.msra.mxu0 %v5994
  %6914 = vmatprep.subr.bf16.mxu0 %v6000
  %6915 = vmatpush1.bf16.msra.mxu0 %v5999
  %6916 = vmatprep.subr.bf16.mxu0 %v6005
  %6917 = vmatpush1.bf16.msra.mxu0 %v6004
  %6918 = vmatprep.subr.bf16.mxu0 %v6010
  %6919 = vmatpush1.bf16.msra.mxu0 %v6009
  %6920 = vmatprep.subr.bf16.mxu0 %v6015
  %6921 = vmatpush1.bf16.msra.mxu0 %v6014
  %6922 = vmatprep.subr.bf16.mxu0 %v6020
  %6923 = vmatpush1.bf16.msra.mxu0 %v6019
  %6924 = vmatprep.subr.bf16.mxu0 %v6025
  %6925 = vmatpush1.bf16.msra.mxu0 %v6024
  %6926 = vmatprep.subr.bf16.mxu0 %v6030
  %6927 = vmatpush1.bf16.msra.mxu0 %v6029
  %6928 = vmatprep.subr.bf16.mxu0 %v6035
  %6929 = vmatpush1.bf16.msra.mxu0 %v6034
  %6930 = vmatprep.subr.bf16.mxu0 %v6040
  %6931 = vmatpush1.bf16.msra.mxu0 %v6039
  %6932 = vmatprep.subr.bf16.mxu0 %v6045
  %6933 = vmatpush1.bf16.msra.mxu0 %v6044
  %6934 = vmatprep.mubr.bf16.mxu0 %v5874
  %6935 = vmatmul.mubr.bf16.gmra.mrb[0].mxu0 %v5873
  %v6936 = vpop.f32.mrb[0].mxu0
  %v6937 = vadd.f32 %v6896, %v6936
  %v6938 = vpop.f32.mrb[0].mxu0
  %v6939 = vadd.f32 %v6898, %v6938
  %v6940 = vpop.f32.mrb[0].mxu0
  %v6941 = vpop.f32.mrb[0].mxu0
  %6942 = vdwg.mxu0
  %6943 = vmatprep.subr.bf16.mxu0 %v6050
  %6944 = vmatpush1.bf16.msra.mxu0 %v6049
  %6945 = vmatprep.subr.bf16.mxu0 %v6055
  %6946 = vmatpush1.bf16.msra.mxu0 %v6054
  %6947 = vmatprep.subr.bf16.mxu0 %v6060
  %6948 = vmatpush1.bf16.msra.mxu0 %v6059
  %6949 = vmatprep.subr.bf16.mxu0 %v6065
  %6950 = vmatpush1.bf16.msra.mxu0 %v6064
  %6951 = vmatprep.subr.bf16.mxu0 %v6070
  %6952 = vmatpush1.bf16.msra.mxu0 %v6069
  %6953 = vmatprep.subr.bf16.mxu0 %v6075
  %6954 = vmatpush1.bf16.msra.mxu0 %v6074
  %6955 = vmatprep.subr.bf16.mxu0 %v6080
  %6956 = vmatpush1.bf16.msra.mxu0 %v6079
  %6957 = vmatprep.subr.bf16.mxu0 %v6085
  %6958 = vmatpush1.bf16.msra.mxu0 %v6084
  %6959 = vmatprep.subr.bf16.mxu0 %v6090
  %6960 = vmatpush1.bf16.msra.mxu0 %v6089
  %6961 = vmatprep.subr.bf16.mxu0 %v6095
  %6962 = vmatpush1.bf16.msra.mxu0 %v6094
  %6963 = vmatprep.subr.bf16.mxu0 %v6100
  %6964 = vmatpush1.bf16.msra.mxu0 %v6099
  %6965 = vmatprep.subr.bf16.mxu0 %v6105
  %6966 = vmatpush1.bf16.msra.mxu0 %v6104
  %6967 = vmatprep.subr.bf16.mxu0 %v6110
  %6968 = vmatpush1.bf16.msra.mxu0 %v6109
  %6969 = vmatprep.subr.bf16.mxu0 %v6115
  %6970 = vmatpush1.bf16.msra.mxu0 %v6114
  %6971 = vmatprep.subr.bf16.mxu0 %v6120
  %6972 = vmatpush1.bf16.msra.mxu0 %v6119
  %6973 = vmatprep.subr.bf16.mxu0 %v6125
  %6974 = vmatpush1.bf16.msra.mxu0 %v6124
  %6975 = vmatprep.mubr.bf16.mxu0 %v5876
  %6976 = vmatmul.mubr.bf16.gmra.mrb[0].mxu0 %v5875
  %v6977 = vpop.f32.mrb[0].mxu0
  %v6978 = vadd.f32 %v6937, %v6977
  %v6979 = vpop.f32.mrb[0].mxu0
  %v6980 = vadd.f32 %v6939, %v6979
  %v6981 = vpop.f32.mrb[0].mxu0
  %v6982 = vpop.f32.mrb[0].mxu0
  %6983 = vdwg.mxu0
  %6984 = vmatprep.subr.bf16.mxu0 %v6130
  %6985 = vmatpush1.bf16.msra.mxu0 %v6129
  %6986 = vmatprep.subr.bf16.mxu0 %v6135
  %6987 = vmatpush1.bf16.msra.mxu0 %v6134
  %6988 = vmatprep.subr.bf16.mxu0 %v6140
  %6989 = vmatpush1.bf16.msra.mxu0 %v6139
  %6990 = vmatprep.subr.bf16.mxu0 %v6145
  %6991 = vmatpush1.bf16.msra.mxu0 %v6144
  %6992 = vmatprep.subr.bf16.mxu0 %v6150
  %6993 = vmatpush1.bf16.msra.mxu0 %v6149
  %6994 = vmatprep.subr.bf16.mxu0 %v6155
  %6995 = vmatpush1.bf16.msra.mxu0 %v6154
  %6996 = vmatprep.subr.bf16.mxu0 %v6160
  %6997 = vmatpush1.bf16.msra.mxu0 %v6159
  %6998 = vmatprep.subr.bf16.mxu0 %v6165
  %6999 = vmatpush1.bf16.msra.mxu0 %v6164
  %7000 = vmatprep.subr.bf16.mxu0 %v6170
  %7001 = vmatpush1.bf16.msra.mxu0 %v6169
  %7002 = vmatprep.subr.bf16.mxu0 %v6175
  %7003 = vmatpush1.bf16.msra.mxu0 %v6174
  %7004 = vmatprep.subr.bf16.mxu0 %v6180
  %7005 = vmatpush1.bf16.msra.mxu0 %v6179
  %7006 = vmatprep.subr.bf16.mxu0 %v6185
  %7007 = vmatpush1.bf16.msra.mxu0 %v6184
  %7008 = vmatprep.subr.bf16.mxu0 %v6190
  %7009 = vmatpush1.bf16.msra.mxu0 %v6189
  %7010 = vmatprep.subr.bf16.mxu0 %v6195
  %7011 = vmatpush1.bf16.msra.mxu0 %v6194
  %7012 = vmatprep.subr.bf16.mxu0 %v6200
  %7013 = vmatpush1.bf16.msra.mxu0 %v6199
  %7014 = vmatprep.subr.bf16.mxu0 %v6205
  %7015 = vmatpush1.bf16.msra.mxu0 %v6204
  %7016 = vmatprep.mubr.bf16.mxu0 %v5878
  %7017 = vmatmul.mubr.bf16.gmra.mrb[0].mxu0 %v5877
  %v7018 = vpop.f32.mrb[0].mxu0
  %v7019 = vadd.f32 %v6978, %v7018
  %v7020 = vpop.f32.mrb[0].mxu0
  %v7021 = vadd.f32 %v6980, %v7020
  %v7022 = vpop.f32.mrb[0].mxu0
  %v7023 = vpop.f32.mrb[0].mxu0
  %7024 = vdwg.mxu0
  %7025 = vmatprep.subr.bf16.mxu0 %v6210
  %7026 = vmatpush1.bf16.msra.mxu0 %v6209
  %7027 = vmatprep.subr.bf16.mxu0 %v6215
  %7028 = vmatpush1.bf16.msra.mxu0 %v6214
  %7029 = vmatprep.subr.bf16.mxu0 %v6220
  %7030 = vmatpush1.bf16.msra.mxu0 %v6219
  %7031 = vmatprep.subr.bf16.mxu0 %v6225
  %7032 = vmatpush1.bf16.msra.mxu0 %v6224
  %7033 = vmatprep.subr.bf16.mxu0 %v6230
  %7034 = vmatpush1.bf16.msra.mxu0 %v6229
  %7035 = vmatprep.subr.bf16.mxu0 %v6235
  %7036 = vmatpush1.bf16.msra.mxu0 %v6234
  %7037 = vmatprep.subr.bf16.mxu0 %v6240
  %7038 = vmatpush1.bf16.msra.mxu0 %v6239
  %7039 = vmatprep.subr.bf16.mxu0 %v6245
  %7040 = vmatpush1.bf16.msra.mxu0 %v6244
  %7041 = vmatprep.subr.bf16.mxu0 %v6250
  %7042 = vmatpush1.bf16.msra.mxu0 %v6249
  %7043 = vmatprep.subr.bf16.mxu0 %v6255
  %7044 = vmatpush1.bf16.msra.mxu0 %v6254
  %7045 = vmatprep.subr.bf16.mxu0 %v6260
  %7046 = vmatpush1.bf16.msra.mxu0 %v6259
  %7047 = vmatprep.subr.bf16.mxu0 %v6265
  %7048 = vmatpush1.bf16.msra.mxu0 %v6264
  %7049 = vmatprep.subr.bf16.mxu0 %v6270
  %7050 = vmatpush1.bf16.msra.mxu0 %v6269
  %7051 = vmatprep.subr.bf16.mxu0 %v6275
  %7052 = vmatpush1.bf16.msra.mxu0 %v6274
  %7053 = vmatprep.subr.bf16.mxu0 %v6280
  %7054 = vmatpush1.bf16.msra.mxu0 %v6279
  %7055 = vmatprep.subr.bf16.mxu0 %v6285
  %7056 = vmatpush1.bf16.msra.mxu0 %v6284
  %7057 = vmatprep.mubr.bf16.mxu0 %v5880
  %7058 = vmatmul.mubr.bf16.gmra.mrb[0].mxu0 %v5879
  %v7059 = vpop.f32.mrb[0].mxu0
  %v7060 = vadd.f32 %v7019, %v7059
  %v7061 = vpop.f32.mrb[0].mxu0
  %v7062 = vadd.f32 %v7021, %v7061
  %v7063 = vpop.f32.mrb[0].mxu0
  %v7064 = vpop.f32.mrb[0].mxu0
  %7065 = vdwg.mxu0
  %7066 = vmatprep.subr.bf16.mxu0 %v6290
  %7067 = vmatpush1.bf16.msra.mxu0 %v6289
  %7068 = vmatprep.subr.bf16.mxu0 %v6295
  %7069 = vmatpush1.bf16.msra.mxu0 %v6294
  %7070 = vmatprep.subr.bf16.mxu0 %v6300
  %7071 = vmatpush1.bf16.msra.mxu0 %v6299
  %7072 = vmatprep.subr.bf16.mxu0 %v6305
  %7073 = vmatpush1.bf16.msra.mxu0 %v6304
  %7074 = vmatprep.subr.bf16.mxu0 %v6310
  %7075 = vmatpush1.bf16.msra.mxu0 %v6309
  %7076 = vmatprep.subr.bf16.mxu0 %v6315
  %7077 = vmatpush1.bf16.msra.mxu0 %v6314
  %7078 = vmatprep.subr.bf16.mxu0 %v6320
  %7079 = vmatpush1.bf16.msra.mxu0 %v6319
  %7080 = vmatprep.subr.bf16.mxu0 %v6325
  %7081 = vmatpush1.bf16.msra.mxu0 %v6324
  %7082 = vmatprep.subr.bf16.mxu0 %v6330
  %7083 = vmatpush1.bf16.msra.mxu0 %v6329
  %7084 = vmatprep.subr.bf16.mxu0 %v6335
  %7085 = vmatpush1.bf16.msra.mxu0 %v6334
  %7086 = vmatprep.subr.bf16.mxu0 %v6340
  %7087 = vmatpush1.bf16.msra.mxu0 %v6339
  %7088 = vmatprep.subr.bf16.mxu0 %v6345
  %7089 = vmatpush1.bf16.msra.mxu0 %v6344
  %7090 = vmatprep.subr.bf16.mxu0 %v6350
  %7091 = vmatpush1.bf16.msra.mxu0 %v6349
  %7092 = vmatprep.subr.bf16.mxu0 %v6355
  %7093 = vmatpush1.bf16.msra.mxu0 %v6354
  %7094 = vmatprep.subr.bf16.mxu0 %v6360
  %7095 = vmatpush1.bf16.msra.mxu0 %v6359
  %7096 = vmatprep.subr.bf16.mxu0 %v6365
  %7097 = vmatpush1.bf16.msra.mxu0 %v6364
  %7098 = vmatprep.mubr.bf16.mxu0 %v5882
  %7099 = vmatmul.mubr.bf16.gmra.mrb[0].mxu0 %v5881
  %v7100 = vpop.f32.mrb[0].mxu0
  %v7101 = vadd.f32 %v7060, %v7100
  %v7102 = vpop.f32.mrb[0].mxu0
  %v7103 = vadd.f32 %v7062, %v7102
  %v7104 = vpop.f32.mrb[0].mxu0
  %v7105 = vpop.f32.mrb[0].mxu0
  %7106 = vdwg.mxu0
  %7107 = vmatprep.subr.bf16.mxu0 %v6370
  %7108 = vmatpush1.bf16.msra.mxu0 %v6369
  %7109 = vmatprep.subr.bf16.mxu0 %v6375
  %7110 = vmatpush1.bf16.msra.mxu0 %v6374
  %7111 = vmatprep.subr.bf16.mxu0 %v6380
  %7112 = vmatpush1.bf16.msra.mxu0 %v6379
  %7113 = vmatprep.subr.bf16.mxu0 %v6385
  %7114 = vmatpush1.bf16.msra.mxu0 %v6384
  %7115 = vmatprep.subr.bf16.mxu0 %v6390
  %7116 = vmatpush1.bf16.msra.mxu0 %v6389
  %7117 = vmatprep.subr.bf16.mxu0 %v6395
  %7118 = vmatpush1.bf16.msra.mxu0 %v6394
  %7119 = vmatprep.subr.bf16.mxu0 %v6400
  %7120 = vmatpush1.bf16.msra.mxu0 %v6399
  %7121 = vmatprep.subr.bf16.mxu0 %v6405
  %7122 = vmatpush1.bf16.msra.mxu0 %v6404
  %7123 = vmatprep.subr.bf16.mxu0 %v6410
  %7124 = vmatpush1.bf16.msra.mxu0 %v6409
  %7125 = vmatprep.subr.bf16.mxu0 %v6415
  %7126 = vmatpush1.bf16.msra.mxu0 %v6414
  %7127 = vmatprep.subr.bf16.mxu0 %v6420
  %7128 = vmatpush1.bf16.msra.mxu0 %v6419
  %7129 = vmatprep.subr.bf16.mxu0 %v6425
  %7130 = vmatpush1.bf16.msra.mxu0 %v6424
  %7131 = vmatprep.subr.bf16.mxu0 %v6430
  %7132 = vmatpush1.bf16.msra.mxu0 %v6429
  %7133 = vmatprep.subr.bf16.mxu0 %v6435
  %7134 = vmatpush1.bf16.msra.mxu0 %v6434
  %7135 = vmatprep.subr.bf16.mxu0 %v6440
  %7136 = vmatpush1.bf16.msra.mxu0 %v6439
  %7137 = vmatprep.subr.bf16.mxu0 %v6445
  %7138 = vmatpush1.bf16.msra.mxu0 %v6444
  %7139 = vmatprep.mubr.bf16.mxu0 %v5884
  %7140 = vmatmul.mubr.bf16.gmra.mrb[0].mxu0 %v5883
  %v7141 = vpop.f32.mrb[0].mxu0
  %v7142 = vadd.f32 %v7101, %v7141
  %v7143 = vpop.f32.mrb[0].mxu0
  %v7144 = vadd.f32 %v7103, %v7143
  %v7145 = vpop.f32.mrb[0].mxu0
  %v7146 = vpop.f32.mrb[0].mxu0
  %7147 = vdwg.mxu0
  %7148 = vmatprep.subr.bf16.mxu0 %v6450
  %7149 = vmatpush1.bf16.msra.mxu0 %v6449
  %7150 = vmatprep.subr.bf16.mxu0 %v6455
  %7151 = vmatpush1.bf16.msra.mxu0 %v6454
  %7152 = vmatprep.subr.bf16.mxu0 %v6460
  %7153 = vmatpush1.bf16.msra.mxu0 %v6459
  %7154 = vmatprep.subr.bf16.mxu0 %v6465
  %7155 = vmatpush1.bf16.msra.mxu0 %v6464
  %7156 = vmatprep.subr.bf16.mxu0 %v6470
  %7157 = vmatpush1.bf16.msra.mxu0 %v6469
  %7158 = vmatprep.subr.bf16.mxu0 %v6475
  %7159 = vmatpush1.bf16.msra.mxu0 %v6474
  %7160 = vmatprep.subr.bf16.mxu0 %v6480
  %7161 = vmatpush1.bf16.msra.mxu0 %v6479
  %7162 = vmatprep.subr.bf16.mxu0 %v6485
  %7163 = vmatpush1.bf16.msra.mxu0 %v6484
  %7164 = vmatprep.subr.bf16.mxu0 %v6490
  %7165 = vmatpush1.bf16.msra.mxu0 %v6489
  %7166 = vmatprep.subr.bf16.mxu0 %v6495
  %7167 = vmatpush1.bf16.msra.mxu0 %v6494
  %7168 = vmatprep.subr.bf16.mxu0 %v6500
  %7169 = vmatpush1.bf16.msra.mxu0 %v6499
  %7170 = vmatprep.subr.bf16.mxu0 0
  %7171 = vmatpush1.bf16.msra.mxu0 0
  %7172 = vmatprep.subr.bf16.mxu0 0
  %7173 = vmatpush1.bf16.msra.mxu0 0
  %7174 = vmatprep.subr.bf16.mxu0 0
  %7175 = vmatpush1.bf16.msra.mxu0 0
  %7176 = vmatprep.subr.bf16.mxu0 0
  %7177 = vmatpush1.bf16.msra.mxu0 0
  %7178 = vmatprep.subr.bf16.mxu0 0
  %7179 = vmatpush1.bf16.msra.mxu0 0
  %7180 = vmatprep.mubr.bf16.mxu0 %v6531
  %7181 = vmatmul.mubr.bf16.gmra.mrb[0].mxu0 %v5885
  %v7182 = vpop.f32.mrb[0].mxu0
  %v7183 = vadd.f32 %v7142, %v7182
  %v7184 = vpop.f32.mrb[0].mxu0
  %v7185 = vadd.f32 %v7144, %v7184
  %v7186 = vpop.f32.mrb[0].mxu0
  %v7187 = vpop.f32.mrb[0].mxu0
  %7188 = vdwg.mxu0
  %7189 = vmatprep.subr.bf16.mxu0 0
  %7190 = vmatpush1.bf16.msra.mxu0 %v5891
  %7191 = vmatprep.subr.bf16.mxu0 0
  %7192 = vmatpush1.bf16.msra.mxu0 %v5896
  %7193 = vmatprep.subr.bf16.mxu0 0
  %7194 = vmatpush1.bf16.msra.mxu0 %v5901
  %7195 = vmatprep.subr.bf16.mxu0 0
  %7196 = vmatpush1.bf16.msra.mxu0 %v5906
  %7197 = vmatprep.subr.bf16.mxu0 0
  %7198 = vmatpush1.bf16.msra.mxu0 %v5911
  %7199 = vmatprep.subr.bf16.mxu0 0
  %7200 = vmatpush1.bf16.msra.mxu0 %v5916
  %7201 = vmatprep.subr.bf16.mxu0 0
  %7202 = vmatpush1.bf16.msra.mxu0 %v5921
  %7203 = vmatprep.subr.bf16.mxu0 0
  %7204 = vmatpush1.bf16.msra.mxu0 %v5926
  %7205 = vmatprep.subr.bf16.mxu0 0
  %7206 = vmatpush1.bf16.msra.mxu0 %v5931
  %7207 = vmatprep.subr.bf16.mxu0 0
  %7208 = vmatpush1.bf16.msra.mxu0 %v5936
  %7209 = vmatprep.subr.bf16.mxu0 0
  %7210 = vmatpush1.bf16.msra.mxu0 %v5941
  %7211 = vmatprep.subr.bf16.mxu0 0
  %7212 = vmatpush1.bf16.msra.mxu0 %v5946
  %7213 = vmatprep.subr.bf16.mxu0 0
  %7214 = vmatpush1.bf16.msra.mxu0 %v5951
  %7215 = vmatprep.subr.bf16.mxu0 0
  %7216 = vmatpush1.bf16.msra.mxu0 %v5956
  %7217 = vmatprep.subr.bf16.mxu0 0
  %7218 = vmatpush1.bf16.msra.mxu0 %v5961
  %7219 = vmatprep.subr.bf16.mxu0 0
  %7220 = vmatpush1.bf16.msra.mxu0 %v5966
  %7221 = vmatprep.mubr.bf16.mxu0 %v5872
  %7222 = vmatmul.mubr.bf16.gmra.mrb[0].mxu0 %v5871
  %v7223 = vpop.f32.mrb[0].mxu0
  %v7224 = vadd.f32 %v6523, %v7223
  %v7225 = vpop.f32.mrb[0].mxu0
  %v7226 = vpop.f32.mrb[0].mxu0
  %v7227 = vpop.f32.mrb[0].mxu0
  %7228 = vdwg.mxu0
  %7229 = vmatprep.subr.bf16.mxu0 0
  %7230 = vmatpush1.bf16.msra.mxu0 %v5971
  %7231 = vmatprep.subr.bf16.mxu0 0
  %7232 = vmatpush1.bf16.msra.mxu0 %v5976
  %7233 = vmatprep.subr.bf16.mxu0 0
  %7234 = vmatpush1.bf16.msra.mxu0 %v5981
  %7235 = vmatprep.subr.bf16.mxu0 0
  %7236 = vmatpush1.bf16.msra.mxu0 %v5986
  %7237 = vmatprep.subr.bf16.mxu0 0
  %7238 = vmatpush1.bf16.msra.mxu0 %v5991
  %7239 = vmatprep.subr.bf16.mxu0 0
  %7240 = vmatpush1.bf16.msra.mxu0 %v5996
  %7241 = vmatprep.subr.bf16.mxu0 0
  %7242 = vmatpush1.bf16.msra.mxu0 %v6001
  %7243 = vmatprep.subr.bf16.mxu0 0
  %7244 = vmatpush1.bf16.msra.mxu0 %v6006
  %7245 = vmatprep.subr.bf16.mxu0 0
  %7246 = vmatpush1.bf16.msra.mxu0 %v6011
  %7247 = vmatprep.subr.bf16.mxu0 0
  %7248 = vmatpush1.bf16.msra.mxu0 %v6016
  %7249 = vmatprep.subr.bf16.mxu0 0
  %7250 = vmatpush1.bf16.msra.mxu0 %v6021
  %7251 = vmatprep.subr.bf16.mxu0 0
  %7252 = vmatpush1.bf16.msra.mxu0 %v6026
  %7253 = vmatprep.subr.bf16.mxu0 0
  %7254 = vmatpush1.bf16.msra.mxu0 %v6031
  %7255 = vmatprep.subr.bf16.mxu0 0
  %7256 = vmatpush1.bf16.msra.mxu0 %v6036
  %7257 = vmatprep.subr.bf16.mxu0 0
  %7258 = vmatpush1.bf16.msra.mxu0 %v6041
  %7259 = vmatprep.subr.bf16.mxu0 0
  %7260 = vmatpush1.bf16.msra.mxu0 %v6046
  %7261 = vmatprep.mubr.bf16.mxu0 %v5874
  %7262 = vmatmul.mubr.bf16.gmra.mrb[0].mxu0 %v5873
  %v7263 = vpop.f32.mrb[0].mxu0
  %v7264 = vadd.f32 %v7224, %v7263
  %v7265 = vpop.f32.mrb[0].mxu0
  %v7266 = vpop.f32.mrb[0].mxu0
  %v7267 = vpop.f32.mrb[0].mxu0
  %7268 = vdwg.mxu0
  %7269 = vmatprep.subr.bf16.mxu0 0
  %7270 = vmatpush1.bf16.msra.mxu0 %v6051
  %7271 = vmatprep.subr.bf16.mxu0 0
  %7272 = vmatpush1.bf16.msra.mxu0 %v6056
  %7273 = vmatprep.subr.bf16.mxu0 0
  %7274 = vmatpush1.bf16.msra.mxu0 %v6061
  %7275 = vmatprep.subr.bf16.mxu0 0
  %7276 = vmatpush1.bf16.msra.mxu0 %v6066
  %7277 = vmatprep.subr.bf16.mxu0 0
  %7278 = vmatpush1.bf16.msra.mxu0 %v6071
  %7279 = vmatprep.subr.bf16.mxu0 0
  %7280 = vmatpush1.bf16.msra.mxu0 %v6076
  %7281 = vmatprep.subr.bf16.mxu0 0
  %7282 = vmatpush1.bf16.msra.mxu0 %v6081
  %7283 = vmatprep.subr.bf16.mxu0 0
  %7284 = vmatpush1.bf16.msra.mxu0 %v6086
  %7285 = vmatprep.subr.bf16.mxu0 0
  %7286 = vmatpush1.bf16.msra.mxu0 %v6091
  %7287 = vmatprep.subr.bf16.mxu0 0
  %7288 = vmatpush1.bf16.msra.mxu0 %v6096
  %7289 = vmatprep.subr.bf16.mxu0 0
  %7290 = vmatpush1.bf16.msra.mxu0 %v6101
  %7291 = vmatprep.subr.bf16.mxu0 0
  %7292 = vmatpush1.bf16.msra.mxu0 %v6106
  %7293 = vmatprep.subr.bf16.mxu0 0
  %7294 = vmatpush1.bf16.msra.mxu0 %v6111
  %7295 = vmatprep.subr.bf16.mxu0 0
  %7296 = vmatpush1.bf16.msra.mxu0 %v6116
  %7297 = vmatprep.subr.bf16.mxu0 0
  %7298 = vmatpush1.bf16.msra.mxu0 %v6121
  %7299 = vmatprep.subr.bf16.mxu0 0
  %7300 = vmatpush1.bf16.msra.mxu0 %v6126
  %7301 = vmatprep.mubr.bf16.mxu0 %v5876
  %7302 = vmatmul.mubr.bf16.gmra.mrb[0].mxu0 %v5875
  %v7303 = vpop.f32.mrb[0].mxu0
  %v7304 = vadd.f32 %v7264, %v7303
  %v7305 = vpop.f32.mrb[0].mxu0
  %v7306 = vpop.f32.mrb[0].mxu0
  %v7307 = vpop.f32.mrb[0].mxu0
  %7308 = vdwg.mxu0
  %7309 = vmatprep.subr.bf16.mxu0 0
  %7310 = vmatpush1.bf16.msra.mxu0 %v6131
  %7311 = vmatprep.subr.bf16.mxu0 0
  %7312 = vmatpush1.bf16.msra.mxu0 %v6136
  %7313 = vmatprep.subr.bf16.mxu0 0
  %7314 = vmatpush1.bf16.msra.mxu0 %v6141
  %7315 = vmatprep.subr.bf16.mxu0 0
  %7316 = vmatpush1.bf16.msra.mxu0 %v6146
  %7317 = vmatprep.subr.bf16.mxu0 0
  %7318 = vmatpush1.bf16.msra.mxu0 %v6151
  %7319 = vmatprep.subr.bf16.mxu0 0
  %7320 = vmatpush1.bf16.msra.mxu0 %v6156
  %7321 = vmatprep.subr.bf16.mxu0 0
  %7322 = vmatpush1.bf16.msra.mxu0 %v6161
  %7323 = vmatprep.subr.bf16.mxu0 0
  %7324 = vmatpush1.bf16.msra.mxu0 %v6166
  %7325 = vmatprep.subr.bf16.mxu0 0
  %7326 = vmatpush1.bf16.msra.mxu0 %v6171
  %7327 = vmatprep.subr.bf16.mxu0 0
  %7328 = vmatpush1.bf16.msra.mxu0 %v6176
  %7329 = vmatprep.subr.bf16.mxu0 0
  %7330 = vmatpush1.bf16.msra.mxu0 %v6181
  %7331 = vmatprep.subr.bf16.mxu0 0
  %7332 = vmatpush1.bf16.msra.mxu0 %v6186
  %7333 = vmatprep.subr.bf16.mxu0 0
  %7334 = vmatpush1.bf16.msra.mxu0 %v6191
  %7335 = vmatprep.subr.bf16.mxu0 0
  %7336 = vmatpush1.bf16.msra.mxu0 %v6196
  %7337 = vmatprep.subr.bf16.mxu0 0
  %7338 = vmatpush1.bf16.msra.mxu0 %v6201
  %7339 = vmatprep.subr.bf16.mxu0 0
  %7340 = vmatpush1.bf16.msra.mxu0 %v6206
  %7341 = vmatprep.mubr.bf16.mxu0 %v5878
  %7342 = vmatmul.mubr.bf16.gmra.mrb[0].mxu0 %v5877
  %v7343 = vpop.f32.mrb[0].mxu0
  %v7344 = vadd.f32 %v7304, %v7343
  %v7345 = vpop.f32.mrb[0].mxu0
  %v7346 = vpop.f32.mrb[0].mxu0
  %v7347 = vpop.f32.mrb[0].mxu0
  %7348 = vdwg.mxu0
  %7349 = vmatprep.subr.bf16.mxu0 0
  %7350 = vmatpush1.bf16.msra.mxu0 %v6211
  %7351 = vmatprep.subr.bf16.mxu0 0
  %7352 = vmatpush1.bf16.msra.mxu0 %v6216
  %7353 = vmatprep.subr.bf16.mxu0 0
  %7354 = vmatpush1.bf16.msra.mxu0 %v6221
  %7355 = vmatprep.subr.bf16.mxu0 0
  %7356 = vmatpush1.bf16.msra.mxu0 %v6226
  %7357 = vmatprep.subr.bf16.mxu0 0
  %7358 = vmatpush1.bf16.msra.mxu0 %v6231
  %7359 = vmatprep.subr.bf16.mxu0 0
  %7360 = vmatpush1.bf16.msra.mxu0 %v6236
  %7361 = vmatprep.subr.bf16.mxu0 0
  %7362 = vmatpush1.bf16.msra.mxu0 %v6241
  %7363 = vmatprep.subr.bf16.mxu0 0
  %7364 = vmatpush1.bf16.msra.mxu0 %v6246
  %7365 = vmatprep.subr.bf16.mxu0 0
  %7366 = vmatpush1.bf16.msra.mxu0 %v6251
  %7367 = vmatprep.subr.bf16.mxu0 0
  %7368 = vmatpush1.bf16.msra.mxu0 %v6256
  %7369 = vmatprep.subr.bf16.mxu0 0
  %7370 = vmatpush1.bf16.msra.mxu0 %v6261
  %7371 = vmatprep.subr.bf16.mxu0 0
  %7372 = vmatpush1.bf16.msra.mxu0 %v6266
  %7373 = vmatprep.subr.bf16.mxu0 0
  %7374 = vmatpush1.bf16.msra.mxu0 %v6271
  %7375 = vmatprep.subr.bf16.mxu0 0
  %7376 = vmatpush1.bf16.msra.mxu0 %v6276
  %7377 = vmatprep.subr.bf16.mxu0 0
  %7378 = vmatpush1.bf16.msra.mxu0 %v6281
  %7379 = vmatprep.subr.bf16.mxu0 0
  %7380 = vmatpush1.bf16.msra.mxu0 %v6286
  %7381 = vmatprep.mubr.bf16.mxu0 %v5880
  %7382 = vmatmul.mubr.bf16.gmra.mrb[0].mxu0 %v5879
  %v7383 = vpop.f32.mrb[0].mxu0
  %v7384 = vadd.f32 %v7344, %v7383
  %v7385 = vpop.f32.mrb[0].mxu0
  %v7386 = vpop.f32.mrb[0].mxu0
  %v7387 = vpop.f32.mrb[0].mxu0
  %7388 = vdwg.mxu0
  %7389 = vmatprep.subr.bf16.mxu0 0
  %7390 = vmatpush1.bf16.msra.mxu0 %v6291
  %7391 = vmatprep.subr.bf16.mxu0 0
  %7392 = vmatpush1.bf16.msra.mxu0 %v6296
  %7393 = vmatprep.subr.bf16.mxu0 0
  %7394 = vmatpush1.bf16.msra.mxu0 %v6301
  %7395 = vmatprep.subr.bf16.mxu0 0
  %7396 = vmatpush1.bf16.msra.mxu0 %v6306
  %7397 = vmatprep.subr.bf16.mxu0 0
  %7398 = vmatpush1.bf16.msra.mxu0 %v6311
  %7399 = vmatprep.subr.bf16.mxu0 0
  %7400 = vmatpush1.bf16.msra.mxu0 %v6316
  %7401 = vmatprep.subr.bf16.mxu0 0
  %7402 = vmatpush1.bf16.msra.mxu0 %v6321
  %7403 = vmatprep.subr.bf16.mxu0 0
  %7404 = vmatpush1.bf16.msra.mxu0 %v6326
  %7405 = vmatprep.subr.bf16.mxu0 0
  %7406 = vmatpush1.bf16.msra.mxu0 %v6331
  %7407 = vmatprep.subr.bf16.mxu0 0
  %7408 = vmatpush1.bf16.msra.mxu0 %v6336
  %7409 = vmatprep.subr.bf16.mxu0 0
  %7410 = vmatpush1.bf16.msra.mxu0 %v6341
  %7411 = vmatprep.subr.bf16.mxu0 0
  %7412 = vmatpush1.bf16.msra.mxu0 %v6346
  %7413 = vmatprep.subr.bf16.mxu0 0
  %7414 = vmatpush1.bf16.msra.mxu0 %v6351
  %7415 = vmatprep.subr.bf16.mxu0 0
  %7416 = vmatpush1.bf16.msra.mxu0 %v6356
  %7417 = vmatprep.subr.bf16.mxu0 0
  %7418 = vmatpush1.bf16.msra.mxu0 %v6361
  %7419 = vmatprep.subr.bf16.mxu0 0
  %7420 = vmatpush1.bf16.msra.mxu0 %v6366
  %7421 = vmatprep.mubr.bf16.mxu0 %v5882
  %7422 = vmatmul.mubr.bf16.gmra.mrb[0].mxu0 %v5881
  %v7423 = vpop.f32.mrb[0].mxu0
  %v7424 = vadd.f32 %v7384, %v7423
  %v7425 = vpop.f32.mrb[0].mxu0
  %v7426 = vpop.f32.mrb[0].mxu0
  %v7427 = vpop.f32.mrb[0].mxu0
  %7428 = vdwg.mxu0
  %7429 = vmatprep.subr.bf16.mxu0 0
  %7430 = vmatpush1.bf16.msra.mxu0 %v6371
  %7431 = vmatprep.subr.bf16.mxu0 0
  %7432 = vmatpush1.bf16.msra.mxu0 %v6376
  %7433 = vmatprep.subr.bf16.mxu0 0
  %7434 = vmatpush1.bf16.msra.mxu0 %v6381
  %7435 = vmatprep.subr.bf16.mxu0 0
  %7436 = vmatpush1.bf16.msra.mxu0 %v6386
  %7437 = vmatprep.subr.bf16.mxu0 0
  %7438 = vmatpush1.bf16.msra.mxu0 %v6391
  %7439 = vmatprep.subr.bf16.mxu0 0
  %7440 = vmatpush1.bf16.msra.mxu0 %v6396
  %7441 = vmatprep.subr.bf16.mxu0 0
  %7442 = vmatpush1.bf16.msra.mxu0 %v6401
  %7443 = vmatprep.subr.bf16.mxu0 0
  %7444 = vmatpush1.bf16.msra.mxu0 %v6406
  %7445 = vmatprep.subr.bf16.mxu0 0
  %7446 = vmatpush1.bf16.msra.mxu0 %v6411
  %7447 = vmatprep.subr.bf16.mxu0 0
  %7448 = vmatpush1.bf16.msra.mxu0 %v6416
  %7449 = vmatprep.subr.bf16.mxu0 0
  %7450 = vmatpush1.bf16.msra.mxu0 %v6421
  %7451 = vmatprep.subr.bf16.mxu0 0
  %7452 = vmatpush1.bf16.msra.mxu0 %v6426
  %7453 = vmatprep.subr.bf16.mxu0 0
  %7454 = vmatpush1.bf16.msra.mxu0 %v6431
  %7455 = vmatprep.subr.bf16.mxu0 0
  %7456 = vmatpush1.bf16.msra.mxu0 %v6436
  %7457 = vmatprep.subr.bf16.mxu0 0
  %7458 = vmatpush1.bf16.msra.mxu0 %v6441
  %7459 = vmatprep.subr.bf16.mxu0 0
  %7460 = vmatpush1.bf16.msra.mxu0 %v6446
  %7461 = vmatprep.mubr.bf16.mxu0 %v5884
  %7462 = vmatmul.mubr.bf16.gmra.mrb[0].mxu0 %v5883
  %v7463 = vpop.f32.mrb[0].mxu0
  %v7464 = vadd.f32 %v7424, %v7463
  %v7465 = vpop.f32.mrb[0].mxu0
  %v7466 = vpop.f32.mrb[0].mxu0
  %v7467 = vpop.f32.mrb[0].mxu0
  %7468 = vdwg.mxu0
  %7469 = vmatprep.subr.bf16.mxu0 0
  %7470 = vmatpush1.bf16.msra.mxu0 %v6451
  %7471 = vmatprep.subr.bf16.mxu0 0
  %7472 = vmatpush1.bf16.msra.mxu0 %v6456
  %7473 = vmatprep.subr.bf16.mxu0 0
  %7474 = vmatpush1.bf16.msra.mxu0 %v6461
  %7475 = vmatprep.subr.bf16.mxu0 0
  %7476 = vmatpush1.bf16.msra.mxu0 %v6466
  %7477 = vmatprep.subr.bf16.mxu0 0
  %7478 = vmatpush1.bf16.msra.mxu0 %v6471
  %7479 = vmatprep.subr.bf16.mxu0 0
  %7480 = vmatpush1.bf16.msra.mxu0 %v6476
  %7481 = vmatprep.subr.bf16.mxu0 0
  %7482 = vmatpush1.bf16.msra.mxu0 %v6481
  %7483 = vmatprep.subr.bf16.mxu0 0
  %7484 = vmatpush1.bf16.msra.mxu0 %v6486
  %7485 = vmatprep.subr.bf16.mxu0 0
  %7486 = vmatpush1.bf16.msra.mxu0 %v6491
  %7487 = vmatprep.subr.bf16.mxu0 0
  %7488 = vmatpush1.bf16.msra.mxu0 %v6496
  %7489 = vmatprep.subr.bf16.mxu0 0
  %7490 = vmatpush1.bf16.msra.mxu0 %v6501
  %7491 = vmatprep.subr.bf16.mxu0 0
  %7492 = vmatpush1.bf16.msra.mxu0 0
  %7493 = vmatprep.subr.bf16.mxu0 0
  %7494 = vmatpush1.bf16.msra.mxu0 0
  %7495 = vmatprep.subr.bf16.mxu0 0
  %7496 = vmatpush1.bf16.msra.mxu0 0
  %7497 = vmatprep.subr.bf16.mxu0 0
  %7498 = vmatpush1.bf16.msra.mxu0 0
  %7499 = vmatprep.subr.bf16.mxu0 0
  %7500 = vmatpush1.bf16.msra.mxu0 0
  %7501 = vmatprep.mubr.bf16.mxu0 %v6531
  %7502 = vmatmul.mubr.bf16.gmra.mrb[0].mxu0 %v5885
  %v7503 = vpop.f32.mrb[0].mxu0
  %v7504 = vadd.f32 %v7464, %v7503
  %v7505 = vpop.f32.mrb[0].mxu0
  %v7506 = vpop.f32.mrb[0].mxu0
  %v7507 = vpop.f32.mrb[0].mxu0
  %7508 = vdwg.mxu0
  %v7509 = vmul.f32 %v6855, 0.2
  %v7510 = vmul.f32 %v6857, 0.2
  %v7511 = vmul.f32 %v7183, 0.2
  %v7512 = vmul.f32 %v7185, 0.2
  %v7513 = vmul.f32 %v7504, 0.2
  %v7514 = vmax.f32 %v6855, %v7509
  %v7515 = vmax.f32 %v6857, %v7510
  %v7516 = vmax.f32 %v7183, %v7511
  %v7517 = vmax.f32 %v7185, %v7512
  %v7518 = vmax.f32 %v7504, %v7513
  %v7519 = vld [vmem:[%s6] sm:$0x1f]
  %v7521 = vlaneseq
  %v7522 = vshrl.u32 %v7521, 7
  %v7523 = vsub.s32 0, %v7522
  %v7524 = vrot.slane %v7519, %v7523
  %v7525 = vlaneseq
  %v7526 = vshrl.u32 %v7525, 7
  %v7527 = vsub.s32 1, %v7526
  %v7528 = vrot.slane %v7519, %v7527
  %v7529 = vlaneseq
  %v7530 = vshrl.u32 %v7529, 7
  %v7531 = vsub.s32 2, %v7530
  %v7532 = vrot.slane %v7519, %v7531
  %v7533 = vlaneseq
  %v7534 = vshrl.u32 %v7533, 7
  %v7535 = vsub.s32 3, %v7534
  %v7536 = vrot.slane %v7519, %v7535
  %v7537 = vlaneseq
  %v7538 = vshrl.u32 %v7537, 7
  %v7539 = vsub.s32 4, %v7538
  %v7540 = vrot.slane %v7519, %v7539
  %v7546 = vmul.f32 %v7514, %v7524
  %v7547 = vmul.f32 %v7515, %v7528
  %v7548 = vmul.f32 %v7516, %v7532
  %v7549 = vmul.f32 %v7517, %v7536
  %v7550 = vmul.f32 %v7518, %v7540
  %vm7551 = vcmask 1041408
  %v7552 = vsel %vm7551, %v7546, 0.0
  %v7553 = vsel %vm7551, %v7547, 0.0
  %v7554 = vadd.f32 %v7552, %v7553
  %v7555 = vsel %vm7551, %v7548, 0.0
  %v7556 = vadd.f32 %v7554, %v7555
  %v7557 = vsel %vm7551, %v7549, 0.0
  %v7558 = vadd.f32 %v7556, %v7557
  %vm7559 = vcmask 713728
  %v7560 = vsel %vm7559, %v7550, 0.0
  %v7561 = vadd.f32 %v7558, %v7560
  %7562 = vadd.xlane.f32.xlu0 %v7561
  %v7563 = vpop.xlane.xlu0 %7562
  %v7564 = vld [vmem:[#allocation5] sm:$0x1]
  %v7566 = vlaneseq
  %v7567 = vshrl.u32 %v7566, 7
  %v7568 = vsub.s32 0, %v7567
  %v7569 = vrot.slane %v7564, %v7568
  %v7571 = vadd.f32 %v7563, %v7569
  %vm7572 = vcmask 1024
  %7573 = vst.msk [vmem:[%s8] sm:$0x3] %vm7572, %v7571
  // Predicated region
  $region78: #{discriminator_forward.1} parent=0 // pred_check
    _
  $region79: #{discriminator_forward.1} parent=0 // pred_check_branch
    %7575 = sbr.rel (0) target = $region81
  $region80: #{discriminator_forward.1} parent=0 // pred_region
    _
  $region81: #{discriminator_forward.1} parent=0 // pred_fallthru
    _
  // Predicated region
  $region82: #{discriminator_forward.1} parent=0 // pred_check
    _
  $region83: #{discriminator_forward.1} parent=0 // pred_check_branch
    %7577 = sbr.rel (0) target = $region85
  $region84: #{discriminator_forward.1} parent=0 // pred_region
    _
  $region85: #{discriminator_forward.1} parent=0 // pred_fallthru
    _
  %7578 = vsyncmov [#allocation4]
  %s7579 = vpop.sfrf %7578
  %p7580 = scmp.eq.s32.totalorder %s7579, 0
  %p7581 = pneg %p7580
  %7583 = shalt.err (%p7581)

</llo_original>
